<compile_context>
chip_gen: v5e
topology: v5e:2x2
jax: 0.10.0
libtpu: 0.0.40
codegen_flags: <defaults>
</compile_context>

<pallas_src>
import functools
import math

import jax
import jax.numpy as jnp
import numpy as np
from jax.experimental import pallas as pl
from jax.experimental.pallas import tpu as pltpu

# Model hyper-parameters fixed by FoldQNet.
IN_DIM = 222
EMBED_DIM = 256
NUM_HEADS = 8
HEAD_DIM = EMBED_DIM // NUM_HEADS
TRUNK_FC_DIM = 1024
NUM_LAYERS = 16
Q_FC_DIM = 1024
NUM_ACTIONS = 288
SCALE = 1.0 / math.sqrt(HEAD_DIM)
NEG_INF = -1e30

_VMEM = pl.BlockSpec(memory_space=pltpu.MemorySpace.VMEM)


# --------------------------- in-kernel attention core ----------------------- #
def _mh_attention(q, k, v, bias):
    """Multi-head attention core.  q: (M, E), k/v: (S, E), bias: (M, S) additive.

    bf16 matmuls with f32 accumulation, f32 softmax, heads merged back along
    the lane axis -> (M, E) f32.
    """
    outs = []
    for h in range(NUM_HEADS):
        c0, c1 = h * HEAD_DIM, (h + 1) * HEAD_DIM
        qh = q[:, c0:c1].astype(jnp.bfloat16)
        kh = k[:, c0:c1].astype(jnp.bfloat16)
        vh = v[:, c0:c1].astype(jnp.bfloat16)
        # s[m, n] = sum_d qh[m, d] * kh[n, d]   (q @ k^T)
        s = jax.lax.dot_general(qh, kh, (((1,), (1,)), ((), ())),
                                preferred_element_type=jnp.float32)
        s = s * SCALE + bias
        m = jnp.max(s, axis=-1, keepdims=True)
        p = jnp.exp(s - m)
        p = p * pl.reciprocal(jnp.sum(p, axis=-1, keepdims=True), approx=True)
        outs.append(jnp.dot(p.astype(jnp.bfloat16), vh,
                            preferred_element_type=jnp.float32))
    return jnp.concatenate(outs, axis=-1)


# ------------------------------ fused trunk kernel -------------------------- #
def _trunk_kernel(mask_ref, obs_ref, encw_ref, encb_ref, qtok_ref,
                  wqkv_ref, bqkv_ref, wo_ref, bo_ref,
                  wfc1_ref, bfc1_ref, wfc2_ref, bfc2_ref,
                  xout_ref, xs_ref, *, n, l_seq):
    t = l_seq + 1
    layer = pl.program_id(0)

    @pl.when(layer == 0)
    def _():
        # Encoder + q-token concat, executed once before layer 0.
        enc = jnp.dot(obs_ref[...].astype(jnp.bfloat16), encw_ref[...],
                      preferred_element_type=jnp.float32) + encb_ref[...]
        for b in range(n):
            xs_ref[pl.ds(b * t, 1), :] = qtok_ref[...]
            xs_ref[pl.ds(b * t + 1, l_seq), :] = enc[b * l_seq:(b + 1) * l_seq, :]

    x = xs_ref[...]                                            # (n*t, E) f32
    # Fused QKV projection (one (E, 3E) matmul).
    qkv = jnp.dot(x.astype(jnp.bfloat16), wqkv_ref[0],
                  preferred_element_type=jnp.float32) + bqkv_ref[0]
    attn = _mh_attention(qkv[:, :EMBED_DIM],
                         qkv[:, EMBED_DIM:2 * EMBED_DIM],
                         qkv[:, 2 * EMBED_DIM:],
                         mask_ref[...])
    # Output projection + residual.
    x = x + (jnp.dot(attn.astype(jnp.bfloat16), wo_ref[0],
                     preferred_element_type=jnp.float32) + bo_ref[0])
    # FFN + residual.
    h = jnp.dot(x.astype(jnp.bfloat16), wfc1_ref[0],
                preferred_element_type=jnp.float32) + bfc1_ref[0]
    h = jnp.maximum(h, 0.0)
    x = x + (jnp.dot(h.astype(jnp.bfloat16), wfc2_ref[0],
                     preferred_element_type=jnp.float32) + bfc2_ref[0])
    xs_ref[...] = x
    xout_ref[...] = x


# ------------------------------ fused q-head kernel ------------------------- #
def _qhead_kernel(x_ref, maskq_ref, wqkv_ref, bqkv_ref, wo_ref, bo_ref,
                  w1_ref, b1_ref, w2_ref, b2_ref, w3_ref, b3_ref,
                  o_ref, *, n, t):
    xb = x_ref[...].astype(jnp.bfloat16)
    qkv = jnp.dot(xb, wqkv_ref[...],
                  preferred_element_type=jnp.float32) + bqkv_ref[...]
    # Queries: the q-token row of every batch element (rows b*t of the flat layout).
    q_rows = jnp.concatenate(
        [qkv[b * t:b * t + 1, :EMBED_DIM] for b in range(n)], axis=0)   # (n, E)
    attn = _mh_attention(q_rows,
                         qkv[:, EMBED_DIM:2 * EMBED_DIM],
                         qkv[:, 2 * EMBED_DIM:],
                         maskq_ref[...])
    y = jnp.dot(attn.astype(jnp.bfloat16), wo_ref[...],
                preferred_element_type=jnp.float32) + bo_ref[...]
    h = jnp.maximum(jnp.dot(y.astype(jnp.bfloat16), w1_ref[...],
                            preferred_element_type=jnp.float32) + b1_ref[...], 0.0)
    y = jnp.dot(h.astype(jnp.bfloat16), w2_ref[...],
                preferred_element_type=jnp.float32) + b2_ref[...]
    o_ref[...] = jnp.dot(y.astype(jnp.bfloat16), w3_ref[...],
                         preferred_element_type=jnp.float32) + b3_ref[...]


# ------------------------------- pallas wrappers ---------------------------- #
def _build_masks(mask, n, l_seq):
    t = l_seq + 1
    nt = n * t
    kpm = jnp.concatenate([jnp.zeros((n, 1), dtype=bool), mask.astype(bool)],
                          axis=1)                                   # (n, t)
    key_valid = jnp.logical_not(kpm).reshape(nt)                    # (nt,)
    batch_of = jnp.repeat(jnp.arange(n), t)                         # (nt,)
    same = batch_of[:, None] == batch_of[None, :]
    full_bias = jnp.where(same & key_valid[None, :], 0.0, NEG_INF).astype(jnp.float32)
    q_ok = (jnp.arange(n)[:, None] == batch_of[None, :]) & key_valid[None, :]
    q_bias = jnp.where(q_ok, 0.0, NEG_INF).astype(jnp.float32)      # (n, nt)
    return full_bias, q_bias


def forward_pallas(params, obs, mask):
    """obs: (L, N, IN_DIM) f32, mask: (N, L) bool (True = padded)."""
    l_seq, n, _ = obs.shape
    t = l_seq + 1
    nt = n * t
    obs_bm = jnp.transpose(obs, (1, 0, 2)).reshape(n * l_seq, IN_DIM)
    full_bias, q_bias = _build_masks(mask, n, l_seq)
    trunk = params["trunk"]

    const2 = lambda l: (0, 0)
    layer3 = lambda l: (l, 0, 0)

    x = pl.pallas_call(
        functools.partial(_trunk_kernel, n=n, l_seq=l_seq),
        out_shape=jax.ShapeDtypeStruct((nt, EMBED_DIM), jnp.float32),
        grid=(NUM_LAYERS,),
        in_specs=[
            pl.BlockSpec((nt, nt), const2),                       # additive attn mask
            pl.BlockSpec((n * l_seq, IN_DIM), const2),            # obs (batch-major)
            pl.BlockSpec((IN_DIM, EMBED_DIM), const2),            # encoder W
            pl.BlockSpec((1, EMBED_DIM), const2),                 # encoder b
            pl.BlockSpec((1, EMBED_DIM), const2),                 # q_token
            pl.BlockSpec((1, EMBED_DIM, 3 * EMBED_DIM), layer3),  # fused Wqkv
            pl.BlockSpec((1, 1, 3 * EMBED_DIM), layer3),          # fused bqkv
            pl.BlockSpec((1, EMBED_DIM, EMBED_DIM), layer3),      # Wo
            pl.BlockSpec((1, 1, EMBED_DIM), layer3),              # bo
            pl.BlockSpec((1, EMBED_DIM, TRUNK_FC_DIM), layer3),   # W_fc1
            pl.BlockSpec((1, 1, TRUNK_FC_DIM), layer3),           # b_fc1
            pl.BlockSpec((1, TRUNK_FC_DIM, EMBED_DIM), layer3),   # W_fc2
            pl.BlockSpec((1, 1, EMBED_DIM), layer3),              # b_fc2
        ],
        out_specs=pl.BlockSpec((nt, EMBED_DIM), const2),
        scratch_shapes=[pltpu.VMEM((nt, EMBED_DIM), jnp.float32)],
        compiler_params=pltpu.CompilerParams(
            dimension_semantics=("arbitrary",),
            vmem_limit_bytes=32 * 1024 * 1024),
    )(full_bias, obs_bm, params["enc_w"], params["enc_b"], params["q_token"],
      trunk["w_qkv"], trunk["b_qkv"], trunk["w_o"], trunk["b_o"],
      trunk["w_fc1"], trunk["b_fc1"], trunk["w_fc2"], trunk["b_fc2"])

    qa = params["q_attn"]
    q = pl.pallas_call(
        functools.partial(_qhead_kernel, n=n, t=t),
        out_shape=jax.ShapeDtypeStruct((n, NUM_ACTIONS), jnp.float32),
        in_specs=[_VMEM] * 12,
        out_specs=_VMEM,
    )(x, q_bias, qa["w_qkv"], qa["b_qkv"], qa["w_o"], qa["b_o"],
      params["q_fc1_w"], params["q_fc1_b"], params["q_fc2_w"], params["q_fc2_b"],
      params["q_out_w"], params["q_out_b"])
    return q                                                     # (N, 288)


# ----------------------------- pure-JAX reference --------------------------- #
def _lin_ref(x, w, b):
    return jnp.dot(x.astype(jnp.bfloat16), w,
                   preferred_element_type=jnp.float32) + b


def _mha_ref(xq, xkv, kbias, p):
    tq, nn, _ = xq.shape
    tk = xkv.shape[0]
    qkv_q = _lin_ref(xq.reshape(tq * nn, EMBED_DIM), p["w_qkv"], p["b_qkv"])
    qkv_k = _lin_ref(xkv.reshape(tk * nn, EMBED_DIM), p["w_qkv"], p["b_qkv"])
    q = qkv_q[:, :EMBED_DIM].reshape(tq, nn, NUM_HEADS, HEAD_DIM).astype(jnp.bfloat16)
    k = qkv_k[:, EMBED_DIM:2 * EMBED_DIM].reshape(tk, nn, NUM_HEADS, HEAD_DIM).astype(jnp.bfloat16)
    v = qkv_k[:, 2 * EMBED_DIM:].reshape(tk, nn, NUM_HEADS, HEAD_DIM).astype(jnp.bfloat16)
    s = jnp.einsum("qnhd,knhd->nhqk", q, k,
                   preferred_element_type=jnp.float32) * SCALE
    s = s + kbias[:, None, None, :]
    m = jnp.max(s, axis=-1, keepdims=True)
    pr = jnp.exp(s - m)
    pr = pr / jnp.sum(pr, axis=-1, keepdims=True)
    o = jnp.einsum("nhqk,knhd->qnhd", pr.astype(jnp.bfloat16), v,
                   preferred_element_type=jnp.float32).reshape(tq * nn, EMBED_DIM)
    return _lin_ref(o, p["w_o"], p["b_o"]).reshape(tq, nn, EMBED_DIM)


def forward_ref(params, obs, mask):
    l_seq, n, _ = obs.shape
    t = l_seq + 1
    enc = _lin_ref(obs.reshape(l_seq * n, IN_DIM), params["enc_w"],
                   params["enc_b"]).reshape(l_seq, n, EMBED_DIM)
    qtok = jnp.broadcast_to(params["q_token"][None], (1, n, EMBED_DIM))
    x = jnp.concatenate([qtok, enc], axis=0)                        # (t, n, E)
    kpm = jnp.concatenate([jnp.zeros((n, 1), dtype=bool), mask.astype(bool)], axis=1)
    kbias = jnp.where(kpm, NEG_INF, 0.0).astype(jnp.float32)        # (n, t)

    def layer(xc, p):
        xc = xc + _mha_ref(xc, xc, kbias, p)
        h = jnp.maximum(_lin_ref(xc.reshape(t * n, EMBED_DIM),
                                 p["w_fc1"], p["b_fc1"]), 0.0)
        y = _lin_ref(h, p["w_fc2"], p["b_fc2"]).reshape(t, n, EMBED_DIM)
        return xc + y, None

    x, _ = jax.lax.scan(layer, x, params["trunk"])

    q = _mha_ref(x[0:1], x, kbias, params["q_attn"])[0]             # (n, E)
    q = jnp.maximum(_lin_ref(q, params["q_fc1_w"], params["q_fc1_b"]), 0.0)
    q = _lin_ref(q, params["q_fc2_w"], params["q_fc2_b"])
    return _lin_ref(q, params["q_out_w"], params["q_out_b"])


# --------------------------- deterministic parameters ------------------------ #
def init_params(key):
    keys = iter(jax.random.split(key, 256))

    def w(shape, scale=0.03):
        return scale * jax.random.normal(next(keys), shape, dtype=jnp.float32)

    def bf(shape, scale=0.03):
        return w(shape, scale).astype(jnp.bfloat16)

    def mha_params():
        return dict(w_qkv=bf((EMBED_DIM, 3 * EMBED_DIM)),
                    b_qkv=w((1, 3 * EMBED_DIM), 0.01),
                    w_o=bf((EMBED_DIM, EMBED_DIM)),
                    b_o=w((1, EMBED_DIM), 0.01))

    layers = [dict(**mha_params(),
                   w_fc1=bf((EMBED_DIM, TRUNK_FC_DIM)),
                   b_fc1=w((1, TRUNK_FC_DIM), 0.01),
                   w_fc2=bf((TRUNK_FC_DIM, EMBED_DIM)),
                   b_fc2=w((1, EMBED_DIM), 0.01))
              for _ in range(NUM_LAYERS)]
    trunk = jax.tree_util.tree_map(lambda *xs: jnp.stack(xs), *layers)

    return dict(
        q_token=w((1, EMBED_DIM), 1.0),
        enc_w=bf((IN_DIM, EMBED_DIM)), enc_b=w((1, EMBED_DIM), 0.01),
        trunk=trunk,
        q_attn=mha_params(),
        q_fc1_w=bf((EMBED_DIM, Q_FC_DIM)), q_fc1_b=w((1, Q_FC_DIM), 0.01),
        q_fc2_w=bf((Q_FC_DIM, EMBED_DIM)), q_fc2_b=w((1, EMBED_DIM), 0.01),
        q_out_w=bf((EMBED_DIM, NUM_ACTIONS)), q_out_b=w((1, NUM_ACTIONS), 0.01),
    )


# ------------------------------------ main ----------------------------------- #
if __name__ == "__main__":
    L, N = 8, 2  # small sequence / batch; feature dims are fixed by FoldQNet.

    root = jax.random.PRNGKey(0)
    k_params, k_obs = jax.random.split(root)
    params = init_params(k_params)

    obs = jax.random.normal(k_obs, (L, N, IN_DIM), dtype=jnp.float32)
    lengths = jnp.array([8, 5])                        # per-sample valid lengths
    mask = jnp.arange(L)[None, :] >= lengths[:, None]  # (N, L) bool, True = pad

    fwd = jax.jit(forward_pallas)
    fwd_ref = jax.jit(forward_ref)

    q = jax.block_until_ready(fwd(params, obs, mask))
    q_ref = jax.block_until_ready(fwd_ref(params, obs, mask))

    assert q.shape == (N, NUM_ACTIONS), q.shape
    assert bool(jnp.all(jnp.isfinite(q)))
    np.testing.assert_allclose(np.asarray(q), np.asarray(q_ref),
                               rtol=5e-2, atol=5e-2)
    print("KERNEL_OK")
</pallas_src>

<mosaic_0001>
module attributes {stable_mosaic.version = 11 : i64} {
  func.func @_trunk_kernel(%arg0: i32, %arg1: memref<18x18xf32, #tpu.memory_space<vmem>>, %arg2: memref<16x222xf32, #tpu.memory_space<vmem>>, %arg3: memref<222x256xbf16, #tpu.memory_space<vmem>>, %arg4: memref<1x256xf32, #tpu.memory_space<vmem>>, %arg5: memref<1x256xf32, #tpu.memory_space<vmem>>, %arg6: memref<1x256x768xbf16, #tpu.memory_space<vmem>>, %arg7: memref<1x1x768xf32, #tpu.memory_space<vmem>>, %arg8: memref<1x256x256xbf16, #tpu.memory_space<vmem>>, %arg9: memref<1x1x256xf32, #tpu.memory_space<vmem>>, %arg10: memref<1x256x1024xbf16, #tpu.memory_space<vmem>>, %arg11: memref<1x1x1024xf32, #tpu.memory_space<vmem>>, %arg12: memref<1x1024x256xbf16, #tpu.memory_space<vmem>>, %arg13: memref<1x1x256xf32, #tpu.memory_space<vmem>>, %arg14: memref<18x256xf32, #tpu.memory_space<vmem>>, %arg15: memref<18x256xf32, #tpu.memory_space<vmem>>) attributes {dimension_semantics = [#tpu.dimension_semantics<arbitrary>], iteration_bounds = array<i64: 16>, scalar_prefetch = 0 : i64, scratch_operands = 1 : i64, tpu.core_type = #tpu.core_type<tc>, window_params = [{pipeline_mode = #tpu.pipeline_mode<synchronous>, transform_indices = @transform_0, window_bounds = array<i64: 18, 18>}, {pipeline_mode = #tpu.pipeline_mode<synchronous>, transform_indices = @transform_1, window_bounds = array<i64: 16, 222>}, {pipeline_mode = #tpu.pipeline_mode<synchronous>, transform_indices = @transform_2, window_bounds = array<i64: 222, 256>}, {pipeline_mode = #tpu.pipeline_mode<synchronous>, transform_indices = @transform_3, window_bounds = array<i64: 1, 256>}, {pipeline_mode = #tpu.pipeline_mode<synchronous>, transform_indices = @transform_4, window_bounds = array<i64: 1, 256>}, {transform_indices = @transform_5, window_bounds = array<i64: 1, 256, 768>}, {transform_indices = @transform_6, window_bounds = array<i64: 1, 1, 768>}, {transform_indices = @transform_7, window_bounds = array<i64: 1, 256, 256>}, {transform_indices = @transform_8, window_bounds = array<i64: 1, 1, 256>}, {transform_indices = @transform_9, window_bounds = array<i64: 1, 256, 1024>}, {transform_indices = @transform_10, window_bounds = array<i64: 1, 1, 1024>}, {transform_indices = @transform_11, window_bounds = array<i64: 1, 1024, 256>}, {transform_indices = @transform_12, window_bounds = array<i64: 1, 1, 256>}, {pipeline_mode = #tpu.pipeline_mode<synchronous>, transform_indices = @transform_13, window_bounds = array<i64: 18, 256>}]} {
    %c0_i32 = arith.constant 0 : i32
    %0 = arith.cmpi eq, %arg0, %c0_i32 : i32
    %1 = arith.extui %0 : i1 to i32
    %c0_i32_0 = arith.constant 0 : i32
    %2 = arith.cmpi ne, %1, %c0_i32_0 : i32
    scf.if %2 {
      %c0_76 = arith.constant 0 : index
      %c0_77 = arith.constant 0 : index
      %223 = vector.load %arg2[%c0_76, %c0_77] : memref<16x222xf32, #tpu.memory_space<vmem>>, vector<16x222xf32>
      %224 = arith.truncf %223 : vector<16x222xf32> to vector<16x222xbf16>
      %c0_78 = arith.constant 0 : index
      %c0_79 = arith.constant 0 : index
      %225 = vector.load %arg3[%c0_78, %c0_79] : memref<222x256xbf16, #tpu.memory_space<vmem>>, vector<222x256xbf16>
      %cst_80 = arith.constant dense<0.000000e+00> : vector<16x256xf32>
      %226 = tpu.matmul %224, %225, %cst_80 {dimension_numbers = #tpu.dot_dimension_numbers<[1], [0], [0], [1], [0, 0, 1, 1], [], []>} : vector<16x222xbf16>, vector<222x256xbf16>, vector<16x256xf32> -> vector<16x256xf32>
      %c0_81 = arith.constant 0 : index
      %c0_82 = arith.constant 0 : index
      %227 = vector.load %arg4[%c0_81, %c0_82] : memref<1x256xf32, #tpu.memory_space<vmem>>, vector<1x256xf32>
      %228 = vector.broadcast %227 : vector<1x256xf32> to vector<16x256xf32>
      %229 = arith.addf %226, %228 : vector<16x256xf32>
      %c0_83 = arith.constant 0 : index
      %c0_84 = arith.constant 0 : index
      %230 = vector.load %arg5[%c0_83, %c0_84] : memref<1x256xf32, #tpu.memory_space<vmem>>, vector<1x256xf32>
      %c0_85 = arith.constant 0 : index
      %c0_86 = arith.constant 0 : index
      %231 = vector.load %arg15[%c0_85, %c0_86] : memref<18x256xf32, #tpu.memory_space<vmem>>, vector<1x256xf32>
      tpu.vector_store %arg15[%c0_85, %c0_86], %230 {strides = array<i32>} : memref<18x256xf32, #tpu.memory_space<vmem>>, vector<1x256xf32>,
      %232 = vector.extract_strided_slice %229 {offsets = [0, 0], sizes = [8, 256], strides = [1, 1]} : vector<16x256xf32> to vector<8x256xf32>
      %c1 = arith.constant 1 : index
      %c0_87 = arith.constant 0 : index
      %233 = vector.load %arg15[%c1, %c0_87] : memref<18x256xf32, #tpu.memory_space<vmem>>, vector<8x256xf32>
      tpu.vector_store %arg15[%c1, %c0_87], %232 {strides = array<i32>} : memref<18x256xf32, #tpu.memory_space<vmem>>, vector<8x256xf32>,
      %c0_88 = arith.constant 0 : index
      %c0_89 = arith.constant 0 : index
      %234 = vector.load %arg5[%c0_88, %c0_89] : memref<1x256xf32, #tpu.memory_space<vmem>>, vector<1x256xf32>
      %c9 = arith.constant 9 : index
      %c0_90 = arith.constant 0 : index
      %235 = vector.load %arg15[%c9, %c0_90] : memref<18x256xf32, #tpu.memory_space<vmem>>, vector<1x256xf32>
      tpu.vector_store %arg15[%c9, %c0_90], %234 {strides = array<i32>} : memref<18x256xf32, #tpu.memory_space<vmem>>, vector<1x256xf32>,
      %236 = vector.extract_strided_slice %229 {offsets = [8, 0], sizes = [8, 256], strides = [1, 1]} : vector<16x256xf32> to vector<8x256xf32>
      %c10 = arith.constant 10 : index
      %c0_91 = arith.constant 0 : index
      %237 = vector.load %arg15[%c10, %c0_91] : memref<18x256xf32, #tpu.memory_space<vmem>>, vector<8x256xf32>
      tpu.vector_store %arg15[%c10, %c0_91], %236 {strides = array<i32>} : memref<18x256xf32, #tpu.memory_space<vmem>>, vector<8x256xf32>,
    } else {
    }
    %c0 = arith.constant 0 : index
    %c0_1 = arith.constant 0 : index
    %3 = vector.load %arg15[%c0, %c0_1] : memref<18x256xf32, #tpu.memory_space<vmem>>, vector<18x256xf32>
    %4 = arith.truncf %3 : vector<18x256xf32> to vector<18x256xbf16>
    %c0_2 = arith.constant 0 : index
    %c0_3 = arith.constant 0 : index
    %c0_4 = arith.constant 0 : index
    %5 = vector.load %arg6[%c0_2, %c0_3, %c0_4] : memref<1x256x768xbf16, #tpu.memory_space<vmem>>, vector<1x256x768xbf16>
    %6 = vector.shape_cast %5 : vector<1x256x768xbf16> to vector<256x768xbf16>
    %cst = arith.constant dense<0.000000e+00> : vector<18x768xf32>
    %7 = tpu.matmul %4, %6, %cst {dimension_numbers = #tpu.dot_dimension_numbers<[1], [0], [0], [1], [0, 0, 1, 1], [], []>} : vector<18x256xbf16>, vector<256x768xbf16>, vector<18x768xf32> -> vector<18x768xf32>
    %c0_5 = arith.constant 0 : index
    %c0_6 = arith.constant 0 : index
    %c0_7 = arith.constant 0 : index
    %8 = vector.load %arg7[%c0_5, %c0_6, %c0_7] : memref<1x1x768xf32, #tpu.memory_space<vmem>>, vector<1x1x768xf32>
    %9 = vector.shape_cast %8 : vector<1x1x768xf32> to vector<1x768xf32>
    %10 = vector.broadcast %9 : vector<1x768xf32> to vector<18x768xf32>
    %11 = arith.addf %7, %10 : vector<18x768xf32>
    %12 = vector.extract_strided_slice %11 {offsets = [0, 0], sizes = [18, 256], strides = [1, 1]} : vector<18x768xf32> to vector<18x256xf32>
    %13 = vector.extract_strided_slice %11 {offsets = [0, 256], sizes = [18, 256], strides = [1, 1]} : vector<18x768xf32> to vector<18x256xf32>
    %14 = vector.extract_strided_slice %11 {offsets = [0, 512], sizes = [18, 256], strides = [1, 1]} : vector<18x768xf32> to vector<18x256xf32>
    %c0_8 = arith.constant 0 : index
    %c0_9 = arith.constant 0 : index
    %15 = vector.load %arg1[%c0_8, %c0_9] : memref<18x18xf32, #tpu.memory_space<vmem>>, vector<18x18xf32>
    %16 = vector.extract_strided_slice %12 {offsets = [0, 0], sizes = [18, 32], strides = [1, 1]} : vector<18x256xf32> to vector<18x32xf32>
    %17 = arith.truncf %16 : vector<18x32xf32> to vector<18x32xbf16>
    %18 = vector.extract_strided_slice %13 {offsets = [0, 0], sizes = [18, 32], strides = [1, 1]} : vector<18x256xf32> to vector<18x32xf32>
    %19 = arith.truncf %18 : vector<18x32xf32> to vector<18x32xbf16>
    %20 = vector.extract_strided_slice %14 {offsets = [0, 0], sizes = [18, 32], strides = [1, 1]} : vector<18x256xf32> to vector<18x32xf32>
    %21 = arith.truncf %20 : vector<18x32xf32> to vector<18x32xbf16>
    %cst_10 = arith.constant dense<0.000000e+00> : vector<18x18xf32>
    %22 = tpu.matmul %17, %19, %cst_10 {dimension_numbers = #tpu.dot_dimension_numbers<[1], [1], [0], [0], [0, 0, 1, 0], [], []>} : vector<18x32xbf16>, vector<18x32xbf16>, vector<18x18xf32> -> vector<18x18xf32>
    %cst_11 = arith.constant 0.176776692 : f32
    %23 = vector.broadcast %cst_11 : f32 to vector<18x18xf32>
    %24 = arith.mulf %22, %23 : vector<18x18xf32>
    %25 = arith.addf %24, %15 : vector<18x18xf32>
    %cst_12 = arith.constant dense<0xFF800000> : vector<18xf32>
    %26 = vector.multi_reduction <maximumf>, %25, %cst_12 [1] : vector<18x18xf32> to vector<18xf32>
    %27 = vector.shape_cast %26 : vector<18xf32> to vector<18x1xf32>
    %28 = vector.broadcast %27 : vector<18x1xf32> to vector<18x18xf32>
    %29 = arith.subf %25, %28 : vector<18x18xf32>
    %30 = math.exp %29 : vector<18x18xf32>
    %cst_13 = arith.constant dense<0.000000e+00> : vector<18xf32>
    %31 = vector.multi_reduction <add>, %30, %cst_13 [1] : vector<18x18xf32> to vector<18xf32>
    %32 = vector.shape_cast %31 : vector<18xf32> to vector<18x1xf32>
    %33 = tpu.reciprocal %32 {approx = true} : vector<18x1xf32> -> vector<18x1xf32>
    %34 = vector.broadcast %33 : vector<18x1xf32> to vector<18x18xf32>
    %35 = arith.mulf %30, %34 : vector<18x18xf32>
    %36 = arith.truncf %35 : vector<18x18xf32> to vector<18x18xbf16>
    %cst_14 = arith.constant dense<0.000000e+00> : vector<18x32xf32>
    %37 = tpu.matmul %36, %21, %cst_14 {dimension_numbers = #tpu.dot_dimension_numbers<[1], [0], [0], [1], [0, 0, 1, 1], [], []>} : vector<18x18xbf16>, vector<18x32xbf16>, vector<18x32xf32> -> vector<18x32xf32>
    %38 = vector.extract_strided_slice %12 {offsets = [0, 32], sizes = [18, 32], strides = [1, 1]} : vector<18x256xf32> to vector<18x32xf32>
    %39 = arith.truncf %38 : vector<18x32xf32> to vector<18x32xbf16>
    %40 = vector.extract_strided_slice %13 {offsets = [0, 32], sizes = [18, 32], strides = [1, 1]} : vector<18x256xf32> to vector<18x32xf32>
    %41 = arith.truncf %40 : vector<18x32xf32> to vector<18x32xbf16>
    %42 = vector.extract_strided_slice %14 {offsets = [0, 32], sizes = [18, 32], strides = [1, 1]} : vector<18x256xf32> to vector<18x32xf32>
    %43 = arith.truncf %42 : vector<18x32xf32> to vector<18x32xbf16>
    %cst_15 = arith.constant dense<0.000000e+00> : vector<18x18xf32>
    %44 = tpu.matmul %39, %41, %cst_15 {dimension_numbers = #tpu.dot_dimension_numbers<[1], [1], [0], [0], [0, 0, 1, 0], [], []>} : vector<18x32xbf16>, vector<18x32xbf16>, vector<18x18xf32> -> vector<18x18xf32>
    %cst_16 = arith.constant 0.176776692 : f32
    %45 = vector.broadcast %cst_16 : f32 to vector<18x18xf32>
    %46 = arith.mulf %44, %45 : vector<18x18xf32>
    %47 = arith.addf %46, %15 : vector<18x18xf32>
    %cst_17 = arith.constant dense<0xFF800000> : vector<18xf32>
    %48 = vector.multi_reduction <maximumf>, %47, %cst_17 [1] : vector<18x18xf32> to vector<18xf32>
    %49 = vector.shape_cast %48 : vector<18xf32> to vector<18x1xf32>
    %50 = vector.broadcast %49 : vector<18x1xf32> to vector<18x18xf32>
    %51 = arith.subf %47, %50 : vector<18x18xf32>
    %52 = math.exp %51 : vector<18x18xf32>
    %cst_18 = arith.constant dense<0.000000e+00> : vector<18xf32>
    %53 = vector.multi_reduction <add>, %52, %cst_18 [1] : vector<18x18xf32> to vector<18xf32>
    %54 = vector.shape_cast %53 : vector<18xf32> to vector<18x1xf32>
    %55 = tpu.reciprocal %54 {approx = true} : vector<18x1xf32> -> vector<18x1xf32>
    %56 = vector.broadcast %55 : vector<18x1xf32> to vector<18x18xf32>
    %57 = arith.mulf %52, %56 : vector<18x18xf32>
    %58 = arith.truncf %57 : vector<18x18xf32> to vector<18x18xbf16>
    %cst_19 = arith.constant dense<0.000000e+00> : vector<18x32xf32>
    %59 = tpu.matmul %58, %43, %cst_19 {dimension_numbers = #tpu.dot_dimension_numbers<[1], [0], [0], [1], [0, 0, 1, 1], [], []>} : vector<18x18xbf16>, vector<18x32xbf16>, vector<18x32xf32> -> vector<18x32xf32>
    %60 = vector.extract_strided_slice %12 {offsets = [0, 64], sizes = [18, 32], strides = [1, 1]} : vector<18x256xf32> to vector<18x32xf32>
    %61 = arith.truncf %60 : vector<18x32xf32> to vector<18x32xbf16>
    %62 = vector.extract_strided_slice %13 {offsets = [0, 64], sizes = [18, 32], strides = [1, 1]} : vector<18x256xf32> to vector<18x32xf32>
    %63 = arith.truncf %62 : vector<18x32xf32> to vector<18x32xbf16>
    %64 = vector.extract_strided_slice %14 {offsets = [0, 64], sizes = [18, 32], strides = [1, 1]} : vector<18x256xf32> to vector<18x32xf32>
    %65 = arith.truncf %64 : vector<18x32xf32> to vector<18x32xbf16>
    %cst_20 = arith.constant dense<0.000000e+00> : vector<18x18xf32>
    %66 = tpu.matmul %61, %63, %cst_20 {dimension_numbers = #tpu.dot_dimension_numbers<[1], [1], [0], [0], [0, 0, 1, 0], [], []>} : vector<18x32xbf16>, vector<18x32xbf16>, vector<18x18xf32> -> vector<18x18xf32>
    %cst_21 = arith.constant 0.176776692 : f32
    %67 = vector.broadcast %cst_21 : f32 to vector<18x18xf32>
    %68 = arith.mulf %66, %67 : vector<18x18xf32>
    %69 = arith.addf %68, %15 : vector<18x18xf32>
    %cst_22 = arith.constant dense<0xFF800000> : vector<18xf32>
    %70 = vector.multi_reduction <maximumf>, %69, %cst_22 [1] : vector<18x18xf32> to vector<18xf32>
    %71 = vector.shape_cast %70 : vector<18xf32> to vector<18x1xf32>
    %72 = vector.broadcast %71 : vector<18x1xf32> to vector<18x18xf32>
    %73 = arith.subf %69, %72 : vector<18x18xf32>
    %74 = math.exp %73 : vector<18x18xf32>
    %cst_23 = arith.constant dense<0.000000e+00> : vector<18xf32>
    %75 = vector.multi_reduction <add>, %74, %cst_23 [1] : vector<18x18xf32> to vector<18xf32>
    %76 = vector.shape_cast %75 : vector<18xf32> to vector<18x1xf32>
    %77 = tpu.reciprocal %76 {approx = true} : vector<18x1xf32> -> vector<18x1xf32>
    %78 = vector.broadcast %77 : vector<18x1xf32> to vector<18x18xf32>
    %79 = arith.mulf %74, %78 : vector<18x18xf32>
    %80 = arith.truncf %79 : vector<18x18xf32> to vector<18x18xbf16>
    %cst_24 = arith.constant dense<0.000000e+00> : vector<18x32xf32>
    %81 = tpu.matmul %80, %65, %cst_24 {dimension_numbers = #tpu.dot_dimension_numbers<[1], [0], [0], [1], [0, 0, 1, 1], [], []>} : vector<18x18xbf16>, vector<18x32xbf16>, vector<18x32xf32> -> vector<18x32xf32>
    %82 = vector.extract_strided_slice %12 {offsets = [0, 96], sizes = [18, 32], strides = [1, 1]} : vector<18x256xf32> to vector<18x32xf32>
    %83 = arith.truncf %82 : vector<18x32xf32> to vector<18x32xbf16>
    %84 = vector.extract_strided_slice %13 {offsets = [0, 96], sizes = [18, 32], strides = [1, 1]} : vector<18x256xf32> to vector<18x32xf32>
    %85 = arith.truncf %84 : vector<18x32xf32> to vector<18x32xbf16>
    %86 = vector.extract_strided_slice %14 {offsets = [0, 96], sizes = [18, 32], strides = [1, 1]} : vector<18x256xf32> to vector<18x32xf32>
    %87 = arith.truncf %86 : vector<18x32xf32> to vector<18x32xbf16>
    %cst_25 = arith.constant dense<0.000000e+00> : vector<18x18xf32>
    %88 = tpu.matmul %83, %85, %cst_25 {dimension_numbers = #tpu.dot_dimension_numbers<[1], [1], [0], [0], [0, 0, 1, 0], [], []>} : vector<18x32xbf16>, vector<18x32xbf16>, vector<18x18xf32> -> vector<18x18xf32>
    %cst_26 = arith.constant 0.176776692 : f32
    %89 = vector.broadcast %cst_26 : f32 to vector<18x18xf32>
    %90 = arith.mulf %88, %89 : vector<18x18xf32>
    %91 = arith.addf %90, %15 : vector<18x18xf32>
    %cst_27 = arith.constant dense<0xFF800000> : vector<18xf32>
    %92 = vector.multi_reduction <maximumf>, %91, %cst_27 [1] : vector<18x18xf32> to vector<18xf32>
    %93 = vector.shape_cast %92 : vector<18xf32> to vector<18x1xf32>
    %94 = vector.broadcast %93 : vector<18x1xf32> to vector<18x18xf32>
    %95 = arith.subf %91, %94 : vector<18x18xf32>
    %96 = math.exp %95 : vector<18x18xf32>
    %cst_28 = arith.constant dense<0.000000e+00> : vector<18xf32>
    %97 = vector.multi_reduction <add>, %96, %cst_28 [1] : vector<18x18xf32> to vector<18xf32>
    %98 = vector.shape_cast %97 : vector<18xf32> to vector<18x1xf32>
    %99 = tpu.reciprocal %98 {approx = true} : vector<18x1xf32> -> vector<18x1xf32>
    %100 = vector.broadcast %99 : vector<18x1xf32> to vector<18x18xf32>
    %101 = arith.mulf %96, %100 : vector<18x18xf32>
    %102 = arith.truncf %101 : vector<18x18xf32> to vector<18x18xbf16>
    %cst_29 = arith.constant dense<0.000000e+00> : vector<18x32xf32>
    %103 = tpu.matmul %102, %87, %cst_29 {dimension_numbers = #tpu.dot_dimension_numbers<[1], [0], [0], [1], [0, 0, 1, 1], [], []>} : vector<18x18xbf16>, vector<18x32xbf16>, vector<18x32xf32> -> vector<18x32xf32>
    %104 = vector.extract_strided_slice %12 {offsets = [0, 128], sizes = [18, 32], strides = [1, 1]} : vector<18x256xf32> to vector<18x32xf32>
    %105 = arith.truncf %104 : vector<18x32xf32> to vector<18x32xbf16>
    %106 = vector.extract_strided_slice %13 {offsets = [0, 128], sizes = [18, 32], strides = [1, 1]} : vector<18x256xf32> to vector<18x32xf32>
    %107 = arith.truncf %106 : vector<18x32xf32> to vector<18x32xbf16>
    %108 = vector.extract_strided_slice %14 {offsets = [0, 128], sizes = [18, 32], strides = [1, 1]} : vector<18x256xf32> to vector<18x32xf32>
    %109 = arith.truncf %108 : vector<18x32xf32> to vector<18x32xbf16>
    %cst_30 = arith.constant dense<0.000000e+00> : vector<18x18xf32>
    %110 = tpu.matmul %105, %107, %cst_30 {dimension_numbers = #tpu.dot_dimension_numbers<[1], [1], [0], [0], [0, 0, 1, 0], [], []>} : vector<18x32xbf16>, vector<18x32xbf16>, vector<18x18xf32> -> vector<18x18xf32>
    %cst_31 = arith.constant 0.176776692 : f32
    %111 = vector.broadcast %cst_31 : f32 to vector<18x18xf32>
    %112 = arith.mulf %110, %111 : vector<18x18xf32>
    %113 = arith.addf %112, %15 : vector<18x18xf32>
    %cst_32 = arith.constant dense<0xFF800000> : vector<18xf32>
    %114 = vector.multi_reduction <maximumf>, %113, %cst_32 [1] : vector<18x18xf32> to vector<18xf32>
    %115 = vector.shape_cast %114 : vector<18xf32> to vector<18x1xf32>
    %116 = vector.broadcast %115 : vector<18x1xf32> to vector<18x18xf32>
    %117 = arith.subf %113, %116 : vector<18x18xf32>
    %118 = math.exp %117 : vector<18x18xf32>
    %cst_33 = arith.constant dense<0.000000e+00> : vector<18xf32>
    %119 = vector.multi_reduction <add>, %118, %cst_33 [1] : vector<18x18xf32> to vector<18xf32>
    %120 = vector.shape_cast %119 : vector<18xf32> to vector<18x1xf32>
    %121 = tpu.reciprocal %120 {approx = true} : vector<18x1xf32> -> vector<18x1xf32>
    %122 = vector.broadcast %121 : vector<18x1xf32> to vector<18x18xf32>
    %123 = arith.mulf %118, %122 : vector<18x18xf32>
    %124 = arith.truncf %123 : vector<18x18xf32> to vector<18x18xbf16>
    %cst_34 = arith.constant dense<0.000000e+00> : vector<18x32xf32>
    %125 = tpu.matmul %124, %109, %cst_34 {dimension_numbers = #tpu.dot_dimension_numbers<[1], [0], [0], [1], [0, 0, 1, 1], [], []>} : vector<18x18xbf16>, vector<18x32xbf16>, vector<18x32xf32> -> vector<18x32xf32>
    %126 = vector.extract_strided_slice %12 {offsets = [0, 160], sizes = [18, 32], strides = [1, 1]} : vector<18x256xf32> to vector<18x32xf32>
    %127 = arith.truncf %126 : vector<18x32xf32> to vector<18x32xbf16>
    %128 = vector.extract_strided_slice %13 {offsets = [0, 160], sizes = [18, 32], strides = [1, 1]} : vector<18x256xf32> to vector<18x32xf32>
    %129 = arith.truncf %128 : vector<18x32xf32> to vector<18x32xbf16>
    %130 = vector.extract_strided_slice %14 {offsets = [0, 160], sizes = [18, 32], strides = [1, 1]} : vector<18x256xf32> to vector<18x32xf32>
    %131 = arith.truncf %130 : vector<18x32xf32> to vector<18x32xbf16>
    %cst_35 = arith.constant dense<0.000000e+00> : vector<18x18xf32>
    %132 = tpu.matmul %127, %129, %cst_35 {dimension_numbers = #tpu.dot_dimension_numbers<[1], [1], [0], [0], [0, 0, 1, 0], [], []>} : vector<18x32xbf16>, vector<18x32xbf16>, vector<18x18xf32> -> vector<18x18xf32>
    %cst_36 = arith.constant 0.176776692 : f32
    %133 = vector.broadcast %cst_36 : f32 to vector<18x18xf32>
    %134 = arith.mulf %132, %133 : vector<18x18xf32>
    %135 = arith.addf %134, %15 : vector<18x18xf32>
    %cst_37 = arith.constant dense<0xFF800000> : vector<18xf32>
    %136 = vector.multi_reduction <maximumf>, %135, %cst_37 [1] : vector<18x18xf32> to vector<18xf32>
    %137 = vector.shape_cast %136 : vector<18xf32> to vector<18x1xf32>
    %138 = vector.broadcast %137 : vector<18x1xf32> to vector<18x18xf32>
    %139 = arith.subf %135, %138 : vector<18x18xf32>
    %140 = math.exp %139 : vector<18x18xf32>
    %cst_38 = arith.constant dense<0.000000e+00> : vector<18xf32>
    %141 = vector.multi_reduction <add>, %140, %cst_38 [1] : vector<18x18xf32> to vector<18xf32>
    %142 = vector.shape_cast %141 : vector<18xf32> to vector<18x1xf32>
    %143 = tpu.reciprocal %142 {approx = true} : vector<18x1xf32> -> vector<18x1xf32>
    %144 = vector.broadcast %143 : vector<18x1xf32> to vector<18x18xf32>
    %145 = arith.mulf %140, %144 : vector<18x18xf32>
    %146 = arith.truncf %145 : vector<18x18xf32> to vector<18x18xbf16>
    %cst_39 = arith.constant dense<0.000000e+00> : vector<18x32xf32>
    %147 = tpu.matmul %146, %131, %cst_39 {dimension_numbers = #tpu.dot_dimension_numbers<[1], [0], [0], [1], [0, 0, 1, 1], [], []>} : vector<18x18xbf16>, vector<18x32xbf16>, vector<18x32xf32> -> vector<18x32xf32>
    %148 = vector.extract_strided_slice %12 {offsets = [0, 192], sizes = [18, 32], strides = [1, 1]} : vector<18x256xf32> to vector<18x32xf32>
    %149 = arith.truncf %148 : vector<18x32xf32> to vector<18x32xbf16>
    %150 = vector.extract_strided_slice %13 {offsets = [0, 192], sizes = [18, 32], strides = [1, 1]} : vector<18x256xf32> to vector<18x32xf32>
    %151 = arith.truncf %150 : vector<18x32xf32> to vector<18x32xbf16>
    %152 = vector.extract_strided_slice %14 {offsets = [0, 192], sizes = [18, 32], strides = [1, 1]} : vector<18x256xf32> to vector<18x32xf32>
    %153 = arith.truncf %152 : vector<18x32xf32> to vector<18x32xbf16>
    %cst_40 = arith.constant dense<0.000000e+00> : vector<18x18xf32>
    %154 = tpu.matmul %149, %151, %cst_40 {dimension_numbers = #tpu.dot_dimension_numbers<[1], [1], [0], [0], [0, 0, 1, 0], [], []>} : vector<18x32xbf16>, vector<18x32xbf16>, vector<18x18xf32> -> vector<18x18xf32>
    %cst_41 = arith.constant 0.176776692 : f32
    %155 = vector.broadcast %cst_41 : f32 to vector<18x18xf32>
    %156 = arith.mulf %154, %155 : vector<18x18xf32>
    %157 = arith.addf %156, %15 : vector<18x18xf32>
    %cst_42 = arith.constant dense<0xFF800000> : vector<18xf32>
    %158 = vector.multi_reduction <maximumf>, %157, %cst_42 [1] : vector<18x18xf32> to vector<18xf32>
    %159 = vector.shape_cast %158 : vector<18xf32> to vector<18x1xf32>
    %160 = vector.broadcast %159 : vector<18x1xf32> to vector<18x18xf32>
    %161 = arith.subf %157, %160 : vector<18x18xf32>
    %162 = math.exp %161 : vector<18x18xf32>
    %cst_43 = arith.constant dense<0.000000e+00> : vector<18xf32>
    %163 = vector.multi_reduction <add>, %162, %cst_43 [1] : vector<18x18xf32> to vector<18xf32>
    %164 = vector.shape_cast %163 : vector<18xf32> to vector<18x1xf32>
    %165 = tpu.reciprocal %164 {approx = true} : vector<18x1xf32> -> vector<18x1xf32>
    %166 = vector.broadcast %165 : vector<18x1xf32> to vector<18x18xf32>
    %167 = arith.mulf %162, %166 : vector<18x18xf32>
    %168 = arith.truncf %167 : vector<18x18xf32> to vector<18x18xbf16>
    %cst_44 = arith.constant dense<0.000000e+00> : vector<18x32xf32>
    %169 = tpu.matmul %168, %153, %cst_44 {dimension_numbers = #tpu.dot_dimension_numbers<[1], [0], [0], [1], [0, 0, 1, 1], [], []>} : vector<18x18xbf16>, vector<18x32xbf16>, vector<18x32xf32> -> vector<18x32xf32>
    %170 = vector.extract_strided_slice %12 {offsets = [0, 224], sizes = [18, 32], strides = [1, 1]} : vector<18x256xf32> to vector<18x32xf32>
    %171 = arith.truncf %170 : vector<18x32xf32> to vector<18x32xbf16>
    %172 = vector.extract_strided_slice %13 {offsets = [0, 224], sizes = [18, 32], strides = [1, 1]} : vector<18x256xf32> to vector<18x32xf32>
    %173 = arith.truncf %172 : vector<18x32xf32> to vector<18x32xbf16>
    %174 = vector.extract_strided_slice %14 {offsets = [0, 224], sizes = [18, 32], strides = [1, 1]} : vector<18x256xf32> to vector<18x32xf32>
    %175 = arith.truncf %174 : vector<18x32xf32> to vector<18x32xbf16>
    %cst_45 = arith.constant dense<0.000000e+00> : vector<18x18xf32>
    %176 = tpu.matmul %171, %173, %cst_45 {dimension_numbers = #tpu.dot_dimension_numbers<[1], [1], [0], [0], [0, 0, 1, 0], [], []>} : vector<18x32xbf16>, vector<18x32xbf16>, vector<18x18xf32> -> vector<18x18xf32>
    %cst_46 = arith.constant 0.176776692 : f32
    %177 = vector.broadcast %cst_46 : f32 to vector<18x18xf32>
    %178 = arith.mulf %176, %177 : vector<18x18xf32>
    %179 = arith.addf %178, %15 : vector<18x18xf32>
    %cst_47 = arith.constant dense<0xFF800000> : vector<18xf32>
    %180 = vector.multi_reduction <maximumf>, %179, %cst_47 [1] : vector<18x18xf32> to vector<18xf32>
    %181 = vector.shape_cast %180 : vector<18xf32> to vector<18x1xf32>
    %182 = vector.broadcast %181 : vector<18x1xf32> to vector<18x18xf32>
    %183 = arith.subf %179, %182 : vector<18x18xf32>
    %184 = math.exp %183 : vector<18x18xf32>
    %cst_48 = arith.constant dense<0.000000e+00> : vector<18xf32>
    %185 = vector.multi_reduction <add>, %184, %cst_48 [1] : vector<18x18xf32> to vector<18xf32>
    %186 = vector.shape_cast %185 : vector<18xf32> to vector<18x1xf32>
    %187 = tpu.reciprocal %186 {approx = true} : vector<18x1xf32> -> vector<18x1xf32>
    %188 = vector.broadcast %187 : vector<18x1xf32> to vector<18x18xf32>
    %189 = arith.mulf %184, %188 : vector<18x18xf32>
    %190 = arith.truncf %189 : vector<18x18xf32> to vector<18x18xbf16>
    %cst_49 = arith.constant dense<0.000000e+00> : vector<18x32xf32>
    %191 = tpu.matmul %190, %175, %cst_49 {dimension_numbers = #tpu.dot_dimension_numbers<[1], [0], [0], [1], [0, 0, 1, 1], [], []>} : vector<18x18xbf16>, vector<18x32xbf16>, vector<18x32xf32> -> vector<18x32xf32>
    %192 = tpu.concatenate %37, %59, %81, %103, %125, %147, %169, %191 in 1 : vector<18x32xf32>, vector<18x32xf32>, vector<18x32xf32>, vector<18x32xf32>, vector<18x32xf32>, vector<18x32xf32>, vector<18x32xf32>, vector<18x32xf32> -> vector<18x256xf32>
    %193 = arith.truncf %192 : vector<18x256xf32> to vector<18x256xbf16>
    %c0_50 = arith.constant 0 : index
    %c0_51 = arith.constant 0 : index
    %c0_52 = arith.constant 0 : index
    %194 = vector.load %arg8[%c0_50, %c0_51, %c0_52] : memref<1x256x256xbf16, #tpu.memory_space<vmem>>, vector<1x256x256xbf16>
    %195 = vector.shape_cast %194 : vector<1x256x256xbf16> to vector<256x256xbf16>
    %cst_53 = arith.constant dense<0.000000e+00> : vector<18x256xf32>
    %196 = tpu.matmul %193, %195, %cst_53 {dimension_numbers = #tpu.dot_dimension_numbers<[1], [0], [0], [1], [0, 0, 1, 1], [], []>} : vector<18x256xbf16>, vector<256x256xbf16>, vector<18x256xf32> -> vector<18x256xf32>
    %c0_54 = arith.constant 0 : index
    %c0_55 = arith.constant 0 : index
    %c0_56 = arith.constant 0 : index
    %197 = vector.load %arg9[%c0_54, %c0_55, %c0_56] : memref<1x1x256xf32, #tpu.memory_space<vmem>>, vector<1x1x256xf32>
    %198 = vector.shape_cast %197 : vector<1x1x256xf32> to vector<1x256xf32>
    %199 = vector.broadcast %198 : vector<1x256xf32> to vector<18x256xf32>
    %200 = arith.addf %196, %199 : vector<18x256xf32>
    %201 = arith.addf %3, %200 : vector<18x256xf32>
    %202 = arith.truncf %201 : vector<18x256xf32> to vector<18x256xbf16>
    %c0_57 = arith.constant 0 : index
    %c0_58 = arith.constant 0 : index
    %c0_59 = arith.constant 0 : index
    %203 = vector.load %arg10[%c0_57, %c0_58, %c0_59] : memref<1x256x1024xbf16, #tpu.memory_space<vmem>>, vector<1x256x1024xbf16>
    %204 = vector.shape_cast %203 : vector<1x256x1024xbf16> to vector<256x1024xbf16>
    %cst_60 = arith.constant dense<0.000000e+00> : vector<18x1024xf32>
    %205 = tpu.matmul %202, %204, %cst_60 {dimension_numbers = #tpu.dot_dimension_numbers<[1], [0], [0], [1], [0, 0, 1, 1], [], []>} : vector<18x256xbf16>, vector<256x1024xbf16>, vector<18x1024xf32> -> vector<18x1024xf32>
    %c0_61 = arith.constant 0 : index
    %c0_62 = arith.constant 0 : index
    %c0_63 = arith.constant 0 : index
    %206 = vector.load %arg11[%c0_61, %c0_62, %c0_63] : memref<1x1x1024xf32, #tpu.memory_space<vmem>>, vector<1x1x1024xf32>
    %207 = vector.shape_cast %206 : vector<1x1x1024xf32> to vector<1x1024xf32>
    %208 = vector.broadcast %207 : vector<1x1024xf32> to vector<18x1024xf32>
    %209 = arith.addf %205, %208 : vector<18x1024xf32>
    %cst_64 = arith.constant 0.000000e+00 : f32
    %210 = vector.broadcast %cst_64 : f32 to vector<18x1024xf32>
    %211 = arith.maximumf %209, %210 : vector<18x1024xf32>
    %212 = arith.truncf %211 : vector<18x1024xf32> to vector<18x1024xbf16>
    %c0_65 = arith.constant 0 : index
    %c0_66 = arith.constant 0 : index
    %c0_67 = arith.constant 0 : index
    %213 = vector.load %arg12[%c0_65, %c0_66, %c0_67] : memref<1x1024x256xbf16, #tpu.memory_space<vmem>>, vector<1x1024x256xbf16>
    %214 = vector.shape_cast %213 : vector<1x1024x256xbf16> to vector<1024x256xbf16>
    %cst_68 = arith.constant dense<0.000000e+00> : vector<18x256xf32>
    %215 = tpu.matmul %212, %214, %cst_68 {dimension_numbers = #tpu.dot_dimension_numbers<[1], [0], [0], [1], [0, 0, 1, 1], [], []>} : vector<18x1024xbf16>, vector<1024x256xbf16>, vector<18x256xf32> -> vector<18x256xf32>
    %c0_69 = arith.constant 0 : index
    %c0_70 = arith.constant 0 : index
    %c0_71 = arith.constant 0 : index
    %216 = vector.load %arg13[%c0_69, %c0_70, %c0_71] : memref<1x1x256xf32, #tpu.memory_space<vmem>>, vector<1x1x256xf32>
    %217 = vector.shape_cast %216 : vector<1x1x256xf32> to vector<1x256xf32>
    %218 = vector.broadcast %217 : vector<1x256xf32> to vector<18x256xf32>
    %219 = arith.addf %215, %218 : vector<18x256xf32>
    %220 = arith.addf %201, %219 : vector<18x256xf32>
    %c0_72 = arith.constant 0 : index
    %c0_73 = arith.constant 0 : index
    %221 = vector.load %arg15[%c0_72, %c0_73] : memref<18x256xf32, #tpu.memory_space<vmem>>, vector<18x256xf32>
    tpu.vector_store %arg15[%c0_72, %c0_73], %220 {strides = array<i32>} : memref<18x256xf32, #tpu.memory_space<vmem>>, vector<18x256xf32>,
    %c0_74 = arith.constant 0 : index
    %c0_75 = arith.constant 0 : index
    %222 = vector.load %arg14[%c0_74, %c0_75] : memref<18x256xf32, #tpu.memory_space<vmem>>, vector<18x256xf32>
    tpu.vector_store %arg14[%c0_74, %c0_75], %220 {strides = array<i32>} : memref<18x256xf32, #tpu.memory_space<vmem>>, vector<18x256xf32>,
    return
  }
  func.func @transform_0(%arg0: i32) -> (i32, i32) {
    %c0_i32 = arith.constant 0 : i32
    %c0_i32_0 = arith.constant 0 : i32
    %c0_i32_1 = arith.constant 0 : i32
    return %c0_i32, %c0_i32_0 : i32, i32
  }
  func.func @transform_1(%arg0: i32) -> (i32, i32) {
    %c0_i32 = arith.constant 0 : i32
    %c0_i32_0 = arith.constant 0 : i32
    %c0_i32_1 = arith.constant 0 : i32
    return %c0_i32, %c0_i32_0 : i32, i32
  }
  func.func @transform_2(%arg0: i32) -> (i32, i32) {
    %c0_i32 = arith.constant 0 : i32
    %c0_i32_0 = arith.constant 0 : i32
    %c0_i32_1 = arith.constant 0 : i32
    return %c0_i32, %c0_i32_0 : i32, i32
  }
  func.func @transform_3(%arg0: i32) -> (i32, i32) {
    %c0_i32 = arith.constant 0 : i32
    %c0_i32_0 = arith.constant 0 : i32
    %c0_i32_1 = arith.constant 0 : i32
    return %c0_i32, %c0_i32_0 : i32, i32
  }
  func.func @transform_4(%arg0: i32) -> (i32, i32) {
    %c0_i32 = arith.constant 0 : i32
    %c0_i32_0 = arith.constant 0 : i32
    %c0_i32_1 = arith.constant 0 : i32
    return %c0_i32, %c0_i32_0 : i32, i32
  }
  func.func @transform_5(%arg0: i32) -> (i32, i32, i32) {
    %c0_i32 = arith.constant 0 : i32
    %c0_i32_0 = arith.constant 0 : i32
    %c0_i32_1 = arith.constant 0 : i32
    return %arg0, %c0_i32, %c0_i32_0 : i32, i32, i32
  }
  func.func @transform_6(%arg0: i32) -> (i32, i32, i32) {
    %c0_i32 = arith.constant 0 : i32
    %c0_i32_0 = arith.constant 0 : i32
    %c0_i32_1 = arith.constant 0 : i32
    return %arg0, %c0_i32, %c0_i32_0 : i32, i32, i32
  }
  func.func @transform_7(%arg0: i32) -> (i32, i32, i32) {
    %c0_i32 = arith.constant 0 : i32
    %c0_i32_0 = arith.constant 0 : i32
    %c0_i32_1 = arith.constant 0 : i32
    return %arg0, %c0_i32, %c0_i32_0 : i32, i32, i32
  }
  func.func @transform_8(%arg0: i32) -> (i32, i32, i32) {
    %c0_i32 = arith.constant 0 : i32
    %c0_i32_0 = arith.constant 0 : i32
    %c0_i32_1 = arith.constant 0 : i32
    return %arg0, %c0_i32, %c0_i32_0 : i32, i32, i32
  }
  func.func @transform_9(%arg0: i32) -> (i32, i32, i32) {
    %c0_i32 = arith.constant 0 : i32
    %c0_i32_0 = arith.constant 0 : i32
    %c0_i32_1 = arith.constant 0 : i32
    return %arg0, %c0_i32, %c0_i32_0 : i32, i32, i32
  }
  func.func @transform_10(%arg0: i32) -> (i32, i32, i32) {
    %c0_i32 = arith.constant 0 : i32
    %c0_i32_0 = arith.constant 0 : i32
    %c0_i32_1 = arith.constant 0 : i32
    return %arg0, %c0_i32, %c0_i32_0 : i32, i32, i32
  }
  func.func @transform_11(%arg0: i32) -> (i32, i32, i32) {
    %c0_i32 = arith.constant 0 : i32
    %c0_i32_0 = arith.constant 0 : i32
    %c0_i32_1 = arith.constant 0 : i32
    return %arg0, %c0_i32, %c0_i32_0 : i32, i32, i32
  }
  func.func @transform_12(%arg0: i32) -> (i32, i32, i32) {
    %c0_i32 = arith.constant 0 : i32
    %c0_i32_0 = arith.constant 0 : i32
    %c0_i32_1 = arith.constant 0 : i32
    return %arg0, %c0_i32, %c0_i32_0 : i32, i32, i32
  }
  func.func @transform_13(%arg0: i32) -> (i32, i32) {
    %c0_i32 = arith.constant 0 : i32
    %c0_i32_0 = arith.constant 0 : i32
    %c0_i32_1 = arith.constant 0 : i32
    return %c0_i32, %c0_i32_0 : i32, i32
  }
}

module attributes {stable_mosaic.version = 11 : i64} {
  func.func @_qhead_kernel(%arg0: memref<18x256xf32, #tpu.memory_space<vmem>>, %arg1: memref<2x18xf32, #tpu.memory_space<vmem>>, %arg2: memref<256x768xbf16, #tpu.memory_space<vmem>>, %arg3: memref<1x768xf32, #tpu.memory_space<vmem>>, %arg4: memref<256x256xbf16, #tpu.memory_space<vmem>>, %arg5: memref<1x256xf32, #tpu.memory_space<vmem>>, %arg6: memref<256x1024xbf16, #tpu.memory_space<vmem>>, %arg7: memref<1x1024xf32, #tpu.memory_space<vmem>>, %arg8: memref<1024x256xbf16, #tpu.memory_space<vmem>>, %arg9: memref<1x256xf32, #tpu.memory_space<vmem>>, %arg10: memref<256x288xbf16, #tpu.memory_space<vmem>>, %arg11: memref<1x288xf32, #tpu.memory_space<vmem>>, %arg12: memref<2x288xf32, #tpu.memory_space<vmem>>) attributes {dimension_semantics = [], scalar_prefetch = 0 : i64, scratch_operands = 0 : i64, tpu.core_type = #tpu.core_type<tc>} {
    %c0 = arith.constant 0 : index
    %c0_0 = arith.constant 0 : index
    %0 = vector.load %arg0[%c0, %c0_0] : memref<18x256xf32, #tpu.memory_space<vmem>>, vector<18x256xf32>
    %1 = arith.truncf %0 : vector<18x256xf32> to vector<18x256xbf16>
    %c0_1 = arith.constant 0 : index
    %c0_2 = arith.constant 0 : index
    %2 = vector.load %arg2[%c0_1, %c0_2] : memref<256x768xbf16, #tpu.memory_space<vmem>>, vector<256x768xbf16>
    %cst = arith.constant dense<0.000000e+00> : vector<18x768xf32>
    %3 = tpu.matmul %1, %2, %cst {dimension_numbers = #tpu.dot_dimension_numbers<[1], [0], [0], [1], [0, 0, 1, 1], [], []>} : vector<18x256xbf16>, vector<256x768xbf16>, vector<18x768xf32> -> vector<18x768xf32>
    %c0_3 = arith.constant 0 : index
    %c0_4 = arith.constant 0 : index
    %4 = vector.load %arg3[%c0_3, %c0_4] : memref<1x768xf32, #tpu.memory_space<vmem>>, vector<1x768xf32>
    %5 = vector.broadcast %4 : vector<1x768xf32> to vector<18x768xf32>
    %6 = arith.addf %3, %5 : vector<18x768xf32>
    %7 = vector.extract_strided_slice %6 {offsets = [0, 0], sizes = [1, 256], strides = [1, 1]} : vector<18x768xf32> to vector<1x256xf32>
    %8 = vector.extract_strided_slice %6 {offsets = [9, 0], sizes = [1, 256], strides = [1, 1]} : vector<18x768xf32> to vector<1x256xf32>
    %9 = tpu.concatenate %7, %8 in 0 : vector<1x256xf32>, vector<1x256xf32> -> vector<2x256xf32>
    %10 = vector.extract_strided_slice %6 {offsets = [0, 256], sizes = [18, 256], strides = [1, 1]} : vector<18x768xf32> to vector<18x256xf32>
    %11 = vector.extract_strided_slice %6 {offsets = [0, 512], sizes = [18, 256], strides = [1, 1]} : vector<18x768xf32> to vector<18x256xf32>
    %c0_5 = arith.constant 0 : index
    %c0_6 = arith.constant 0 : index
    %12 = vector.load %arg1[%c0_5, %c0_6] : memref<2x18xf32, #tpu.memory_space<vmem>>, vector<2x18xf32>
    %13 = vector.extract_strided_slice %9 {offsets = [0, 0], sizes = [2, 32], strides = [1, 1]} : vector<2x256xf32> to vector<2x32xf32>
    %14 = arith.truncf %13 : vector<2x32xf32> to vector<2x32xbf16>
    %15 = vector.extract_strided_slice %10 {offsets = [0, 0], sizes = [18, 32], strides = [1, 1]} : vector<18x256xf32> to vector<18x32xf32>
    %16 = arith.truncf %15 : vector<18x32xf32> to vector<18x32xbf16>
    %17 = vector.extract_strided_slice %11 {offsets = [0, 0], sizes = [18, 32], strides = [1, 1]} : vector<18x256xf32> to vector<18x32xf32>
    %18 = arith.truncf %17 : vector<18x32xf32> to vector<18x32xbf16>
    %cst_7 = arith.constant dense<0.000000e+00> : vector<2x18xf32>
    %19 = tpu.matmul %14, %16, %cst_7 {dimension_numbers = #tpu.dot_dimension_numbers<[1], [1], [0], [0], [0, 0, 1, 0], [], []>} : vector<2x32xbf16>, vector<18x32xbf16>, vector<2x18xf32> -> vector<2x18xf32>
    %cst_8 = arith.constant 0.176776692 : f32
    %20 = vector.broadcast %cst_8 : f32 to vector<2x18xf32>
    %21 = arith.mulf %19, %20 : vector<2x18xf32>
    %22 = arith.addf %21, %12 : vector<2x18xf32>
    %cst_9 = arith.constant dense<0xFF800000> : vector<2xf32>
    %23 = vector.multi_reduction <maximumf>, %22, %cst_9 [1] : vector<2x18xf32> to vector<2xf32>
    %24 = vector.shape_cast %23 : vector<2xf32> to vector<2x1xf32>
    %25 = vector.broadcast %24 : vector<2x1xf32> to vector<2x18xf32>
    %26 = arith.subf %22, %25 : vector<2x18xf32>
    %27 = math.exp %26 : vector<2x18xf32>
    %cst_10 = arith.constant dense<0.000000e+00> : vector<2xf32>
    %28 = vector.multi_reduction <add>, %27, %cst_10 [1] : vector<2x18xf32> to vector<2xf32>
    %29 = vector.shape_cast %28 : vector<2xf32> to vector<2x1xf32>
    %30 = tpu.reciprocal %29 {approx = true} : vector<2x1xf32> -> vector<2x1xf32>
    %31 = vector.broadcast %30 : vector<2x1xf32> to vector<2x18xf32>
    %32 = arith.mulf %27, %31 : vector<2x18xf32>
    %33 = arith.truncf %32 : vector<2x18xf32> to vector<2x18xbf16>
    %cst_11 = arith.constant dense<0.000000e+00> : vector<2x32xf32>
    %34 = tpu.matmul %33, %18, %cst_11 {dimension_numbers = #tpu.dot_dimension_numbers<[1], [0], [0], [1], [0, 0, 1, 1], [], []>} : vector<2x18xbf16>, vector<18x32xbf16>, vector<2x32xf32> -> vector<2x32xf32>
    %35 = vector.extract_strided_slice %9 {offsets = [0, 32], sizes = [2, 32], strides = [1, 1]} : vector<2x256xf32> to vector<2x32xf32>
    %36 = arith.truncf %35 : vector<2x32xf32> to vector<2x32xbf16>
    %37 = vector.extract_strided_slice %10 {offsets = [0, 32], sizes = [18, 32], strides = [1, 1]} : vector<18x256xf32> to vector<18x32xf32>
    %38 = arith.truncf %37 : vector<18x32xf32> to vector<18x32xbf16>
    %39 = vector.extract_strided_slice %11 {offsets = [0, 32], sizes = [18, 32], strides = [1, 1]} : vector<18x256xf32> to vector<18x32xf32>
    %40 = arith.truncf %39 : vector<18x32xf32> to vector<18x32xbf16>
    %cst_12 = arith.constant dense<0.000000e+00> : vector<2x18xf32>
    %41 = tpu.matmul %36, %38, %cst_12 {dimension_numbers = #tpu.dot_dimension_numbers<[1], [1], [0], [0], [0, 0, 1, 0], [], []>} : vector<2x32xbf16>, vector<18x32xbf16>, vector<2x18xf32> -> vector<2x18xf32>
    %cst_13 = arith.constant 0.176776692 : f32
    %42 = vector.broadcast %cst_13 : f32 to vector<2x18xf32>
    %43 = arith.mulf %41, %42 : vector<2x18xf32>
    %44 = arith.addf %43, %12 : vector<2x18xf32>
    %cst_14 = arith.constant dense<0xFF800000> : vector<2xf32>
    %45 = vector.multi_reduction <maximumf>, %44, %cst_14 [1] : vector<2x18xf32> to vector<2xf32>
    %46 = vector.shape_cast %45 : vector<2xf32> to vector<2x1xf32>
    %47 = vector.broadcast %46 : vector<2x1xf32> to vector<2x18xf32>
    %48 = arith.subf %44, %47 : vector<2x18xf32>
    %49 = math.exp %48 : vector<2x18xf32>
    %cst_15 = arith.constant dense<0.000000e+00> : vector<2xf32>
    %50 = vector.multi_reduction <add>, %49, %cst_15 [1] : vector<2x18xf32> to vector<2xf32>
    %51 = vector.shape_cast %50 : vector<2xf32> to vector<2x1xf32>
    %52 = tpu.reciprocal %51 {approx = true} : vector<2x1xf32> -> vector<2x1xf32>
    %53 = vector.broadcast %52 : vector<2x1xf32> to vector<2x18xf32>
    %54 = arith.mulf %49, %53 : vector<2x18xf32>
    %55 = arith.truncf %54 : vector<2x18xf32> to vector<2x18xbf16>
    %cst_16 = arith.constant dense<0.000000e+00> : vector<2x32xf32>
    %56 = tpu.matmul %55, %40, %cst_16 {dimension_numbers = #tpu.dot_dimension_numbers<[1], [0], [0], [1], [0, 0, 1, 1], [], []>} : vector<2x18xbf16>, vector<18x32xbf16>, vector<2x32xf32> -> vector<2x32xf32>
    %57 = vector.extract_strided_slice %9 {offsets = [0, 64], sizes = [2, 32], strides = [1, 1]} : vector<2x256xf32> to vector<2x32xf32>
    %58 = arith.truncf %57 : vector<2x32xf32> to vector<2x32xbf16>
    %59 = vector.extract_strided_slice %10 {offsets = [0, 64], sizes = [18, 32], strides = [1, 1]} : vector<18x256xf32> to vector<18x32xf32>
    %60 = arith.truncf %59 : vector<18x32xf32> to vector<18x32xbf16>
    %61 = vector.extract_strided_slice %11 {offsets = [0, 64], sizes = [18, 32], strides = [1, 1]} : vector<18x256xf32> to vector<18x32xf32>
    %62 = arith.truncf %61 : vector<18x32xf32> to vector<18x32xbf16>
    %cst_17 = arith.constant dense<0.000000e+00> : vector<2x18xf32>
    %63 = tpu.matmul %58, %60, %cst_17 {dimension_numbers = #tpu.dot_dimension_numbers<[1], [1], [0], [0], [0, 0, 1, 0], [], []>} : vector<2x32xbf16>, vector<18x32xbf16>, vector<2x18xf32> -> vector<2x18xf32>
    %cst_18 = arith.constant 0.176776692 : f32
    %64 = vector.broadcast %cst_18 : f32 to vector<2x18xf32>
    %65 = arith.mulf %63, %64 : vector<2x18xf32>
    %66 = arith.addf %65, %12 : vector<2x18xf32>
    %cst_19 = arith.constant dense<0xFF800000> : vector<2xf32>
    %67 = vector.multi_reduction <maximumf>, %66, %cst_19 [1] : vector<2x18xf32> to vector<2xf32>
    %68 = vector.shape_cast %67 : vector<2xf32> to vector<2x1xf32>
    %69 = vector.broadcast %68 : vector<2x1xf32> to vector<2x18xf32>
    %70 = arith.subf %66, %69 : vector<2x18xf32>
    %71 = math.exp %70 : vector<2x18xf32>
    %cst_20 = arith.constant dense<0.000000e+00> : vector<2xf32>
    %72 = vector.multi_reduction <add>, %71, %cst_20 [1] : vector<2x18xf32> to vector<2xf32>
    %73 = vector.shape_cast %72 : vector<2xf32> to vector<2x1xf32>
    %74 = tpu.reciprocal %73 {approx = true} : vector<2x1xf32> -> vector<2x1xf32>
    %75 = vector.broadcast %74 : vector<2x1xf32> to vector<2x18xf32>
    %76 = arith.mulf %71, %75 : vector<2x18xf32>
    %77 = arith.truncf %76 : vector<2x18xf32> to vector<2x18xbf16>
    %cst_21 = arith.constant dense<0.000000e+00> : vector<2x32xf32>
    %78 = tpu.matmul %77, %62, %cst_21 {dimension_numbers = #tpu.dot_dimension_numbers<[1], [0], [0], [1], [0, 0, 1, 1], [], []>} : vector<2x18xbf16>, vector<18x32xbf16>, vector<2x32xf32> -> vector<2x32xf32>
    %79 = vector.extract_strided_slice %9 {offsets = [0, 96], sizes = [2, 32], strides = [1, 1]} : vector<2x256xf32> to vector<2x32xf32>
    %80 = arith.truncf %79 : vector<2x32xf32> to vector<2x32xbf16>
    %81 = vector.extract_strided_slice %10 {offsets = [0, 96], sizes = [18, 32], strides = [1, 1]} : vector<18x256xf32> to vector<18x32xf32>
    %82 = arith.truncf %81 : vector<18x32xf32> to vector<18x32xbf16>
    %83 = vector.extract_strided_slice %11 {offsets = [0, 96], sizes = [18, 32], strides = [1, 1]} : vector<18x256xf32> to vector<18x32xf32>
    %84 = arith.truncf %83 : vector<18x32xf32> to vector<18x32xbf16>
    %cst_22 = arith.constant dense<0.000000e+00> : vector<2x18xf32>
    %85 = tpu.matmul %80, %82, %cst_22 {dimension_numbers = #tpu.dot_dimension_numbers<[1], [1], [0], [0], [0, 0, 1, 0], [], []>} : vector<2x32xbf16>, vector<18x32xbf16>, vector<2x18xf32> -> vector<2x18xf32>
    %cst_23 = arith.constant 0.176776692 : f32
    %86 = vector.broadcast %cst_23 : f32 to vector<2x18xf32>
    %87 = arith.mulf %85, %86 : vector<2x18xf32>
    %88 = arith.addf %87, %12 : vector<2x18xf32>
    %cst_24 = arith.constant dense<0xFF800000> : vector<2xf32>
    %89 = vector.multi_reduction <maximumf>, %88, %cst_24 [1] : vector<2x18xf32> to vector<2xf32>
    %90 = vector.shape_cast %89 : vector<2xf32> to vector<2x1xf32>
    %91 = vector.broadcast %90 : vector<2x1xf32> to vector<2x18xf32>
    %92 = arith.subf %88, %91 : vector<2x18xf32>
    %93 = math.exp %92 : vector<2x18xf32>
    %cst_25 = arith.constant dense<0.000000e+00> : vector<2xf32>
    %94 = vector.multi_reduction <add>, %93, %cst_25 [1] : vector<2x18xf32> to vector<2xf32>
    %95 = vector.shape_cast %94 : vector<2xf32> to vector<2x1xf32>
    %96 = tpu.reciprocal %95 {approx = true} : vector<2x1xf32> -> vector<2x1xf32>
    %97 = vector.broadcast %96 : vector<2x1xf32> to vector<2x18xf32>
    %98 = arith.mulf %93, %97 : vector<2x18xf32>
    %99 = arith.truncf %98 : vector<2x18xf32> to vector<2x18xbf16>
    %cst_26 = arith.constant dense<0.000000e+00> : vector<2x32xf32>
    %100 = tpu.matmul %99, %84, %cst_26 {dimension_numbers = #tpu.dot_dimension_numbers<[1], [0], [0], [1], [0, 0, 1, 1], [], []>} : vector<2x18xbf16>, vector<18x32xbf16>, vector<2x32xf32> -> vector<2x32xf32>
    %101 = vector.extract_strided_slice %9 {offsets = [0, 128], sizes = [2, 32], strides = [1, 1]} : vector<2x256xf32> to vector<2x32xf32>
    %102 = arith.truncf %101 : vector<2x32xf32> to vector<2x32xbf16>
    %103 = vector.extract_strided_slice %10 {offsets = [0, 128], sizes = [18, 32], strides = [1, 1]} : vector<18x256xf32> to vector<18x32xf32>
    %104 = arith.truncf %103 : vector<18x32xf32> to vector<18x32xbf16>
    %105 = vector.extract_strided_slice %11 {offsets = [0, 128], sizes = [18, 32], strides = [1, 1]} : vector<18x256xf32> to vector<18x32xf32>
    %106 = arith.truncf %105 : vector<18x32xf32> to vector<18x32xbf16>
    %cst_27 = arith.constant dense<0.000000e+00> : vector<2x18xf32>
    %107 = tpu.matmul %102, %104, %cst_27 {dimension_numbers = #tpu.dot_dimension_numbers<[1], [1], [0], [0], [0, 0, 1, 0], [], []>} : vector<2x32xbf16>, vector<18x32xbf16>, vector<2x18xf32> -> vector<2x18xf32>
    %cst_28 = arith.constant 0.176776692 : f32
    %108 = vector.broadcast %cst_28 : f32 to vector<2x18xf32>
    %109 = arith.mulf %107, %108 : vector<2x18xf32>
    %110 = arith.addf %109, %12 : vector<2x18xf32>
    %cst_29 = arith.constant dense<0xFF800000> : vector<2xf32>
    %111 = vector.multi_reduction <maximumf>, %110, %cst_29 [1] : vector<2x18xf32> to vector<2xf32>
    %112 = vector.shape_cast %111 : vector<2xf32> to vector<2x1xf32>
    %113 = vector.broadcast %112 : vector<2x1xf32> to vector<2x18xf32>
    %114 = arith.subf %110, %113 : vector<2x18xf32>
    %115 = math.exp %114 : vector<2x18xf32>
    %cst_30 = arith.constant dense<0.000000e+00> : vector<2xf32>
    %116 = vector.multi_reduction <add>, %115, %cst_30 [1] : vector<2x18xf32> to vector<2xf32>
    %117 = vector.shape_cast %116 : vector<2xf32> to vector<2x1xf32>
    %118 = tpu.reciprocal %117 {approx = true} : vector<2x1xf32> -> vector<2x1xf32>
    %119 = vector.broadcast %118 : vector<2x1xf32> to vector<2x18xf32>
    %120 = arith.mulf %115, %119 : vector<2x18xf32>
    %121 = arith.truncf %120 : vector<2x18xf32> to vector<2x18xbf16>
    %cst_31 = arith.constant dense<0.000000e+00> : vector<2x32xf32>
    %122 = tpu.matmul %121, %106, %cst_31 {dimension_numbers = #tpu.dot_dimension_numbers<[1], [0], [0], [1], [0, 0, 1, 1], [], []>} : vector<2x18xbf16>, vector<18x32xbf16>, vector<2x32xf32> -> vector<2x32xf32>
    %123 = vector.extract_strided_slice %9 {offsets = [0, 160], sizes = [2, 32], strides = [1, 1]} : vector<2x256xf32> to vector<2x32xf32>
    %124 = arith.truncf %123 : vector<2x32xf32> to vector<2x32xbf16>
    %125 = vector.extract_strided_slice %10 {offsets = [0, 160], sizes = [18, 32], strides = [1, 1]} : vector<18x256xf32> to vector<18x32xf32>
    %126 = arith.truncf %125 : vector<18x32xf32> to vector<18x32xbf16>
    %127 = vector.extract_strided_slice %11 {offsets = [0, 160], sizes = [18, 32], strides = [1, 1]} : vector<18x256xf32> to vector<18x32xf32>
    %128 = arith.truncf %127 : vector<18x32xf32> to vector<18x32xbf16>
    %cst_32 = arith.constant dense<0.000000e+00> : vector<2x18xf32>
    %129 = tpu.matmul %124, %126, %cst_32 {dimension_numbers = #tpu.dot_dimension_numbers<[1], [1], [0], [0], [0, 0, 1, 0], [], []>} : vector<2x32xbf16>, vector<18x32xbf16>, vector<2x18xf32> -> vector<2x18xf32>
    %cst_33 = arith.constant 0.176776692 : f32
    %130 = vector.broadcast %cst_33 : f32 to vector<2x18xf32>
    %131 = arith.mulf %129, %130 : vector<2x18xf32>
    %132 = arith.addf %131, %12 : vector<2x18xf32>
    %cst_34 = arith.constant dense<0xFF800000> : vector<2xf32>
    %133 = vector.multi_reduction <maximumf>, %132, %cst_34 [1] : vector<2x18xf32> to vector<2xf32>
    %134 = vector.shape_cast %133 : vector<2xf32> to vector<2x1xf32>
    %135 = vector.broadcast %134 : vector<2x1xf32> to vector<2x18xf32>
    %136 = arith.subf %132, %135 : vector<2x18xf32>
    %137 = math.exp %136 : vector<2x18xf32>
    %cst_35 = arith.constant dense<0.000000e+00> : vector<2xf32>
    %138 = vector.multi_reduction <add>, %137, %cst_35 [1] : vector<2x18xf32> to vector<2xf32>
    %139 = vector.shape_cast %138 : vector<2xf32> to vector<2x1xf32>
    %140 = tpu.reciprocal %139 {approx = true} : vector<2x1xf32> -> vector<2x1xf32>
    %141 = vector.broadcast %140 : vector<2x1xf32> to vector<2x18xf32>
    %142 = arith.mulf %137, %141 : vector<2x18xf32>
    %143 = arith.truncf %142 : vector<2x18xf32> to vector<2x18xbf16>
    %cst_36 = arith.constant dense<0.000000e+00> : vector<2x32xf32>
    %144 = tpu.matmul %143, %128, %cst_36 {dimension_numbers = #tpu.dot_dimension_numbers<[1], [0], [0], [1], [0, 0, 1, 1], [], []>} : vector<2x18xbf16>, vector<18x32xbf16>, vector<2x32xf32> -> vector<2x32xf32>
    %145 = vector.extract_strided_slice %9 {offsets = [0, 192], sizes = [2, 32], strides = [1, 1]} : vector<2x256xf32> to vector<2x32xf32>
    %146 = arith.truncf %145 : vector<2x32xf32> to vector<2x32xbf16>
    %147 = vector.extract_strided_slice %10 {offsets = [0, 192], sizes = [18, 32], strides = [1, 1]} : vector<18x256xf32> to vector<18x32xf32>
    %148 = arith.truncf %147 : vector<18x32xf32> to vector<18x32xbf16>
    %149 = vector.extract_strided_slice %11 {offsets = [0, 192], sizes = [18, 32], strides = [1, 1]} : vector<18x256xf32> to vector<18x32xf32>
    %150 = arith.truncf %149 : vector<18x32xf32> to vector<18x32xbf16>
    %cst_37 = arith.constant dense<0.000000e+00> : vector<2x18xf32>
    %151 = tpu.matmul %146, %148, %cst_37 {dimension_numbers = #tpu.dot_dimension_numbers<[1], [1], [0], [0], [0, 0, 1, 0], [], []>} : vector<2x32xbf16>, vector<18x32xbf16>, vector<2x18xf32> -> vector<2x18xf32>
    %cst_38 = arith.constant 0.176776692 : f32
    %152 = vector.broadcast %cst_38 : f32 to vector<2x18xf32>
    %153 = arith.mulf %151, %152 : vector<2x18xf32>
    %154 = arith.addf %153, %12 : vector<2x18xf32>
    %cst_39 = arith.constant dense<0xFF800000> : vector<2xf32>
    %155 = vector.multi_reduction <maximumf>, %154, %cst_39 [1] : vector<2x18xf32> to vector<2xf32>
    %156 = vector.shape_cast %155 : vector<2xf32> to vector<2x1xf32>
    %157 = vector.broadcast %156 : vector<2x1xf32> to vector<2x18xf32>
    %158 = arith.subf %154, %157 : vector<2x18xf32>
    %159 = math.exp %158 : vector<2x18xf32>
    %cst_40 = arith.constant dense<0.000000e+00> : vector<2xf32>
    %160 = vector.multi_reduction <add>, %159, %cst_40 [1] : vector<2x18xf32> to vector<2xf32>
    %161 = vector.shape_cast %160 : vector<2xf32> to vector<2x1xf32>
    %162 = tpu.reciprocal %161 {approx = true} : vector<2x1xf32> -> vector<2x1xf32>
    %163 = vector.broadcast %162 : vector<2x1xf32> to vector<2x18xf32>
    %164 = arith.mulf %159, %163 : vector<2x18xf32>
    %165 = arith.truncf %164 : vector<2x18xf32> to vector<2x18xbf16>
    %cst_41 = arith.constant dense<0.000000e+00> : vector<2x32xf32>
    %166 = tpu.matmul %165, %150, %cst_41 {dimension_numbers = #tpu.dot_dimension_numbers<[1], [0], [0], [1], [0, 0, 1, 1], [], []>} : vector<2x18xbf16>, vector<18x32xbf16>, vector<2x32xf32> -> vector<2x32xf32>
    %167 = vector.extract_strided_slice %9 {offsets = [0, 224], sizes = [2, 32], strides = [1, 1]} : vector<2x256xf32> to vector<2x32xf32>
    %168 = arith.truncf %167 : vector<2x32xf32> to vector<2x32xbf16>
    %169 = vector.extract_strided_slice %10 {offsets = [0, 224], sizes = [18, 32], strides = [1, 1]} : vector<18x256xf32> to vector<18x32xf32>
    %170 = arith.truncf %169 : vector<18x32xf32> to vector<18x32xbf16>
    %171 = vector.extract_strided_slice %11 {offsets = [0, 224], sizes = [18, 32], strides = [1, 1]} : vector<18x256xf32> to vector<18x32xf32>
    %172 = arith.truncf %171 : vector<18x32xf32> to vector<18x32xbf16>
    %cst_42 = arith.constant dense<0.000000e+00> : vector<2x18xf32>
    %173 = tpu.matmul %168, %170, %cst_42 {dimension_numbers = #tpu.dot_dimension_numbers<[1], [1], [0], [0], [0, 0, 1, 0], [], []>} : vector<2x32xbf16>, vector<18x32xbf16>, vector<2x18xf32> -> vector<2x18xf32>
    %cst_43 = arith.constant 0.176776692 : f32
    %174 = vector.broadcast %cst_43 : f32 to vector<2x18xf32>
    %175 = arith.mulf %173, %174 : vector<2x18xf32>
    %176 = arith.addf %175, %12 : vector<2x18xf32>
    %cst_44 = arith.constant dense<0xFF800000> : vector<2xf32>
    %177 = vector.multi_reduction <maximumf>, %176, %cst_44 [1] : vector<2x18xf32> to vector<2xf32>
    %178 = vector.shape_cast %177 : vector<2xf32> to vector<2x1xf32>
    %179 = vector.broadcast %178 : vector<2x1xf32> to vector<2x18xf32>
    %180 = arith.subf %176, %179 : vector<2x18xf32>
    %181 = math.exp %180 : vector<2x18xf32>
    %cst_45 = arith.constant dense<0.000000e+00> : vector<2xf32>
    %182 = vector.multi_reduction <add>, %181, %cst_45 [1] : vector<2x18xf32> to vector<2xf32>
    %183 = vector.shape_cast %182 : vector<2xf32> to vector<2x1xf32>
    %184 = tpu.reciprocal %183 {approx = true} : vector<2x1xf32> -> vector<2x1xf32>
    %185 = vector.broadcast %184 : vector<2x1xf32> to vector<2x18xf32>
    %186 = arith.mulf %181, %185 : vector<2x18xf32>
    %187 = arith.truncf %186 : vector<2x18xf32> to vector<2x18xbf16>
    %cst_46 = arith.constant dense<0.000000e+00> : vector<2x32xf32>
    %188 = tpu.matmul %187, %172, %cst_46 {dimension_numbers = #tpu.dot_dimension_numbers<[1], [0], [0], [1], [0, 0, 1, 1], [], []>} : vector<2x18xbf16>, vector<18x32xbf16>, vector<2x32xf32> -> vector<2x32xf32>
    %189 = tpu.concatenate %34, %56, %78, %100, %122, %144, %166, %188 in 1 : vector<2x32xf32>, vector<2x32xf32>, vector<2x32xf32>, vector<2x32xf32>, vector<2x32xf32>, vector<2x32xf32>, vector<2x32xf32>, vector<2x32xf32> -> vector<2x256xf32>
    %190 = arith.truncf %189 : vector<2x256xf32> to vector<2x256xbf16>
    %c0_47 = arith.constant 0 : index
    %c0_48 = arith.constant 0 : index
    %191 = vector.load %arg4[%c0_47, %c0_48] : memref<256x256xbf16, #tpu.memory_space<vmem>>, vector<256x256xbf16>
    %cst_49 = arith.constant dense<0.000000e+00> : vector<2x256xf32>
    %192 = tpu.matmul %190, %191, %cst_49 {dimension_numbers = #tpu.dot_dimension_numbers<[1], [0], [0], [1], [0, 0, 1, 1], [], []>} : vector<2x256xbf16>, vector<256x256xbf16>, vector<2x256xf32> -> vector<2x256xf32>
    %c0_50 = arith.constant 0 : index
    %c0_51 = arith.constant 0 : index
    %193 = vector.load %arg5[%c0_50, %c0_51] : memref<1x256xf32, #tpu.memory_space<vmem>>, vector<1x256xf32>
    %194 = vector.broadcast %193 : vector<1x256xf32> to vector<2x256xf32>
    %195 = arith.addf %192, %194 : vector<2x256xf32>
    %196 = arith.truncf %195 : vector<2x256xf32> to vector<2x256xbf16>
    %c0_52 = arith.constant 0 : index
    %c0_53 = arith.constant 0 : index
    %197 = vector.load %arg6[%c0_52, %c0_53] : memref<256x1024xbf16, #tpu.memory_space<vmem>>, vector<256x1024xbf16>
    %cst_54 = arith.constant dense<0.000000e+00> : vector<2x1024xf32>
    %198 = tpu.matmul %196, %197, %cst_54 {dimension_numbers = #tpu.dot_dimension_numbers<[1], [0], [0], [1], [0, 0, 1, 1], [], []>} : vector<2x256xbf16>, vector<256x1024xbf16>, vector<2x1024xf32> -> vector<2x1024xf32>
    %c0_55 = arith.constant 0 : index
    %c0_56 = arith.constant 0 : index
    %199 = vector.load %arg7[%c0_55, %c0_56] : memref<1x1024xf32, #tpu.memory_space<vmem>>, vector<1x1024xf32>
    %200 = vector.broadcast %199 : vector<1x1024xf32> to vector<2x1024xf32>
    %201 = arith.addf %198, %200 : vector<2x1024xf32>
    %cst_57 = arith.constant 0.000000e+00 : f32
    %202 = vector.broadcast %cst_57 : f32 to vector<2x1024xf32>
    %203 = arith.maximumf %201, %202 : vector<2x1024xf32>
    %204 = arith.truncf %203 : vector<2x1024xf32> to vector<2x1024xbf16>
    %c0_58 = arith.constant 0 : index
    %c0_59 = arith.constant 0 : index
    %205 = vector.load %arg8[%c0_58, %c0_59] : memref<1024x256xbf16, #tpu.memory_space<vmem>>, vector<1024x256xbf16>
    %cst_60 = arith.constant dense<0.000000e+00> : vector<2x256xf32>
    %206 = tpu.matmul %204, %205, %cst_60 {dimension_numbers = #tpu.dot_dimension_numbers<[1], [0], [0], [1], [0, 0, 1, 1], [], []>} : vector<2x1024xbf16>, vector<1024x256xbf16>, vector<2x256xf32> -> vector<2x256xf32>
    %c0_61 = arith.constant 0 : index
    %c0_62 = arith.constant 0 : index
    %207 = vector.load %arg9[%c0_61, %c0_62] : memref<1x256xf32, #tpu.memory_space<vmem>>, vector<1x256xf32>
    %208 = vector.broadcast %207 : vector<1x256xf32> to vector<2x256xf32>
    %209 = arith.addf %206, %208 : vector<2x256xf32>
    %210 = arith.truncf %209 : vector<2x256xf32> to vector<2x256xbf16>
    %c0_63 = arith.constant 0 : index
    %c0_64 = arith.constant 0 : index
    %211 = vector.load %arg10[%c0_63, %c0_64] : memref<256x288xbf16, #tpu.memory_space<vmem>>, vector<256x288xbf16>
    %cst_65 = arith.constant dense<0.000000e+00> : vector<2x288xf32>
    %212 = tpu.matmul %210, %211, %cst_65 {dimension_numbers = #tpu.dot_dimension_numbers<[1], [0], [0], [1], [0, 0, 1, 1], [], []>} : vector<2x256xbf16>, vector<256x288xbf16>, vector<2x288xf32> -> vector<2x288xf32>
    %c0_66 = arith.constant 0 : index
    %c0_67 = arith.constant 0 : index
    %213 = vector.load %arg11[%c0_66, %c0_67] : memref<1x288xf32, #tpu.memory_space<vmem>>, vector<1x288xf32>
    %214 = vector.broadcast %213 : vector<1x288xf32> to vector<2x288xf32>
    %215 = arith.addf %212, %214 : vector<2x288xf32>
    %c0_68 = arith.constant 0 : index
    %c0_69 = arith.constant 0 : index
    %216 = vector.load %arg12[%c0_68, %c0_69] : memref<2x288xf32, #tpu.memory_space<vmem>>, vector<2x288xf32>
    tpu.vector_store %arg12[%c0_68, %c0_69], %215 {strides = array<i32>} : memref<2x288xf32, #tpu.memory_space<vmem>>, vector<2x288xf32>,
    return
  }
}

</mosaic_0001>

<llo_original>
// kernel: eq.15
$region0: #{eq.15}
  %s0 = inlined_call_operand.vmem [shape: s32[2,9], index: 0, kind: input, shape index: {}]
  %s1 = inlined_call_operand.vmem [shape: s32[18], index: 1, kind: output, shape index: {}]
  $region1: #{eq.15} parent=0
    #allocation0 [shape = 'u8[4096]{0}', space=vmem, size = 0x1000, scoped, tag = 'scoped mem for output reshape']
    #allocation1 [shape = 'u8[4096]{0}', space=vmem, size = 0x1000, scoped, tag = 'scoped mem for input reshape']
    %s3 = ssub.s32 4, 1
    %v4 = vld [vmem:[%s0] sm:%s3]
    %5 = vst [vmem:[#allocation1] sm:%s3] %v4
    %v6 = vld [vmem:[#allocation1] sm:$0x1]
    %vm7 = vcmask 72704
    %8 = vst.msk [vmem:[#allocation0] sm:$0x1] %vm7, %v6
    %s9 = scalar_lea.vmem [#allocation1], 1
    %v10 = vld [vmem:[%s9] sm:$0x1]
    %11 = vrot.lane.b32.xlu0 %v10, 9
    %v12 = vpop.permute.xlu0 %11
    %vm13 = vcmask 146504
    %14 = vst.msk [vmem:[#allocation0] sm:$0x1] %vm13, %v12
    %s16 = ssub.s32 2, 1
    %v17 = vld [vmem:[#allocation0] sm:%s16]
    %s19 = ssub.s32 2, 1
    %20 = vst [vmem:[%s1] sm:%s19] %v17

// kernel: forward_pallas.2
$region0: #{forward_pallas.2}
  #allocation0 [shape = 'u32[]', space=smem, size = 0x4, offset = 0x4, fixed_abs, tag = 'smem constant byte address 0x4 - core index']
  #allocation1 [shape = 'u32[72,128]{1,0:T(1,128)}', space=vmem, size = 0x9000, scoped, tag = 'internal scratch']
  #allocation2 [shape = 'f32[18,256]{1,0:T(8,128)}', space=vmem, size = 0x6000, scoped, tag = 'scratch operand']
  %s0 = inlined_call_operand.vmem [shape: f32[18,18], index: 0, kind: input, shape index: {}]
  %s1 = inlined_call_operand.vmem [shape: f32[16,222], index: 1, kind: input, shape index: {}]
  %s2 = inlined_call_operand.hbm [shape: bf16[222,256], index: 2, kind: input, shape index: {}]
  %s3 = inlined_call_operand.hbm [shape: f32[1,256], index: 3, kind: input, shape index: {}]
  %s4 = inlined_call_operand.hbm [shape: f32[1,256], index: 4, kind: input, shape index: {}]
  %s5 = inlined_call_operand.hbm [shape: bf16[16,256,768], index: 5, kind: input, shape index: {}]
  %s6 = inlined_call_operand.hbm [shape: f32[16,1,768], index: 6, kind: input, shape index: {}]
  %s7 = inlined_call_operand.hbm [shape: bf16[16,256,256], index: 7, kind: input, shape index: {}]
  %s8 = inlined_call_operand.hbm [shape: f32[16,1,256], index: 8, kind: input, shape index: {}]
  %s9 = inlined_call_operand.hbm [shape: bf16[16,256,1024], index: 9, kind: input, shape index: {}]
  %s10 = inlined_call_operand.hbm [shape: f32[16,1,1024], index: 10, kind: input, shape index: {}]
  %s11 = inlined_call_operand.hbm [shape: bf16[16,1024,256], index: 11, kind: input, shape index: {}]
  %s12 = inlined_call_operand.hbm [shape: f32[16,1,256], index: 12, kind: input, shape index: {}]
  %s13 = inlined_call_operand.vmem [shape: f32[18,256], index: 13, kind: output, shape index: {}]
  %s14 = sld [smem:[#allocation0]]
  $region133: #{forward_pallas.2} parent=0
    _
  %s16 = ssub.s32 1, %s14
  %s17 = scalar_select 0, %s16, %s14
  $region1: #{forward_pallas.2} parent=0
    #allocation3 [shape = 'u8[114688]{0}', space=vmem, size = 0x1c000, scoped, tag = 'input window, operand 2, single buffered']
    #allocation4 [shape = 's32[2]{0}', space=sflag, size = 0x8, scoped, tag = 'scoped memory for forward_pallas.2']
    #allocation5 [shape = 'u8[1024]{0}', space=vmem, size = 0x400, scoped, tag = 'input window, operand 3, single buffered']
    #allocation6 [shape = 's32[1]{0}', space=sflag, size = 0x4, scoped, tag = 'scoped memory for forward_pallas.2']
    #allocation7 [shape = 'u8[1024]{0}', space=vmem, size = 0x400, scoped, tag = 'input window, operand 4, single buffered']
    #allocation8 [shape = 'u8[786432]{0}', space=vmem, size = 0xc0000, scoped, tag = 'input window, operand 5']
    #allocation9 [shape = 's32[2]{0}', space=sflag, size = 0x8, scoped, tag = 'scoped memory for forward_pallas.2']
    #allocation10 [shape = 'u8[6144]{0}', space=vmem, size = 0x1800, scoped, tag = 'input window, operand 6']
    #allocation11 [shape = 'u8[262144]{0}', space=vmem, size = 0x40000, scoped, tag = 'input window, operand 7']
    #allocation12 [shape = 's32[2]{0}', space=sflag, size = 0x8, scoped, tag = 'scoped memory for forward_pallas.2']
    #allocation13 [shape = 'u8[2048]{0}', space=vmem, size = 0x800, scoped, tag = 'input window, operand 8']
    #allocation14 [shape = 'u8[1048576]{0}', space=vmem, size = 0x100000, scoped, tag = 'input window, operand 9']
    #allocation15 [shape = 's32[2]{0}', space=sflag, size = 0x8, scoped, tag = 'scoped memory for forward_pallas.2']
    #allocation16 [shape = 'u8[8192]{0}', space=vmem, size = 0x2000, scoped, tag = 'input window, operand 10']
    #allocation17 [shape = 'u8[1048576]{0}', space=vmem, size = 0x100000, scoped, tag = 'input window, operand 11']
    #allocation18 [shape = 's32[2]{0}', space=sflag, size = 0x8, scoped, tag = 'scoped memory for forward_pallas.2']
    #allocation19 [shape = 'u8[2048]{0}', space=vmem, size = 0x800, scoped, tag = 'input window, operand 12']
    %18 = vsyncpa [#allocation4], 0
    %19 = vsyncpa [#allocation6], 0
    %20 = vsyncpa [#allocation9], 0
    %s21 = scalar_lea.sflag [#allocation9], 1
    %22 = vsyncpa %s21, 0
    %23 = vsyncpa [#allocation12], 0
    %s24 = scalar_lea.sflag [#allocation12], 1
    %25 = vsyncpa %s24, 0
    %26 = vsyncpa [#allocation15], 0
    %s27 = scalar_lea.sflag [#allocation15], 1
    %28 = vsyncpa %s27, 0
    %29 = vsyncpa [#allocation18], 0
    %s30 = scalar_lea.sflag [#allocation18], 1
    %31 = vsyncpa %s30, 0
    loop: start=0, step=1, limit=18
    $region2: #{forward_pallas.2} parent=1 // loop_pre_header
      _
    $region3: #{forward_pallas.2} parent=1 // loop_header
      %s33 = sphi 0, %s37
      %p34 = scmp.ge.s32.totalorder %s33, 18
      %s41 = sphi 0, %s41
      %s43 = sphi 0, %s41
      %s44 = sphi 0, %s43
      %s58 = sphi 0, %s44
      %s62 = sphi 0, %s62
      %s64 = sphi 0, %s62
      %s65 = sphi 0, %s64
      %s79 = sphi 0, %s65
      %s83 = sphi 0, %s83
      %s85 = sphi 0, %s83
      %s86 = sphi 0, %s85
      %s100 = sphi 0, %s86
      %s104 = sphi 0, %s104
      %s106 = sphi 0, %s104
      %s107 = sphi 0, %s106
      %s121 = sphi 0, %s107
      %s125 = sphi 0, %s125
      %s127 = sphi 0, %s125
      %s128 = sphi 0, %s127
      %s142 = sphi 0, %s128
      %s148 = sphi 0, %s150
      %s151 = sphi 0, %s148
      %s152 = sphi 0, %s151
      %s168 = sphi 0, %s152
      %s174 = sphi 0, %s176
      %s177 = sphi 0, %s174
      %s178 = sphi 0, %s177
      %s194 = sphi 0, %s178
      %s200 = sphi 0, %s202
      %s203 = sphi 0, %s200
      %s204 = sphi 0, %s203
      %s220 = sphi 0, %s204
      %s226 = sphi 0, %s228
      %s229 = sphi 0, %s226
      %s230 = sphi 0, %s229
      %s246 = sphi 0, %s230
      %s252 = sphi 0, %s254
      %s255 = sphi 0, %s252
      %s256 = sphi 0, %s255
      %s272 = sphi 0, %s256
      %s278 = sphi 0, %s280
      %s281 = sphi 0, %s278
      %s282 = sphi 0, %s281
      %s298 = sphi 0, %s282
      %s304 = sphi 0, %s306
      %s307 = sphi 0, %s304
      %s308 = sphi 0, %s307
      %s324 = sphi 0, %s308
      %s330 = sphi 0, %s332
      %s333 = sphi 0, %s330
      %s334 = sphi 0, %s333
      %s350 = sphi 0, %s334
      %s354 = sphi 0, %s354
      %s356 = sphi 0, %s354
      %s357 = sphi 0, %s356
      %s371 = sphi 0, %s357
    $region4: #{forward_pallas.2} parent=1 // loop_header_branch
      %36 = sbr.rel (%p34) target = $region8
    $region5: #{forward_pallas.2} parent=1 // loop_body
      %s38 = ssub.s32 %s33, 1
      %s39 = ssub.s32 %s33, 2
      %s40 = sadd.s32 %s33, 1
      %s42 = sadd.s32 %s41, 1
      %p45 = scmp.eq.s32.totalorder %s33, 15
      %p46 = scmp.ne.s32.totalorder %s41, %s43
      %p47 = scmp.eq.s32.totalorder %s33, 0
      %p48 = por %p46, %p47
      %p49 = scmp.ne.s32.totalorder %s41, %s43
      %p50 = scmp.eq.s32.totalorder %s38, 15
      %p51 = por %p49, %p50
      %p52 = scmp.ne.s32.totalorder %s43, %s44
      %p53 = scmp.eq.s32.totalorder %s38, 0
      %p54 = por %p52, %p53
      %p55 = scmp.ne.s32.totalorder %s43, %s44
      %p56 = scmp.eq.s32.totalorder %s39, 15
      %p57 = por %p55, %p56
      %p59 = scmp.ne.s32.totalorder %s44, %s58
      %p60 = scmp.eq.s32.totalorder %s39, 0
      %p61 = por %p59, %p60
      %s63 = sadd.s32 %s62, 1
      %p66 = scmp.eq.s32.totalorder %s33, 15
      %p67 = scmp.ne.s32.totalorder %s62, %s64
      %p68 = scmp.eq.s32.totalorder %s33, 0
      %p69 = por %p67, %p68
      %p70 = scmp.ne.s32.totalorder %s62, %s64
      %p71 = scmp.eq.s32.totalorder %s38, 15
      %p72 = por %p70, %p71
      %p73 = scmp.ne.s32.totalorder %s64, %s65
      %p74 = scmp.eq.s32.totalorder %s38, 0
      %p75 = por %p73, %p74
      %p76 = scmp.ne.s32.totalorder %s64, %s65
      %p77 = scmp.eq.s32.totalorder %s39, 15
      %p78 = por %p76, %p77
      %p80 = scmp.ne.s32.totalorder %s65, %s79
      %p81 = scmp.eq.s32.totalorder %s39, 0
      %p82 = por %p80, %p81
      %s84 = sadd.s32 %s83, 1
      %p87 = scmp.eq.s32.totalorder %s33, 15
      %p88 = scmp.ne.s32.totalorder %s83, %s85
      %p89 = scmp.eq.s32.totalorder %s33, 0
      %p90 = por %p88, %p89
      %p91 = scmp.ne.s32.totalorder %s83, %s85
      %p92 = scmp.eq.s32.totalorder %s38, 15
      %p93 = por %p91, %p92
      %p94 = scmp.ne.s32.totalorder %s85, %s86
      %p95 = scmp.eq.s32.totalorder %s38, 0
      %p96 = por %p94, %p95
      %p97 = scmp.ne.s32.totalorder %s85, %s86
      %p98 = scmp.eq.s32.totalorder %s39, 15
      %p99 = por %p97, %p98
      %p101 = scmp.ne.s32.totalorder %s86, %s100
      %p102 = scmp.eq.s32.totalorder %s39, 0
      %p103 = por %p101, %p102
      %s105 = sadd.s32 %s104, 1
      %p108 = scmp.eq.s32.totalorder %s33, 15
      %p109 = scmp.ne.s32.totalorder %s104, %s106
      %p110 = scmp.eq.s32.totalorder %s33, 0
      %p111 = por %p109, %p110
      %p112 = scmp.ne.s32.totalorder %s104, %s106
      %p113 = scmp.eq.s32.totalorder %s38, 15
      %p114 = por %p112, %p113
      %p115 = scmp.ne.s32.totalorder %s106, %s107
      %p116 = scmp.eq.s32.totalorder %s38, 0
      %p117 = por %p115, %p116
      %p118 = scmp.ne.s32.totalorder %s106, %s107
      %p119 = scmp.eq.s32.totalorder %s39, 15
      %p120 = por %p118, %p119
      %p122 = scmp.ne.s32.totalorder %s107, %s121
      %p123 = scmp.eq.s32.totalorder %s39, 0
      %p124 = por %p122, %p123
      %s126 = sadd.s32 %s125, 1
      %p129 = scmp.eq.s32.totalorder %s33, 15
      %p130 = scmp.ne.s32.totalorder %s125, %s127
      %p131 = scmp.eq.s32.totalorder %s33, 0
      %p132 = por %p130, %p131
      %p133 = scmp.ne.s32.totalorder %s125, %s127
      %p134 = scmp.eq.s32.totalorder %s38, 15
      %p135 = por %p133, %p134
      %p136 = scmp.ne.s32.totalorder %s127, %s128
      %p137 = scmp.eq.s32.totalorder %s38, 0
      %p138 = por %p136, %p137
      %p139 = scmp.ne.s32.totalorder %s127, %s128
      %p140 = scmp.eq.s32.totalorder %s39, 15
      %p141 = por %p139, %p140
      %p143 = scmp.ne.s32.totalorder %s128, %s142
      %p144 = scmp.eq.s32.totalorder %s39, 0
      %p145 = por %p143, %p144
      %s146 = ssub.s32 %s33, %s40
      %p147 = scmp.eq.s32.totalorder %s146, 0
      %s149 = sadd.s32 %s148, 1
      %s150 = scalar_select %p147, %s148, %s149
      %p153 = pneg %p147
      %p154 = scmp.eq.s32.totalorder %s33, 15
      %p155 = por %p153, %p154
      %p156 = scmp.ne.s32.totalorder %s148, %s151
      %p157 = scmp.eq.s32.totalorder %s33, 0
      %p158 = por %p156, %p157
      %p159 = scmp.ne.s32.totalorder %s148, %s151
      %p160 = scmp.eq.s32.totalorder %s38, 15
      %p161 = por %p159, %p160
      %p162 = scmp.ne.s32.totalorder %s151, %s152
      %p163 = scmp.eq.s32.totalorder %s38, 0
      %p164 = por %p162, %p163
      %p165 = scmp.ne.s32.totalorder %s151, %s152
      %p166 = scmp.eq.s32.totalorder %s39, 15
      %p167 = por %p165, %p166
      %p169 = scmp.ne.s32.totalorder %s152, %s168
      %p170 = scmp.eq.s32.totalorder %s39, 0
      %p171 = por %p169, %p170
      %s172 = ssub.s32 %s33, %s40
      %p173 = scmp.eq.s32.totalorder %s172, 0
      %s175 = sadd.s32 %s174, 1
      %s176 = scalar_select %p173, %s174, %s175
      %p179 = pneg %p173
      %p180 = scmp.eq.s32.totalorder %s33, 15
      %p181 = por %p179, %p180
      %p182 = scmp.ne.s32.totalorder %s174, %s177
      %p183 = scmp.eq.s32.totalorder %s33, 0
      %p184 = por %p182, %p183
      %p185 = scmp.ne.s32.totalorder %s174, %s177
      %p186 = scmp.eq.s32.totalorder %s38, 15
      %p187 = por %p185, %p186
      %p188 = scmp.ne.s32.totalorder %s177, %s178
      %p189 = scmp.eq.s32.totalorder %s38, 0
      %p190 = por %p188, %p189
      %p191 = scmp.ne.s32.totalorder %s177, %s178
      %p192 = scmp.eq.s32.totalorder %s39, 15
      %p193 = por %p191, %p192
      %p195 = scmp.ne.s32.totalorder %s178, %s194
      %p196 = scmp.eq.s32.totalorder %s39, 0
      %p197 = por %p195, %p196
      %s198 = ssub.s32 %s33, %s40
      %p199 = scmp.eq.s32.totalorder %s198, 0
      %s201 = sadd.s32 %s200, 1
      %s202 = scalar_select %p199, %s200, %s201
      %p205 = pneg %p199
      %p206 = scmp.eq.s32.totalorder %s33, 15
      %p207 = por %p205, %p206
      %p208 = scmp.ne.s32.totalorder %s200, %s203
      %p209 = scmp.eq.s32.totalorder %s33, 0
      %p210 = por %p208, %p209
      %p211 = scmp.ne.s32.totalorder %s200, %s203
      %p212 = scmp.eq.s32.totalorder %s38, 15
      %p213 = por %p211, %p212
      %p214 = scmp.ne.s32.totalorder %s203, %s204
      %p215 = scmp.eq.s32.totalorder %s38, 0
      %p216 = por %p214, %p215
      %p217 = scmp.ne.s32.totalorder %s203, %s204
      %p218 = scmp.eq.s32.totalorder %s39, 15
      %p219 = por %p217, %p218
      %p221 = scmp.ne.s32.totalorder %s204, %s220
      %p222 = scmp.eq.s32.totalorder %s39, 0
      %p223 = por %p221, %p222
      %s224 = ssub.s32 %s33, %s40
      %p225 = scmp.eq.s32.totalorder %s224, 0
      %s227 = sadd.s32 %s226, 1
      %s228 = scalar_select %p225, %s226, %s227
      %p231 = pneg %p225
      %p232 = scmp.eq.s32.totalorder %s33, 15
      %p233 = por %p231, %p232
      %p234 = scmp.ne.s32.totalorder %s226, %s229
      %p235 = scmp.eq.s32.totalorder %s33, 0
      %p236 = por %p234, %p235
      %p237 = scmp.ne.s32.totalorder %s226, %s229
      %p238 = scmp.eq.s32.totalorder %s38, 15
      %p239 = por %p237, %p238
      %p240 = scmp.ne.s32.totalorder %s229, %s230
      %p241 = scmp.eq.s32.totalorder %s38, 0
      %p242 = por %p240, %p241
      %p243 = scmp.ne.s32.totalorder %s229, %s230
      %p244 = scmp.eq.s32.totalorder %s39, 15
      %p245 = por %p243, %p244
      %p247 = scmp.ne.s32.totalorder %s230, %s246
      %p248 = scmp.eq.s32.totalorder %s39, 0
      %p249 = por %p247, %p248
      %s250 = ssub.s32 %s33, %s40
      %p251 = scmp.eq.s32.totalorder %s250, 0
      %s253 = sadd.s32 %s252, 1
      %s254 = scalar_select %p251, %s252, %s253
      %p257 = pneg %p251
      %p258 = scmp.eq.s32.totalorder %s33, 15
      %p259 = por %p257, %p258
      %p260 = scmp.ne.s32.totalorder %s252, %s255
      %p261 = scmp.eq.s32.totalorder %s33, 0
      %p262 = por %p260, %p261
      %p263 = scmp.ne.s32.totalorder %s252, %s255
      %p264 = scmp.eq.s32.totalorder %s38, 15
      %p265 = por %p263, %p264
      %p266 = scmp.ne.s32.totalorder %s255, %s256
      %p267 = scmp.eq.s32.totalorder %s38, 0
      %p268 = por %p266, %p267
      %p269 = scmp.ne.s32.totalorder %s255, %s256
      %p270 = scmp.eq.s32.totalorder %s39, 15
      %p271 = por %p269, %p270
      %p273 = scmp.ne.s32.totalorder %s256, %s272
      %p274 = scmp.eq.s32.totalorder %s39, 0
      %p275 = por %p273, %p274
      %s276 = ssub.s32 %s33, %s40
      %p277 = scmp.eq.s32.totalorder %s276, 0
      %s279 = sadd.s32 %s278, 1
      %s280 = scalar_select %p277, %s278, %s279
      %p283 = pneg %p277
      %p284 = scmp.eq.s32.totalorder %s33, 15
      %p285 = por %p283, %p284
      %p286 = scmp.ne.s32.totalorder %s278, %s281
      %p287 = scmp.eq.s32.totalorder %s33, 0
      %p288 = por %p286, %p287
      %p289 = scmp.ne.s32.totalorder %s278, %s281
      %p290 = scmp.eq.s32.totalorder %s38, 15
      %p291 = por %p289, %p290
      %p292 = scmp.ne.s32.totalorder %s281, %s282
      %p293 = scmp.eq.s32.totalorder %s38, 0
      %p294 = por %p292, %p293
      %p295 = scmp.ne.s32.totalorder %s281, %s282
      %p296 = scmp.eq.s32.totalorder %s39, 15
      %p297 = por %p295, %p296
      %p299 = scmp.ne.s32.totalorder %s282, %s298
      %p300 = scmp.eq.s32.totalorder %s39, 0
      %p301 = por %p299, %p300
      %s302 = ssub.s32 %s33, %s40
      %p303 = scmp.eq.s32.totalorder %s302, 0
      %s305 = sadd.s32 %s304, 1
      %s306 = scalar_select %p303, %s304, %s305
      %p309 = pneg %p303
      %p310 = scmp.eq.s32.totalorder %s33, 15
      %p311 = por %p309, %p310
      %p312 = scmp.ne.s32.totalorder %s304, %s307
      %p313 = scmp.eq.s32.totalorder %s33, 0
      %p314 = por %p312, %p313
      %p315 = scmp.ne.s32.totalorder %s304, %s307
      %p316 = scmp.eq.s32.totalorder %s38, 15
      %p317 = por %p315, %p316
      %p318 = scmp.ne.s32.totalorder %s307, %s308
      %p319 = scmp.eq.s32.totalorder %s38, 0
      %p320 = por %p318, %p319
      %p321 = scmp.ne.s32.totalorder %s307, %s308
      %p322 = scmp.eq.s32.totalorder %s39, 15
      %p323 = por %p321, %p322
      %p325 = scmp.ne.s32.totalorder %s308, %s324
      %p326 = scmp.eq.s32.totalorder %s39, 0
      %p327 = por %p325, %p326
      %s328 = ssub.s32 %s33, %s40
      %p329 = scmp.eq.s32.totalorder %s328, 0
      %s331 = sadd.s32 %s330, 1
      %s332 = scalar_select %p329, %s330, %s331
      %p335 = pneg %p329
      %p336 = scmp.eq.s32.totalorder %s33, 15
      %p337 = por %p335, %p336
      %p338 = scmp.ne.s32.totalorder %s330, %s333
      %p339 = scmp.eq.s32.totalorder %s33, 0
      %p340 = por %p338, %p339
      %p341 = scmp.ne.s32.totalorder %s330, %s333
      %p342 = scmp.eq.s32.totalorder %s38, 15
      %p343 = por %p341, %p342
      %p344 = scmp.ne.s32.totalorder %s333, %s334
      %p345 = scmp.eq.s32.totalorder %s38, 0
      %p346 = por %p344, %p345
      %p347 = scmp.ne.s32.totalorder %s333, %s334
      %p348 = scmp.eq.s32.totalorder %s39, 15
      %p349 = por %p347, %p348
      %p351 = scmp.ne.s32.totalorder %s334, %s350
      %p352 = scmp.eq.s32.totalorder %s39, 0
      %p353 = por %p351, %p352
      %s355 = sadd.s32 %s354, 1
      %p358 = scmp.eq.s32.totalorder %s33, 15
      %p359 = scmp.ne.s32.totalorder %s354, %s356
      %p360 = scmp.eq.s32.totalorder %s33, 0
      %p361 = por %p359, %p360
      %p362 = scmp.ne.s32.totalorder %s354, %s356
      %p363 = scmp.eq.s32.totalorder %s38, 15
      %p364 = por %p362, %p363
      %p365 = scmp.ne.s32.totalorder %s356, %s357
      %p366 = scmp.eq.s32.totalorder %s38, 0
      %p367 = por %p365, %p366
      %p368 = scmp.ne.s32.totalorder %s356, %s357
      %p369 = scmp.eq.s32.totalorder %s39, 15
      %p370 = por %p368, %p369
      %p372 = scmp.ne.s32.totalorder %s357, %s371
      %p373 = scmp.eq.s32.totalorder %s39, 0
      %p374 = por %p372, %p373
      %p375 = scmp.le.s32.totalorder 1, %s33
      %p376 = scmp.lt.s32.totalorder %s33, 17
      %p377 = pnand %p375, %p376
      %p378 = pneg %p377
      // Predicated region
      $region9: #{forward_pallas.2} parent=5 // pred_check
        _
      $region10: #{forward_pallas.2} parent=5 // pred_check_branch
        %380 = sbr.rel (%p377) target = $region12
      $region11: #{forward_pallas.2} parent=5 // pred_region
        %s381 = ssub.s32 %s33, 1
        // Predicated region
        $region13: #{forward_pallas.2} parent=11 // pred_check
          %p382 = pneg %p54
        $region14: #{forward_pallas.2} parent=11 // pred_check_branch
          %384 = sbr.rel (%p382) target = $region16
        $region15: #{forward_pallas.2} parent=11 // pred_region
          _
        $region16: #{forward_pallas.2} parent=11 // pred_fallthru
          _
        // Predicated region
        $region17: #{forward_pallas.2} parent=11 // pred_check
          %p385 = pneg %p75
        $region18: #{forward_pallas.2} parent=11 // pred_check_branch
          %387 = sbr.rel (%p385) target = $region20
        $region19: #{forward_pallas.2} parent=11 // pred_region
          _
        $region20: #{forward_pallas.2} parent=11 // pred_fallthru
          _
        // Predicated region
        $region21: #{forward_pallas.2} parent=11 // pred_check
          %p388 = pneg %p96
        $region22: #{forward_pallas.2} parent=11 // pred_check_branch
          %390 = sbr.rel (%p388) target = $region24
        $region23: #{forward_pallas.2} parent=11 // pred_region
          %392 = vsyncadd [#allocation4], 0
          %s393 = sshll.u32 %s2, 4
          %s394 = int_to_ptr.hbm [resolvable:$true] %s393
          %s395 = sshll.u32 [#allocation3], 4
          %s396 = int_to_ptr.vmem [resolvable:$true] %s395
          %401 = dma.hbm_to_vmem [thread:$0]  %s394, 3584, %s396, [#allocation4], 128, 128, 8
        $region24: #{forward_pallas.2} parent=11 // pred_fallthru
          _
        // Predicated region
        $region25: #{forward_pallas.2} parent=11 // pred_check
          %p402 = pneg %p117
        $region26: #{forward_pallas.2} parent=11 // pred_check_branch
          %404 = sbr.rel (%p402) target = $region28
        $region27: #{forward_pallas.2} parent=11 // pred_region
          %406 = vsyncadd [#allocation6], 0
          %s408 = sshll.u32 %s3, 4
          %s409 = int_to_ptr.hbm [resolvable:$true] %s408
          %s410 = sshll.u32 [#allocation5], 4
          %s411 = int_to_ptr.vmem [resolvable:$true] %s410
          %413 = dma.hbm_to_vmem [thread:$0]  %s409, 32, %s411, [#allocation6]
        $region28: #{forward_pallas.2} parent=11 // pred_fallthru
          _
        // Predicated region
        $region29: #{forward_pallas.2} parent=11 // pred_check
          %p414 = pneg %p138
        $region30: #{forward_pallas.2} parent=11 // pred_check_branch
          %416 = sbr.rel (%p414) target = $region32
        $region31: #{forward_pallas.2} parent=11 // pred_region
          %418 = vsyncadd [#allocation6], 0
          %s420 = sshll.u32 %s4, 4
          %s421 = int_to_ptr.hbm [resolvable:$true] %s420
          %s422 = sshll.u32 [#allocation7], 4
          %s423 = int_to_ptr.vmem [resolvable:$true] %s422
          %425 = dma.hbm_to_vmem [thread:$0]  %s421, 32, %s423, [#allocation6]
        $region32: #{forward_pallas.2} parent=11 // pred_fallthru
          _
      $region12: #{forward_pallas.2} parent=5 // pred_fallthru
        _
      %p426 = scmp.lt.s32.totalorder %s33, 16
      // Predicated region
      $region33: #{forward_pallas.2} parent=5 // pred_check
        %p427 = pneg %p426
      $region34: #{forward_pallas.2} parent=5 // pred_check_branch
        %429 = sbr.rel (%p427) target = $region36
      $region35: #{forward_pallas.2} parent=5 // pred_region
        // Predicated region
        $region37: #{forward_pallas.2} parent=35 // pred_check
          %p430 = pneg %p158
        $region38: #{forward_pallas.2} parent=35 // pred_check_branch
          %432 = sbr.rel (%p430) target = $region40
        $region39: #{forward_pallas.2} parent=35 // pred_region
          %s433 = sand.u32 %s33, 1
          %s434 = scalar_lea.sflag [#allocation9], %s433
          %s435 = sand.u32 %s148, 1
          %s436 = smul.addr %s435, 768
          %s437 = scalar_lea.vmem [#allocation8], %s436
          %439 = vsyncadd %s434, 0
          %s440 = smul.addr %s33, 192
          %s441 = smul.addr %s440, 4
          %s442 = scalar_lea.hbm %s5, %s441
          %s443 = sshll.u32 %s442, 4
          %s444 = int_to_ptr.hbm [resolvable:$true] %s443
          %s445 = sshll.u32 %s437, 4
          %s446 = int_to_ptr.vmem [resolvable:$true] %s445
          %451 = dma.hbm_to_vmem [thread:$0]  %s444, 12288, %s446, %s434, 384, 384, 24
        $region40: #{forward_pallas.2} parent=35 // pred_fallthru
          _
        // Predicated region
        $region41: #{forward_pallas.2} parent=35 // pred_check
          %p452 = pneg %p184
        $region42: #{forward_pallas.2} parent=35 // pred_check_branch
          %454 = sbr.rel (%p452) target = $region44
        $region43: #{forward_pallas.2} parent=35 // pred_region
          %s455 = sand.u32 %s33, 1
          %s456 = scalar_lea.sflag [#allocation9], %s455
          %s457 = sand.u32 %s174, 1
          %s458 = smul.addr %s457, 6
          %s459 = scalar_lea.vmem [#allocation10], %s458
          %461 = vsyncadd %s456, 0
          %s462 = smul.addr %s33, 6
          %s463 = scalar_lea.hbm %s6, %s462
          %s465 = sshll.u32 %s463, 4
          %s466 = int_to_ptr.hbm [resolvable:$true] %s465
          %s467 = sshll.u32 %s459, 4
          %s468 = int_to_ptr.vmem [resolvable:$true] %s467
          %470 = dma.hbm_to_vmem [thread:$0]  %s466, 96, %s468, %s456
        $region44: #{forward_pallas.2} parent=35 // pred_fallthru
          _
        // Predicated region
        $region45: #{forward_pallas.2} parent=35 // pred_check
          %p471 = pneg %p210
        $region46: #{forward_pallas.2} parent=35 // pred_check_branch
          %473 = sbr.rel (%p471) target = $region48
        $region47: #{forward_pallas.2} parent=35 // pred_region
          %s474 = sand.u32 %s33, 1
          %s475 = scalar_lea.sflag [#allocation12], %s474
          %s476 = sand.u32 %s200, 1
          %s477 = smul.addr %s476, 256
          %s478 = scalar_lea.vmem [#allocation11], %s477
          %480 = vsyncadd %s475, 0
          %s481 = smul.addr %s33, 64
          %s482 = smul.addr %s481, 4
          %s483 = scalar_lea.hbm %s7, %s482
          %s484 = sshll.u32 %s483, 4
          %s485 = int_to_ptr.hbm [resolvable:$true] %s484
          %s486 = sshll.u32 %s478, 4
          %s487 = int_to_ptr.vmem [resolvable:$true] %s486
          %492 = dma.hbm_to_vmem [thread:$0]  %s485, 4096, %s487, %s475, 128, 128, 8
        $region48: #{forward_pallas.2} parent=35 // pred_fallthru
          _
        // Predicated region
        $region49: #{forward_pallas.2} parent=35 // pred_check
          %p493 = pneg %p236
        $region50: #{forward_pallas.2} parent=35 // pred_check_branch
          %495 = sbr.rel (%p493) target = $region52
        $region51: #{forward_pallas.2} parent=35 // pred_region
          %s496 = sand.u32 %s33, 1
          %s497 = scalar_lea.sflag [#allocation12], %s496
          %s498 = sand.u32 %s226, 1
          %s499 = smul.addr %s498, 2
          %s500 = scalar_lea.vmem [#allocation13], %s499
          %502 = vsyncadd %s497, 0
          %s503 = smul.addr %s33, 2
          %s504 = scalar_lea.hbm %s8, %s503
          %s506 = sshll.u32 %s504, 4
          %s507 = int_to_ptr.hbm [resolvable:$true] %s506
          %s508 = sshll.u32 %s500, 4
          %s509 = int_to_ptr.vmem [resolvable:$true] %s508
          %511 = dma.hbm_to_vmem [thread:$0]  %s507, 32, %s509, %s497
        $region52: #{forward_pallas.2} parent=35 // pred_fallthru
          _
        // Predicated region
        $region53: #{forward_pallas.2} parent=35 // pred_check
          %p512 = pneg %p262
        $region54: #{forward_pallas.2} parent=35 // pred_check_branch
          %514 = sbr.rel (%p512) target = $region56
        $region55: #{forward_pallas.2} parent=35 // pred_region
          %s515 = sand.u32 %s33, 1
          %s516 = scalar_lea.sflag [#allocation15], %s515
          %s517 = sand.u32 %s252, 1
          %s518 = smul.addr %s517, 1024
          %s519 = scalar_lea.vmem [#allocation14], %s518
          %521 = vsyncadd %s516, 0
          %s522 = smul.addr %s33, 256
          %s523 = smul.addr %s522, 4
          %s524 = scalar_lea.hbm %s9, %s523
          %s525 = sshll.u32 %s524, 4
          %s526 = int_to_ptr.hbm [resolvable:$true] %s525
          %s527 = sshll.u32 %s519, 4
          %s528 = int_to_ptr.vmem [resolvable:$true] %s527
          %533 = dma.hbm_to_vmem [thread:$0]  %s526, 16384, %s528, %s516, 512, 512, 32
        $region56: #{forward_pallas.2} parent=35 // pred_fallthru
          _
        // Predicated region
        $region57: #{forward_pallas.2} parent=35 // pred_check
          %p534 = pneg %p288
        $region58: #{forward_pallas.2} parent=35 // pred_check_branch
          %536 = sbr.rel (%p534) target = $region60
        $region59: #{forward_pallas.2} parent=35 // pred_region
          %s537 = sand.u32 %s33, 1
          %s538 = scalar_lea.sflag [#allocation15], %s537
          %s539 = sand.u32 %s278, 1
          %s540 = smul.addr %s539, 8
          %s541 = scalar_lea.vmem [#allocation16], %s540
          %543 = vsyncadd %s538, 0
          %s544 = smul.addr %s33, 8
          %s545 = scalar_lea.hbm %s10, %s544
          %s547 = sshll.u32 %s545, 4
          %s548 = int_to_ptr.hbm [resolvable:$true] %s547
          %s549 = sshll.u32 %s541, 4
          %s550 = int_to_ptr.vmem [resolvable:$true] %s549
          %552 = dma.hbm_to_vmem [thread:$0]  %s548, 128, %s550, %s538
        $region60: #{forward_pallas.2} parent=35 // pred_fallthru
          _
        // Predicated region
        $region61: #{forward_pallas.2} parent=35 // pred_check
          %p553 = pneg %p314
        $region62: #{forward_pallas.2} parent=35 // pred_check_branch
          %555 = sbr.rel (%p553) target = $region64
        $region63: #{forward_pallas.2} parent=35 // pred_region
          %s556 = sand.u32 %s33, 1
          %s557 = scalar_lea.sflag [#allocation18], %s556
          %s558 = sand.u32 %s304, 1
          %s559 = smul.addr %s558, 1024
          %s560 = scalar_lea.vmem [#allocation17], %s559
          %562 = vsyncadd %s557, 0
          %s563 = smul.addr %s33, 256
          %s564 = smul.addr %s563, 4
          %s565 = scalar_lea.hbm %s11, %s564
          %s566 = sshll.u32 %s565, 4
          %s567 = int_to_ptr.hbm [resolvable:$true] %s566
          %s568 = sshll.u32 %s560, 4
          %s569 = int_to_ptr.vmem [resolvable:$true] %s568
          %574 = dma.hbm_to_vmem [thread:$0]  %s567, 16384, %s569, %s557, 128, 128, 8
        $region64: #{forward_pallas.2} parent=35 // pred_fallthru
          _
        // Predicated region
        $region65: #{forward_pallas.2} parent=35 // pred_check
          %p575 = pneg %p340
        $region66: #{forward_pallas.2} parent=35 // pred_check_branch
          %577 = sbr.rel (%p575) target = $region68
        $region67: #{forward_pallas.2} parent=35 // pred_region
          %s578 = sand.u32 %s33, 1
          %s579 = scalar_lea.sflag [#allocation18], %s578
          %s580 = sand.u32 %s330, 1
          %s581 = smul.addr %s580, 2
          %s582 = scalar_lea.vmem [#allocation19], %s581
          %584 = vsyncadd %s579, 0
          %s585 = smul.addr %s33, 2
          %s586 = scalar_lea.hbm %s12, %s585
          %s588 = sshll.u32 %s586, 4
          %s589 = int_to_ptr.hbm [resolvable:$true] %s588
          %s590 = sshll.u32 %s582, 4
          %s591 = int_to_ptr.vmem [resolvable:$true] %s590
          %593 = dma.hbm_to_vmem [thread:$0]  %s589, 32, %s591, %s579
        $region68: #{forward_pallas.2} parent=35 // pred_fallthru
          _
      $region36: #{forward_pallas.2} parent=5 // pred_fallthru
        _
      %p594 = scmp.le.s32.totalorder 1, %s33
      %p595 = scmp.lt.s32.totalorder %s33, 17
      %p596 = pnand %p594, %p595
      %p597 = pneg %p596
      // Predicated region
      $region69: #{forward_pallas.2} parent=5 // pred_check
        _
      $region70: #{forward_pallas.2} parent=5 // pred_check_branch
        %599 = sbr.rel (%p596) target = $region72
      $region71: #{forward_pallas.2} parent=5 // pred_region
        %s600 = ssub.s32 %s33, 1
        // Predicated region
        $region73: #{forward_pallas.2} parent=71 // pred_check
          %p601 = pneg %p96
        $region74: #{forward_pallas.2} parent=71 // pred_check_branch
          %603 = sbr.rel (%p601) target = $region76
        $region75: #{forward_pallas.2} parent=71 // pred_region
          %605 = dma.done [#allocation4], 3584
        $region76: #{forward_pallas.2} parent=71 // pred_fallthru
          _
        // Predicated region
        $region77: #{forward_pallas.2} parent=71 // pred_check
          %p606 = pneg %p117
        $region78: #{forward_pallas.2} parent=71 // pred_check_branch
          %608 = sbr.rel (%p606) target = $region80
        $region79: #{forward_pallas.2} parent=71 // pred_region
          %610 = dma.done [#allocation6], 32
        $region80: #{forward_pallas.2} parent=71 // pred_fallthru
          _
        // Predicated region
        $region81: #{forward_pallas.2} parent=71 // pred_check
          %p611 = pneg %p138
        $region82: #{forward_pallas.2} parent=71 // pred_check_branch
          %613 = sbr.rel (%p611) target = $region84
        $region83: #{forward_pallas.2} parent=71 // pred_region
          %615 = dma.done [#allocation6], 32
        $region84: #{forward_pallas.2} parent=71 // pred_fallthru
          _
        %s616 = sand.u32 %s38, 1
        %s617 = scalar_lea.sflag [#allocation9], %s616
        %s618 = sand.u32 %s151, 1
        %s619 = smul.addr %s618, 768
        %s620 = scalar_lea.vmem [#allocation8], %s619
        // Predicated region
        $region85: #{forward_pallas.2} parent=71 // pred_check
          %p621 = pneg %p164
        $region86: #{forward_pallas.2} parent=71 // pred_check_branch
          %623 = sbr.rel (%p621) target = $region88
        $region87: #{forward_pallas.2} parent=71 // pred_region
          %625 = dma.done %s617, 12288
        $region88: #{forward_pallas.2} parent=71 // pred_fallthru
          _
        %s626 = sand.u32 %s38, 1
        %s627 = scalar_lea.sflag [#allocation9], %s626
        %s628 = sand.u32 %s177, 1
        %s629 = smul.addr %s628, 6
        %s630 = scalar_lea.vmem [#allocation10], %s629
        // Predicated region
        $region89: #{forward_pallas.2} parent=71 // pred_check
          %p631 = pneg %p190
        $region90: #{forward_pallas.2} parent=71 // pred_check_branch
          %633 = sbr.rel (%p631) target = $region92
        $region91: #{forward_pallas.2} parent=71 // pred_region
          %635 = dma.done %s627, 96
        $region92: #{forward_pallas.2} parent=71 // pred_fallthru
          _
        %s636 = sand.u32 %s38, 1
        %s637 = scalar_lea.sflag [#allocation12], %s636
        %s638 = sand.u32 %s203, 1
        %s639 = smul.addr %s638, 256
        %s640 = scalar_lea.vmem [#allocation11], %s639
        // Predicated region
        $region93: #{forward_pallas.2} parent=71 // pred_check
          %p641 = pneg %p216
        $region94: #{forward_pallas.2} parent=71 // pred_check_branch
          %643 = sbr.rel (%p641) target = $region96
        $region95: #{forward_pallas.2} parent=71 // pred_region
          %645 = dma.done %s637, 4096
        $region96: #{forward_pallas.2} parent=71 // pred_fallthru
          _
        %s646 = sand.u32 %s38, 1
        %s647 = scalar_lea.sflag [#allocation12], %s646
        %s648 = sand.u32 %s229, 1
        %s649 = smul.addr %s648, 2
        %s650 = scalar_lea.vmem [#allocation13], %s649
        // Predicated region
        $region97: #{forward_pallas.2} parent=71 // pred_check
          %p651 = pneg %p242
        $region98: #{forward_pallas.2} parent=71 // pred_check_branch
          %653 = sbr.rel (%p651) target = $region100
        $region99: #{forward_pallas.2} parent=71 // pred_region
          %655 = dma.done %s647, 32
        $region100: #{forward_pallas.2} parent=71 // pred_fallthru
          _
        %s656 = sand.u32 %s38, 1
        %s657 = scalar_lea.sflag [#allocation15], %s656
        %s658 = sand.u32 %s255, 1
        %s659 = smul.addr %s658, 1024
        %s660 = scalar_lea.vmem [#allocation14], %s659
        // Predicated region
        $region101: #{forward_pallas.2} parent=71 // pred_check
          %p661 = pneg %p268
        $region102: #{forward_pallas.2} parent=71 // pred_check_branch
          %663 = sbr.rel (%p661) target = $region104
        $region103: #{forward_pallas.2} parent=71 // pred_region
          %665 = dma.done %s657, 16384
        $region104: #{forward_pallas.2} parent=71 // pred_fallthru
          _
        %s666 = sand.u32 %s38, 1
        %s667 = scalar_lea.sflag [#allocation15], %s666
        %s668 = sand.u32 %s281, 1
        %s669 = smul.addr %s668, 8
        %s670 = scalar_lea.vmem [#allocation16], %s669
        // Predicated region
        $region105: #{forward_pallas.2} parent=71 // pred_check
          %p671 = pneg %p294
        $region106: #{forward_pallas.2} parent=71 // pred_check_branch
          %673 = sbr.rel (%p671) target = $region108
        $region107: #{forward_pallas.2} parent=71 // pred_region
          %675 = dma.done %s667, 128
        $region108: #{forward_pallas.2} parent=71 // pred_fallthru
          _
        %s676 = sand.u32 %s38, 1
        %s677 = scalar_lea.sflag [#allocation18], %s676
        %s678 = sand.u32 %s307, 1
        %s679 = smul.addr %s678, 1024
        %s680 = scalar_lea.vmem [#allocation17], %s679
        // Predicated region
        $region109: #{forward_pallas.2} parent=71 // pred_check
          %p681 = pneg %p320
        $region110: #{forward_pallas.2} parent=71 // pred_check_branch
          %683 = sbr.rel (%p681) target = $region112
        $region111: #{forward_pallas.2} parent=71 // pred_region
          %685 = dma.done %s677, 16384
        $region112: #{forward_pallas.2} parent=71 // pred_fallthru
          _
        %s686 = sand.u32 %s38, 1
        %s687 = scalar_lea.sflag [#allocation18], %s686
        %s688 = sand.u32 %s333, 1
        %s689 = smul.addr %s688, 2
        %s690 = scalar_lea.vmem [#allocation19], %s689
        // Predicated region
        $region113: #{forward_pallas.2} parent=71 // pred_check
          %p691 = pneg %p346
        $region114: #{forward_pallas.2} parent=71 // pred_check_branch
          %693 = sbr.rel (%p691) target = $region116
        $region115: #{forward_pallas.2} parent=71 // pred_region
          %695 = dma.done %s687, 32
        $region116: #{forward_pallas.2} parent=71 // pred_fallthru
          _
        %p696 = pneg %p54
        %p697 = pneg %p51
        %p698 = pneg %p75
        %p699 = pneg %p72
        %p700 = pneg %p96
        %p701 = pneg %p93
        %p702 = pneg %p117
        %p703 = pneg %p114
        %p704 = pneg %p138
        %p705 = pneg %p135
        %s706 = sand.u32 %s38, 1
        %s707 = scalar_lea.sflag [#allocation9], %s706
        %s708 = sand.u32 %s151, 1
        %s709 = smul.addr %s708, 768
        %s710 = scalar_lea.vmem [#allocation8], %s709
        %p711 = pneg %p164
        %p712 = pneg %p161
        %s713 = sand.u32 %s38, 1
        %s714 = scalar_lea.sflag [#allocation9], %s713
        %s715 = sand.u32 %s177, 1
        %s716 = smul.addr %s715, 6
        %s717 = scalar_lea.vmem [#allocation10], %s716
        %p718 = pneg %p190
        %p719 = pneg %p187
        %s720 = sand.u32 %s38, 1
        %s721 = scalar_lea.sflag [#allocation12], %s720
        %s722 = sand.u32 %s203, 1
        %s723 = smul.addr %s722, 256
        %s724 = scalar_lea.vmem [#allocation11], %s723
        %p725 = pneg %p216
        %p726 = pneg %p213
        %s727 = sand.u32 %s38, 1
        %s728 = scalar_lea.sflag [#allocation12], %s727
        %s729 = sand.u32 %s229, 1
        %s730 = smul.addr %s729, 2
        %s731 = scalar_lea.vmem [#allocation13], %s730
        %p732 = pneg %p242
        %p733 = pneg %p239
        %s734 = sand.u32 %s38, 1
        %s735 = scalar_lea.sflag [#allocation15], %s734
        %s736 = sand.u32 %s255, 1
        %s737 = smul.addr %s736, 1024
        %s738 = scalar_lea.vmem [#allocation14], %s737
        %p739 = pneg %p268
        %p740 = pneg %p265
        %s741 = sand.u32 %s38, 1
        %s742 = scalar_lea.sflag [#allocation15], %s741
        %s743 = sand.u32 %s281, 1
        %s744 = smul.addr %s743, 8
        %s745 = scalar_lea.vmem [#allocation16], %s744
        %p746 = pneg %p294
        %p747 = pneg %p291
        %s748 = sand.u32 %s38, 1
        %s749 = scalar_lea.sflag [#allocation18], %s748
        %s750 = sand.u32 %s307, 1
        %s751 = smul.addr %s750, 1024
        %s752 = scalar_lea.vmem [#allocation17], %s751
        %p753 = pneg %p320
        %p754 = pneg %p317
        %s755 = sand.u32 %s38, 1
        %s756 = scalar_lea.sflag [#allocation18], %s755
        %s757 = sand.u32 %s333, 1
        %s758 = smul.addr %s757, 2
        %s759 = scalar_lea.vmem [#allocation19], %s758
        %p760 = pneg %p346
        %p761 = pneg %p343
        %p762 = pneg %p367
        %p763 = pneg %p364
        %p765 = scmp.eq.s32.totalorder %s38, 0
        // Predicated region
        $region117: #{forward_pallas.2} parent=71 // pred_check
          %p766 = pneg %p765
        $region118: #{forward_pallas.2} parent=71 // pred_check_branch
          %768 = sbr.rel (%p766) target = $region120
        $region119: #{forward_pallas.2} parent=71 // pred_region
          %v769 = vld [vmem:[%s1] sm:$0xff]
          %v770 = vld [vmem:[%s1 + $0x8] sm:$0xff]
          %v771 = vld [vmem:[%s1 + $0x10] sm:$0xff]
          %v772 = vld [vmem:[%s1 + $0x18] sm:$0xff]
          %v773 = vpack.c.bf16 %v771, %v769
          %v774 = vpack.c.bf16 %v772, %v770
          %v775 = vld [vmem:[#allocation3] sm:$0xff]
          %v776 = vld [vmem:[#allocation3 + $0x8] sm:$0xff]
          %v777 = vld [vmem:[#allocation3 + $0x10] sm:$0xff]
          %v778 = vld [vmem:[#allocation3 + $0x18] sm:$0xff]
          %v779 = vld [vmem:[#allocation3 + $0x20] sm:$0xff]
          %v780 = vld [vmem:[#allocation3 + $0x28] sm:$0xff]
          %v781 = vld [vmem:[#allocation3 + $0x30] sm:$0xff]
          %v782 = vld [vmem:[#allocation3 + $0x38] sm:$0xff]
          %v783 = vld [vmem:[#allocation3 + $0x40] sm:$0xff]
          %v784 = vld [vmem:[#allocation3 + $0x48] sm:$0xff]
          %v785 = vld [vmem:[#allocation3 + $0x50] sm:$0xff]
          %v786 = vld [vmem:[#allocation3 + $0x58] sm:$0xff]
          %v787 = vld [vmem:[#allocation3 + $0x60] sm:$0xff]
          %v788 = vld [vmem:[#allocation3 + $0x68] sm:$0xff]
          %v789 = vld [vmem:[#allocation3 + $0x70] sm:$0xff]
          %v790 = vld [vmem:[#allocation3 + $0x78] sm:$0xff]
          %v791 = vld [vmem:[#allocation3 + $0x80] sm:$0xff]
          %v792 = vld [vmem:[#allocation3 + $0x88] sm:$0xff]
          %v793 = vld [vmem:[#allocation3 + $0x90] sm:$0xff]
          %v794 = vld [vmem:[#allocation3 + $0x98] sm:$0xff]
          %v795 = vld [vmem:[#allocation3 + $0xa0] sm:$0xff]
          %v796 = vld [vmem:[#allocation3 + $0xa8] sm:$0xff]
          %v797 = vld [vmem:[#allocation3 + $0xb0] sm:$0xff]
          %v798 = vld [vmem:[#allocation3 + $0xb8] sm:$0xff]
          %v799 = vld [vmem:[#allocation3 + $0xc0] sm:$0xff]
          %v800 = vld [vmem:[#allocation3 + $0xc8] sm:$0xff]
          %v801 = vld [vmem:[#allocation3 + $0xd0] sm:$0xff]
          %v802 = vld [vmem:[#allocation3 + $0xd8] sm:$0x77]
          %v803 = vld [vmem:[#allocation5] sm:$0x3]
          %v805 = vperm.slane %v803, 0
          %v806 = vperm.slane %v803, 1
          %v837 = vunpack.c.l.b16 %v775
          %v838 = vunpack.c.h.b16 %v775
          %v839 = vunpack.c.l.b16 %v776
          %v840 = vunpack.c.h.b16 %v776
          %v841 = vunpack.c.l.b16 %v777
          %v842 = vunpack.c.h.b16 %v777
          %v843 = vunpack.c.l.b16 %v778
          %v844 = vunpack.c.h.b16 %v778
          %v845 = vunpack.c.l.b16 %v779
          %v846 = vunpack.c.h.b16 %v779
          %v847 = vunpack.c.l.b16 %v780
          %v848 = vunpack.c.h.b16 %v780
          %v849 = vunpack.c.l.b16 %v781
          %v850 = vunpack.c.h.b16 %v781
          %v851 = vunpack.c.l.b16 %v782
          %v852 = vunpack.c.h.b16 %v782
          %v853 = vunpack.c.l.b16 %v783
          %v854 = vunpack.c.h.b16 %v783
          %v855 = vunpack.c.l.b16 %v784
          %v856 = vunpack.c.h.b16 %v784
          %v857 = vunpack.c.l.b16 %v785
          %v858 = vunpack.c.h.b16 %v785
          %v859 = vunpack.c.l.b16 %v786
          %v860 = vunpack.c.h.b16 %v786
          %v861 = vunpack.c.l.b16 %v787
          %v862 = vunpack.c.h.b16 %v787
          %v863 = vunpack.c.l.b16 %v788
          %v864 = vunpack.c.h.b16 %v788
          %v865 = vunpack.c.l.b16 %v789
          %v866 = vunpack.c.h.b16 %v789
          %v867 = vunpack.c.l.b16 %v790
          %v868 = vunpack.c.h.b16 %v790
          %v869 = vunpack.c.l.b16 %v791
          %v870 = vunpack.c.h.b16 %v791
          %v871 = vunpack.c.l.b16 %v792
          %v872 = vunpack.c.h.b16 %v792
          %v873 = vunpack.c.l.b16 %v793
          %v874 = vunpack.c.h.b16 %v793
          %v875 = vunpack.c.l.b16 %v794
          %v876 = vunpack.c.h.b16 %v794
          %v877 = vunpack.c.l.b16 %v795
          %v878 = vunpack.c.h.b16 %v795
          %v879 = vunpack.c.l.b16 %v796
          %v880 = vunpack.c.h.b16 %v796
          %v881 = vunpack.c.l.b16 %v797
          %v882 = vunpack.c.h.b16 %v797
          %v883 = vunpack.c.l.b16 %v798
          %v884 = vunpack.c.h.b16 %v798
          %v885 = vunpack.c.l.b16 %v799
          %v886 = vunpack.c.h.b16 %v799
          %v887 = vunpack.c.l.b16 %v800
          %v888 = vunpack.c.h.b16 %v800
          %v889 = vunpack.c.l.b16 %v801
          %v890 = vunpack.c.h.b16 %v801
          %v891 = vunpack.c.l.b16 %v802
          %v892 = vunpack.c.h.b16 %v802
          %v893 = vpack.c.b16 %v839, %v837
          %v894 = vpack.c.b16 %v840, %v838
          %v895 = vpack.c.b16 %v843, %v841
          %v896 = vpack.c.b16 %v844, %v842
          %v897 = vpack.c.b16 %v847, %v845
          %v898 = vpack.c.b16 %v848, %v846
          %v899 = vpack.c.b16 %v851, %v849
          %v900 = vpack.c.b16 %v852, %v850
          %v901 = vpack.c.b16 %v855, %v853
          %v902 = vpack.c.b16 %v856, %v854
          %v903 = vpack.c.b16 %v859, %v857
          %v904 = vpack.c.b16 %v860, %v858
          %v905 = vpack.c.b16 %v863, %v861
          %v906 = vpack.c.b16 %v864, %v862
          %v907 = vpack.c.b16 %v867, %v865
          %v908 = vpack.c.b16 %v868, %v866
          %v909 = vpack.c.b16 %v871, %v869
          %v910 = vpack.c.b16 %v872, %v870
          %v911 = vpack.c.b16 %v875, %v873
          %v912 = vpack.c.b16 %v876, %v874
          %v913 = vpack.c.b16 %v879, %v877
          %v914 = vpack.c.b16 %v880, %v878
          %v915 = vpack.c.b16 %v883, %v881
          %v916 = vpack.c.b16 %v884, %v882
          %v917 = vpack.c.b16 %v887, %v885
          %v918 = vpack.c.b16 %v888, %v886
          %v919 = vpack.c.b16 %v891, %v889
          %v920 = vpack.c.b16 %v892, %v890
          %vm947 = vcmask 769024
          %v949 = vsel %vm947, %v774, 0
          %vm951 = vcmask 1046528
          %v953 = vsel %vm951, %v919, 0
          %v956 = vsel %vm951, %v920, 0
          %958 = vmatpush.bf16.msra.mxu0 %v907
          %959 = vmatpush.bf16.msra.mxu0 %v905
          %960 = vmatpush.bf16.msra.mxu0 %v903
          %961 = vmatpush.bf16.msra.mxu0 %v901
          %962 = vmatpush.bf16.msra.mxu0 %v899
          %963 = vmatpush.bf16.msra.mxu0 %v897
          %964 = vmatpush.bf16.msra.mxu0 %v895
          %965 = vmatpush.bf16.msra.mxu0 %v893
          %966 = vmatmul.bf16.gmra.mxu0 %v773
          %v967 = vpop.f32.mrf.mxu0
          %v968 = vadd.f32 %v805, %v967
          %v969 = vpop.f32.mrf.mxu0
          %v970 = vadd.f32 %v805, %v969
          %971 = vdwg.mxu0
          %972 = vmatpush.bf16.msra.mxu0 0
          %973 = vmatpush.bf16.msra.mxu0 0
          %974 = vmatpush.bf16.msra.mxu0 %v953
          %975 = vmatpush.bf16.msra.mxu0 %v917
          %976 = vmatpush.bf16.msra.mxu0 %v915
          %977 = vmatpush.bf16.msra.mxu0 %v913
          %978 = vmatpush.bf16.msra.mxu0 %v911
          %979 = vmatpush.bf16.msra.mxu0 %v909
          %980 = vmatmul.bf16.gmra.mxu0 %v949
          %v981 = vpop.f32.mrf.mxu0
          %v982 = vadd.f32 %v968, %v981
          %v983 = vpop.f32.mrf.mxu0
          %v984 = vadd.f32 %v970, %v983
          %985 = vdwg.mxu0
          %986 = vmatpush.bf16.msra.mxu0 %v908
          %987 = vmatpush.bf16.msra.mxu0 %v906
          %988 = vmatpush.bf16.msra.mxu0 %v904
          %989 = vmatpush.bf16.msra.mxu0 %v902
          %990 = vmatpush.bf16.msra.mxu0 %v900
          %991 = vmatpush.bf16.msra.mxu0 %v898
          %992 = vmatpush.bf16.msra.mxu0 %v896
          %993 = vmatpush.bf16.msra.mxu0 %v894
          %994 = vmatmul.bf16.gmra.mxu0 %v773
          %v995 = vpop.f32.mrf.mxu0
          %v996 = vadd.f32 %v806, %v995
          %v997 = vpop.f32.mrf.mxu0
          %v998 = vadd.f32 %v806, %v997
          %999 = vdwg.mxu0
          %1000 = vmatpush.bf16.msra.mxu0 0
          %1001 = vmatpush.bf16.msra.mxu0 0
          %1002 = vmatpush.bf16.msra.mxu0 %v956
          %1003 = vmatpush.bf16.msra.mxu0 %v918
          %1004 = vmatpush.bf16.msra.mxu0 %v916
          %1005 = vmatpush.bf16.msra.mxu0 %v914
          %1006 = vmatpush.bf16.msra.mxu0 %v912
          %1007 = vmatpush.bf16.msra.mxu0 %v910
          %1008 = vmatmul.bf16.gmra.mxu0 %v949
          %v1009 = vpop.f32.mrf.mxu0
          %v1010 = vadd.f32 %v996, %v1009
          %v1011 = vpop.f32.mrf.mxu0
          %v1012 = vadd.f32 %v998, %v1011
          %1013 = vdwg.mxu0
          %v1014 = vld [vmem:[#allocation7] sm:$0x3]
          %v1015 = vlaneseq
          %vm1016 = vcmp.ge.s32.totalorder %v1015, 0
          %vm1017 = vcmp.lt.s32.totalorder %v1015, 256
          %vm1018 = vmand %vm1016, %vm1017
          %1019 = vst.msk [vmem:[#allocation2] ss:$8 sm:$0x3] %vm1018, %v1014
          %1020 = vst.msk [vmem:[#allocation2] ss:$8 sm:$0x0] %vm1018, %v1014
          %v1023 = vrot.slane %v982, 7
          %v1024 = vrot.slane %v1010, 7
          %1027 = vst [vmem:[#allocation2] sm:$0xfe] %v1023
          %1028 = vst [vmem:[#allocation2 + $0x8] sm:$0xfe] %v1024
          %1029 = vst [vmem:[#allocation2 + $0x10] sm:$0x1] %v1023
          %1030 = vst [vmem:[#allocation2 + $0x18] sm:$0x1] %v1024
          %v1031 = vld [vmem:[#allocation7] sm:$0x3]
          %s1032 = scalar_lea.vmem [#allocation2], 17
          %1033 = vst.msk [vmem:[%s1032] ss:$8 sm:$0x3] %vm1018, %v1031
          %1034 = vst.msk [vmem:[%s1032] ss:$8 sm:$0x0] %vm1018, %v1031
          %v1037 = vrot.slane %v984, 6
          %v1038 = vrot.slane %v1012, 6
          %1041 = vst [vmem:[#allocation2 + $0x10] sm:$0xfc] %v1037
          %1042 = vst [vmem:[#allocation2 + $0x18] sm:$0xfc] %v1038
          %1043 = vst [vmem:[#allocation2 + $0x20] sm:$0x3] %v1037
          %1044 = vst [vmem:[#allocation2 + $0x28] sm:$0x3] %v1038
        $region120: #{forward_pallas.2} parent=71 // pred_fallthru
          _
        %v1045 = vld [vmem:[#allocation2] sm:$0xff]
        %v1046 = vld [vmem:[#allocation2 + $0x8] sm:$0xff]
        %v1047 = vld [vmem:[#allocation2 + $0x10] sm:$0xff]
        %v1048 = vld [vmem:[#allocation2 + $0x18] sm:$0xff]
        %v1049 = vld [vmem:[#allocation2 + $0x20] sm:$0x3]
        %v1050 = vld [vmem:[#allocation2 + $0x28] sm:$0x3]
        %v1051 = vpack.c.bf16 %v1047, %v1045
        %v1052 = vpack.c.bf16 %v1048, %v1046
        %v1053 = vpack.c.bf16 %v1049, %v1049
        %v1054 = vpack.c.bf16 %v1050, %v1050
        %v1055 = vld [vmem:[%s620] sm:$0xff]
        %v1056 = vld [vmem:[%s620 + $0x8] sm:$0xff]
        %v1057 = vld [vmem:[%s620 + $0x10] sm:$0xff]
        %v1058 = vld [vmem:[%s620 + $0x18] sm:$0xff]
        %v1059 = vld [vmem:[%s620 + $0x20] sm:$0xff]
        %v1060 = vld [vmem:[%s620 + $0x28] sm:$0xff]
        %v1061 = vld [vmem:[%s620 + $0x30] sm:$0xff]
        %v1062 = vld [vmem:[%s620 + $0x38] sm:$0xff]
        %v1063 = vld [vmem:[%s620 + $0x40] sm:$0xff]
        %v1064 = vld [vmem:[%s620 + $0x48] sm:$0xff]
        %v1065 = vld [vmem:[%s620 + $0x50] sm:$0xff]
        %v1066 = vld [vmem:[%s620 + $0x58] sm:$0xff]
        %v1067 = vld [vmem:[%s620 + $0x60] sm:$0xff]
        %v1068 = vld [vmem:[%s620 + $0x68] sm:$0xff]
        %v1069 = vld [vmem:[%s620 + $0x70] sm:$0xff]
        %v1070 = vld [vmem:[%s620 + $0x78] sm:$0xff]
        %v1071 = vld [vmem:[%s620 + $0x80] sm:$0xff]
        %v1072 = vld [vmem:[%s620 + $0x88] sm:$0xff]
        %v1073 = vld [vmem:[%s620 + $0x90] sm:$0xff]
        %v1074 = vld [vmem:[%s620 + $0x98] sm:$0xff]
        %v1075 = vld [vmem:[%s620 + $0xa0] sm:$0xff]
        %v1076 = vld [vmem:[%s620 + $0xa8] sm:$0xff]
        %v1077 = vld [vmem:[%s620 + $0xb0] sm:$0xff]
        %v1078 = vld [vmem:[%s620 + $0xb8] sm:$0xff]
        %v1079 = vld [vmem:[%s620 + $0xc0] sm:$0xff]
        %v1080 = vld [vmem:[%s620 + $0xc8] sm:$0xff]
        %v1081 = vld [vmem:[%s620 + $0xd0] sm:$0xff]
        %v1082 = vld [vmem:[%s620 + $0xd8] sm:$0xff]
        %v1083 = vld [vmem:[%s620 + $0xe0] sm:$0xff]
        %v1084 = vld [vmem:[%s620 + $0xe8] sm:$0xff]
        %v1085 = vld [vmem:[%s620 + $0xf0] sm:$0xff]
        %v1086 = vld [vmem:[%s620 + $0xf8] sm:$0xff]
        %v1087 = vld [vmem:[%s620 + $0x100] sm:$0xff]
        %v1088 = vld [vmem:[%s620 + $0x108] sm:$0xff]
        %v1089 = vld [vmem:[%s620 + $0x110] sm:$0xff]
        %v1090 = vld [vmem:[%s620 + $0x118] sm:$0xff]
        %v1091 = vld [vmem:[%s620 + $0x120] sm:$0xff]
        %v1092 = vld [vmem:[%s620 + $0x128] sm:$0xff]
        %v1093 = vld [vmem:[%s620 + $0x130] sm:$0xff]
        %v1094 = vld [vmem:[%s620 + $0x138] sm:$0xff]
        %v1095 = vld [vmem:[%s620 + $0x140] sm:$0xff]
        %v1096 = vld [vmem:[%s620 + $0x148] sm:$0xff]
        %v1097 = vld [vmem:[%s620 + $0x150] sm:$0xff]
        %v1098 = vld [vmem:[%s620 + $0x158] sm:$0xff]
        %v1099 = vld [vmem:[%s620 + $0x160] sm:$0xff]
        %v1100 = vld [vmem:[%s620 + $0x168] sm:$0xff]
        %v1101 = vld [vmem:[%s620 + $0x170] sm:$0xff]
        %v1102 = vld [vmem:[%s620 + $0x178] sm:$0xff]
        %v1103 = vld [vmem:[%s620 + $0x180] sm:$0xff]
        %v1104 = vld [vmem:[%s620 + $0x188] sm:$0xff]
        %v1105 = vld [vmem:[%s620 + $0x190] sm:$0xff]
        %v1106 = vld [vmem:[%s620 + $0x198] sm:$0xff]
        %v1107 = vld [vmem:[%s620 + $0x1a0] sm:$0xff]
        %v1108 = vld [vmem:[%s620 + $0x1a8] sm:$0xff]
        %v1109 = vld [vmem:[%s620 + $0x1b0] sm:$0xff]
        %v1110 = vld [vmem:[%s620 + $0x1b8] sm:$0xff]
        %v1111 = vld [vmem:[%s620 + $0x1c0] sm:$0xff]
        %v1112 = vld [vmem:[%s620 + $0x1c8] sm:$0xff]
        %v1113 = vld [vmem:[%s620 + $0x1d0] sm:$0xff]
        %v1114 = vld [vmem:[%s620 + $0x1d8] sm:$0xff]
        %v1115 = vld [vmem:[%s620 + $0x1e0] sm:$0xff]
        %v1116 = vld [vmem:[%s620 + $0x1e8] sm:$0xff]
        %v1117 = vld [vmem:[%s620 + $0x1f0] sm:$0xff]
        %v1118 = vld [vmem:[%s620 + $0x1f8] sm:$0xff]
        %v1119 = vld [vmem:[%s620 + $0x200] sm:$0xff]
        %v1120 = vld [vmem:[%s620 + $0x208] sm:$0xff]
        %v1121 = vld [vmem:[%s620 + $0x210] sm:$0xff]
        %v1122 = vld [vmem:[%s620 + $0x218] sm:$0xff]
        %v1123 = vld [vmem:[%s620 + $0x220] sm:$0xff]
        %v1124 = vld [vmem:[%s620 + $0x228] sm:$0xff]
        %v1125 = vld [vmem:[%s620 + $0x230] sm:$0xff]
        %v1126 = vld [vmem:[%s620 + $0x238] sm:$0xff]
        %v1127 = vld [vmem:[%s620 + $0x240] sm:$0xff]
        %v1128 = vld [vmem:[%s620 + $0x248] sm:$0xff]
        %v1129 = vld [vmem:[%s620 + $0x250] sm:$0xff]
        %v1130 = vld [vmem:[%s620 + $0x258] sm:$0xff]
        %v1131 = vld [vmem:[%s620 + $0x260] sm:$0xff]
        %v1132 = vld [vmem:[%s620 + $0x268] sm:$0xff]
        %v1133 = vld [vmem:[%s620 + $0x270] sm:$0xff]
        %v1134 = vld [vmem:[%s620 + $0x278] sm:$0xff]
        %v1135 = vld [vmem:[%s620 + $0x280] sm:$0xff]
        %v1136 = vld [vmem:[%s620 + $0x288] sm:$0xff]
        %v1137 = vld [vmem:[%s620 + $0x290] sm:$0xff]
        %v1138 = vld [vmem:[%s620 + $0x298] sm:$0xff]
        %v1139 = vld [vmem:[%s620 + $0x2a0] sm:$0xff]
        %v1140 = vld [vmem:[%s620 + $0x2a8] sm:$0xff]
        %v1141 = vld [vmem:[%s620 + $0x2b0] sm:$0xff]
        %v1142 = vld [vmem:[%s620 + $0x2b8] sm:$0xff]
        %v1143 = vld [vmem:[%s620 + $0x2c0] sm:$0xff]
        %v1144 = vld [vmem:[%s620 + $0x2c8] sm:$0xff]
        %v1145 = vld [vmem:[%s620 + $0x2d0] sm:$0xff]
        %v1146 = vld [vmem:[%s620 + $0x2d8] sm:$0xff]
        %v1147 = vld [vmem:[%s620 + $0x2e0] sm:$0xff]
        %v1148 = vld [vmem:[%s620 + $0x2e8] sm:$0xff]
        %v1149 = vld [vmem:[%s620 + $0x2f0] sm:$0xff]
        %v1150 = vld [vmem:[%s620 + $0x2f8] sm:$0xff]
        %v1151 = vld [vmem:[%s630] sm:$0x3f]
        %v1153 = vperm.slane %v1151, 0
        %v1154 = vperm.slane %v1151, 1
        %v1155 = vperm.slane %v1151, 2
        %v1156 = vperm.slane %v1151, 3
        %v1157 = vperm.slane %v1151, 4
        %v1158 = vperm.slane %v1151, 5
        %v1261 = vunpack.c.l.b16 %v1055
        %v1262 = vunpack.c.h.b16 %v1055
        %v1263 = vunpack.c.l.b16 %v1056
        %v1264 = vunpack.c.h.b16 %v1056
        %v1265 = vunpack.c.l.b16 %v1057
        %v1266 = vunpack.c.h.b16 %v1057
        %v1267 = vunpack.c.l.b16 %v1058
        %v1268 = vunpack.c.h.b16 %v1058
        %v1269 = vunpack.c.l.b16 %v1059
        %v1270 = vunpack.c.h.b16 %v1059
        %v1271 = vunpack.c.l.b16 %v1060
        %v1272 = vunpack.c.h.b16 %v1060
        %v1273 = vunpack.c.l.b16 %v1061
        %v1274 = vunpack.c.h.b16 %v1061
        %v1275 = vunpack.c.l.b16 %v1062
        %v1276 = vunpack.c.h.b16 %v1062
        %v1277 = vunpack.c.l.b16 %v1063
        %v1278 = vunpack.c.h.b16 %v1063
        %v1279 = vunpack.c.l.b16 %v1064
        %v1280 = vunpack.c.h.b16 %v1064
        %v1281 = vunpack.c.l.b16 %v1065
        %v1282 = vunpack.c.h.b16 %v1065
        %v1283 = vunpack.c.l.b16 %v1066
        %v1284 = vunpack.c.h.b16 %v1066
        %v1285 = vunpack.c.l.b16 %v1067
        %v1286 = vunpack.c.h.b16 %v1067
        %v1287 = vunpack.c.l.b16 %v1068
        %v1288 = vunpack.c.h.b16 %v1068
        %v1289 = vunpack.c.l.b16 %v1069
        %v1290 = vunpack.c.h.b16 %v1069
        %v1291 = vunpack.c.l.b16 %v1070
        %v1292 = vunpack.c.h.b16 %v1070
        %v1293 = vunpack.c.l.b16 %v1071
        %v1294 = vunpack.c.h.b16 %v1071
        %v1295 = vunpack.c.l.b16 %v1072
        %v1296 = vunpack.c.h.b16 %v1072
        %v1297 = vunpack.c.l.b16 %v1073
        %v1298 = vunpack.c.h.b16 %v1073
        %v1299 = vunpack.c.l.b16 %v1074
        %v1300 = vunpack.c.h.b16 %v1074
        %v1301 = vunpack.c.l.b16 %v1075
        %v1302 = vunpack.c.h.b16 %v1075
        %v1303 = vunpack.c.l.b16 %v1076
        %v1304 = vunpack.c.h.b16 %v1076
        %v1305 = vunpack.c.l.b16 %v1077
        %v1306 = vunpack.c.h.b16 %v1077
        %v1307 = vunpack.c.l.b16 %v1078
        %v1308 = vunpack.c.h.b16 %v1078
        %v1309 = vunpack.c.l.b16 %v1079
        %v1310 = vunpack.c.h.b16 %v1079
        %v1311 = vunpack.c.l.b16 %v1080
        %v1312 = vunpack.c.h.b16 %v1080
        %v1313 = vunpack.c.l.b16 %v1081
        %v1314 = vunpack.c.h.b16 %v1081
        %v1315 = vunpack.c.l.b16 %v1082
        %v1316 = vunpack.c.h.b16 %v1082
        %v1317 = vunpack.c.l.b16 %v1083
        %v1318 = vunpack.c.h.b16 %v1083
        %v1319 = vunpack.c.l.b16 %v1084
        %v1320 = vunpack.c.h.b16 %v1084
        %v1321 = vunpack.c.l.b16 %v1085
        %v1322 = vunpack.c.h.b16 %v1085
        %v1323 = vunpack.c.l.b16 %v1086
        %v1324 = vunpack.c.h.b16 %v1086
        %v1325 = vunpack.c.l.b16 %v1087
        %v1326 = vunpack.c.h.b16 %v1087
        %v1327 = vunpack.c.l.b16 %v1088
        %v1328 = vunpack.c.h.b16 %v1088
        %v1329 = vunpack.c.l.b16 %v1089
        %v1330 = vunpack.c.h.b16 %v1089
        %v1331 = vunpack.c.l.b16 %v1090
        %v1332 = vunpack.c.h.b16 %v1090
        %v1333 = vunpack.c.l.b16 %v1091
        %v1334 = vunpack.c.h.b16 %v1091
        %v1335 = vunpack.c.l.b16 %v1092
        %v1336 = vunpack.c.h.b16 %v1092
        %v1337 = vunpack.c.l.b16 %v1093
        %v1338 = vunpack.c.h.b16 %v1093
        %v1339 = vunpack.c.l.b16 %v1094
        %v1340 = vunpack.c.h.b16 %v1094
        %v1341 = vunpack.c.l.b16 %v1095
        %v1342 = vunpack.c.h.b16 %v1095
        %v1343 = vunpack.c.l.b16 %v1096
        %v1344 = vunpack.c.h.b16 %v1096
        %v1345 = vunpack.c.l.b16 %v1097
        %v1346 = vunpack.c.h.b16 %v1097
        %v1347 = vunpack.c.l.b16 %v1098
        %v1348 = vunpack.c.h.b16 %v1098
        %v1349 = vunpack.c.l.b16 %v1099
        %v1350 = vunpack.c.h.b16 %v1099
        %v1351 = vunpack.c.l.b16 %v1100
        %v1352 = vunpack.c.h.b16 %v1100
        %v1353 = vunpack.c.l.b16 %v1101
        %v1354 = vunpack.c.h.b16 %v1101
        %v1355 = vunpack.c.l.b16 %v1102
        %v1356 = vunpack.c.h.b16 %v1102
        %v1357 = vunpack.c.l.b16 %v1103
        %v1358 = vunpack.c.h.b16 %v1103
        %v1359 = vunpack.c.l.b16 %v1104
        %v1360 = vunpack.c.h.b16 %v1104
        %v1361 = vunpack.c.l.b16 %v1105
        %v1362 = vunpack.c.h.b16 %v1105
        %v1363 = vunpack.c.l.b16 %v1106
        %v1364 = vunpack.c.h.b16 %v1106
        %v1365 = vunpack.c.l.b16 %v1107
        %v1366 = vunpack.c.h.b16 %v1107
        %v1367 = vunpack.c.l.b16 %v1108
        %v1368 = vunpack.c.h.b16 %v1108
        %v1369 = vunpack.c.l.b16 %v1109
        %v1370 = vunpack.c.h.b16 %v1109
        %v1371 = vunpack.c.l.b16 %v1110
        %v1372 = vunpack.c.h.b16 %v1110
        %v1373 = vunpack.c.l.b16 %v1111
        %v1374 = vunpack.c.h.b16 %v1111
        %v1375 = vunpack.c.l.b16 %v1112
        %v1376 = vunpack.c.h.b16 %v1112
        %v1377 = vunpack.c.l.b16 %v1113
        %v1378 = vunpack.c.h.b16 %v1113
        %v1379 = vunpack.c.l.b16 %v1114
        %v1380 = vunpack.c.h.b16 %v1114
        %v1381 = vunpack.c.l.b16 %v1115
        %v1382 = vunpack.c.h.b16 %v1115
        %v1383 = vunpack.c.l.b16 %v1116
        %v1384 = vunpack.c.h.b16 %v1116
        %v1385 = vunpack.c.l.b16 %v1117
        %v1386 = vunpack.c.h.b16 %v1117
        %v1387 = vunpack.c.l.b16 %v1118
        %v1388 = vunpack.c.h.b16 %v1118
        %v1389 = vunpack.c.l.b16 %v1119
        %v1390 = vunpack.c.h.b16 %v1119
        %v1391 = vunpack.c.l.b16 %v1120
        %v1392 = vunpack.c.h.b16 %v1120
        %v1393 = vunpack.c.l.b16 %v1121
        %v1394 = vunpack.c.h.b16 %v1121
        %v1395 = vunpack.c.l.b16 %v1122
        %v1396 = vunpack.c.h.b16 %v1122
        %v1397 = vunpack.c.l.b16 %v1123
        %v1398 = vunpack.c.h.b16 %v1123
        %v1399 = vunpack.c.l.b16 %v1124
        %v1400 = vunpack.c.h.b16 %v1124
        %v1401 = vunpack.c.l.b16 %v1125
        %v1402 = vunpack.c.h.b16 %v1125
        %v1403 = vunpack.c.l.b16 %v1126
        %v1404 = vunpack.c.h.b16 %v1126
        %v1405 = vunpack.c.l.b16 %v1127
        %v1406 = vunpack.c.h.b16 %v1127
        %v1407 = vunpack.c.l.b16 %v1128
        %v1408 = vunpack.c.h.b16 %v1128
        %v1409 = vunpack.c.l.b16 %v1129
        %v1410 = vunpack.c.h.b16 %v1129
        %v1411 = vunpack.c.l.b16 %v1130
        %v1412 = vunpack.c.h.b16 %v1130
        %v1413 = vunpack.c.l.b16 %v1131
        %v1414 = vunpack.c.h.b16 %v1131
        %v1415 = vunpack.c.l.b16 %v1132
        %v1416 = vunpack.c.h.b16 %v1132
        %v1417 = vunpack.c.l.b16 %v1133
        %v1418 = vunpack.c.h.b16 %v1133
        %v1419 = vunpack.c.l.b16 %v1134
        %v1420 = vunpack.c.h.b16 %v1134
        %v1421 = vunpack.c.l.b16 %v1135
        %v1422 = vunpack.c.h.b16 %v1135
        %v1423 = vunpack.c.l.b16 %v1136
        %v1424 = vunpack.c.h.b16 %v1136
        %v1425 = vunpack.c.l.b16 %v1137
        %v1426 = vunpack.c.h.b16 %v1137
        %v1427 = vunpack.c.l.b16 %v1138
        %v1428 = vunpack.c.h.b16 %v1138
        %v1429 = vunpack.c.l.b16 %v1139
        %v1430 = vunpack.c.h.b16 %v1139
        %v1431 = vunpack.c.l.b16 %v1140
        %v1432 = vunpack.c.h.b16 %v1140
        %v1433 = vunpack.c.l.b16 %v1141
        %v1434 = vunpack.c.h.b16 %v1141
        %v1435 = vunpack.c.l.b16 %v1142
        %v1436 = vunpack.c.h.b16 %v1142
        %v1437 = vunpack.c.l.b16 %v1143
        %v1438 = vunpack.c.h.b16 %v1143
        %v1439 = vunpack.c.l.b16 %v1144
        %v1440 = vunpack.c.h.b16 %v1144
        %v1441 = vunpack.c.l.b16 %v1145
        %v1442 = vunpack.c.h.b16 %v1145
        %v1443 = vunpack.c.l.b16 %v1146
        %v1444 = vunpack.c.h.b16 %v1146
        %v1445 = vunpack.c.l.b16 %v1147
        %v1446 = vunpack.c.h.b16 %v1147
        %v1447 = vunpack.c.l.b16 %v1148
        %v1448 = vunpack.c.h.b16 %v1148
        %v1449 = vunpack.c.l.b16 %v1149
        %v1450 = vunpack.c.h.b16 %v1149
        %v1451 = vunpack.c.l.b16 %v1150
        %v1452 = vunpack.c.h.b16 %v1150
        %v1453 = vpack.c.b16 %v1267, %v1261
        %v1454 = vpack.c.b16 %v1268, %v1262
        %v1455 = vpack.c.b16 %v1269, %v1263
        %v1456 = vpack.c.b16 %v1270, %v1264
        %v1457 = vpack.c.b16 %v1271, %v1265
        %v1458 = vpack.c.b16 %v1272, %v1266
        %v1459 = vpack.c.b16 %v1279, %v1273
        %v1460 = vpack.c.b16 %v1280, %v1274
        %v1461 = vpack.c.b16 %v1281, %v1275
        %v1462 = vpack.c.b16 %v1282, %v1276
        %v1463 = vpack.c.b16 %v1283, %v1277
        %v1464 = vpack.c.b16 %v1284, %v1278
        %v1465 = vpack.c.b16 %v1291, %v1285
        %v1466 = vpack.c.b16 %v1292, %v1286
        %v1467 = vpack.c.b16 %v1293, %v1287
        %v1468 = vpack.c.b16 %v1294, %v1288
        %v1469 = vpack.c.b16 %v1295, %v1289
        %v1470 = vpack.c.b16 %v1296, %v1290
        %v1471 = vpack.c.b16 %v1303, %v1297
        %v1472 = vpack.c.b16 %v1304, %v1298
        %v1473 = vpack.c.b16 %v1305, %v1299
        %v1474 = vpack.c.b16 %v1306, %v1300
        %v1475 = vpack.c.b16 %v1307, %v1301
        %v1476 = vpack.c.b16 %v1308, %v1302
        %v1477 = vpack.c.b16 %v1315, %v1309
        %v1478 = vpack.c.b16 %v1316, %v1310
        %v1479 = vpack.c.b16 %v1317, %v1311
        %v1480 = vpack.c.b16 %v1318, %v1312
        %v1481 = vpack.c.b16 %v1319, %v1313
        %v1482 = vpack.c.b16 %v1320, %v1314
        %v1483 = vpack.c.b16 %v1327, %v1321
        %v1484 = vpack.c.b16 %v1328, %v1322
        %v1485 = vpack.c.b16 %v1329, %v1323
        %v1486 = vpack.c.b16 %v1330, %v1324
        %v1487 = vpack.c.b16 %v1331, %v1325
        %v1488 = vpack.c.b16 %v1332, %v1326
        %v1489 = vpack.c.b16 %v1339, %v1333
        %v1490 = vpack.c.b16 %v1340, %v1334
        %v1491 = vpack.c.b16 %v1341, %v1335
        %v1492 = vpack.c.b16 %v1342, %v1336
        %v1493 = vpack.c.b16 %v1343, %v1337
        %v1494 = vpack.c.b16 %v1344, %v1338
        %v1495 = vpack.c.b16 %v1351, %v1345
        %v1496 = vpack.c.b16 %v1352, %v1346
        %v1497 = vpack.c.b16 %v1353, %v1347
        %v1498 = vpack.c.b16 %v1354, %v1348
        %v1499 = vpack.c.b16 %v1355, %v1349
        %v1500 = vpack.c.b16 %v1356, %v1350
        %v1501 = vpack.c.b16 %v1363, %v1357
        %v1502 = vpack.c.b16 %v1364, %v1358
        %v1503 = vpack.c.b16 %v1365, %v1359
        %v1504 = vpack.c.b16 %v1366, %v1360
        %v1505 = vpack.c.b16 %v1367, %v1361
        %v1506 = vpack.c.b16 %v1368, %v1362
        %v1507 = vpack.c.b16 %v1375, %v1369
        %v1508 = vpack.c.b16 %v1376, %v1370
        %v1509 = vpack.c.b16 %v1377, %v1371
        %v1510 = vpack.c.b16 %v1378, %v1372
        %v1511 = vpack.c.b16 %v1379, %v1373
        %v1512 = vpack.c.b16 %v1380, %v1374
        %v1513 = vpack.c.b16 %v1387, %v1381
        %v1514 = vpack.c.b16 %v1388, %v1382
        %v1515 = vpack.c.b16 %v1389, %v1383
        %v1516 = vpack.c.b16 %v1390, %v1384
        %v1517 = vpack.c.b16 %v1391, %v1385
        %v1518 = vpack.c.b16 %v1392, %v1386
        %v1519 = vpack.c.b16 %v1399, %v1393
        %v1520 = vpack.c.b16 %v1400, %v1394
        %v1521 = vpack.c.b16 %v1401, %v1395
        %v1522 = vpack.c.b16 %v1402, %v1396
        %v1523 = vpack.c.b16 %v1403, %v1397
        %v1524 = vpack.c.b16 %v1404, %v1398
        %v1525 = vpack.c.b16 %v1411, %v1405
        %v1526 = vpack.c.b16 %v1412, %v1406
        %v1527 = vpack.c.b16 %v1413, %v1407
        %v1528 = vpack.c.b16 %v1414, %v1408
        %v1529 = vpack.c.b16 %v1415, %v1409
        %v1530 = vpack.c.b16 %v1416, %v1410
        %v1531 = vpack.c.b16 %v1423, %v1417
        %v1532 = vpack.c.b16 %v1424, %v1418
        %v1533 = vpack.c.b16 %v1425, %v1419
        %v1534 = vpack.c.b16 %v1426, %v1420
        %v1535 = vpack.c.b16 %v1427, %v1421
        %v1536 = vpack.c.b16 %v1428, %v1422
        %v1537 = vpack.c.b16 %v1435, %v1429
        %v1538 = vpack.c.b16 %v1436, %v1430
        %v1539 = vpack.c.b16 %v1437, %v1431
        %v1540 = vpack.c.b16 %v1438, %v1432
        %v1541 = vpack.c.b16 %v1439, %v1433
        %v1542 = vpack.c.b16 %v1440, %v1434
        %v1543 = vpack.c.b16 %v1447, %v1441
        %v1544 = vpack.c.b16 %v1448, %v1442
        %v1545 = vpack.c.b16 %v1449, %v1443
        %v1546 = vpack.c.b16 %v1450, %v1444
        %v1547 = vpack.c.b16 %v1451, %v1445
        %v1548 = vpack.c.b16 %v1452, %v1446
        %1645 = vmatpush.bf16.msra.mxu0 %v1495
        %1646 = vmatpush.bf16.msra.mxu0 %v1489
        %1647 = vmatpush.bf16.msra.mxu0 %v1483
        %1648 = vmatpush.bf16.msra.mxu0 %v1477
        %1649 = vmatpush.bf16.msra.mxu0 %v1471
        %1650 = vmatpush.bf16.msra.mxu0 %v1465
        %1651 = vmatpush.bf16.msra.mxu0 %v1459
        %1652 = vmatpush.bf16.msra.mxu0 %v1453
        %1653 = vmatmul.bf16.gmra.mxu0 %v1051
        %v1654 = vpop.f32.mrf.mxu0
        %v1655 = vadd.f32 %v1153, %v1654
        %v1656 = vpop.f32.mrf.mxu0
        %v1657 = vadd.f32 %v1153, %v1656
        %1658 = vmatmul.bf16.gmra.mxu0 %v1053
        %v1659 = vpop.f32.mrf.mxu0
        %v1660 = vadd.f32 %v1153, %v1659
        %v1661 = vpop.f32.mrf.mxu0
        %1662 = vdwg.mxu0
        %1663 = vmatpush.bf16.msra.mxu0 %v1543
        %1664 = vmatpush.bf16.msra.mxu0 %v1537
        %1665 = vmatpush.bf16.msra.mxu0 %v1531
        %1666 = vmatpush.bf16.msra.mxu0 %v1525
        %1667 = vmatpush.bf16.msra.mxu0 %v1519
        %1668 = vmatpush.bf16.msra.mxu0 %v1513
        %1669 = vmatpush.bf16.msra.mxu0 %v1507
        %1670 = vmatpush.bf16.msra.mxu0 %v1501
        %1671 = vmatmul.bf16.gmra.mxu0 %v1052
        %v1672 = vpop.f32.mrf.mxu0
        %v1673 = vadd.f32 %v1655, %v1672
        %v1674 = vpop.f32.mrf.mxu0
        %v1675 = vadd.f32 %v1657, %v1674
        %1676 = vmatmul.bf16.gmra.mxu0 %v1054
        %v1677 = vpop.f32.mrf.mxu0
        %v1678 = vadd.f32 %v1660, %v1677
        %v1679 = vpop.f32.mrf.mxu0
        %1680 = vdwg.mxu0
        %1681 = vmatpush.bf16.msra.mxu0 %v1496
        %1682 = vmatpush.bf16.msra.mxu0 %v1490
        %1683 = vmatpush.bf16.msra.mxu0 %v1484
        %1684 = vmatpush.bf16.msra.mxu0 %v1478
        %1685 = vmatpush.bf16.msra.mxu0 %v1472
        %1686 = vmatpush.bf16.msra.mxu0 %v1466
        %1687 = vmatpush.bf16.msra.mxu0 %v1460
        %1688 = vmatpush.bf16.msra.mxu0 %v1454
        %1689 = vmatmul.bf16.gmra.mxu0 %v1051
        %v1690 = vpop.f32.mrf.mxu0
        %v1691 = vadd.f32 %v1154, %v1690
        %v1692 = vpop.f32.mrf.mxu0
        %v1693 = vadd.f32 %v1154, %v1692
        %1694 = vmatmul.bf16.gmra.mxu0 %v1053
        %v1695 = vpop.f32.mrf.mxu0
        %v1696 = vadd.f32 %v1154, %v1695
        %v1697 = vpop.f32.mrf.mxu0
        %1698 = vdwg.mxu0
        %1699 = vmatpush.bf16.msra.mxu0 %v1544
        %1700 = vmatpush.bf16.msra.mxu0 %v1538
        %1701 = vmatpush.bf16.msra.mxu0 %v1532
        %1702 = vmatpush.bf16.msra.mxu0 %v1526
        %1703 = vmatpush.bf16.msra.mxu0 %v1520
        %1704 = vmatpush.bf16.msra.mxu0 %v1514
        %1705 = vmatpush.bf16.msra.mxu0 %v1508
        %1706 = vmatpush.bf16.msra.mxu0 %v1502
        %1707 = vmatmul.bf16.gmra.mxu0 %v1052
        %v1708 = vpop.f32.mrf.mxu0
        %v1709 = vadd.f32 %v1691, %v1708
        %v1710 = vpop.f32.mrf.mxu0
        %v1711 = vadd.f32 %v1693, %v1710
        %1712 = vmatmul.bf16.gmra.mxu0 %v1054
        %v1713 = vpop.f32.mrf.mxu0
        %v1714 = vadd.f32 %v1696, %v1713
        %v1715 = vpop.f32.mrf.mxu0
        %1716 = vdwg.mxu0
        %1717 = vmatpush.bf16.msra.mxu0 %v1497
        %1718 = vmatpush.bf16.msra.mxu0 %v1491
        %1719 = vmatpush.bf16.msra.mxu0 %v1485
        %1720 = vmatpush.bf16.msra.mxu0 %v1479
        %1721 = vmatpush.bf16.msra.mxu0 %v1473
        %1722 = vmatpush.bf16.msra.mxu0 %v1467
        %1723 = vmatpush.bf16.msra.mxu0 %v1461
        %1724 = vmatpush.bf16.msra.mxu0 %v1455
        %1725 = vmatmul.bf16.gmra.mxu0 %v1051
        %v1726 = vpop.f32.mrf.mxu0
        %v1727 = vadd.f32 %v1155, %v1726
        %v1728 = vpop.f32.mrf.mxu0
        %v1729 = vadd.f32 %v1155, %v1728
        %1730 = vmatmul.bf16.gmra.mxu0 %v1053
        %v1731 = vpop.f32.mrf.mxu0
        %v1732 = vadd.f32 %v1155, %v1731
        %v1733 = vpop.f32.mrf.mxu0
        %1734 = vdwg.mxu0
        %1735 = vmatpush.bf16.msra.mxu0 %v1545
        %1736 = vmatpush.bf16.msra.mxu0 %v1539
        %1737 = vmatpush.bf16.msra.mxu0 %v1533
        %1738 = vmatpush.bf16.msra.mxu0 %v1527
        %1739 = vmatpush.bf16.msra.mxu0 %v1521
        %1740 = vmatpush.bf16.msra.mxu0 %v1515
        %1741 = vmatpush.bf16.msra.mxu0 %v1509
        %1742 = vmatpush.bf16.msra.mxu0 %v1503
        %1743 = vmatmul.bf16.gmra.mxu0 %v1052
        %v1744 = vpop.f32.mrf.mxu0
        %v1745 = vadd.f32 %v1727, %v1744
        %v1746 = vpop.f32.mrf.mxu0
        %v1747 = vadd.f32 %v1729, %v1746
        %1748 = vmatmul.bf16.gmra.mxu0 %v1054
        %v1749 = vpop.f32.mrf.mxu0
        %v1750 = vadd.f32 %v1732, %v1749
        %v1751 = vpop.f32.mrf.mxu0
        %1752 = vdwg.mxu0
        %1753 = vmatpush.bf16.msra.mxu0 %v1498
        %1754 = vmatpush.bf16.msra.mxu0 %v1492
        %1755 = vmatpush.bf16.msra.mxu0 %v1486
        %1756 = vmatpush.bf16.msra.mxu0 %v1480
        %1757 = vmatpush.bf16.msra.mxu0 %v1474
        %1758 = vmatpush.bf16.msra.mxu0 %v1468
        %1759 = vmatpush.bf16.msra.mxu0 %v1462
        %1760 = vmatpush.bf16.msra.mxu0 %v1456
        %1761 = vmatmul.bf16.gmra.mxu0 %v1051
        %v1762 = vpop.f32.mrf.mxu0
        %v1763 = vadd.f32 %v1156, %v1762
        %v1764 = vpop.f32.mrf.mxu0
        %v1765 = vadd.f32 %v1156, %v1764
        %1766 = vmatmul.bf16.gmra.mxu0 %v1053
        %v1767 = vpop.f32.mrf.mxu0
        %v1768 = vadd.f32 %v1156, %v1767
        %v1769 = vpop.f32.mrf.mxu0
        %1770 = vdwg.mxu0
        %1771 = vmatpush.bf16.msra.mxu0 %v1546
        %1772 = vmatpush.bf16.msra.mxu0 %v1540
        %1773 = vmatpush.bf16.msra.mxu0 %v1534
        %1774 = vmatpush.bf16.msra.mxu0 %v1528
        %1775 = vmatpush.bf16.msra.mxu0 %v1522
        %1776 = vmatpush.bf16.msra.mxu0 %v1516
        %1777 = vmatpush.bf16.msra.mxu0 %v1510
        %1778 = vmatpush.bf16.msra.mxu0 %v1504
        %1779 = vmatmul.bf16.gmra.mxu0 %v1052
        %v1780 = vpop.f32.mrf.mxu0
        %v1781 = vadd.f32 %v1763, %v1780
        %v1782 = vpop.f32.mrf.mxu0
        %v1783 = vadd.f32 %v1765, %v1782
        %1784 = vmatmul.bf16.gmra.mxu0 %v1054
        %v1785 = vpop.f32.mrf.mxu0
        %v1786 = vadd.f32 %v1768, %v1785
        %v1787 = vpop.f32.mrf.mxu0
        %1788 = vdwg.mxu0
        %1789 = vmatpush.bf16.msra.mxu0 %v1499
        %1790 = vmatpush.bf16.msra.mxu0 %v1493
        %1791 = vmatpush.bf16.msra.mxu0 %v1487
        %1792 = vmatpush.bf16.msra.mxu0 %v1481
        %1793 = vmatpush.bf16.msra.mxu0 %v1475
        %1794 = vmatpush.bf16.msra.mxu0 %v1469
        %1795 = vmatpush.bf16.msra.mxu0 %v1463
        %1796 = vmatpush.bf16.msra.mxu0 %v1457
        %1797 = vmatmul.bf16.gmra.mxu0 %v1051
        %v1798 = vpop.f32.mrf.mxu0
        %v1799 = vadd.f32 %v1157, %v1798
        %v1800 = vpop.f32.mrf.mxu0
        %v1801 = vadd.f32 %v1157, %v1800
        %1802 = vmatmul.bf16.gmra.mxu0 %v1053
        %v1803 = vpop.f32.mrf.mxu0
        %v1804 = vadd.f32 %v1157, %v1803
        %v1805 = vpop.f32.mrf.mxu0
        %1806 = vdwg.mxu0
        %1807 = vmatpush.bf16.msra.mxu0 %v1547
        %1808 = vmatpush.bf16.msra.mxu0 %v1541
        %1809 = vmatpush.bf16.msra.mxu0 %v1535
        %1810 = vmatpush.bf16.msra.mxu0 %v1529
        %1811 = vmatpush.bf16.msra.mxu0 %v1523
        %1812 = vmatpush.bf16.msra.mxu0 %v1517
        %1813 = vmatpush.bf16.msra.mxu0 %v1511
        %1814 = vmatpush.bf16.msra.mxu0 %v1505
        %1815 = vmatmul.bf16.gmra.mxu0 %v1052
        %v1816 = vpop.f32.mrf.mxu0
        %v1817 = vadd.f32 %v1799, %v1816
        %v1818 = vpop.f32.mrf.mxu0
        %v1819 = vadd.f32 %v1801, %v1818
        %1820 = vmatmul.bf16.gmra.mxu0 %v1054
        %v1821 = vpop.f32.mrf.mxu0
        %v1822 = vadd.f32 %v1804, %v1821
        %v1823 = vpop.f32.mrf.mxu0
        %1824 = vdwg.mxu0
        %1825 = vmatpush.bf16.msra.mxu0 %v1500
        %1826 = vmatpush.bf16.msra.mxu0 %v1494
        %1827 = vmatpush.bf16.msra.mxu0 %v1488
        %1828 = vmatpush.bf16.msra.mxu0 %v1482
        %1829 = vmatpush.bf16.msra.mxu0 %v1476
        %1830 = vmatpush.bf16.msra.mxu0 %v1470
        %1831 = vmatpush.bf16.msra.mxu0 %v1464
        %1832 = vmatpush.bf16.msra.mxu0 %v1458
        %1833 = vmatmul.bf16.gmra.mxu0 %v1051
        %v1834 = vpop.f32.mrf.mxu0
        %v1835 = vadd.f32 %v1158, %v1834
        %v1836 = vpop.f32.mrf.mxu0
        %v1837 = vadd.f32 %v1158, %v1836
        %1838 = vmatmul.bf16.gmra.mxu0 %v1053
        %v1839 = vpop.f32.mrf.mxu0
        %v1840 = vadd.f32 %v1158, %v1839
        %v1841 = vpop.f32.mrf.mxu0
        %1842 = vdwg.mxu0
        %1843 = vmatpush.bf16.msra.mxu0 %v1548
        %1844 = vmatpush.bf16.msra.mxu0 %v1542
        %1845 = vmatpush.bf16.msra.mxu0 %v1536
        %1846 = vmatpush.bf16.msra.mxu0 %v1530
        %1847 = vmatpush.bf16.msra.mxu0 %v1524
        %1848 = vmatpush.bf16.msra.mxu0 %v1518
        %1849 = vmatpush.bf16.msra.mxu0 %v1512
        %1850 = vmatpush.bf16.msra.mxu0 %v1506
        %1851 = vmatmul.bf16.gmra.mxu0 %v1052
        %v1852 = vpop.f32.mrf.mxu0
        %v1853 = vadd.f32 %v1835, %v1852
        %v1854 = vpop.f32.mrf.mxu0
        %v1855 = vadd.f32 %v1837, %v1854
        %1856 = vmatmul.bf16.gmra.mxu0 %v1054
        %v1857 = vpop.f32.mrf.mxu0
        %v1858 = vadd.f32 %v1840, %v1857
        %v1859 = vpop.f32.mrf.mxu0
        %1860 = vdwg.mxu0
        %v1861 = vld [vmem:[%s0] sm:$0xff]
        %v1862 = vld [vmem:[%s0 + $0x8] sm:$0xff]
        %v1863 = vld [vmem:[%s0 + $0x10] sm:$0x3]
        %v1864 = vpack.c.bf16 %v1675, %v1673
        %v1865 = vpack.c.bf16 %v1678, %v1678
        %v1866 = vpack.c.bf16 %v1747, %v1745
        %v1867 = vpack.c.bf16 %v1750, %v1750
        %v1868 = vpack.c.bf16 %v1819, %v1817
        %v1869 = vpack.c.bf16 %v1822, %v1822
        %vm1870 = vcmask 261120
        %v1872 = vsel %vm1870, %v1864, 0
        %v1875 = vsel %vm1870, %v1865, 0
        %v1878 = vsel %vm1870, %v1866, 0
        %v1881 = vsel %vm1870, %v1867, 0
        %1883 = vmatpush.bf16.xpose.msra.mxu0 0
        %1884 = vmatpush.bf16.xpose.msra.mxu0 0
        %1885 = vmatpush.bf16.xpose.msra.mxu0 0
        %1886 = vmatpush.bf16.xpose.msra.mxu0 0
        %1887 = vmatpush.bf16.xpose.msra.mxu0 0
        %1888 = vmatpush.bf16.xpose.msra.mxu0 0
        %1889 = vmatpush.bf16.xpose.msra.mxu0 %v1881
        %1890 = vmatpush.bf16.xpose.msra.mxu0 %v1878
        %1891 = vmatmul.bf16.gmra.mxu0 %v1872
        %v1892 = vpop.f32.mrf.mxu0
        %v1893 = vadd.f32 0.0, %v1892
        %v1894 = vpop.f32.mrf.mxu0
        %v1895 = vadd.f32 0.0, %v1894
        %1896 = vmatmul.bf16.gmra.mxu0 %v1875
        %v1897 = vpop.f32.mrf.mxu0
        %v1898 = vadd.f32 0.0, %v1897
        %v1899 = vpop.f32.mrf.mxu0
        %1900 = vdwg.mxu0
        %v1901 = vmul.f32 %v1893, 0.17677669
        %v1902 = vmul.f32 %v1895, 0.17677669
        %v1903 = vmul.f32 %v1898, 0.17677669
        %v1904 = vadd.f32 %v1901, %v1861
        %v1905 = vadd.f32 %v1902, %v1862
        %v1906 = vadd.f32 %v1903, %v1863
        %vm1907 = vcmask 146432
        %v1908 = vsel %vm1907, %v1904, -inf
        %1909 = vmax.xlane.f32.xlu0 %v1908
        %v1910 = vpop.xlane.xlu0 %1909
        %v1911 = vsel %vm1907, %v1905, -inf
        %1912 = vmax.xlane.f32.xlu0 %v1911
        %v1913 = vpop.xlane.xlu0 %1912
        %vm1914 = vcmask 140288
        %v1915 = vsel %vm1914, %v1906, -inf
        %1916 = vmax.xlane.f32.xlu0 %v1915
        %v1917 = vpop.xlane.xlu0 %1916
        %v1918 = vsub.f32 %v1904, %v1910
        %v1919 = vsub.f32 %v1905, %v1913
        %v1920 = vsub.f32 %v1906, %v1917
        %v1921 = vmul.f32 %v1918, 1.442695
        %v1922 = vpow.pop %v1921
        %v1923 = vmul.f32 %v1919, 1.442695
        %v1924 = vpow.pop %v1923
        %v1925 = vmul.f32 %v1920, 1.442695
        %v1926 = vpow.pop %v1925
        %v1927 = vsel %vm1907, %v1922, 0.0
        %1928 = vadd.xlane.f32.xlu0 %v1927
        %v1929 = vpop.xlane.xlu0 %1928
        %v1930 = vsel %vm1907, %v1924, 0.0
        %1931 = vadd.xlane.f32.xlu0 %v1930
        %v1932 = vpop.xlane.xlu0 %1931
        %v1933 = vsel %vm1914, %v1926, 0.0
        %1934 = vadd.xlane.f32.xlu0 %v1933
        %v1935 = vpop.xlane.xlu0 %1934
        %v1936 = vrcp.pop %v1929
        %v1937 = vrcp.pop %v1932
        %v1938 = vrcp.pop %v1935
        %v1939 = vmul.f32 %v1922, %v1936
        %v1940 = vmul.f32 %v1924, %v1937
        %v1941 = vmul.f32 %v1926, %v1938
        %v1942 = vpack.c.bf16 %v1940, %v1939
        %v1943 = vpack.c.bf16 %v1941, %v1941
        %v1945 = vsel %vm1907, %v1942, 0
        %v1948 = vsel %vm1907, %v1943, 0
        %vm1950 = vcmask 1040384
        %v1952 = vsel %vm1950, %v1869, 0
        %1954 = vmatpush.bf16.msra.mxu0 0
        %1955 = vmatpush.bf16.msra.mxu0 0
        %1956 = vmatpush.bf16.msra.mxu0 0
        %1957 = vmatpush.bf16.msra.mxu0 0
        %1958 = vmatpush.bf16.msra.mxu0 0
        %1959 = vmatpush.bf16.msra.mxu0 0
        %1960 = vmatpush.bf16.msra.mxu0 %v1952
        %1961 = vmatpush.bf16.msra.mxu0 %v1868
        %1962 = vmatmul.bf16.gmra.mxu0 %v1945
        %v1963 = vpop.f32.mrf.mxu0
        %v1964 = vadd.f32 0.0, %v1963
        %v1965 = vpop.f32.mrf.mxu0
        %v1966 = vadd.f32 0.0, %v1965
        %1967 = vmatmul.bf16.gmra.mxu0 %v1948
        %v1968 = vpop.f32.mrf.mxu0
        %v1969 = vadd.f32 0.0, %v1968
        %v1970 = vpop.f32.mrf.mxu0
        %1971 = vdwg.mxu0
        %1974 = vrot.lane.b32.xlu0 %v1864, 96
        %v1975 = vpop.permute.xlu0 %1974
        %1976 = vrot.lane.b32.xlu0 %v1865, 96
        %v1977 = vpop.permute.xlu0 %1976
        %1980 = vrot.lane.b32.xlu0 %v1866, 96
        %v1981 = vpop.permute.xlu0 %1980
        %1982 = vrot.lane.b32.xlu0 %v1867, 96
        %v1983 = vpop.permute.xlu0 %1982
        %v1985 = vsel %vm1870, %v1975, 0
        %v1988 = vsel %vm1870, %v1977, 0
        %v1991 = vsel %vm1870, %v1981, 0
        %v1994 = vsel %vm1870, %v1983, 0
        %1996 = vmatpush.bf16.xpose.msra.mxu0 0
        %1997 = vmatpush.bf16.xpose.msra.mxu0 0
        %1998 = vmatpush.bf16.xpose.msra.mxu0 0
        %1999 = vmatpush.bf16.xpose.msra.mxu0 0
        %2000 = vmatpush.bf16.xpose.msra.mxu0 0
        %2001 = vmatpush.bf16.xpose.msra.mxu0 0
        %2002 = vmatpush.bf16.xpose.msra.mxu0 %v1994
        %2003 = vmatpush.bf16.xpose.msra.mxu0 %v1991
        %2004 = vmatmul.bf16.gmra.mxu0 %v1985
        %v2005 = vpop.f32.mrf.mxu0
        %v2006 = vadd.f32 0.0, %v2005
        %v2007 = vpop.f32.mrf.mxu0
        %v2008 = vadd.f32 0.0, %v2007
        %2009 = vmatmul.bf16.gmra.mxu0 %v1988
        %v2010 = vpop.f32.mrf.mxu0
        %v2011 = vadd.f32 0.0, %v2010
        %v2012 = vpop.f32.mrf.mxu0
        %2013 = vdwg.mxu0
        %v2014 = vmul.f32 %v2006, 0.17677669
        %v2015 = vmul.f32 %v2008, 0.17677669
        %v2016 = vmul.f32 %v2011, 0.17677669
        %v2017 = vadd.f32 %v2014, %v1861
        %v2018 = vadd.f32 %v2015, %v1862
        %v2019 = vadd.f32 %v2016, %v1863
        %v2020 = vsel %vm1907, %v2017, -inf
        %2021 = vmax.xlane.f32.xlu0 %v2020
        %v2022 = vpop.xlane.xlu0 %2021
        %v2023 = vsel %vm1907, %v2018, -inf
        %2024 = vmax.xlane.f32.xlu0 %v2023
        %v2025 = vpop.xlane.xlu0 %2024
        %v2026 = vsel %vm1914, %v2019, -inf
        %2027 = vmax.xlane.f32.xlu0 %v2026
        %v2028 = vpop.xlane.xlu0 %2027
        %v2029 = vsub.f32 %v2017, %v2022
        %v2030 = vsub.f32 %v2018, %v2025
        %v2031 = vsub.f32 %v2019, %v2028
        %v2032 = vmul.f32 %v2029, 1.442695
        %v2033 = vpow.pop %v2032
        %v2034 = vmul.f32 %v2030, 1.442695
        %v2035 = vpow.pop %v2034
        %v2036 = vmul.f32 %v2031, 1.442695
        %v2037 = vpow.pop %v2036
        %v2038 = vsel %vm1907, %v2033, 0.0
        %2039 = vadd.xlane.f32.xlu0 %v2038
        %v2040 = vpop.xlane.xlu0 %2039
        %v2041 = vsel %vm1907, %v2035, 0.0
        %2042 = vadd.xlane.f32.xlu0 %v2041
        %v2043 = vpop.xlane.xlu0 %2042
        %v2044 = vsel %vm1914, %v2037, 0.0
        %2045 = vadd.xlane.f32.xlu0 %v2044
        %v2046 = vpop.xlane.xlu0 %2045
        %v2047 = vrcp.pop %v2040
        %v2048 = vrcp.pop %v2043
        %v2049 = vrcp.pop %v2046
        %v2050 = vmul.f32 %v2033, %v2047
        %v2051 = vmul.f32 %v2035, %v2048
        %v2052 = vmul.f32 %v2037, %v2049
        %v2053 = vpack.c.bf16 %v2051, %v2050
        %v2054 = vpack.c.bf16 %v2052, %v2052
        %2057 = vrot.lane.b32.xlu0 %v1868, 96
        %v2058 = vpop.permute.xlu0 %2057
        %2059 = vrot.lane.b32.xlu0 %v1869, 96
        %v2060 = vpop.permute.xlu0 %2059
        %v2063 = vsel %vm1907, %v2053, 0
        %v2066 = vsel %vm1907, %v2054, 0
        %v2069 = vsel %vm1950, %v2060, 0
        %2071 = vmatpush.bf16.msra.mxu0 0
        %2072 = vmatpush.bf16.msra.mxu0 0
        %2073 = vmatpush.bf16.msra.mxu0 0
        %2074 = vmatpush.bf16.msra.mxu0 0
        %2075 = vmatpush.bf16.msra.mxu0 0
        %2076 = vmatpush.bf16.msra.mxu0 0
        %2077 = vmatpush.bf16.msra.mxu0 %v2069
        %2078 = vmatpush.bf16.msra.mxu0 %v2058
        %2079 = vmatmul.bf16.gmra.mxu0 %v2063
        %v2080 = vpop.f32.mrf.mxu0
        %v2081 = vadd.f32 0.0, %v2080
        %v2082 = vpop.f32.mrf.mxu0
        %v2083 = vadd.f32 0.0, %v2082
        %2084 = vmatmul.bf16.gmra.mxu0 %v2066
        %v2085 = vpop.f32.mrf.mxu0
        %v2086 = vadd.f32 0.0, %v2085
        %v2087 = vpop.f32.mrf.mxu0
        %2088 = vdwg.mxu0
        %2089 = vrot.lane.b32.xlu0 %v1864, 64
        %v2090 = vpop.permute.xlu0 %2089
        %2091 = vrot.lane.b32.xlu0 %v1865, 64
        %v2092 = vpop.permute.xlu0 %2091
        %2093 = vrot.lane.b32.xlu0 %v1866, 64
        %v2094 = vpop.permute.xlu0 %2093
        %2095 = vrot.lane.b32.xlu0 %v1867, 64
        %v2096 = vpop.permute.xlu0 %2095
        %v2098 = vsel %vm1870, %v2090, 0
        %v2101 = vsel %vm1870, %v2092, 0
        %v2104 = vsel %vm1870, %v2094, 0
        %v2107 = vsel %vm1870, %v2096, 0
        %2109 = vmatpush.bf16.xpose.msra.mxu0 0
        %2110 = vmatpush.bf16.xpose.msra.mxu0 0
        %2111 = vmatpush.bf16.xpose.msra.mxu0 0
        %2112 = vmatpush.bf16.xpose.msra.mxu0 0
        %2113 = vmatpush.bf16.xpose.msra.mxu0 0
        %2114 = vmatpush.bf16.xpose.msra.mxu0 0
        %2115 = vmatpush.bf16.xpose.msra.mxu0 %v2107
        %2116 = vmatpush.bf16.xpose.msra.mxu0 %v2104
        %2117 = vmatmul.bf16.gmra.mxu0 %v2098
        %v2118 = vpop.f32.mrf.mxu0
        %v2119 = vadd.f32 0.0, %v2118
        %v2120 = vpop.f32.mrf.mxu0
        %v2121 = vadd.f32 0.0, %v2120
        %2122 = vmatmul.bf16.gmra.mxu0 %v2101
        %v2123 = vpop.f32.mrf.mxu0
        %v2124 = vadd.f32 0.0, %v2123
        %v2125 = vpop.f32.mrf.mxu0
        %2126 = vdwg.mxu0
        %v2127 = vmul.f32 %v2119, 0.17677669
        %v2128 = vmul.f32 %v2121, 0.17677669
        %v2129 = vmul.f32 %v2124, 0.17677669
        %v2130 = vadd.f32 %v2127, %v1861
        %v2131 = vadd.f32 %v2128, %v1862
        %v2132 = vadd.f32 %v2129, %v1863
        %v2133 = vsel %vm1907, %v2130, -inf
        %2134 = vmax.xlane.f32.xlu0 %v2133
        %v2135 = vpop.xlane.xlu0 %2134
        %v2136 = vsel %vm1907, %v2131, -inf
        %2137 = vmax.xlane.f32.xlu0 %v2136
        %v2138 = vpop.xlane.xlu0 %2137
        %v2139 = vsel %vm1914, %v2132, -inf
        %2140 = vmax.xlane.f32.xlu0 %v2139
        %v2141 = vpop.xlane.xlu0 %2140
        %v2142 = vsub.f32 %v2130, %v2135
        %v2143 = vsub.f32 %v2131, %v2138
        %v2144 = vsub.f32 %v2132, %v2141
        %v2145 = vmul.f32 %v2142, 1.442695
        %v2146 = vpow.pop %v2145
        %v2147 = vmul.f32 %v2143, 1.442695
        %v2148 = vpow.pop %v2147
        %v2149 = vmul.f32 %v2144, 1.442695
        %v2150 = vpow.pop %v2149
        %v2151 = vsel %vm1907, %v2146, 0.0
        %2152 = vadd.xlane.f32.xlu0 %v2151
        %v2153 = vpop.xlane.xlu0 %2152
        %v2154 = vsel %vm1907, %v2148, 0.0
        %2155 = vadd.xlane.f32.xlu0 %v2154
        %v2156 = vpop.xlane.xlu0 %2155
        %v2157 = vsel %vm1914, %v2150, 0.0
        %2158 = vadd.xlane.f32.xlu0 %v2157
        %v2159 = vpop.xlane.xlu0 %2158
        %v2160 = vrcp.pop %v2153
        %v2161 = vrcp.pop %v2156
        %v2162 = vrcp.pop %v2159
        %v2163 = vmul.f32 %v2146, %v2160
        %v2164 = vmul.f32 %v2148, %v2161
        %v2165 = vmul.f32 %v2150, %v2162
        %v2166 = vpack.c.bf16 %v2164, %v2163
        %v2167 = vpack.c.bf16 %v2165, %v2165
        %2168 = vrot.lane.b32.xlu0 %v1868, 64
        %v2169 = vpop.permute.xlu0 %2168
        %2170 = vrot.lane.b32.xlu0 %v1869, 64
        %v2171 = vpop.permute.xlu0 %2170
        %v2174 = vsel %vm1907, %v2166, 0
        %v2177 = vsel %vm1907, %v2167, 0
        %v2180 = vsel %vm1950, %v2171, 0
        %2182 = vmatpush.bf16.msra.mxu0 0
        %2183 = vmatpush.bf16.msra.mxu0 0
        %2184 = vmatpush.bf16.msra.mxu0 0
        %2185 = vmatpush.bf16.msra.mxu0 0
        %2186 = vmatpush.bf16.msra.mxu0 0
        %2187 = vmatpush.bf16.msra.mxu0 0
        %2188 = vmatpush.bf16.msra.mxu0 %v2180
        %2189 = vmatpush.bf16.msra.mxu0 %v2169
        %2190 = vmatmul.bf16.gmra.mxu0 %v2174
        %v2191 = vpop.f32.mrf.mxu0
        %v2192 = vadd.f32 0.0, %v2191
        %v2193 = vpop.f32.mrf.mxu0
        %v2194 = vadd.f32 0.0, %v2193
        %2195 = vmatmul.bf16.gmra.mxu0 %v2177
        %v2196 = vpop.f32.mrf.mxu0
        %v2197 = vadd.f32 0.0, %v2196
        %v2198 = vpop.f32.mrf.mxu0
        %2199 = vdwg.mxu0
        %2200 = vrot.lane.b32.xlu0 %v1864, 32
        %v2201 = vpop.permute.xlu0 %2200
        %2202 = vrot.lane.b32.xlu0 %v1865, 32
        %v2203 = vpop.permute.xlu0 %2202
        %2204 = vrot.lane.b32.xlu0 %v1866, 32
        %v2205 = vpop.permute.xlu0 %2204
        %2206 = vrot.lane.b32.xlu0 %v1867, 32
        %v2207 = vpop.permute.xlu0 %2206
        %v2209 = vsel %vm1870, %v2201, 0
        %v2212 = vsel %vm1870, %v2203, 0
        %v2215 = vsel %vm1870, %v2205, 0
        %v2218 = vsel %vm1870, %v2207, 0
        %2220 = vmatpush.bf16.xpose.msra.mxu0 0
        %2221 = vmatpush.bf16.xpose.msra.mxu0 0
        %2222 = vmatpush.bf16.xpose.msra.mxu0 0
        %2223 = vmatpush.bf16.xpose.msra.mxu0 0
        %2224 = vmatpush.bf16.xpose.msra.mxu0 0
        %2225 = vmatpush.bf16.xpose.msra.mxu0 0
        %2226 = vmatpush.bf16.xpose.msra.mxu0 %v2218
        %2227 = vmatpush.bf16.xpose.msra.mxu0 %v2215
        %2228 = vmatmul.bf16.gmra.mxu0 %v2209
        %v2229 = vpop.f32.mrf.mxu0
        %v2230 = vadd.f32 0.0, %v2229
        %v2231 = vpop.f32.mrf.mxu0
        %v2232 = vadd.f32 0.0, %v2231
        %2233 = vmatmul.bf16.gmra.mxu0 %v2212
        %v2234 = vpop.f32.mrf.mxu0
        %v2235 = vadd.f32 0.0, %v2234
        %v2236 = vpop.f32.mrf.mxu0
        %2237 = vdwg.mxu0
        %v2238 = vmul.f32 %v2230, 0.17677669
        %v2239 = vmul.f32 %v2232, 0.17677669
        %v2240 = vmul.f32 %v2235, 0.17677669
        %v2241 = vadd.f32 %v2238, %v1861
        %v2242 = vadd.f32 %v2239, %v1862
        %v2243 = vadd.f32 %v2240, %v1863
        %v2244 = vsel %vm1907, %v2241, -inf
        %2245 = vmax.xlane.f32.xlu0 %v2244
        %v2246 = vpop.xlane.xlu0 %2245
        %v2247 = vsel %vm1907, %v2242, -inf
        %2248 = vmax.xlane.f32.xlu0 %v2247
        %v2249 = vpop.xlane.xlu0 %2248
        %v2250 = vsel %vm1914, %v2243, -inf
        %2251 = vmax.xlane.f32.xlu0 %v2250
        %v2252 = vpop.xlane.xlu0 %2251
        %v2253 = vsub.f32 %v2241, %v2246
        %v2254 = vsub.f32 %v2242, %v2249
        %v2255 = vsub.f32 %v2243, %v2252
        %v2256 = vmul.f32 %v2253, 1.442695
        %v2257 = vpow.pop %v2256
        %v2258 = vmul.f32 %v2254, 1.442695
        %v2259 = vpow.pop %v2258
        %v2260 = vmul.f32 %v2255, 1.442695
        %v2261 = vpow.pop %v2260
        %v2262 = vsel %vm1907, %v2257, 0.0
        %2263 = vadd.xlane.f32.xlu0 %v2262
        %v2264 = vpop.xlane.xlu0 %2263
        %v2265 = vsel %vm1907, %v2259, 0.0
        %2266 = vadd.xlane.f32.xlu0 %v2265
        %v2267 = vpop.xlane.xlu0 %2266
        %v2268 = vsel %vm1914, %v2261, 0.0
        %2269 = vadd.xlane.f32.xlu0 %v2268
        %v2270 = vpop.xlane.xlu0 %2269
        %v2271 = vrcp.pop %v2264
        %v2272 = vrcp.pop %v2267
        %v2273 = vrcp.pop %v2270
        %v2274 = vmul.f32 %v2257, %v2271
        %v2275 = vmul.f32 %v2259, %v2272
        %v2276 = vmul.f32 %v2261, %v2273
        %v2277 = vpack.c.bf16 %v2275, %v2274
        %v2278 = vpack.c.bf16 %v2276, %v2276
        %2279 = vrot.lane.b32.xlu0 %v1868, 32
        %v2280 = vpop.permute.xlu0 %2279
        %2281 = vrot.lane.b32.xlu0 %v1869, 32
        %v2282 = vpop.permute.xlu0 %2281
        %v2285 = vsel %vm1907, %v2277, 0
        %v2288 = vsel %vm1907, %v2278, 0
        %v2291 = vsel %vm1950, %v2282, 0
        %2293 = vmatpush.bf16.msra.mxu0 0
        %2294 = vmatpush.bf16.msra.mxu0 0
        %2295 = vmatpush.bf16.msra.mxu0 0
        %2296 = vmatpush.bf16.msra.mxu0 0
        %2297 = vmatpush.bf16.msra.mxu0 0
        %2298 = vmatpush.bf16.msra.mxu0 0
        %2299 = vmatpush.bf16.msra.mxu0 %v2291
        %2300 = vmatpush.bf16.msra.mxu0 %v2280
        %2301 = vmatmul.bf16.gmra.mxu0 %v2285
        %v2302 = vpop.f32.mrf.mxu0
        %v2303 = vadd.f32 0.0, %v2302
        %v2304 = vpop.f32.mrf.mxu0
        %v2305 = vadd.f32 0.0, %v2304
        %2306 = vmatmul.bf16.gmra.mxu0 %v2288
        %v2307 = vpop.f32.mrf.mxu0
        %v2308 = vadd.f32 0.0, %v2307
        %v2309 = vpop.f32.mrf.mxu0
        %2310 = vdwg.mxu0
        %v2311 = vpack.c.bf16 %v1711, %v1709
        %v2312 = vpack.c.bf16 %v1714, %v1714
        %v2313 = vpack.c.bf16 %v1783, %v1781
        %v2314 = vpack.c.bf16 %v1786, %v1786
        %v2315 = vpack.c.bf16 %v1855, %v1853
        %v2316 = vpack.c.bf16 %v1858, %v1858
        %v2318 = vsel %vm1870, %v2311, 0
        %v2321 = vsel %vm1870, %v2312, 0
        %v2324 = vsel %vm1870, %v2313, 0
        %v2327 = vsel %vm1870, %v2314, 0
        %2329 = vmatpush.bf16.xpose.msra.mxu0 0
        %2330 = vmatpush.bf16.xpose.msra.mxu0 0
        %2331 = vmatpush.bf16.xpose.msra.mxu0 0
        %2332 = vmatpush.bf16.xpose.msra.mxu0 0
        %2333 = vmatpush.bf16.xpose.msra.mxu0 0
        %2334 = vmatpush.bf16.xpose.msra.mxu0 0
        %2335 = vmatpush.bf16.xpose.msra.mxu0 %v2327
        %2336 = vmatpush.bf16.xpose.msra.mxu0 %v2324
        %2337 = vmatmul.bf16.gmra.mxu0 %v2318
        %v2338 = vpop.f32.mrf.mxu0
        %v2339 = vadd.f32 0.0, %v2338
        %v2340 = vpop.f32.mrf.mxu0
        %v2341 = vadd.f32 0.0, %v2340
        %2342 = vmatmul.bf16.gmra.mxu0 %v2321
        %v2343 = vpop.f32.mrf.mxu0
        %v2344 = vadd.f32 0.0, %v2343
        %v2345 = vpop.f32.mrf.mxu0
        %2346 = vdwg.mxu0
        %v2347 = vmul.f32 %v2339, 0.17677669
        %v2348 = vmul.f32 %v2341, 0.17677669
        %v2349 = vmul.f32 %v2344, 0.17677669
        %v2350 = vadd.f32 %v2347, %v1861
        %v2351 = vadd.f32 %v2348, %v1862
        %v2352 = vadd.f32 %v2349, %v1863
        %v2353 = vsel %vm1907, %v2350, -inf
        %2354 = vmax.xlane.f32.xlu0 %v2353
        %v2355 = vpop.xlane.xlu0 %2354
        %v2356 = vsel %vm1907, %v2351, -inf
        %2357 = vmax.xlane.f32.xlu0 %v2356
        %v2358 = vpop.xlane.xlu0 %2357
        %v2359 = vsel %vm1914, %v2352, -inf
        %2360 = vmax.xlane.f32.xlu0 %v2359
        %v2361 = vpop.xlane.xlu0 %2360
        %v2362 = vsub.f32 %v2350, %v2355
        %v2363 = vsub.f32 %v2351, %v2358
        %v2364 = vsub.f32 %v2352, %v2361
        %v2365 = vmul.f32 %v2362, 1.442695
        %v2366 = vpow.pop %v2365
        %v2367 = vmul.f32 %v2363, 1.442695
        %v2368 = vpow.pop %v2367
        %v2369 = vmul.f32 %v2364, 1.442695
        %v2370 = vpow.pop %v2369
        %v2371 = vsel %vm1907, %v2366, 0.0
        %2372 = vadd.xlane.f32.xlu0 %v2371
        %v2373 = vpop.xlane.xlu0 %2372
        %v2374 = vsel %vm1907, %v2368, 0.0
        %2375 = vadd.xlane.f32.xlu0 %v2374
        %v2376 = vpop.xlane.xlu0 %2375
        %v2377 = vsel %vm1914, %v2370, 0.0
        %2378 = vadd.xlane.f32.xlu0 %v2377
        %v2379 = vpop.xlane.xlu0 %2378
        %v2380 = vrcp.pop %v2373
        %v2381 = vrcp.pop %v2376
        %v2382 = vrcp.pop %v2379
        %v2383 = vmul.f32 %v2366, %v2380
        %v2384 = vmul.f32 %v2368, %v2381
        %v2385 = vmul.f32 %v2370, %v2382
        %v2386 = vpack.c.bf16 %v2384, %v2383
        %v2387 = vpack.c.bf16 %v2385, %v2385
        %v2389 = vsel %vm1907, %v2386, 0
        %v2392 = vsel %vm1907, %v2387, 0
        %v2395 = vsel %vm1950, %v2316, 0
        %2397 = vmatpush.bf16.msra.mxu0 0
        %2398 = vmatpush.bf16.msra.mxu0 0
        %2399 = vmatpush.bf16.msra.mxu0 0
        %2400 = vmatpush.bf16.msra.mxu0 0
        %2401 = vmatpush.bf16.msra.mxu0 0
        %2402 = vmatpush.bf16.msra.mxu0 0
        %2403 = vmatpush.bf16.msra.mxu0 %v2395
        %2404 = vmatpush.bf16.msra.mxu0 %v2315
        %2405 = vmatmul.bf16.gmra.mxu0 %v2389
        %v2406 = vpop.f32.mrf.mxu0
        %v2407 = vadd.f32 0.0, %v2406
        %v2408 = vpop.f32.mrf.mxu0
        %v2409 = vadd.f32 0.0, %v2408
        %2410 = vmatmul.bf16.gmra.mxu0 %v2392
        %v2411 = vpop.f32.mrf.mxu0
        %v2412 = vadd.f32 0.0, %v2411
        %v2413 = vpop.f32.mrf.mxu0
        %2414 = vdwg.mxu0
        %2417 = vrot.lane.b32.xlu0 %v2311, 96
        %v2418 = vpop.permute.xlu0 %2417
        %2419 = vrot.lane.b32.xlu0 %v2312, 96
        %v2420 = vpop.permute.xlu0 %2419
        %2423 = vrot.lane.b32.xlu0 %v2313, 96
        %v2424 = vpop.permute.xlu0 %2423
        %2425 = vrot.lane.b32.xlu0 %v2314, 96
        %v2426 = vpop.permute.xlu0 %2425
        %v2428 = vsel %vm1870, %v2418, 0
        %v2431 = vsel %vm1870, %v2420, 0
        %v2434 = vsel %vm1870, %v2424, 0
        %v2437 = vsel %vm1870, %v2426, 0
        %2439 = vmatpush.bf16.xpose.msra.mxu0 0
        %2440 = vmatpush.bf16.xpose.msra.mxu0 0
        %2441 = vmatpush.bf16.xpose.msra.mxu0 0
        %2442 = vmatpush.bf16.xpose.msra.mxu0 0
        %2443 = vmatpush.bf16.xpose.msra.mxu0 0
        %2444 = vmatpush.bf16.xpose.msra.mxu0 0
        %2445 = vmatpush.bf16.xpose.msra.mxu0 %v2437
        %2446 = vmatpush.bf16.xpose.msra.mxu0 %v2434
        %2447 = vmatmul.bf16.gmra.mxu0 %v2428
        %v2448 = vpop.f32.mrf.mxu0
        %v2449 = vadd.f32 0.0, %v2448
        %v2450 = vpop.f32.mrf.mxu0
        %v2451 = vadd.f32 0.0, %v2450
        %2452 = vmatmul.bf16.gmra.mxu0 %v2431
        %v2453 = vpop.f32.mrf.mxu0
        %v2454 = vadd.f32 0.0, %v2453
        %v2455 = vpop.f32.mrf.mxu0
        %2456 = vdwg.mxu0
        %v2457 = vmul.f32 %v2449, 0.17677669
        %v2458 = vmul.f32 %v2451, 0.17677669
        %v2459 = vmul.f32 %v2454, 0.17677669
        %v2460 = vadd.f32 %v2457, %v1861
        %v2461 = vadd.f32 %v2458, %v1862
        %v2462 = vadd.f32 %v2459, %v1863
        %v2463 = vsel %vm1907, %v2460, -inf
        %2464 = vmax.xlane.f32.xlu0 %v2463
        %v2465 = vpop.xlane.xlu0 %2464
        %v2466 = vsel %vm1907, %v2461, -inf
        %2467 = vmax.xlane.f32.xlu0 %v2466
        %v2468 = vpop.xlane.xlu0 %2467
        %v2469 = vsel %vm1914, %v2462, -inf
        %2470 = vmax.xlane.f32.xlu0 %v2469
        %v2471 = vpop.xlane.xlu0 %2470
        %v2472 = vsub.f32 %v2460, %v2465
        %v2473 = vsub.f32 %v2461, %v2468
        %v2474 = vsub.f32 %v2462, %v2471
        %v2475 = vmul.f32 %v2472, 1.442695
        %v2476 = vpow.pop %v2475
        %v2477 = vmul.f32 %v2473, 1.442695
        %v2478 = vpow.pop %v2477
        %v2479 = vmul.f32 %v2474, 1.442695
        %v2480 = vpow.pop %v2479
        %v2481 = vsel %vm1907, %v2476, 0.0
        %2482 = vadd.xlane.f32.xlu0 %v2481
        %v2483 = vpop.xlane.xlu0 %2482
        %v2484 = vsel %vm1907, %v2478, 0.0
        %2485 = vadd.xlane.f32.xlu0 %v2484
        %v2486 = vpop.xlane.xlu0 %2485
        %v2487 = vsel %vm1914, %v2480, 0.0
        %2488 = vadd.xlane.f32.xlu0 %v2487
        %v2489 = vpop.xlane.xlu0 %2488
        %v2490 = vrcp.pop %v2483
        %v2491 = vrcp.pop %v2486
        %v2492 = vrcp.pop %v2489
        %v2493 = vmul.f32 %v2476, %v2490
        %v2494 = vmul.f32 %v2478, %v2491
        %v2495 = vmul.f32 %v2480, %v2492
        %v2496 = vpack.c.bf16 %v2494, %v2493
        %v2497 = vpack.c.bf16 %v2495, %v2495
        %2500 = vrot.lane.b32.xlu0 %v2315, 96
        %v2501 = vpop.permute.xlu0 %2500
        %2502 = vrot.lane.b32.xlu0 %v2316, 96
        %v2503 = vpop.permute.xlu0 %2502
        %v2506 = vsel %vm1907, %v2496, 0
        %v2509 = vsel %vm1907, %v2497, 0
        %v2512 = vsel %vm1950, %v2503, 0
        %2514 = vmatpush.bf16.msra.mxu0 0
        %2515 = vmatpush.bf16.msra.mxu0 0
        %2516 = vmatpush.bf16.msra.mxu0 0
        %2517 = vmatpush.bf16.msra.mxu0 0
        %2518 = vmatpush.bf16.msra.mxu0 0
        %2519 = vmatpush.bf16.msra.mxu0 0
        %2520 = vmatpush.bf16.msra.mxu0 %v2512
        %2521 = vmatpush.bf16.msra.mxu0 %v2501
        %2522 = vmatmul.bf16.gmra.mxu0 %v2506
        %v2523 = vpop.f32.mrf.mxu0
        %v2524 = vadd.f32 0.0, %v2523
        %v2525 = vpop.f32.mrf.mxu0
        %v2526 = vadd.f32 0.0, %v2525
        %2527 = vmatmul.bf16.gmra.mxu0 %v2509
        %v2528 = vpop.f32.mrf.mxu0
        %v2529 = vadd.f32 0.0, %v2528
        %v2530 = vpop.f32.mrf.mxu0
        %2531 = vdwg.mxu0
        %2532 = vrot.lane.b32.xlu0 %v2311, 64
        %v2533 = vpop.permute.xlu0 %2532
        %2534 = vrot.lane.b32.xlu0 %v2312, 64
        %v2535 = vpop.permute.xlu0 %2534
        %2536 = vrot.lane.b32.xlu0 %v2313, 64
        %v2537 = vpop.permute.xlu0 %2536
        %2538 = vrot.lane.b32.xlu0 %v2314, 64
        %v2539 = vpop.permute.xlu0 %2538
        %v2541 = vsel %vm1870, %v2533, 0
        %v2544 = vsel %vm1870, %v2535, 0
        %v2547 = vsel %vm1870, %v2537, 0
        %v2550 = vsel %vm1870, %v2539, 0
        %2552 = vmatpush.bf16.xpose.msra.mxu0 0
        %2553 = vmatpush.bf16.xpose.msra.mxu0 0
        %2554 = vmatpush.bf16.xpose.msra.mxu0 0
        %2555 = vmatpush.bf16.xpose.msra.mxu0 0
        %2556 = vmatpush.bf16.xpose.msra.mxu0 0
        %2557 = vmatpush.bf16.xpose.msra.mxu0 0
        %2558 = vmatpush.bf16.xpose.msra.mxu0 %v2550
        %2559 = vmatpush.bf16.xpose.msra.mxu0 %v2547
        %2560 = vmatmul.bf16.gmra.mxu0 %v2541
        %v2561 = vpop.f32.mrf.mxu0
        %v2562 = vadd.f32 0.0, %v2561
        %v2563 = vpop.f32.mrf.mxu0
        %v2564 = vadd.f32 0.0, %v2563
        %2565 = vmatmul.bf16.gmra.mxu0 %v2544
        %v2566 = vpop.f32.mrf.mxu0
        %v2567 = vadd.f32 0.0, %v2566
        %v2568 = vpop.f32.mrf.mxu0
        %2569 = vdwg.mxu0
        %v2570 = vmul.f32 %v2562, 0.17677669
        %v2571 = vmul.f32 %v2564, 0.17677669
        %v2572 = vmul.f32 %v2567, 0.17677669
        %v2573 = vadd.f32 %v2570, %v1861
        %v2574 = vadd.f32 %v2571, %v1862
        %v2575 = vadd.f32 %v2572, %v1863
        %v2576 = vsel %vm1907, %v2573, -inf
        %2577 = vmax.xlane.f32.xlu0 %v2576
        %v2578 = vpop.xlane.xlu0 %2577
        %v2579 = vsel %vm1907, %v2574, -inf
        %2580 = vmax.xlane.f32.xlu0 %v2579
        %v2581 = vpop.xlane.xlu0 %2580
        %v2582 = vsel %vm1914, %v2575, -inf
        %2583 = vmax.xlane.f32.xlu0 %v2582
        %v2584 = vpop.xlane.xlu0 %2583
        %v2585 = vsub.f32 %v2573, %v2578
        %v2586 = vsub.f32 %v2574, %v2581
        %v2587 = vsub.f32 %v2575, %v2584
        %v2588 = vmul.f32 %v2585, 1.442695
        %v2589 = vpow.pop %v2588
        %v2590 = vmul.f32 %v2586, 1.442695
        %v2591 = vpow.pop %v2590
        %v2592 = vmul.f32 %v2587, 1.442695
        %v2593 = vpow.pop %v2592
        %v2594 = vsel %vm1907, %v2589, 0.0
        %2595 = vadd.xlane.f32.xlu0 %v2594
        %v2596 = vpop.xlane.xlu0 %2595
        %v2597 = vsel %vm1907, %v2591, 0.0
        %2598 = vadd.xlane.f32.xlu0 %v2597
        %v2599 = vpop.xlane.xlu0 %2598
        %v2600 = vsel %vm1914, %v2593, 0.0
        %2601 = vadd.xlane.f32.xlu0 %v2600
        %v2602 = vpop.xlane.xlu0 %2601
        %v2603 = vrcp.pop %v2596
        %v2604 = vrcp.pop %v2599
        %v2605 = vrcp.pop %v2602
        %v2606 = vmul.f32 %v2589, %v2603
        %v2607 = vmul.f32 %v2591, %v2604
        %v2608 = vmul.f32 %v2593, %v2605
        %v2609 = vpack.c.bf16 %v2607, %v2606
        %v2610 = vpack.c.bf16 %v2608, %v2608
        %2611 = vrot.lane.b32.xlu0 %v2315, 64
        %v2612 = vpop.permute.xlu0 %2611
        %2613 = vrot.lane.b32.xlu0 %v2316, 64
        %v2614 = vpop.permute.xlu0 %2613
        %v2617 = vsel %vm1907, %v2609, 0
        %v2620 = vsel %vm1907, %v2610, 0
        %v2623 = vsel %vm1950, %v2614, 0
        %2625 = vmatpush.bf16.msra.mxu0 0
        %2626 = vmatpush.bf16.msra.mxu0 0
        %2627 = vmatpush.bf16.msra.mxu0 0
        %2628 = vmatpush.bf16.msra.mxu0 0
        %2629 = vmatpush.bf16.msra.mxu0 0
        %2630 = vmatpush.bf16.msra.mxu0 0
        %2631 = vmatpush.bf16.msra.mxu0 %v2623
        %2632 = vmatpush.bf16.msra.mxu0 %v2612
        %2633 = vmatmul.bf16.gmra.mxu0 %v2617
        %v2634 = vpop.f32.mrf.mxu0
        %v2635 = vadd.f32 0.0, %v2634
        %v2636 = vpop.f32.mrf.mxu0
        %v2637 = vadd.f32 0.0, %v2636
        %2638 = vmatmul.bf16.gmra.mxu0 %v2620
        %v2639 = vpop.f32.mrf.mxu0
        %v2640 = vadd.f32 0.0, %v2639
        %v2641 = vpop.f32.mrf.mxu0
        %2642 = vdwg.mxu0
        %2643 = vrot.lane.b32.xlu0 %v2311, 32
        %v2644 = vpop.permute.xlu0 %2643
        %2645 = vrot.lane.b32.xlu0 %v2312, 32
        %v2646 = vpop.permute.xlu0 %2645
        %2647 = vrot.lane.b32.xlu0 %v2313, 32
        %v2648 = vpop.permute.xlu0 %2647
        %2649 = vrot.lane.b32.xlu0 %v2314, 32
        %v2650 = vpop.permute.xlu0 %2649
        %v2652 = vsel %vm1870, %v2644, 0
        %v2655 = vsel %vm1870, %v2646, 0
        %v2658 = vsel %vm1870, %v2648, 0
        %v2661 = vsel %vm1870, %v2650, 0
        %2663 = vmatpush.bf16.xpose.msra.mxu0 0
        %2664 = vmatpush.bf16.xpose.msra.mxu0 0
        %2665 = vmatpush.bf16.xpose.msra.mxu0 0
        %2666 = vmatpush.bf16.xpose.msra.mxu0 0
        %2667 = vmatpush.bf16.xpose.msra.mxu0 0
        %2668 = vmatpush.bf16.xpose.msra.mxu0 0
        %2669 = vmatpush.bf16.xpose.msra.mxu0 %v2661
        %2670 = vmatpush.bf16.xpose.msra.mxu0 %v2658
        %2671 = vmatmul.bf16.gmra.mxu0 %v2652
        %v2672 = vpop.f32.mrf.mxu0
        %v2673 = vadd.f32 0.0, %v2672
        %v2674 = vpop.f32.mrf.mxu0
        %v2675 = vadd.f32 0.0, %v2674
        %2676 = vmatmul.bf16.gmra.mxu0 %v2655
        %v2677 = vpop.f32.mrf.mxu0
        %v2678 = vadd.f32 0.0, %v2677
        %v2679 = vpop.f32.mrf.mxu0
        %2680 = vdwg.mxu0
        %v2681 = vmul.f32 %v2673, 0.17677669
        %v2682 = vmul.f32 %v2675, 0.17677669
        %v2683 = vmul.f32 %v2678, 0.17677669
        %v2684 = vadd.f32 %v2681, %v1861
        %v2685 = vadd.f32 %v2682, %v1862
        %v2686 = vadd.f32 %v2683, %v1863
        %v2687 = vsel %vm1907, %v2684, -inf
        %2688 = vmax.xlane.f32.xlu0 %v2687
        %v2689 = vpop.xlane.xlu0 %2688
        %v2690 = vsel %vm1907, %v2685, -inf
        %2691 = vmax.xlane.f32.xlu0 %v2690
        %v2692 = vpop.xlane.xlu0 %2691
        %v2693 = vsel %vm1914, %v2686, -inf
        %2694 = vmax.xlane.f32.xlu0 %v2693
        %v2695 = vpop.xlane.xlu0 %2694
        %v2696 = vsub.f32 %v2684, %v2689
        %v2697 = vsub.f32 %v2685, %v2692
        %v2698 = vsub.f32 %v2686, %v2695
        %v2699 = vmul.f32 %v2696, 1.442695
        %v2700 = vpow.pop %v2699
        %v2701 = vmul.f32 %v2697, 1.442695
        %v2702 = vpow.pop %v2701
        %v2703 = vmul.f32 %v2698, 1.442695
        %v2704 = vpow.pop %v2703
        %v2705 = vsel %vm1907, %v2700, 0.0
        %2706 = vadd.xlane.f32.xlu0 %v2705
        %v2707 = vpop.xlane.xlu0 %2706
        %v2708 = vsel %vm1907, %v2702, 0.0
        %2709 = vadd.xlane.f32.xlu0 %v2708
        %v2710 = vpop.xlane.xlu0 %2709
        %v2711 = vsel %vm1914, %v2704, 0.0
        %2712 = vadd.xlane.f32.xlu0 %v2711
        %v2713 = vpop.xlane.xlu0 %2712
        %v2714 = vrcp.pop %v2707
        %v2715 = vrcp.pop %v2710
        %v2716 = vrcp.pop %v2713
        %v2717 = vmul.f32 %v2700, %v2714
        %v2718 = vmul.f32 %v2702, %v2715
        %v2719 = vmul.f32 %v2704, %v2716
        %v2720 = vpack.c.bf16 %v2718, %v2717
        %v2721 = vpack.c.bf16 %v2719, %v2719
        %2722 = vrot.lane.b32.xlu0 %v2315, 32
        %v2723 = vpop.permute.xlu0 %2722
        %2724 = vrot.lane.b32.xlu0 %v2316, 32
        %v2725 = vpop.permute.xlu0 %2724
        %v2728 = vsel %vm1907, %v2720, 0
        %v2731 = vsel %vm1907, %v2721, 0
        %v2734 = vsel %vm1950, %v2725, 0
        %2736 = vmatpush.bf16.msra.mxu0 0
        %2737 = vmatpush.bf16.msra.mxu0 0
        %2738 = vmatpush.bf16.msra.mxu0 0
        %2739 = vmatpush.bf16.msra.mxu0 0
        %2740 = vmatpush.bf16.msra.mxu0 0
        %2741 = vmatpush.bf16.msra.mxu0 0
        %2742 = vmatpush.bf16.msra.mxu0 %v2734
        %2743 = vmatpush.bf16.msra.mxu0 %v2723
        %2744 = vmatmul.bf16.gmra.mxu0 %v2728
        %v2745 = vpop.f32.mrf.mxu0
        %v2746 = vadd.f32 0.0, %v2745
        %v2747 = vpop.f32.mrf.mxu0
        %v2748 = vadd.f32 0.0, %v2747
        %2749 = vmatmul.bf16.gmra.mxu0 %v2731
        %v2750 = vpop.f32.mrf.mxu0
        %v2751 = vadd.f32 0.0, %v2750
        %v2752 = vpop.f32.mrf.mxu0
        %2753 = vdwg.mxu0
        %2757 = vrot.lane.b32.xlu0 %v2081, 32
        %v2758 = vpop.permute.xlu0 %2757
        %2759 = vrot.lane.b32.xlu0 %v2083, 32
        %v2760 = vpop.permute.xlu0 %2759
        %2761 = vrot.lane.b32.xlu0 %v2086, 32
        %v2762 = vpop.permute.xlu0 %2761
        %2769 = vrot.lane.b32.xlu0 %v2192, 64
        %v2770 = vpop.permute.xlu0 %2769
        %2771 = vrot.lane.b32.xlu0 %v2194, 64
        %v2772 = vpop.permute.xlu0 %2771
        %2773 = vrot.lane.b32.xlu0 %v2197, 64
        %v2774 = vpop.permute.xlu0 %2773
        %2781 = vrot.lane.b32.xlu0 %v2303, 96
        %v2782 = vpop.permute.xlu0 %2781
        %2783 = vrot.lane.b32.xlu0 %v2305, 96
        %v2784 = vpop.permute.xlu0 %2783
        %2785 = vrot.lane.b32.xlu0 %v2308, 96
        %v2786 = vpop.permute.xlu0 %2785
        %2793 = vrot.lane.b32.xlu0 %v2524, 32
        %v2794 = vpop.permute.xlu0 %2793
        %2795 = vrot.lane.b32.xlu0 %v2526, 32
        %v2796 = vpop.permute.xlu0 %2795
        %2797 = vrot.lane.b32.xlu0 %v2529, 32
        %v2798 = vpop.permute.xlu0 %2797
        %2805 = vrot.lane.b32.xlu0 %v2635, 64
        %v2806 = vpop.permute.xlu0 %2805
        %2807 = vrot.lane.b32.xlu0 %v2637, 64
        %v2808 = vpop.permute.xlu0 %2807
        %2809 = vrot.lane.b32.xlu0 %v2640, 64
        %v2810 = vpop.permute.xlu0 %2809
        %2817 = vrot.lane.b32.xlu0 %v2746, 96
        %v2818 = vpop.permute.xlu0 %2817
        %2819 = vrot.lane.b32.xlu0 %v2748, 96
        %v2820 = vpop.permute.xlu0 %2819
        %2821 = vrot.lane.b32.xlu0 %v2751, 96
        %v2822 = vpop.permute.xlu0 %2821
        %v2826 = vsel %vm1870, %v1964, %v2758
        %v2827 = vsel %vm1870, %v1966, %v2760
        %v2828 = vsel %vm1870, %v1969, %v2762
        %vm2829 = vcmask 523264
        %v2830 = vsel %vm2829, %v2826, %v2770
        %v2831 = vsel %vm2829, %v2827, %v2772
        %v2832 = vsel %vm2829, %v2828, %v2774
        %vm2833 = vcmask 785408
        %v2834 = vsel %vm2833, %v2830, %v2782
        %v2835 = vsel %vm2833, %v2831, %v2784
        %v2836 = vsel %vm2833, %v2832, %v2786
        %v2837 = vsel %vm1870, %v2407, %v2794
        %v2838 = vsel %vm1870, %v2409, %v2796
        %v2839 = vsel %vm1870, %v2412, %v2798
        %v2840 = vsel %vm2829, %v2837, %v2806
        %v2841 = vsel %vm2829, %v2838, %v2808
        %v2842 = vsel %vm2829, %v2839, %v2810
        %v2843 = vsel %vm2833, %v2840, %v2818
        %v2844 = vsel %vm2833, %v2841, %v2820
        %v2845 = vsel %vm2833, %v2842, %v2822
        %v2846 = vpack.c.bf16 %v2835, %v2834
        %v2847 = vpack.c.bf16 %v2844, %v2843
        %v2848 = vpack.c.bf16 %v2836, %v2836
        %v2849 = vpack.c.bf16 %v2845, %v2845
        %v2850 = vld [vmem:[%s640] sm:$0xff]
        %v2851 = vld [vmem:[%s640 + $0x8] sm:$0xff]
        %v2852 = vld [vmem:[%s640 + $0x10] sm:$0xff]
        %v2853 = vld [vmem:[%s640 + $0x18] sm:$0xff]
        %v2854 = vld [vmem:[%s640 + $0x20] sm:$0xff]
        %v2855 = vld [vmem:[%s640 + $0x28] sm:$0xff]
        %v2856 = vld [vmem:[%s640 + $0x30] sm:$0xff]
        %v2857 = vld [vmem:[%s640 + $0x38] sm:$0xff]
        %v2858 = vld [vmem:[%s640 + $0x40] sm:$0xff]
        %v2859 = vld [vmem:[%s640 + $0x48] sm:$0xff]
        %v2860 = vld [vmem:[%s640 + $0x50] sm:$0xff]
        %v2861 = vld [vmem:[%s640 + $0x58] sm:$0xff]
        %v2862 = vld [vmem:[%s640 + $0x60] sm:$0xff]
        %v2863 = vld [vmem:[%s640 + $0x68] sm:$0xff]
        %v2864 = vld [vmem:[%s640 + $0x70] sm:$0xff]
        %v2865 = vld [vmem:[%s640 + $0x78] sm:$0xff]
        %v2866 = vld [vmem:[%s640 + $0x80] sm:$0xff]
        %v2867 = vld [vmem:[%s640 + $0x88] sm:$0xff]
        %v2868 = vld [vmem:[%s640 + $0x90] sm:$0xff]
        %v2869 = vld [vmem:[%s640 + $0x98] sm:$0xff]
        %v2870 = vld [vmem:[%s640 + $0xa0] sm:$0xff]
        %v2871 = vld [vmem:[%s640 + $0xa8] sm:$0xff]
        %v2872 = vld [vmem:[%s640 + $0xb0] sm:$0xff]
        %v2873 = vld [vmem:[%s640 + $0xb8] sm:$0xff]
        %v2874 = vld [vmem:[%s640 + $0xc0] sm:$0xff]
        %v2875 = vld [vmem:[%s640 + $0xc8] sm:$0xff]
        %v2876 = vld [vmem:[%s640 + $0xd0] sm:$0xff]
        %v2877 = vld [vmem:[%s640 + $0xd8] sm:$0xff]
        %v2878 = vld [vmem:[%s640 + $0xe0] sm:$0xff]
        %v2879 = vld [vmem:[%s640 + $0xe8] sm:$0xff]
        %v2880 = vld [vmem:[%s640 + $0xf0] sm:$0xff]
        %v2881 = vld [vmem:[%s640 + $0xf8] sm:$0xff]
        %v2882 = vld [vmem:[%s650] sm:$0x3]
        %v2884 = vperm.slane %v2882, 0
        %v2885 = vperm.slane %v2882, 1
        %v2920 = vunpack.c.l.b16 %v2850
        %v2921 = vunpack.c.h.b16 %v2850
        %v2922 = vunpack.c.l.b16 %v2851
        %v2923 = vunpack.c.h.b16 %v2851
        %v2924 = vunpack.c.l.b16 %v2852
        %v2925 = vunpack.c.h.b16 %v2852
        %v2926 = vunpack.c.l.b16 %v2853
        %v2927 = vunpack.c.h.b16 %v2853
        %v2928 = vunpack.c.l.b16 %v2854
        %v2929 = vunpack.c.h.b16 %v2854
        %v2930 = vunpack.c.l.b16 %v2855
        %v2931 = vunpack.c.h.b16 %v2855
        %v2932 = vunpack.c.l.b16 %v2856
        %v2933 = vunpack.c.h.b16 %v2856
        %v2934 = vunpack.c.l.b16 %v2857
        %v2935 = vunpack.c.h.b16 %v2857
        %v2936 = vunpack.c.l.b16 %v2858
        %v2937 = vunpack.c.h.b16 %v2858
        %v2938 = vunpack.c.l.b16 %v2859
        %v2939 = vunpack.c.h.b16 %v2859
        %v2940 = vunpack.c.l.b16 %v2860
        %v2941 = vunpack.c.h.b16 %v2860
        %v2942 = vunpack.c.l.b16 %v2861
        %v2943 = vunpack.c.h.b16 %v2861
        %v2944 = vunpack.c.l.b16 %v2862
        %v2945 = vunpack.c.h.b16 %v2862
        %v2946 = vunpack.c.l.b16 %v2863
        %v2947 = vunpack.c.h.b16 %v2863
        %v2948 = vunpack.c.l.b16 %v2864
        %v2949 = vunpack.c.h.b16 %v2864
        %v2950 = vunpack.c.l.b16 %v2865
        %v2951 = vunpack.c.h.b16 %v2865
        %v2952 = vunpack.c.l.b16 %v2866
        %v2953 = vunpack.c.h.b16 %v2866
        %v2954 = vunpack.c.l.b16 %v2867
        %v2955 = vunpack.c.h.b16 %v2867
        %v2956 = vunpack.c.l.b16 %v2868
        %v2957 = vunpack.c.h.b16 %v2868
        %v2958 = vunpack.c.l.b16 %v2869
        %v2959 = vunpack.c.h.b16 %v2869
        %v2960 = vunpack.c.l.b16 %v2870
        %v2961 = vunpack.c.h.b16 %v2870
        %v2962 = vunpack.c.l.b16 %v2871
        %v2963 = vunpack.c.h.b16 %v2871
        %v2964 = vunpack.c.l.b16 %v2872
        %v2965 = vunpack.c.h.b16 %v2872
        %v2966 = vunpack.c.l.b16 %v2873
        %v2967 = vunpack.c.h.b16 %v2873
        %v2968 = vunpack.c.l.b16 %v2874
        %v2969 = vunpack.c.h.b16 %v2874
        %v2970 = vunpack.c.l.b16 %v2875
        %v2971 = vunpack.c.h.b16 %v2875
        %v2972 = vunpack.c.l.b16 %v2876
        %v2973 = vunpack.c.h.b16 %v2876
        %v2974 = vunpack.c.l.b16 %v2877
        %v2975 = vunpack.c.h.b16 %v2877
        %v2976 = vunpack.c.l.b16 %v2878
        %v2977 = vunpack.c.h.b16 %v2878
        %v2978 = vunpack.c.l.b16 %v2879
        %v2979 = vunpack.c.h.b16 %v2879
        %v2980 = vunpack.c.l.b16 %v2880
        %v2981 = vunpack.c.h.b16 %v2880
        %v2982 = vunpack.c.l.b16 %v2881
        %v2983 = vunpack.c.h.b16 %v2881
        %v2984 = vpack.c.b16 %v2922, %v2920
        %v2985 = vpack.c.b16 %v2923, %v2921
        %v2986 = vpack.c.b16 %v2926, %v2924
        %v2987 = vpack.c.b16 %v2927, %v2925
        %v2988 = vpack.c.b16 %v2930, %v2928
        %v2989 = vpack.c.b16 %v2931, %v2929
        %v2990 = vpack.c.b16 %v2934, %v2932
        %v2991 = vpack.c.b16 %v2935, %v2933
        %v2992 = vpack.c.b16 %v2938, %v2936
        %v2993 = vpack.c.b16 %v2939, %v2937
        %v2994 = vpack.c.b16 %v2942, %v2940
        %v2995 = vpack.c.b16 %v2943, %v2941
        %v2996 = vpack.c.b16 %v2946, %v2944
        %v2997 = vpack.c.b16 %v2947, %v2945
        %v2998 = vpack.c.b16 %v2950, %v2948
        %v2999 = vpack.c.b16 %v2951, %v2949
        %v3000 = vpack.c.b16 %v2954, %v2952
        %v3001 = vpack.c.b16 %v2955, %v2953
        %v3002 = vpack.c.b16 %v2958, %v2956
        %v3003 = vpack.c.b16 %v2959, %v2957
        %v3004 = vpack.c.b16 %v2962, %v2960
        %v3005 = vpack.c.b16 %v2963, %v2961
        %v3006 = vpack.c.b16 %v2966, %v2964
        %v3007 = vpack.c.b16 %v2967, %v2965
        %v3008 = vpack.c.b16 %v2970, %v2968
        %v3009 = vpack.c.b16 %v2971, %v2969
        %v3010 = vpack.c.b16 %v2974, %v2972
        %v3011 = vpack.c.b16 %v2975, %v2973
        %v3012 = vpack.c.b16 %v2978, %v2976
        %v3013 = vpack.c.b16 %v2979, %v2977
        %v3014 = vpack.c.b16 %v2982, %v2980
        %v3015 = vpack.c.b16 %v2983, %v2981
        %3048 = vmatpush.bf16.msra.mxu0 %v2998
        %3049 = vmatpush.bf16.msra.mxu0 %v2996
        %3050 = vmatpush.bf16.msra.mxu0 %v2994
        %3051 = vmatpush.bf16.msra.mxu0 %v2992
        %3052 = vmatpush.bf16.msra.mxu0 %v2990
        %3053 = vmatpush.bf16.msra.mxu0 %v2988
        %3054 = vmatpush.bf16.msra.mxu0 %v2986
        %3055 = vmatpush.bf16.msra.mxu0 %v2984
        %3056 = vmatmul.bf16.gmra.mxu0 %v2846
        %v3057 = vpop.f32.mrf.mxu0
        %v3058 = vadd.f32 %v2884, %v3057
        %v3059 = vpop.f32.mrf.mxu0
        %v3060 = vadd.f32 %v2884, %v3059
        %3061 = vmatmul.bf16.gmra.mxu0 %v2848
        %v3062 = vpop.f32.mrf.mxu0
        %v3063 = vadd.f32 %v2884, %v3062
        %v3064 = vpop.f32.mrf.mxu0
        %3065 = vdwg.mxu0
        %3066 = vmatpush.bf16.msra.mxu0 %v3014
        %3067 = vmatpush.bf16.msra.mxu0 %v3012
        %3068 = vmatpush.bf16.msra.mxu0 %v3010
        %3069 = vmatpush.bf16.msra.mxu0 %v3008
        %3070 = vmatpush.bf16.msra.mxu0 %v3006
        %3071 = vmatpush.bf16.msra.mxu0 %v3004
        %3072 = vmatpush.bf16.msra.mxu0 %v3002
        %3073 = vmatpush.bf16.msra.mxu0 %v3000
        %3074 = vmatmul.bf16.gmra.mxu0 %v2847
        %v3075 = vpop.f32.mrf.mxu0
        %v3076 = vadd.f32 %v3058, %v3075
        %v3077 = vpop.f32.mrf.mxu0
        %v3078 = vadd.f32 %v3060, %v3077
        %3079 = vmatmul.bf16.gmra.mxu0 %v2849
        %v3080 = vpop.f32.mrf.mxu0
        %v3081 = vadd.f32 %v3063, %v3080
        %v3082 = vpop.f32.mrf.mxu0
        %3083 = vdwg.mxu0
        %3084 = vmatpush.bf16.msra.mxu0 %v2999
        %3085 = vmatpush.bf16.msra.mxu0 %v2997
        %3086 = vmatpush.bf16.msra.mxu0 %v2995
        %3087 = vmatpush.bf16.msra.mxu0 %v2993
        %3088 = vmatpush.bf16.msra.mxu0 %v2991
        %3089 = vmatpush.bf16.msra.mxu0 %v2989
        %3090 = vmatpush.bf16.msra.mxu0 %v2987
        %3091 = vmatpush.bf16.msra.mxu0 %v2985
        %3092 = vmatmul.bf16.gmra.mxu0 %v2846
        %v3093 = vpop.f32.mrf.mxu0
        %v3094 = vadd.f32 %v2885, %v3093
        %v3095 = vpop.f32.mrf.mxu0
        %v3096 = vadd.f32 %v2885, %v3095
        %3097 = vmatmul.bf16.gmra.mxu0 %v2848
        %v3098 = vpop.f32.mrf.mxu0
        %v3099 = vadd.f32 %v2885, %v3098
        %v3100 = vpop.f32.mrf.mxu0
        %3101 = vdwg.mxu0
        %3102 = vmatpush.bf16.msra.mxu0 %v3015
        %3103 = vmatpush.bf16.msra.mxu0 %v3013
        %3104 = vmatpush.bf16.msra.mxu0 %v3011
        %3105 = vmatpush.bf16.msra.mxu0 %v3009
        %3106 = vmatpush.bf16.msra.mxu0 %v3007
        %3107 = vmatpush.bf16.msra.mxu0 %v3005
        %3108 = vmatpush.bf16.msra.mxu0 %v3003
        %3109 = vmatpush.bf16.msra.mxu0 %v3001
        %3110 = vmatmul.bf16.gmra.mxu0 %v2847
        %v3111 = vpop.f32.mrf.mxu0
        %v3112 = vadd.f32 %v3094, %v3111
        %v3113 = vpop.f32.mrf.mxu0
        %v3114 = vadd.f32 %v3096, %v3113
        %3115 = vmatmul.bf16.gmra.mxu0 %v2849
        %v3116 = vpop.f32.mrf.mxu0
        %v3117 = vadd.f32 %v3099, %v3116
        %v3118 = vpop.f32.mrf.mxu0
        %3119 = vdwg.mxu0
        %v3120 = vadd.f32 %v1045, %v3076
        %v3121 = vadd.f32 %v1046, %v3112
        %v3122 = vadd.f32 %v1047, %v3078
        %v3123 = vadd.f32 %v1048, %v3114
        %v3124 = vadd.f32 %v1049, %v3081
        %v3125 = vadd.f32 %v1050, %v3117
        %v3126 = vpack.c.bf16 %v3122, %v3120
        %v3127 = vpack.c.bf16 %v3123, %v3121
        %v3128 = vpack.c.bf16 %v3124, %v3124
        %v3129 = vpack.c.bf16 %v3125, %v3125
        %v3130 = vld [vmem:[%s660] sm:$0xff]
        %v3131 = vld [vmem:[%s660 + $0x8] sm:$0xff]
        %v3132 = vld [vmem:[%s660 + $0x10] sm:$0xff]
        %v3133 = vld [vmem:[%s660 + $0x18] sm:$0xff]
        %v3134 = vld [vmem:[%s660 + $0x20] sm:$0xff]
        %v3135 = vld [vmem:[%s660 + $0x28] sm:$0xff]
        %v3136 = vld [vmem:[%s660 + $0x30] sm:$0xff]
        %v3137 = vld [vmem:[%s660 + $0x38] sm:$0xff]
        %v3138 = vld [vmem:[%s660 + $0x40] sm:$0xff]
        %v3139 = vld [vmem:[%s660 + $0x48] sm:$0xff]
        %v3140 = vld [vmem:[%s660 + $0x50] sm:$0xff]
        %v3141 = vld [vmem:[%s660 + $0x58] sm:$0xff]
        %v3142 = vld [vmem:[%s660 + $0x60] sm:$0xff]
        %v3143 = vld [vmem:[%s660 + $0x68] sm:$0xff]
        %v3144 = vld [vmem:[%s660 + $0x70] sm:$0xff]
        %v3145 = vld [vmem:[%s660 + $0x78] sm:$0xff]
        %v3146 = vld [vmem:[%s660 + $0x80] sm:$0xff]
        %v3147 = vld [vmem:[%s660 + $0x88] sm:$0xff]
        %v3148 = vld [vmem:[%s660 + $0x90] sm:$0xff]
        %v3149 = vld [vmem:[%s660 + $0x98] sm:$0xff]
        %v3150 = vld [vmem:[%s660 + $0xa0] sm:$0xff]
        %v3151 = vld [vmem:[%s660 + $0xa8] sm:$0xff]
        %v3152 = vld [vmem:[%s660 + $0xb0] sm:$0xff]
        %v3153 = vld [vmem:[%s660 + $0xb8] sm:$0xff]
        %v3154 = vld [vmem:[%s660 + $0xc0] sm:$0xff]
        %v3155 = vld [vmem:[%s660 + $0xc8] sm:$0xff]
        %v3156 = vld [vmem:[%s660 + $0xd0] sm:$0xff]
        %v3157 = vld [vmem:[%s660 + $0xd8] sm:$0xff]
        %v3158 = vld [vmem:[%s660 + $0xe0] sm:$0xff]
        %v3159 = vld [vmem:[%s660 + $0xe8] sm:$0xff]
        %v3160 = vld [vmem:[%s660 + $0xf0] sm:$0xff]
        %v3161 = vld [vmem:[%s660 + $0xf8] sm:$0xff]
        %v3162 = vld [vmem:[%s660 + $0x100] sm:$0xff]
        %v3163 = vld [vmem:[%s660 + $0x108] sm:$0xff]
        %v3164 = vld [vmem:[%s660 + $0x110] sm:$0xff]
        %v3165 = vld [vmem:[%s660 + $0x118] sm:$0xff]
        %v3166 = vld [vmem:[%s660 + $0x120] sm:$0xff]
        %v3167 = vld [vmem:[%s660 + $0x128] sm:$0xff]
        %v3168 = vld [vmem:[%s660 + $0x130] sm:$0xff]
        %v3169 = vld [vmem:[%s660 + $0x138] sm:$0xff]
        %v3170 = vld [vmem:[%s660 + $0x140] sm:$0xff]
        %v3171 = vld [vmem:[%s660 + $0x148] sm:$0xff]
        %v3172 = vld [vmem:[%s660 + $0x150] sm:$0xff]
        %v3173 = vld [vmem:[%s660 + $0x158] sm:$0xff]
        %v3174 = vld [vmem:[%s660 + $0x160] sm:$0xff]
        %v3175 = vld [vmem:[%s660 + $0x168] sm:$0xff]
        %v3176 = vld [vmem:[%s660 + $0x170] sm:$0xff]
        %v3177 = vld [vmem:[%s660 + $0x178] sm:$0xff]
        %v3178 = vld [vmem:[%s660 + $0x180] sm:$0xff]
        %v3179 = vld [vmem:[%s660 + $0x188] sm:$0xff]
        %v3180 = vld [vmem:[%s660 + $0x190] sm:$0xff]
        %v3181 = vld [vmem:[%s660 + $0x198] sm:$0xff]
        %v3182 = vld [vmem:[%s660 + $0x1a0] sm:$0xff]
        %v3183 = vld [vmem:[%s660 + $0x1a8] sm:$0xff]
        %v3184 = vld [vmem:[%s660 + $0x1b0] sm:$0xff]
        %v3185 = vld [vmem:[%s660 + $0x1b8] sm:$0xff]
        %v3186 = vld [vmem:[%s660 + $0x1c0] sm:$0xff]
        %v3187 = vld [vmem:[%s660 + $0x1c8] sm:$0xff]
        %v3188 = vld [vmem:[%s660 + $0x1d0] sm:$0xff]
        %v3189 = vld [vmem:[%s660 + $0x1d8] sm:$0xff]
        %v3190 = vld [vmem:[%s660 + $0x1e0] sm:$0xff]
        %v3191 = vld [vmem:[%s660 + $0x1e8] sm:$0xff]
        %v3192 = vld [vmem:[%s660 + $0x1f0] sm:$0xff]
        %v3193 = vld [vmem:[%s660 + $0x1f8] sm:$0xff]
        %v3194 = vld [vmem:[%s660 + $0x200] sm:$0xff]
        %v3195 = vld [vmem:[%s660 + $0x208] sm:$0xff]
        %v3196 = vld [vmem:[%s660 + $0x210] sm:$0xff]
        %v3197 = vld [vmem:[%s660 + $0x218] sm:$0xff]
        %v3198 = vld [vmem:[%s660 + $0x220] sm:$0xff]
        %v3199 = vld [vmem:[%s660 + $0x228] sm:$0xff]
        %v3200 = vld [vmem:[%s660 + $0x230] sm:$0xff]
        %v3201 = vld [vmem:[%s660 + $0x238] sm:$0xff]
        %v3202 = vld [vmem:[%s660 + $0x240] sm:$0xff]
        %v3203 = vld [vmem:[%s660 + $0x248] sm:$0xff]
        %v3204 = vld [vmem:[%s660 + $0x250] sm:$0xff]
        %v3205 = vld [vmem:[%s660 + $0x258] sm:$0xff]
        %v3206 = vld [vmem:[%s660 + $0x260] sm:$0xff]
        %v3207 = vld [vmem:[%s660 + $0x268] sm:$0xff]
        %v3208 = vld [vmem:[%s660 + $0x270] sm:$0xff]
        %v3209 = vld [vmem:[%s660 + $0x278] sm:$0xff]
        %v3210 = vld [vmem:[%s660 + $0x280] sm:$0xff]
        %v3211 = vld [vmem:[%s660 + $0x288] sm:$0xff]
        %v3212 = vld [vmem:[%s660 + $0x290] sm:$0xff]
        %v3213 = vld [vmem:[%s660 + $0x298] sm:$0xff]
        %v3214 = vld [vmem:[%s660 + $0x2a0] sm:$0xff]
        %v3215 = vld [vmem:[%s660 + $0x2a8] sm:$0xff]
        %v3216 = vld [vmem:[%s660 + $0x2b0] sm:$0xff]
        %v3217 = vld [vmem:[%s660 + $0x2b8] sm:$0xff]
        %v3218 = vld [vmem:[%s660 + $0x2c0] sm:$0xff]
        %v3219 = vld [vmem:[%s660 + $0x2c8] sm:$0xff]
        %v3220 = vld [vmem:[%s660 + $0x2d0] sm:$0xff]
        %v3221 = vld [vmem:[%s660 + $0x2d8] sm:$0xff]
        %v3222 = vld [vmem:[%s660 + $0x2e0] sm:$0xff]
        %v3223 = vld [vmem:[%s660 + $0x2e8] sm:$0xff]
        %v3224 = vld [vmem:[%s660 + $0x2f0] sm:$0xff]
        %v3225 = vld [vmem:[%s660 + $0x2f8] sm:$0xff]
        %v3226 = vld [vmem:[%s660 + $0x300] sm:$0xff]
        %v3227 = vld [vmem:[%s660 + $0x308] sm:$0xff]
        %v3228 = vld [vmem:[%s660 + $0x310] sm:$0xff]
        %v3229 = vld [vmem:[%s660 + $0x318] sm:$0xff]
        %v3230 = vld [vmem:[%s660 + $0x320] sm:$0xff]
        %v3231 = vld [vmem:[%s660 + $0x328] sm:$0xff]
        %v3232 = vld [vmem:[%s660 + $0x330] sm:$0xff]
        %v3233 = vld [vmem:[%s660 + $0x338] sm:$0xff]
        %v3234 = vld [vmem:[%s660 + $0x340] sm:$0xff]
        %v3235 = vld [vmem:[%s660 + $0x348] sm:$0xff]
        %v3236 = vld [vmem:[%s660 + $0x350] sm:$0xff]
        %v3237 = vld [vmem:[%s660 + $0x358] sm:$0xff]
        %v3238 = vld [vmem:[%s660 + $0x360] sm:$0xff]
        %v3239 = vld [vmem:[%s660 + $0x368] sm:$0xff]
        %v3240 = vld [vmem:[%s660 + $0x370] sm:$0xff]
        %v3241 = vld [vmem:[%s660 + $0x378] sm:$0xff]
        %v3242 = vld [vmem:[%s660 + $0x380] sm:$0xff]
        %v3243 = vld [vmem:[%s660 + $0x388] sm:$0xff]
        %v3244 = vld [vmem:[%s660 + $0x390] sm:$0xff]
        %v3245 = vld [vmem:[%s660 + $0x398] sm:$0xff]
        %v3246 = vld [vmem:[%s660 + $0x3a0] sm:$0xff]
        %v3247 = vld [vmem:[%s660 + $0x3a8] sm:$0xff]
        %v3248 = vld [vmem:[%s660 + $0x3b0] sm:$0xff]
        %v3249 = vld [vmem:[%s660 + $0x3b8] sm:$0xff]
        %v3250 = vld [vmem:[%s660 + $0x3c0] sm:$0xff]
        %v3251 = vld [vmem:[%s660 + $0x3c8] sm:$0xff]
        %v3252 = vld [vmem:[%s660 + $0x3d0] sm:$0xff]
        %v3253 = vld [vmem:[%s660 + $0x3d8] sm:$0xff]
        %v3254 = vld [vmem:[%s660 + $0x3e0] sm:$0xff]
        %v3255 = vld [vmem:[%s660 + $0x3e8] sm:$0xff]
        %v3256 = vld [vmem:[%s660 + $0x3f0] sm:$0xff]
        %v3257 = vld [vmem:[%s660 + $0x3f8] sm:$0xff]
        %v3258 = vld [vmem:[%s670] sm:$0xff]
        %v3260 = vperm.slane %v3258, 0
        %v3261 = vperm.slane %v3258, 1
        %v3262 = vperm.slane %v3258, 2
        %v3263 = vperm.slane %v3258, 3
        %v3264 = vperm.slane %v3258, 4
        %v3265 = vperm.slane %v3258, 5
        %v3266 = vperm.slane %v3258, 6
        %v3267 = vperm.slane %v3258, 7
        %v3404 = vunpack.c.l.b16 %v3130
        %v3405 = vunpack.c.h.b16 %v3130
        %v3406 = vunpack.c.l.b16 %v3131
        %v3407 = vunpack.c.h.b16 %v3131
        %v3408 = vunpack.c.l.b16 %v3132
        %v3409 = vunpack.c.h.b16 %v3132
        %v3410 = vunpack.c.l.b16 %v3133
        %v3411 = vunpack.c.h.b16 %v3133
        %v3412 = vunpack.c.l.b16 %v3134
        %v3413 = vunpack.c.h.b16 %v3134
        %v3414 = vunpack.c.l.b16 %v3135
        %v3415 = vunpack.c.h.b16 %v3135
        %v3416 = vunpack.c.l.b16 %v3136
        %v3417 = vunpack.c.h.b16 %v3136
        %v3418 = vunpack.c.l.b16 %v3137
        %v3419 = vunpack.c.h.b16 %v3137
        %v3420 = vunpack.c.l.b16 %v3138
        %v3421 = vunpack.c.h.b16 %v3138
        %v3422 = vunpack.c.l.b16 %v3139
        %v3423 = vunpack.c.h.b16 %v3139
        %v3424 = vunpack.c.l.b16 %v3140
        %v3425 = vunpack.c.h.b16 %v3140
        %v3426 = vunpack.c.l.b16 %v3141
        %v3427 = vunpack.c.h.b16 %v3141
        %v3428 = vunpack.c.l.b16 %v3142
        %v3429 = vunpack.c.h.b16 %v3142
        %v3430 = vunpack.c.l.b16 %v3143
        %v3431 = vunpack.c.h.b16 %v3143
        %v3432 = vunpack.c.l.b16 %v3144
        %v3433 = vunpack.c.h.b16 %v3144
        %v3434 = vunpack.c.l.b16 %v3145
        %v3435 = vunpack.c.h.b16 %v3145
        %v3436 = vunpack.c.l.b16 %v3146
        %v3437 = vunpack.c.h.b16 %v3146
        %v3438 = vunpack.c.l.b16 %v3147
        %v3439 = vunpack.c.h.b16 %v3147
        %v3440 = vunpack.c.l.b16 %v3148
        %v3441 = vunpack.c.h.b16 %v3148
        %v3442 = vunpack.c.l.b16 %v3149
        %v3443 = vunpack.c.h.b16 %v3149
        %v3444 = vunpack.c.l.b16 %v3150
        %v3445 = vunpack.c.h.b16 %v3150
        %v3446 = vunpack.c.l.b16 %v3151
        %v3447 = vunpack.c.h.b16 %v3151
        %v3448 = vunpack.c.l.b16 %v3152
        %v3449 = vunpack.c.h.b16 %v3152
        %v3450 = vunpack.c.l.b16 %v3153
        %v3451 = vunpack.c.h.b16 %v3153
        %v3452 = vunpack.c.l.b16 %v3154
        %v3453 = vunpack.c.h.b16 %v3154
        %v3454 = vunpack.c.l.b16 %v3155
        %v3455 = vunpack.c.h.b16 %v3155
        %v3456 = vunpack.c.l.b16 %v3156
        %v3457 = vunpack.c.h.b16 %v3156
        %v3458 = vunpack.c.l.b16 %v3157
        %v3459 = vunpack.c.h.b16 %v3157
        %v3460 = vunpack.c.l.b16 %v3158
        %v3461 = vunpack.c.h.b16 %v3158
        %v3462 = vunpack.c.l.b16 %v3159
        %v3463 = vunpack.c.h.b16 %v3159
        %v3464 = vunpack.c.l.b16 %v3160
        %v3465 = vunpack.c.h.b16 %v3160
        %v3466 = vunpack.c.l.b16 %v3161
        %v3467 = vunpack.c.h.b16 %v3161
        %v3468 = vunpack.c.l.b16 %v3162
        %v3469 = vunpack.c.h.b16 %v3162
        %v3470 = vunpack.c.l.b16 %v3163
        %v3471 = vunpack.c.h.b16 %v3163
        %v3472 = vunpack.c.l.b16 %v3164
        %v3473 = vunpack.c.h.b16 %v3164
        %v3474 = vunpack.c.l.b16 %v3165
        %v3475 = vunpack.c.h.b16 %v3165
        %v3476 = vunpack.c.l.b16 %v3166
        %v3477 = vunpack.c.h.b16 %v3166
        %v3478 = vunpack.c.l.b16 %v3167
        %v3479 = vunpack.c.h.b16 %v3167
        %v3480 = vunpack.c.l.b16 %v3168
        %v3481 = vunpack.c.h.b16 %v3168
        %v3482 = vunpack.c.l.b16 %v3169
        %v3483 = vunpack.c.h.b16 %v3169
        %v3484 = vunpack.c.l.b16 %v3170
        %v3485 = vunpack.c.h.b16 %v3170
        %v3486 = vunpack.c.l.b16 %v3171
        %v3487 = vunpack.c.h.b16 %v3171
        %v3488 = vunpack.c.l.b16 %v3172
        %v3489 = vunpack.c.h.b16 %v3172
        %v3490 = vunpack.c.l.b16 %v3173
        %v3491 = vunpack.c.h.b16 %v3173
        %v3492 = vunpack.c.l.b16 %v3174
        %v3493 = vunpack.c.h.b16 %v3174
        %v3494 = vunpack.c.l.b16 %v3175
        %v3495 = vunpack.c.h.b16 %v3175
        %v3496 = vunpack.c.l.b16 %v3176
        %v3497 = vunpack.c.h.b16 %v3176
        %v3498 = vunpack.c.l.b16 %v3177
        %v3499 = vunpack.c.h.b16 %v3177
        %v3500 = vunpack.c.l.b16 %v3178
        %v3501 = vunpack.c.h.b16 %v3178
        %v3502 = vunpack.c.l.b16 %v3179
        %v3503 = vunpack.c.h.b16 %v3179
        %v3504 = vunpack.c.l.b16 %v3180
        %v3505 = vunpack.c.h.b16 %v3180
        %v3506 = vunpack.c.l.b16 %v3181
        %v3507 = vunpack.c.h.b16 %v3181
        %v3508 = vunpack.c.l.b16 %v3182
        %v3509 = vunpack.c.h.b16 %v3182
        %v3510 = vunpack.c.l.b16 %v3183
        %v3511 = vunpack.c.h.b16 %v3183
        %v3512 = vunpack.c.l.b16 %v3184
        %v3513 = vunpack.c.h.b16 %v3184
        %v3514 = vunpack.c.l.b16 %v3185
        %v3515 = vunpack.c.h.b16 %v3185
        %v3516 = vunpack.c.l.b16 %v3186
        %v3517 = vunpack.c.h.b16 %v3186
        %v3518 = vunpack.c.l.b16 %v3187
        %v3519 = vunpack.c.h.b16 %v3187
        %v3520 = vunpack.c.l.b16 %v3188
        %v3521 = vunpack.c.h.b16 %v3188
        %v3522 = vunpack.c.l.b16 %v3189
        %v3523 = vunpack.c.h.b16 %v3189
        %v3524 = vunpack.c.l.b16 %v3190
        %v3525 = vunpack.c.h.b16 %v3190
        %v3526 = vunpack.c.l.b16 %v3191
        %v3527 = vunpack.c.h.b16 %v3191
        %v3528 = vunpack.c.l.b16 %v3192
        %v3529 = vunpack.c.h.b16 %v3192
        %v3530 = vunpack.c.l.b16 %v3193
        %v3531 = vunpack.c.h.b16 %v3193
        %v3532 = vunpack.c.l.b16 %v3194
        %v3533 = vunpack.c.h.b16 %v3194
        %v3534 = vunpack.c.l.b16 %v3195
        %v3535 = vunpack.c.h.b16 %v3195
        %v3536 = vunpack.c.l.b16 %v3196
        %v3537 = vunpack.c.h.b16 %v3196
        %v3538 = vunpack.c.l.b16 %v3197
        %v3539 = vunpack.c.h.b16 %v3197
        %v3540 = vunpack.c.l.b16 %v3198
        %v3541 = vunpack.c.h.b16 %v3198
        %v3542 = vunpack.c.l.b16 %v3199
        %v3543 = vunpack.c.h.b16 %v3199
        %v3544 = vunpack.c.l.b16 %v3200
        %v3545 = vunpack.c.h.b16 %v3200
        %v3546 = vunpack.c.l.b16 %v3201
        %v3547 = vunpack.c.h.b16 %v3201
        %v3548 = vunpack.c.l.b16 %v3202
        %v3549 = vunpack.c.h.b16 %v3202
        %v3550 = vunpack.c.l.b16 %v3203
        %v3551 = vunpack.c.h.b16 %v3203
        %v3552 = vunpack.c.l.b16 %v3204
        %v3553 = vunpack.c.h.b16 %v3204
        %v3554 = vunpack.c.l.b16 %v3205
        %v3555 = vunpack.c.h.b16 %v3205
        %v3556 = vunpack.c.l.b16 %v3206
        %v3557 = vunpack.c.h.b16 %v3206
        %v3558 = vunpack.c.l.b16 %v3207
        %v3559 = vunpack.c.h.b16 %v3207
        %v3560 = vunpack.c.l.b16 %v3208
        %v3561 = vunpack.c.h.b16 %v3208
        %v3562 = vunpack.c.l.b16 %v3209
        %v3563 = vunpack.c.h.b16 %v3209
        %v3564 = vunpack.c.l.b16 %v3210
        %v3565 = vunpack.c.h.b16 %v3210
        %v3566 = vunpack.c.l.b16 %v3211
        %v3567 = vunpack.c.h.b16 %v3211
        %v3568 = vunpack.c.l.b16 %v3212
        %v3569 = vunpack.c.h.b16 %v3212
        %v3570 = vunpack.c.l.b16 %v3213
        %v3571 = vunpack.c.h.b16 %v3213
        %v3572 = vunpack.c.l.b16 %v3214
        %v3573 = vunpack.c.h.b16 %v3214
        %v3574 = vunpack.c.l.b16 %v3215
        %v3575 = vunpack.c.h.b16 %v3215
        %v3576 = vunpack.c.l.b16 %v3216
        %v3577 = vunpack.c.h.b16 %v3216
        %v3578 = vunpack.c.l.b16 %v3217
        %v3579 = vunpack.c.h.b16 %v3217
        %v3580 = vunpack.c.l.b16 %v3218
        %v3581 = vunpack.c.h.b16 %v3218
        %v3582 = vunpack.c.l.b16 %v3219
        %v3583 = vunpack.c.h.b16 %v3219
        %v3584 = vunpack.c.l.b16 %v3220
        %v3585 = vunpack.c.h.b16 %v3220
        %v3586 = vunpack.c.l.b16 %v3221
        %v3587 = vunpack.c.h.b16 %v3221
        %v3588 = vunpack.c.l.b16 %v3222
        %v3589 = vunpack.c.h.b16 %v3222
        %v3590 = vunpack.c.l.b16 %v3223
        %v3591 = vunpack.c.h.b16 %v3223
        %v3592 = vunpack.c.l.b16 %v3224
        %v3593 = vunpack.c.h.b16 %v3224
        %v3594 = vunpack.c.l.b16 %v3225
        %v3595 = vunpack.c.h.b16 %v3225
        %v3596 = vunpack.c.l.b16 %v3226
        %v3597 = vunpack.c.h.b16 %v3226
        %v3598 = vunpack.c.l.b16 %v3227
        %v3599 = vunpack.c.h.b16 %v3227
        %v3600 = vunpack.c.l.b16 %v3228
        %v3601 = vunpack.c.h.b16 %v3228
        %v3602 = vunpack.c.l.b16 %v3229
        %v3603 = vunpack.c.h.b16 %v3229
        %v3604 = vunpack.c.l.b16 %v3230
        %v3605 = vunpack.c.h.b16 %v3230
        %v3606 = vunpack.c.l.b16 %v3231
        %v3607 = vunpack.c.h.b16 %v3231
        %v3608 = vunpack.c.l.b16 %v3232
        %v3609 = vunpack.c.h.b16 %v3232
        %v3610 = vunpack.c.l.b16 %v3233
        %v3611 = vunpack.c.h.b16 %v3233
        %v3612 = vunpack.c.l.b16 %v3234
        %v3613 = vunpack.c.h.b16 %v3234
        %v3614 = vunpack.c.l.b16 %v3235
        %v3615 = vunpack.c.h.b16 %v3235
        %v3616 = vunpack.c.l.b16 %v3236
        %v3617 = vunpack.c.h.b16 %v3236
        %v3618 = vunpack.c.l.b16 %v3237
        %v3619 = vunpack.c.h.b16 %v3237
        %v3620 = vunpack.c.l.b16 %v3238
        %v3621 = vunpack.c.h.b16 %v3238
        %v3622 = vunpack.c.l.b16 %v3239
        %v3623 = vunpack.c.h.b16 %v3239
        %v3624 = vunpack.c.l.b16 %v3240
        %v3625 = vunpack.c.h.b16 %v3240
        %v3626 = vunpack.c.l.b16 %v3241
        %v3627 = vunpack.c.h.b16 %v3241
        %v3628 = vunpack.c.l.b16 %v3242
        %v3629 = vunpack.c.h.b16 %v3242
        %v3630 = vunpack.c.l.b16 %v3243
        %v3631 = vunpack.c.h.b16 %v3243
        %v3632 = vunpack.c.l.b16 %v3244
        %v3633 = vunpack.c.h.b16 %v3244
        %v3634 = vunpack.c.l.b16 %v3245
        %v3635 = vunpack.c.h.b16 %v3245
        %v3636 = vunpack.c.l.b16 %v3246
        %v3637 = vunpack.c.h.b16 %v3246
        %v3638 = vunpack.c.l.b16 %v3247
        %v3639 = vunpack.c.h.b16 %v3247
        %v3640 = vunpack.c.l.b16 %v3248
        %v3641 = vunpack.c.h.b16 %v3248
        %v3642 = vunpack.c.l.b16 %v3249
        %v3643 = vunpack.c.h.b16 %v3249
        %v3644 = vunpack.c.l.b16 %v3250
        %v3645 = vunpack.c.h.b16 %v3250
        %v3646 = vunpack.c.l.b16 %v3251
        %v3647 = vunpack.c.h.b16 %v3251
        %v3648 = vunpack.c.l.b16 %v3252
        %v3649 = vunpack.c.h.b16 %v3252
        %v3650 = vunpack.c.l.b16 %v3253
        %v3651 = vunpack.c.h.b16 %v3253
        %v3652 = vunpack.c.l.b16 %v3254
        %v3653 = vunpack.c.h.b16 %v3254
        %v3654 = vunpack.c.l.b16 %v3255
        %v3655 = vunpack.c.h.b16 %v3255
        %v3656 = vunpack.c.l.b16 %v3256
        %v3657 = vunpack.c.h.b16 %v3256
        %v3658 = vunpack.c.l.b16 %v3257
        %v3659 = vunpack.c.h.b16 %v3257
        %v3660 = vpack.c.b16 %v3412, %v3404
        %v3661 = vpack.c.b16 %v3413, %v3405
        %v3662 = vpack.c.b16 %v3414, %v3406
        %v3663 = vpack.c.b16 %v3415, %v3407
        %v3664 = vpack.c.b16 %v3416, %v3408
        %v3665 = vpack.c.b16 %v3417, %v3409
        %v3666 = vpack.c.b16 %v3418, %v3410
        %v3667 = vpack.c.b16 %v3419, %v3411
        %v3668 = vpack.c.b16 %v3428, %v3420
        %v3669 = vpack.c.b16 %v3429, %v3421
        %v3670 = vpack.c.b16 %v3430, %v3422
        %v3671 = vpack.c.b16 %v3431, %v3423
        %v3672 = vpack.c.b16 %v3432, %v3424
        %v3673 = vpack.c.b16 %v3433, %v3425
        %v3674 = vpack.c.b16 %v3434, %v3426
        %v3675 = vpack.c.b16 %v3435, %v3427
        %v3676 = vpack.c.b16 %v3444, %v3436
        %v3677 = vpack.c.b16 %v3445, %v3437
        %v3678 = vpack.c.b16 %v3446, %v3438
        %v3679 = vpack.c.b16 %v3447, %v3439
        %v3680 = vpack.c.b16 %v3448, %v3440
        %v3681 = vpack.c.b16 %v3449, %v3441
        %v3682 = vpack.c.b16 %v3450, %v3442
        %v3683 = vpack.c.b16 %v3451, %v3443
        %v3684 = vpack.c.b16 %v3460, %v3452
        %v3685 = vpack.c.b16 %v3461, %v3453
        %v3686 = vpack.c.b16 %v3462, %v3454
        %v3687 = vpack.c.b16 %v3463, %v3455
        %v3688 = vpack.c.b16 %v3464, %v3456
        %v3689 = vpack.c.b16 %v3465, %v3457
        %v3690 = vpack.c.b16 %v3466, %v3458
        %v3691 = vpack.c.b16 %v3467, %v3459
        %v3692 = vpack.c.b16 %v3476, %v3468
        %v3693 = vpack.c.b16 %v3477, %v3469
        %v3694 = vpack.c.b16 %v3478, %v3470
        %v3695 = vpack.c.b16 %v3479, %v3471
        %v3696 = vpack.c.b16 %v3480, %v3472
        %v3697 = vpack.c.b16 %v3481, %v3473
        %v3698 = vpack.c.b16 %v3482, %v3474
        %v3699 = vpack.c.b16 %v3483, %v3475
        %v3700 = vpack.c.b16 %v3492, %v3484
        %v3701 = vpack.c.b16 %v3493, %v3485
        %v3702 = vpack.c.b16 %v3494, %v3486
        %v3703 = vpack.c.b16 %v3495, %v3487
        %v3704 = vpack.c.b16 %v3496, %v3488
        %v3705 = vpack.c.b16 %v3497, %v3489
        %v3706 = vpack.c.b16 %v3498, %v3490
        %v3707 = vpack.c.b16 %v3499, %v3491
        %v3708 = vpack.c.b16 %v3508, %v3500
        %v3709 = vpack.c.b16 %v3509, %v3501
        %v3710 = vpack.c.b16 %v3510, %v3502
        %v3711 = vpack.c.b16 %v3511, %v3503
        %v3712 = vpack.c.b16 %v3512, %v3504
        %v3713 = vpack.c.b16 %v3513, %v3505
        %v3714 = vpack.c.b16 %v3514, %v3506
        %v3715 = vpack.c.b16 %v3515, %v3507
        %v3716 = vpack.c.b16 %v3524, %v3516
        %v3717 = vpack.c.b16 %v3525, %v3517
        %v3718 = vpack.c.b16 %v3526, %v3518
        %v3719 = vpack.c.b16 %v3527, %v3519
        %v3720 = vpack.c.b16 %v3528, %v3520
        %v3721 = vpack.c.b16 %v3529, %v3521
        %v3722 = vpack.c.b16 %v3530, %v3522
        %v3723 = vpack.c.b16 %v3531, %v3523
        %v3724 = vpack.c.b16 %v3540, %v3532
        %v3725 = vpack.c.b16 %v3541, %v3533
        %v3726 = vpack.c.b16 %v3542, %v3534
        %v3727 = vpack.c.b16 %v3543, %v3535
        %v3728 = vpack.c.b16 %v3544, %v3536
        %v3729 = vpack.c.b16 %v3545, %v3537
        %v3730 = vpack.c.b16 %v3546, %v3538
        %v3731 = vpack.c.b16 %v3547, %v3539
        %v3732 = vpack.c.b16 %v3556, %v3548
        %v3733 = vpack.c.b16 %v3557, %v3549
        %v3734 = vpack.c.b16 %v3558, %v3550
        %v3735 = vpack.c.b16 %v3559, %v3551
        %v3736 = vpack.c.b16 %v3560, %v3552
        %v3737 = vpack.c.b16 %v3561, %v3553
        %v3738 = vpack.c.b16 %v3562, %v3554
        %v3739 = vpack.c.b16 %v3563, %v3555
        %v3740 = vpack.c.b16 %v3572, %v3564
        %v3741 = vpack.c.b16 %v3573, %v3565
        %v3742 = vpack.c.b16 %v3574, %v3566
        %v3743 = vpack.c.b16 %v3575, %v3567
        %v3744 = vpack.c.b16 %v3576, %v3568
        %v3745 = vpack.c.b16 %v3577, %v3569
        %v3746 = vpack.c.b16 %v3578, %v3570
        %v3747 = vpack.c.b16 %v3579, %v3571
        %v3748 = vpack.c.b16 %v3588, %v3580
        %v3749 = vpack.c.b16 %v3589, %v3581
        %v3750 = vpack.c.b16 %v3590, %v3582
        %v3751 = vpack.c.b16 %v3591, %v3583
        %v3752 = vpack.c.b16 %v3592, %v3584
        %v3753 = vpack.c.b16 %v3593, %v3585
        %v3754 = vpack.c.b16 %v3594, %v3586
        %v3755 = vpack.c.b16 %v3595, %v3587
        %v3756 = vpack.c.b16 %v3604, %v3596
        %v3757 = vpack.c.b16 %v3605, %v3597
        %v3758 = vpack.c.b16 %v3606, %v3598
        %v3759 = vpack.c.b16 %v3607, %v3599
        %v3760 = vpack.c.b16 %v3608, %v3600
        %v3761 = vpack.c.b16 %v3609, %v3601
        %v3762 = vpack.c.b16 %v3610, %v3602
        %v3763 = vpack.c.b16 %v3611, %v3603
        %v3764 = vpack.c.b16 %v3620, %v3612
        %v3765 = vpack.c.b16 %v3621, %v3613
        %v3766 = vpack.c.b16 %v3622, %v3614
        %v3767 = vpack.c.b16 %v3623, %v3615
        %v3768 = vpack.c.b16 %v3624, %v3616
        %v3769 = vpack.c.b16 %v3625, %v3617
        %v3770 = vpack.c.b16 %v3626, %v3618
        %v3771 = vpack.c.b16 %v3627, %v3619
        %v3772 = vpack.c.b16 %v3636, %v3628
        %v3773 = vpack.c.b16 %v3637, %v3629
        %v3774 = vpack.c.b16 %v3638, %v3630
        %v3775 = vpack.c.b16 %v3639, %v3631
        %v3776 = vpack.c.b16 %v3640, %v3632
        %v3777 = vpack.c.b16 %v3641, %v3633
        %v3778 = vpack.c.b16 %v3642, %v3634
        %v3779 = vpack.c.b16 %v3643, %v3635
        %v3780 = vpack.c.b16 %v3652, %v3644
        %v3781 = vpack.c.b16 %v3653, %v3645
        %v3782 = vpack.c.b16 %v3654, %v3646
        %v3783 = vpack.c.b16 %v3655, %v3647
        %v3784 = vpack.c.b16 %v3656, %v3648
        %v3785 = vpack.c.b16 %v3657, %v3649
        %v3786 = vpack.c.b16 %v3658, %v3650
        %v3787 = vpack.c.b16 %v3659, %v3651
        %3916 = vmatpush.bf16.msra.mxu0 %v3716
        %3917 = vmatpush.bf16.msra.mxu0 %v3708
        %3918 = vmatpush.bf16.msra.mxu0 %v3700
        %3919 = vmatpush.bf16.msra.mxu0 %v3692
        %3920 = vmatpush.bf16.msra.mxu0 %v3684
        %3921 = vmatpush.bf16.msra.mxu0 %v3676
        %3922 = vmatpush.bf16.msra.mxu0 %v3668
        %3923 = vmatpush.bf16.msra.mxu0 %v3660
        %3924 = vmatmul.bf16.gmra.mxu0 %v3126
        %v3925 = vpop.f32.mrf.mxu0
        %v3926 = vadd.f32 %v3260, %v3925
        %v3927 = vpop.f32.mrf.mxu0
        %v3928 = vadd.f32 %v3260, %v3927
        %3929 = vmatmul.bf16.gmra.mxu0 %v3128
        %v3930 = vpop.f32.mrf.mxu0
        %v3931 = vadd.f32 %v3260, %v3930
        %v3932 = vpop.f32.mrf.mxu0
        %3933 = vdwg.mxu0
        %3934 = vmatpush.bf16.msra.mxu0 %v3780
        %3935 = vmatpush.bf16.msra.mxu0 %v3772
        %3936 = vmatpush.bf16.msra.mxu0 %v3764
        %3937 = vmatpush.bf16.msra.mxu0 %v3756
        %3938 = vmatpush.bf16.msra.mxu0 %v3748
        %3939 = vmatpush.bf16.msra.mxu0 %v3740
        %3940 = vmatpush.bf16.msra.mxu0 %v3732
        %3941 = vmatpush.bf16.msra.mxu0 %v3724
        %3942 = vmatmul.bf16.gmra.mxu0 %v3127
        %v3943 = vpop.f32.mrf.mxu0
        %v3944 = vadd.f32 %v3926, %v3943
        %v3945 = vpop.f32.mrf.mxu0
        %v3946 = vadd.f32 %v3928, %v3945
        %3947 = vmatmul.bf16.gmra.mxu0 %v3129
        %v3948 = vpop.f32.mrf.mxu0
        %v3949 = vadd.f32 %v3931, %v3948
        %v3950 = vpop.f32.mrf.mxu0
        %3951 = vdwg.mxu0
        %3952 = vmatpush.bf16.msra.mxu0 %v3717
        %3953 = vmatpush.bf16.msra.mxu0 %v3709
        %3954 = vmatpush.bf16.msra.mxu0 %v3701
        %3955 = vmatpush.bf16.msra.mxu0 %v3693
        %3956 = vmatpush.bf16.msra.mxu0 %v3685
        %3957 = vmatpush.bf16.msra.mxu0 %v3677
        %3958 = vmatpush.bf16.msra.mxu0 %v3669
        %3959 = vmatpush.bf16.msra.mxu0 %v3661
        %3960 = vmatmul.bf16.gmra.mxu0 %v3126
        %v3961 = vpop.f32.mrf.mxu0
        %v3962 = vadd.f32 %v3261, %v3961
        %v3963 = vpop.f32.mrf.mxu0
        %v3964 = vadd.f32 %v3261, %v3963
        %3965 = vmatmul.bf16.gmra.mxu0 %v3128
        %v3966 = vpop.f32.mrf.mxu0
        %v3967 = vadd.f32 %v3261, %v3966
        %v3968 = vpop.f32.mrf.mxu0
        %3969 = vdwg.mxu0
        %3970 = vmatpush.bf16.msra.mxu0 %v3781
        %3971 = vmatpush.bf16.msra.mxu0 %v3773
        %3972 = vmatpush.bf16.msra.mxu0 %v3765
        %3973 = vmatpush.bf16.msra.mxu0 %v3757
        %3974 = vmatpush.bf16.msra.mxu0 %v3749
        %3975 = vmatpush.bf16.msra.mxu0 %v3741
        %3976 = vmatpush.bf16.msra.mxu0 %v3733
        %3977 = vmatpush.bf16.msra.mxu0 %v3725
        %3978 = vmatmul.bf16.gmra.mxu0 %v3127
        %v3979 = vpop.f32.mrf.mxu0
        %v3980 = vadd.f32 %v3962, %v3979
        %v3981 = vpop.f32.mrf.mxu0
        %v3982 = vadd.f32 %v3964, %v3981
        %3983 = vmatmul.bf16.gmra.mxu0 %v3129
        %v3984 = vpop.f32.mrf.mxu0
        %v3985 = vadd.f32 %v3967, %v3984
        %v3986 = vpop.f32.mrf.mxu0
        %3987 = vdwg.mxu0
        %3988 = vmatpush.bf16.msra.mxu0 %v3718
        %3989 = vmatpush.bf16.msra.mxu0 %v3710
        %3990 = vmatpush.bf16.msra.mxu0 %v3702
        %3991 = vmatpush.bf16.msra.mxu0 %v3694
        %3992 = vmatpush.bf16.msra.mxu0 %v3686
        %3993 = vmatpush.bf16.msra.mxu0 %v3678
        %3994 = vmatpush.bf16.msra.mxu0 %v3670
        %3995 = vmatpush.bf16.msra.mxu0 %v3662
        %3996 = vmatmul.bf16.gmra.mxu0 %v3126
        %v3997 = vpop.f32.mrf.mxu0
        %v3998 = vadd.f32 %v3262, %v3997
        %v3999 = vpop.f32.mrf.mxu0
        %v4000 = vadd.f32 %v3262, %v3999
        %4001 = vmatmul.bf16.gmra.mxu0 %v3128
        %v4002 = vpop.f32.mrf.mxu0
        %v4003 = vadd.f32 %v3262, %v4002
        %v4004 = vpop.f32.mrf.mxu0
        %4005 = vdwg.mxu0
        %4006 = vmatpush.bf16.msra.mxu0 %v3782
        %4007 = vmatpush.bf16.msra.mxu0 %v3774
        %4008 = vmatpush.bf16.msra.mxu0 %v3766
        %4009 = vmatpush.bf16.msra.mxu0 %v3758
        %4010 = vmatpush.bf16.msra.mxu0 %v3750
        %4011 = vmatpush.bf16.msra.mxu0 %v3742
        %4012 = vmatpush.bf16.msra.mxu0 %v3734
        %4013 = vmatpush.bf16.msra.mxu0 %v3726
        %4014 = vmatmul.bf16.gmra.mxu0 %v3127
        %v4015 = vpop.f32.mrf.mxu0
        %v4016 = vadd.f32 %v3998, %v4015
        %v4017 = vpop.f32.mrf.mxu0
        %v4018 = vadd.f32 %v4000, %v4017
        %4019 = vmatmul.bf16.gmra.mxu0 %v3129
        %v4020 = vpop.f32.mrf.mxu0
        %v4021 = vadd.f32 %v4003, %v4020
        %v4022 = vpop.f32.mrf.mxu0
        %4023 = vdwg.mxu0
        %4024 = vmatpush.bf16.msra.mxu0 %v3719
        %4025 = vmatpush.bf16.msra.mxu0 %v3711
        %4026 = vmatpush.bf16.msra.mxu0 %v3703
        %4027 = vmatpush.bf16.msra.mxu0 %v3695
        %4028 = vmatpush.bf16.msra.mxu0 %v3687
        %4029 = vmatpush.bf16.msra.mxu0 %v3679
        %4030 = vmatpush.bf16.msra.mxu0 %v3671
        %4031 = vmatpush.bf16.msra.mxu0 %v3663
        %4032 = vmatmul.bf16.gmra.mxu0 %v3126
        %v4033 = vpop.f32.mrf.mxu0
        %v4034 = vadd.f32 %v3263, %v4033
        %v4035 = vpop.f32.mrf.mxu0
        %v4036 = vadd.f32 %v3263, %v4035
        %4037 = vmatmul.bf16.gmra.mxu0 %v3128
        %v4038 = vpop.f32.mrf.mxu0
        %v4039 = vadd.f32 %v3263, %v4038
        %v4040 = vpop.f32.mrf.mxu0
        %4041 = vdwg.mxu0
        %4042 = vmatpush.bf16.msra.mxu0 %v3783
        %4043 = vmatpush.bf16.msra.mxu0 %v3775
        %4044 = vmatpush.bf16.msra.mxu0 %v3767
        %4045 = vmatpush.bf16.msra.mxu0 %v3759
        %4046 = vmatpush.bf16.msra.mxu0 %v3751
        %4047 = vmatpush.bf16.msra.mxu0 %v3743
        %4048 = vmatpush.bf16.msra.mxu0 %v3735
        %4049 = vmatpush.bf16.msra.mxu0 %v3727
        %4050 = vmatmul.bf16.gmra.mxu0 %v3127
        %v4051 = vpop.f32.mrf.mxu0
        %v4052 = vadd.f32 %v4034, %v4051
        %v4053 = vpop.f32.mrf.mxu0
        %v4054 = vadd.f32 %v4036, %v4053
        %4055 = vmatmul.bf16.gmra.mxu0 %v3129
        %v4056 = vpop.f32.mrf.mxu0
        %v4057 = vadd.f32 %v4039, %v4056
        %v4058 = vpop.f32.mrf.mxu0
        %4059 = vdwg.mxu0
        %4060 = vmatpush.bf16.msra.mxu0 %v3720
        %4061 = vmatpush.bf16.msra.mxu0 %v3712
        %4062 = vmatpush.bf16.msra.mxu0 %v3704
        %4063 = vmatpush.bf16.msra.mxu0 %v3696
        %4064 = vmatpush.bf16.msra.mxu0 %v3688
        %4065 = vmatpush.bf16.msra.mxu0 %v3680
        %4066 = vmatpush.bf16.msra.mxu0 %v3672
        %4067 = vmatpush.bf16.msra.mxu0 %v3664
        %4068 = vmatmul.bf16.gmra.mxu0 %v3126
        %v4069 = vpop.f32.mrf.mxu0
        %v4070 = vadd.f32 %v3264, %v4069
        %v4071 = vpop.f32.mrf.mxu0
        %v4072 = vadd.f32 %v3264, %v4071
        %4073 = vmatmul.bf16.gmra.mxu0 %v3128
        %v4074 = vpop.f32.mrf.mxu0
        %v4075 = vadd.f32 %v3264, %v4074
        %v4076 = vpop.f32.mrf.mxu0
        %4077 = vdwg.mxu0
        %4078 = vmatpush.bf16.msra.mxu0 %v3784
        %4079 = vmatpush.bf16.msra.mxu0 %v3776
        %4080 = vmatpush.bf16.msra.mxu0 %v3768
        %4081 = vmatpush.bf16.msra.mxu0 %v3760
        %4082 = vmatpush.bf16.msra.mxu0 %v3752
        %4083 = vmatpush.bf16.msra.mxu0 %v3744
        %4084 = vmatpush.bf16.msra.mxu0 %v3736
        %4085 = vmatpush.bf16.msra.mxu0 %v3728
        %4086 = vmatmul.bf16.gmra.mxu0 %v3127
        %v4087 = vpop.f32.mrf.mxu0
        %v4088 = vadd.f32 %v4070, %v4087
        %v4089 = vpop.f32.mrf.mxu0
        %v4090 = vadd.f32 %v4072, %v4089
        %4091 = vmatmul.bf16.gmra.mxu0 %v3129
        %v4092 = vpop.f32.mrf.mxu0
        %v4093 = vadd.f32 %v4075, %v4092
        %v4094 = vpop.f32.mrf.mxu0
        %4095 = vdwg.mxu0
        %4096 = vmatpush.bf16.msra.mxu0 %v3721
        %4097 = vmatpush.bf16.msra.mxu0 %v3713
        %4098 = vmatpush.bf16.msra.mxu0 %v3705
        %4099 = vmatpush.bf16.msra.mxu0 %v3697
        %4100 = vmatpush.bf16.msra.mxu0 %v3689
        %4101 = vmatpush.bf16.msra.mxu0 %v3681
        %4102 = vmatpush.bf16.msra.mxu0 %v3673
        %4103 = vmatpush.bf16.msra.mxu0 %v3665
        %4104 = vmatmul.bf16.gmra.mxu0 %v3126
        %v4105 = vpop.f32.mrf.mxu0
        %v4106 = vadd.f32 %v3265, %v4105
        %v4107 = vpop.f32.mrf.mxu0
        %v4108 = vadd.f32 %v3265, %v4107
        %4109 = vmatmul.bf16.gmra.mxu0 %v3128
        %v4110 = vpop.f32.mrf.mxu0
        %v4111 = vadd.f32 %v3265, %v4110
        %v4112 = vpop.f32.mrf.mxu0
        %4113 = vdwg.mxu0
        %4114 = vmatpush.bf16.msra.mxu0 %v3785
        %4115 = vmatpush.bf16.msra.mxu0 %v3777
        %4116 = vmatpush.bf16.msra.mxu0 %v3769
        %4117 = vmatpush.bf16.msra.mxu0 %v3761
        %4118 = vmatpush.bf16.msra.mxu0 %v3753
        %4119 = vmatpush.bf16.msra.mxu0 %v3745
        %4120 = vmatpush.bf16.msra.mxu0 %v3737
        %4121 = vmatpush.bf16.msra.mxu0 %v3729
        %4122 = vmatmul.bf16.gmra.mxu0 %v3127
        %v4123 = vpop.f32.mrf.mxu0
        %v4124 = vadd.f32 %v4106, %v4123
        %v4125 = vpop.f32.mrf.mxu0
        %v4126 = vadd.f32 %v4108, %v4125
        %4127 = vmatmul.bf16.gmra.mxu0 %v3129
        %v4128 = vpop.f32.mrf.mxu0
        %v4129 = vadd.f32 %v4111, %v4128
        %v4130 = vpop.f32.mrf.mxu0
        %4131 = vdwg.mxu0
        %4132 = vmatpush.bf16.msra.mxu0 %v3722
        %4133 = vmatpush.bf16.msra.mxu0 %v3714
        %4134 = vmatpush.bf16.msra.mxu0 %v3706
        %4135 = vmatpush.bf16.msra.mxu0 %v3698
        %4136 = vmatpush.bf16.msra.mxu0 %v3690
        %4137 = vmatpush.bf16.msra.mxu0 %v3682
        %4138 = vmatpush.bf16.msra.mxu0 %v3674
        %4139 = vmatpush.bf16.msra.mxu0 %v3666
        %4140 = vmatmul.bf16.gmra.mxu0 %v3126
        %v4141 = vpop.f32.mrf.mxu0
        %v4142 = vadd.f32 %v3266, %v4141
        %v4143 = vpop.f32.mrf.mxu0
        %v4144 = vadd.f32 %v3266, %v4143
        %4145 = vmatmul.bf16.gmra.mxu0 %v3128
        %v4146 = vpop.f32.mrf.mxu0
        %v4147 = vadd.f32 %v3266, %v4146
        %v4148 = vpop.f32.mrf.mxu0
        %4149 = vdwg.mxu0
        %4150 = vmatpush.bf16.msra.mxu0 %v3786
        %4151 = vmatpush.bf16.msra.mxu0 %v3778
        %4152 = vmatpush.bf16.msra.mxu0 %v3770
        %4153 = vmatpush.bf16.msra.mxu0 %v3762
        %4154 = vmatpush.bf16.msra.mxu0 %v3754
        %4155 = vmatpush.bf16.msra.mxu0 %v3746
        %4156 = vmatpush.bf16.msra.mxu0 %v3738
        %4157 = vmatpush.bf16.msra.mxu0 %v3730
        %4158 = vmatmul.bf16.gmra.mxu0 %v3127
        %v4159 = vpop.f32.mrf.mxu0
        %v4160 = vadd.f32 %v4142, %v4159
        %v4161 = vpop.f32.mrf.mxu0
        %v4162 = vadd.f32 %v4144, %v4161
        %4163 = vmatmul.bf16.gmra.mxu0 %v3129
        %v4164 = vpop.f32.mrf.mxu0
        %v4165 = vadd.f32 %v4147, %v4164
        %v4166 = vpop.f32.mrf.mxu0
        %4167 = vdwg.mxu0
        %4168 = vmatpush.bf16.msra.mxu0 %v3723
        %4169 = vmatpush.bf16.msra.mxu0 %v3715
        %4170 = vmatpush.bf16.msra.mxu0 %v3707
        %4171 = vmatpush.bf16.msra.mxu0 %v3699
        %4172 = vmatpush.bf16.msra.mxu0 %v3691
        %4173 = vmatpush.bf16.msra.mxu0 %v3683
        %4174 = vmatpush.bf16.msra.mxu0 %v3675
        %4175 = vmatpush.bf16.msra.mxu0 %v3667
        %4176 = vmatmul.bf16.gmra.mxu0 %v3126
        %v4177 = vpop.f32.mrf.mxu0
        %v4178 = vadd.f32 %v3267, %v4177
        %v4179 = vpop.f32.mrf.mxu0
        %v4180 = vadd.f32 %v3267, %v4179
        %4181 = vmatmul.bf16.gmra.mxu0 %v3128
        %v4182 = vpop.f32.mrf.mxu0
        %v4183 = vadd.f32 %v3267, %v4182
        %v4184 = vpop.f32.mrf.mxu0
        %4185 = vdwg.mxu0
        %4186 = vmatpush.bf16.msra.mxu0 %v3787
        %4187 = vmatpush.bf16.msra.mxu0 %v3779
        %4188 = vmatpush.bf16.msra.mxu0 %v3771
        %4189 = vmatpush.bf16.msra.mxu0 %v3763
        %4190 = vmatpush.bf16.msra.mxu0 %v3755
        %4191 = vmatpush.bf16.msra.mxu0 %v3747
        %4192 = vmatpush.bf16.msra.mxu0 %v3739
        %4193 = vmatpush.bf16.msra.mxu0 %v3731
        %4194 = vmatmul.bf16.gmra.mxu0 %v3127
        %v4195 = vpop.f32.mrf.mxu0
        %v4196 = vadd.f32 %v4178, %v4195
        %v4197 = vpop.f32.mrf.mxu0
        %v4198 = vadd.f32 %v4180, %v4197
        %4199 = vmatmul.bf16.gmra.mxu0 %v3129
        %v4200 = vpop.f32.mrf.mxu0
        %v4201 = vadd.f32 %v4183, %v4200
        %v4202 = vpop.f32.mrf.mxu0
        %4203 = vdwg.mxu0
        %v4204 = vmax.f32 %v3944, 0.0
        %v4205 = vmax.f32 %v3980, 0.0
        %v4206 = vmax.f32 %v4016, 0.0
        %v4207 = vmax.f32 %v4052, 0.0
        %v4208 = vmax.f32 %v4088, 0.0
        %v4209 = vmax.f32 %v4124, 0.0
        %v4210 = vmax.f32 %v4160, 0.0
        %v4211 = vmax.f32 %v4196, 0.0
        %v4212 = vmax.f32 %v3946, 0.0
        %v4213 = vmax.f32 %v3982, 0.0
        %v4214 = vmax.f32 %v4018, 0.0
        %v4215 = vmax.f32 %v4054, 0.0
        %v4216 = vmax.f32 %v4090, 0.0
        %v4217 = vmax.f32 %v4126, 0.0
        %v4218 = vmax.f32 %v4162, 0.0
        %v4219 = vmax.f32 %v4198, 0.0
        %v4220 = vmax.f32 %v3949, 0.0
        %v4221 = vmax.f32 %v3985, 0.0
        %v4222 = vmax.f32 %v4021, 0.0
        %v4223 = vmax.f32 %v4057, 0.0
        %v4224 = vmax.f32 %v4093, 0.0
        %v4225 = vmax.f32 %v4129, 0.0
        %v4226 = vmax.f32 %v4165, 0.0
        %v4227 = vmax.f32 %v4201, 0.0
        %v4228 = vpack.c.bf16 %v4212, %v4204
        %v4229 = vpack.c.bf16 %v4213, %v4205
        %v4230 = vpack.c.bf16 %v4214, %v4206
        %v4231 = vpack.c.bf16 %v4215, %v4207
        %v4232 = vpack.c.bf16 %v4216, %v4208
        %v4233 = vpack.c.bf16 %v4217, %v4209
        %v4234 = vpack.c.bf16 %v4218, %v4210
        %v4235 = vpack.c.bf16 %v4219, %v4211
        %v4236 = vpack.c.bf16 %v4220, %v4220
        %v4237 = vpack.c.bf16 %v4221, %v4221
        %v4238 = vpack.c.bf16 %v4222, %v4222
        %v4239 = vpack.c.bf16 %v4223, %v4223
        %v4240 = vpack.c.bf16 %v4224, %v4224
        %v4241 = vpack.c.bf16 %v4225, %v4225
        %v4242 = vpack.c.bf16 %v4226, %v4226
        %v4243 = vpack.c.bf16 %v4227, %v4227
        %v4244 = vld [vmem:[%s680] sm:$0xff]
        %v4245 = vld [vmem:[%s680 + $0x8] sm:$0xff]
        %v4246 = vld [vmem:[%s680 + $0x10] sm:$0xff]
        %v4247 = vld [vmem:[%s680 + $0x18] sm:$0xff]
        %v4248 = vld [vmem:[%s680 + $0x20] sm:$0xff]
        %v4249 = vld [vmem:[%s680 + $0x28] sm:$0xff]
        %v4250 = vld [vmem:[%s680 + $0x30] sm:$0xff]
        %v4251 = vld [vmem:[%s680 + $0x38] sm:$0xff]
        %v4252 = vld [vmem:[%s680 + $0x40] sm:$0xff]
        %v4253 = vld [vmem:[%s680 + $0x48] sm:$0xff]
        %v4254 = vld [vmem:[%s680 + $0x50] sm:$0xff]
        %v4255 = vld [vmem:[%s680 + $0x58] sm:$0xff]
        %v4256 = vld [vmem:[%s680 + $0x60] sm:$0xff]
        %v4257 = vld [vmem:[%s680 + $0x68] sm:$0xff]
        %v4258 = vld [vmem:[%s680 + $0x70] sm:$0xff]
        %v4259 = vld [vmem:[%s680 + $0x78] sm:$0xff]
        %v4260 = vld [vmem:[%s680 + $0x80] sm:$0xff]
        %v4261 = vld [vmem:[%s680 + $0x88] sm:$0xff]
        %v4262 = vld [vmem:[%s680 + $0x90] sm:$0xff]
        %v4263 = vld [vmem:[%s680 + $0x98] sm:$0xff]
        %v4264 = vld [vmem:[%s680 + $0xa0] sm:$0xff]
        %v4265 = vld [vmem:[%s680 + $0xa8] sm:$0xff]
        %v4266 = vld [vmem:[%s680 + $0xb0] sm:$0xff]
        %v4267 = vld [vmem:[%s680 + $0xb8] sm:$0xff]
        %v4268 = vld [vmem:[%s680 + $0xc0] sm:$0xff]
        %v4269 = vld [vmem:[%s680 + $0xc8] sm:$0xff]
        %v4270 = vld [vmem:[%s680 + $0xd0] sm:$0xff]
        %v4271 = vld [vmem:[%s680 + $0xd8] sm:$0xff]
        %v4272 = vld [vmem:[%s680 + $0xe0] sm:$0xff]
        %v4273 = vld [vmem:[%s680 + $0xe8] sm:$0xff]
        %v4274 = vld [vmem:[%s680 + $0xf0] sm:$0xff]
        %v4275 = vld [vmem:[%s680 + $0xf8] sm:$0xff]
        %v4276 = vld [vmem:[%s680 + $0x100] sm:$0xff]
        %v4277 = vld [vmem:[%s680 + $0x108] sm:$0xff]
        %v4278 = vld [vmem:[%s680 + $0x110] sm:$0xff]
        %v4279 = vld [vmem:[%s680 + $0x118] sm:$0xff]
        %v4280 = vld [vmem:[%s680 + $0x120] sm:$0xff]
        %v4281 = vld [vmem:[%s680 + $0x128] sm:$0xff]
        %v4282 = vld [vmem:[%s680 + $0x130] sm:$0xff]
        %v4283 = vld [vmem:[%s680 + $0x138] sm:$0xff]
        %v4284 = vld [vmem:[%s680 + $0x140] sm:$0xff]
        %v4285 = vld [vmem:[%s680 + $0x148] sm:$0xff]
        %v4286 = vld [vmem:[%s680 + $0x150] sm:$0xff]
        %v4287 = vld [vmem:[%s680 + $0x158] sm:$0xff]
        %v4288 = vld [vmem:[%s680 + $0x160] sm:$0xff]
        %v4289 = vld [vmem:[%s680 + $0x168] sm:$0xff]
        %v4290 = vld [vmem:[%s680 + $0x170] sm:$0xff]
        %v4291 = vld [vmem:[%s680 + $0x178] sm:$0xff]
        %v4292 = vld [vmem:[%s680 + $0x180] sm:$0xff]
        %v4293 = vld [vmem:[%s680 + $0x188] sm:$0xff]
        %v4294 = vld [vmem:[%s680 + $0x190] sm:$0xff]
        %v4295 = vld [vmem:[%s680 + $0x198] sm:$0xff]
        %v4296 = vld [vmem:[%s680 + $0x1a0] sm:$0xff]
        %v4297 = vld [vmem:[%s680 + $0x1a8] sm:$0xff]
        %v4298 = vld [vmem:[%s680 + $0x1b0] sm:$0xff]
        %v4299 = vld [vmem:[%s680 + $0x1b8] sm:$0xff]
        %v4300 = vld [vmem:[%s680 + $0x1c0] sm:$0xff]
        %v4301 = vld [vmem:[%s680 + $0x1c8] sm:$0xff]
        %v4302 = vld [vmem:[%s680 + $0x1d0] sm:$0xff]
        %v4303 = vld [vmem:[%s680 + $0x1d8] sm:$0xff]
        %v4304 = vld [vmem:[%s680 + $0x1e0] sm:$0xff]
        %v4305 = vld [vmem:[%s680 + $0x1e8] sm:$0xff]
        %v4306 = vld [vmem:[%s680 + $0x1f0] sm:$0xff]
        %v4307 = vld [vmem:[%s680 + $0x1f8] sm:$0xff]
        %v4308 = vld [vmem:[%s680 + $0x200] sm:$0xff]
        %v4309 = vld [vmem:[%s680 + $0x208] sm:$0xff]
        %v4310 = vld [vmem:[%s680 + $0x210] sm:$0xff]
        %v4311 = vld [vmem:[%s680 + $0x218] sm:$0xff]
        %v4312 = vld [vmem:[%s680 + $0x220] sm:$0xff]
        %v4313 = vld [vmem:[%s680 + $0x228] sm:$0xff]
        %v4314 = vld [vmem:[%s680 + $0x230] sm:$0xff]
        %v4315 = vld [vmem:[%s680 + $0x238] sm:$0xff]
        %v4316 = vld [vmem:[%s680 + $0x240] sm:$0xff]
        %v4317 = vld [vmem:[%s680 + $0x248] sm:$0xff]
        %v4318 = vld [vmem:[%s680 + $0x250] sm:$0xff]
        %v4319 = vld [vmem:[%s680 + $0x258] sm:$0xff]
        %v4320 = vld [vmem:[%s680 + $0x260] sm:$0xff]
        %v4321 = vld [vmem:[%s680 + $0x268] sm:$0xff]
        %v4322 = vld [vmem:[%s680 + $0x270] sm:$0xff]
        %v4323 = vld [vmem:[%s680 + $0x278] sm:$0xff]
        %v4324 = vld [vmem:[%s680 + $0x280] sm:$0xff]
        %v4325 = vld [vmem:[%s680 + $0x288] sm:$0xff]
        %v4326 = vld [vmem:[%s680 + $0x290] sm:$0xff]
        %v4327 = vld [vmem:[%s680 + $0x298] sm:$0xff]
        %v4328 = vld [vmem:[%s680 + $0x2a0] sm:$0xff]
        %v4329 = vld [vmem:[%s680 + $0x2a8] sm:$0xff]
        %v4330 = vld [vmem:[%s680 + $0x2b0] sm:$0xff]
        %v4331 = vld [vmem:[%s680 + $0x2b8] sm:$0xff]
        %v4332 = vld [vmem:[%s680 + $0x2c0] sm:$0xff]
        %v4333 = vld [vmem:[%s680 + $0x2c8] sm:$0xff]
        %v4334 = vld [vmem:[%s680 + $0x2d0] sm:$0xff]
        %v4335 = vld [vmem:[%s680 + $0x2d8] sm:$0xff]
        %v4336 = vld [vmem:[%s680 + $0x2e0] sm:$0xff]
        %v4337 = vld [vmem:[%s680 + $0x2e8] sm:$0xff]
        %v4338 = vld [vmem:[%s680 + $0x2f0] sm:$0xff]
        %v4339 = vld [vmem:[%s680 + $0x2f8] sm:$0xff]
        %v4340 = vld [vmem:[%s680 + $0x300] sm:$0xff]
        %v4341 = vld [vmem:[%s680 + $0x308] sm:$0xff]
        %v4342 = vld [vmem:[%s680 + $0x310] sm:$0xff]
        %v4343 = vld [vmem:[%s680 + $0x318] sm:$0xff]
        %v4344 = vld [vmem:[%s680 + $0x320] sm:$0xff]
        %v4345 = vld [vmem:[%s680 + $0x328] sm:$0xff]
        %v4346 = vld [vmem:[%s680 + $0x330] sm:$0xff]
        %v4347 = vld [vmem:[%s680 + $0x338] sm:$0xff]
        %v4348 = vld [vmem:[%s680 + $0x340] sm:$0xff]
        %v4349 = vld [vmem:[%s680 + $0x348] sm:$0xff]
        %v4350 = vld [vmem:[%s680 + $0x350] sm:$0xff]
        %v4351 = vld [vmem:[%s680 + $0x358] sm:$0xff]
        %v4352 = vld [vmem:[%s680 + $0x360] sm:$0xff]
        %v4353 = vld [vmem:[%s680 + $0x368] sm:$0xff]
        %v4354 = vld [vmem:[%s680 + $0x370] sm:$0xff]
        %v4355 = vld [vmem:[%s680 + $0x378] sm:$0xff]
        %v4356 = vld [vmem:[%s680 + $0x380] sm:$0xff]
        %v4357 = vld [vmem:[%s680 + $0x388] sm:$0xff]
        %v4358 = vld [vmem:[%s680 + $0x390] sm:$0xff]
        %v4359 = vld [vmem:[%s680 + $0x398] sm:$0xff]
        %v4360 = vld [vmem:[%s680 + $0x3a0] sm:$0xff]
        %v4361 = vld [vmem:[%s680 + $0x3a8] sm:$0xff]
        %v4362 = vld [vmem:[%s680 + $0x3b0] sm:$0xff]
        %v4363 = vld [vmem:[%s680 + $0x3b8] sm:$0xff]
        %v4364 = vld [vmem:[%s680 + $0x3c0] sm:$0xff]
        %v4365 = vld [vmem:[%s680 + $0x3c8] sm:$0xff]
        %v4366 = vld [vmem:[%s680 + $0x3d0] sm:$0xff]
        %v4367 = vld [vmem:[%s680 + $0x3d8] sm:$0xff]
        %v4368 = vld [vmem:[%s680 + $0x3e0] sm:$0xff]
        %v4369 = vld [vmem:[%s680 + $0x3e8] sm:$0xff]
        %v4370 = vld [vmem:[%s680 + $0x3f0] sm:$0xff]
        %v4371 = vld [vmem:[%s680 + $0x3f8] sm:$0xff]
        %v4372 = vld [vmem:[%s690] sm:$0x3]
        %v4374 = vperm.slane %v4372, 0
        %v4375 = vperm.slane %v4372, 1
        %v4506 = vunpack.c.l.b16 %v4244
        %v4507 = vunpack.c.h.b16 %v4244
        %v4508 = vunpack.c.l.b16 %v4245
        %v4509 = vunpack.c.h.b16 %v4245
        %v4510 = vunpack.c.l.b16 %v4246
        %v4511 = vunpack.c.h.b16 %v4246
        %v4512 = vunpack.c.l.b16 %v4247
        %v4513 = vunpack.c.h.b16 %v4247
        %v4514 = vunpack.c.l.b16 %v4248
        %v4515 = vunpack.c.h.b16 %v4248
        %v4516 = vunpack.c.l.b16 %v4249
        %v4517 = vunpack.c.h.b16 %v4249
        %v4518 = vunpack.c.l.b16 %v4250
        %v4519 = vunpack.c.h.b16 %v4250
        %v4520 = vunpack.c.l.b16 %v4251
        %v4521 = vunpack.c.h.b16 %v4251
        %v4522 = vunpack.c.l.b16 %v4252
        %v4523 = vunpack.c.h.b16 %v4252
        %v4524 = vunpack.c.l.b16 %v4253
        %v4525 = vunpack.c.h.b16 %v4253
        %v4526 = vunpack.c.l.b16 %v4254
        %v4527 = vunpack.c.h.b16 %v4254
        %v4528 = vunpack.c.l.b16 %v4255
        %v4529 = vunpack.c.h.b16 %v4255
        %v4530 = vunpack.c.l.b16 %v4256
        %v4531 = vunpack.c.h.b16 %v4256
        %v4532 = vunpack.c.l.b16 %v4257
        %v4533 = vunpack.c.h.b16 %v4257
        %v4534 = vunpack.c.l.b16 %v4258
        %v4535 = vunpack.c.h.b16 %v4258
        %v4536 = vunpack.c.l.b16 %v4259
        %v4537 = vunpack.c.h.b16 %v4259
        %v4538 = vunpack.c.l.b16 %v4260
        %v4539 = vunpack.c.h.b16 %v4260
        %v4540 = vunpack.c.l.b16 %v4261
        %v4541 = vunpack.c.h.b16 %v4261
        %v4542 = vunpack.c.l.b16 %v4262
        %v4543 = vunpack.c.h.b16 %v4262
        %v4544 = vunpack.c.l.b16 %v4263
        %v4545 = vunpack.c.h.b16 %v4263
        %v4546 = vunpack.c.l.b16 %v4264
        %v4547 = vunpack.c.h.b16 %v4264
        %v4548 = vunpack.c.l.b16 %v4265
        %v4549 = vunpack.c.h.b16 %v4265
        %v4550 = vunpack.c.l.b16 %v4266
        %v4551 = vunpack.c.h.b16 %v4266
        %v4552 = vunpack.c.l.b16 %v4267
        %v4553 = vunpack.c.h.b16 %v4267
        %v4554 = vunpack.c.l.b16 %v4268
        %v4555 = vunpack.c.h.b16 %v4268
        %v4556 = vunpack.c.l.b16 %v4269
        %v4557 = vunpack.c.h.b16 %v4269
        %v4558 = vunpack.c.l.b16 %v4270
        %v4559 = vunpack.c.h.b16 %v4270
        %v4560 = vunpack.c.l.b16 %v4271
        %v4561 = vunpack.c.h.b16 %v4271
        %v4562 = vunpack.c.l.b16 %v4272
        %v4563 = vunpack.c.h.b16 %v4272
        %v4564 = vunpack.c.l.b16 %v4273
        %v4565 = vunpack.c.h.b16 %v4273
        %v4566 = vunpack.c.l.b16 %v4274
        %v4567 = vunpack.c.h.b16 %v4274
        %v4568 = vunpack.c.l.b16 %v4275
        %v4569 = vunpack.c.h.b16 %v4275
        %v4570 = vunpack.c.l.b16 %v4276
        %v4571 = vunpack.c.h.b16 %v4276
        %v4572 = vunpack.c.l.b16 %v4277
        %v4573 = vunpack.c.h.b16 %v4277
        %v4574 = vunpack.c.l.b16 %v4278
        %v4575 = vunpack.c.h.b16 %v4278
        %v4576 = vunpack.c.l.b16 %v4279
        %v4577 = vunpack.c.h.b16 %v4279
        %v4578 = vunpack.c.l.b16 %v4280
        %v4579 = vunpack.c.h.b16 %v4280
        %v4580 = vunpack.c.l.b16 %v4281
        %v4581 = vunpack.c.h.b16 %v4281
        %v4582 = vunpack.c.l.b16 %v4282
        %v4583 = vunpack.c.h.b16 %v4282
        %v4584 = vunpack.c.l.b16 %v4283
        %v4585 = vunpack.c.h.b16 %v4283
        %v4586 = vunpack.c.l.b16 %v4284
        %v4587 = vunpack.c.h.b16 %v4284
        %v4588 = vunpack.c.l.b16 %v4285
        %v4589 = vunpack.c.h.b16 %v4285
        %v4590 = vunpack.c.l.b16 %v4286
        %v4591 = vunpack.c.h.b16 %v4286
        %v4592 = vunpack.c.l.b16 %v4287
        %v4593 = vunpack.c.h.b16 %v4287
        %v4594 = vunpack.c.l.b16 %v4288
        %v4595 = vunpack.c.h.b16 %v4288
        %v4596 = vunpack.c.l.b16 %v4289
        %v4597 = vunpack.c.h.b16 %v4289
        %v4598 = vunpack.c.l.b16 %v4290
        %v4599 = vunpack.c.h.b16 %v4290
        %v4600 = vunpack.c.l.b16 %v4291
        %v4601 = vunpack.c.h.b16 %v4291
        %v4602 = vunpack.c.l.b16 %v4292
        %v4603 = vunpack.c.h.b16 %v4292
        %v4604 = vunpack.c.l.b16 %v4293
        %v4605 = vunpack.c.h.b16 %v4293
        %v4606 = vunpack.c.l.b16 %v4294
        %v4607 = vunpack.c.h.b16 %v4294
        %v4608 = vunpack.c.l.b16 %v4295
        %v4609 = vunpack.c.h.b16 %v4295
        %v4610 = vunpack.c.l.b16 %v4296
        %v4611 = vunpack.c.h.b16 %v4296
        %v4612 = vunpack.c.l.b16 %v4297
        %v4613 = vunpack.c.h.b16 %v4297
        %v4614 = vunpack.c.l.b16 %v4298
        %v4615 = vunpack.c.h.b16 %v4298
        %v4616 = vunpack.c.l.b16 %v4299
        %v4617 = vunpack.c.h.b16 %v4299
        %v4618 = vunpack.c.l.b16 %v4300
        %v4619 = vunpack.c.h.b16 %v4300
        %v4620 = vunpack.c.l.b16 %v4301
        %v4621 = vunpack.c.h.b16 %v4301
        %v4622 = vunpack.c.l.b16 %v4302
        %v4623 = vunpack.c.h.b16 %v4302
        %v4624 = vunpack.c.l.b16 %v4303
        %v4625 = vunpack.c.h.b16 %v4303
        %v4626 = vunpack.c.l.b16 %v4304
        %v4627 = vunpack.c.h.b16 %v4304
        %v4628 = vunpack.c.l.b16 %v4305
        %v4629 = vunpack.c.h.b16 %v4305
        %v4630 = vunpack.c.l.b16 %v4306
        %v4631 = vunpack.c.h.b16 %v4306
        %v4632 = vunpack.c.l.b16 %v4307
        %v4633 = vunpack.c.h.b16 %v4307
        %v4634 = vunpack.c.l.b16 %v4308
        %v4635 = vunpack.c.h.b16 %v4308
        %v4636 = vunpack.c.l.b16 %v4309
        %v4637 = vunpack.c.h.b16 %v4309
        %v4638 = vunpack.c.l.b16 %v4310
        %v4639 = vunpack.c.h.b16 %v4310
        %v4640 = vunpack.c.l.b16 %v4311
        %v4641 = vunpack.c.h.b16 %v4311
        %v4642 = vunpack.c.l.b16 %v4312
        %v4643 = vunpack.c.h.b16 %v4312
        %v4644 = vunpack.c.l.b16 %v4313
        %v4645 = vunpack.c.h.b16 %v4313
        %v4646 = vunpack.c.l.b16 %v4314
        %v4647 = vunpack.c.h.b16 %v4314
        %v4648 = vunpack.c.l.b16 %v4315
        %v4649 = vunpack.c.h.b16 %v4315
        %v4650 = vunpack.c.l.b16 %v4316
        %v4651 = vunpack.c.h.b16 %v4316
        %v4652 = vunpack.c.l.b16 %v4317
        %v4653 = vunpack.c.h.b16 %v4317
        %v4654 = vunpack.c.l.b16 %v4318
        %v4655 = vunpack.c.h.b16 %v4318
        %v4656 = vunpack.c.l.b16 %v4319
        %v4657 = vunpack.c.h.b16 %v4319
        %v4658 = vunpack.c.l.b16 %v4320
        %v4659 = vunpack.c.h.b16 %v4320
        %v4660 = vunpack.c.l.b16 %v4321
        %v4661 = vunpack.c.h.b16 %v4321
        %v4662 = vunpack.c.l.b16 %v4322
        %v4663 = vunpack.c.h.b16 %v4322
        %v4664 = vunpack.c.l.b16 %v4323
        %v4665 = vunpack.c.h.b16 %v4323
        %v4666 = vunpack.c.l.b16 %v4324
        %v4667 = vunpack.c.h.b16 %v4324
        %v4668 = vunpack.c.l.b16 %v4325
        %v4669 = vunpack.c.h.b16 %v4325
        %v4670 = vunpack.c.l.b16 %v4326
        %v4671 = vunpack.c.h.b16 %v4326
        %v4672 = vunpack.c.l.b16 %v4327
        %v4673 = vunpack.c.h.b16 %v4327
        %v4674 = vunpack.c.l.b16 %v4328
        %v4675 = vunpack.c.h.b16 %v4328
        %v4676 = vunpack.c.l.b16 %v4329
        %v4677 = vunpack.c.h.b16 %v4329
        %v4678 = vunpack.c.l.b16 %v4330
        %v4679 = vunpack.c.h.b16 %v4330
        %v4680 = vunpack.c.l.b16 %v4331
        %v4681 = vunpack.c.h.b16 %v4331
        %v4682 = vunpack.c.l.b16 %v4332
        %v4683 = vunpack.c.h.b16 %v4332
        %v4684 = vunpack.c.l.b16 %v4333
        %v4685 = vunpack.c.h.b16 %v4333
        %v4686 = vunpack.c.l.b16 %v4334
        %v4687 = vunpack.c.h.b16 %v4334
        %v4688 = vunpack.c.l.b16 %v4335
        %v4689 = vunpack.c.h.b16 %v4335
        %v4690 = vunpack.c.l.b16 %v4336
        %v4691 = vunpack.c.h.b16 %v4336
        %v4692 = vunpack.c.l.b16 %v4337
        %v4693 = vunpack.c.h.b16 %v4337
        %v4694 = vunpack.c.l.b16 %v4338
        %v4695 = vunpack.c.h.b16 %v4338
        %v4696 = vunpack.c.l.b16 %v4339
        %v4697 = vunpack.c.h.b16 %v4339
        %v4698 = vunpack.c.l.b16 %v4340
        %v4699 = vunpack.c.h.b16 %v4340
        %v4700 = vunpack.c.l.b16 %v4341
        %v4701 = vunpack.c.h.b16 %v4341
        %v4702 = vunpack.c.l.b16 %v4342
        %v4703 = vunpack.c.h.b16 %v4342
        %v4704 = vunpack.c.l.b16 %v4343
        %v4705 = vunpack.c.h.b16 %v4343
        %v4706 = vunpack.c.l.b16 %v4344
        %v4707 = vunpack.c.h.b16 %v4344
        %v4708 = vunpack.c.l.b16 %v4345
        %v4709 = vunpack.c.h.b16 %v4345
        %v4710 = vunpack.c.l.b16 %v4346
        %v4711 = vunpack.c.h.b16 %v4346
        %v4712 = vunpack.c.l.b16 %v4347
        %v4713 = vunpack.c.h.b16 %v4347
        %v4714 = vunpack.c.l.b16 %v4348
        %v4715 = vunpack.c.h.b16 %v4348
        %v4716 = vunpack.c.l.b16 %v4349
        %v4717 = vunpack.c.h.b16 %v4349
        %v4718 = vunpack.c.l.b16 %v4350
        %v4719 = vunpack.c.h.b16 %v4350
        %v4720 = vunpack.c.l.b16 %v4351
        %v4721 = vunpack.c.h.b16 %v4351
        %v4722 = vunpack.c.l.b16 %v4352
        %v4723 = vunpack.c.h.b16 %v4352
        %v4724 = vunpack.c.l.b16 %v4353
        %v4725 = vunpack.c.h.b16 %v4353
        %v4726 = vunpack.c.l.b16 %v4354
        %v4727 = vunpack.c.h.b16 %v4354
        %v4728 = vunpack.c.l.b16 %v4355
        %v4729 = vunpack.c.h.b16 %v4355
        %v4730 = vunpack.c.l.b16 %v4356
        %v4731 = vunpack.c.h.b16 %v4356
        %v4732 = vunpack.c.l.b16 %v4357
        %v4733 = vunpack.c.h.b16 %v4357
        %v4734 = vunpack.c.l.b16 %v4358
        %v4735 = vunpack.c.h.b16 %v4358
        %v4736 = vunpack.c.l.b16 %v4359
        %v4737 = vunpack.c.h.b16 %v4359
        %v4738 = vunpack.c.l.b16 %v4360
        %v4739 = vunpack.c.h.b16 %v4360
        %v4740 = vunpack.c.l.b16 %v4361
        %v4741 = vunpack.c.h.b16 %v4361
        %v4742 = vunpack.c.l.b16 %v4362
        %v4743 = vunpack.c.h.b16 %v4362
        %v4744 = vunpack.c.l.b16 %v4363
        %v4745 = vunpack.c.h.b16 %v4363
        %v4746 = vunpack.c.l.b16 %v4364
        %v4747 = vunpack.c.h.b16 %v4364
        %v4748 = vunpack.c.l.b16 %v4365
        %v4749 = vunpack.c.h.b16 %v4365
        %v4750 = vunpack.c.l.b16 %v4366
        %v4751 = vunpack.c.h.b16 %v4366
        %v4752 = vunpack.c.l.b16 %v4367
        %v4753 = vunpack.c.h.b16 %v4367
        %v4754 = vunpack.c.l.b16 %v4368
        %v4755 = vunpack.c.h.b16 %v4368
        %v4756 = vunpack.c.l.b16 %v4369
        %v4757 = vunpack.c.h.b16 %v4369
        %v4758 = vunpack.c.l.b16 %v4370
        %v4759 = vunpack.c.h.b16 %v4370
        %v4760 = vunpack.c.l.b16 %v4371
        %v4761 = vunpack.c.h.b16 %v4371
        %v4762 = vpack.c.b16 %v4508, %v4506
        %v4763 = vpack.c.b16 %v4509, %v4507
        %v4764 = vpack.c.b16 %v4512, %v4510
        %v4765 = vpack.c.b16 %v4513, %v4511
        %v4766 = vpack.c.b16 %v4516, %v4514
        %v4767 = vpack.c.b16 %v4517, %v4515
        %v4768 = vpack.c.b16 %v4520, %v4518
        %v4769 = vpack.c.b16 %v4521, %v4519
        %v4770 = vpack.c.b16 %v4524, %v4522
        %v4771 = vpack.c.b16 %v4525, %v4523
        %v4772 = vpack.c.b16 %v4528, %v4526
        %v4773 = vpack.c.b16 %v4529, %v4527
        %v4774 = vpack.c.b16 %v4532, %v4530
        %v4775 = vpack.c.b16 %v4533, %v4531
        %v4776 = vpack.c.b16 %v4536, %v4534
        %v4777 = vpack.c.b16 %v4537, %v4535
        %v4778 = vpack.c.b16 %v4540, %v4538
        %v4779 = vpack.c.b16 %v4541, %v4539
        %v4780 = vpack.c.b16 %v4544, %v4542
        %v4781 = vpack.c.b16 %v4545, %v4543
        %v4782 = vpack.c.b16 %v4548, %v4546
        %v4783 = vpack.c.b16 %v4549, %v4547
        %v4784 = vpack.c.b16 %v4552, %v4550
        %v4785 = vpack.c.b16 %v4553, %v4551
        %v4786 = vpack.c.b16 %v4556, %v4554
        %v4787 = vpack.c.b16 %v4557, %v4555
        %v4788 = vpack.c.b16 %v4560, %v4558
        %v4789 = vpack.c.b16 %v4561, %v4559
        %v4790 = vpack.c.b16 %v4564, %v4562
        %v4791 = vpack.c.b16 %v4565, %v4563
        %v4792 = vpack.c.b16 %v4568, %v4566
        %v4793 = vpack.c.b16 %v4569, %v4567
        %v4794 = vpack.c.b16 %v4572, %v4570
        %v4795 = vpack.c.b16 %v4573, %v4571
        %v4796 = vpack.c.b16 %v4576, %v4574
        %v4797 = vpack.c.b16 %v4577, %v4575
        %v4798 = vpack.c.b16 %v4580, %v4578
        %v4799 = vpack.c.b16 %v4581, %v4579
        %v4800 = vpack.c.b16 %v4584, %v4582
        %v4801 = vpack.c.b16 %v4585, %v4583
        %v4802 = vpack.c.b16 %v4588, %v4586
        %v4803 = vpack.c.b16 %v4589, %v4587
        %v4804 = vpack.c.b16 %v4592, %v4590
        %v4805 = vpack.c.b16 %v4593, %v4591
        %v4806 = vpack.c.b16 %v4596, %v4594
        %v4807 = vpack.c.b16 %v4597, %v4595
        %v4808 = vpack.c.b16 %v4600, %v4598
        %v4809 = vpack.c.b16 %v4601, %v4599
        %v4810 = vpack.c.b16 %v4604, %v4602
        %v4811 = vpack.c.b16 %v4605, %v4603
        %v4812 = vpack.c.b16 %v4608, %v4606
        %v4813 = vpack.c.b16 %v4609, %v4607
        %v4814 = vpack.c.b16 %v4612, %v4610
        %v4815 = vpack.c.b16 %v4613, %v4611
        %v4816 = vpack.c.b16 %v4616, %v4614
        %v4817 = vpack.c.b16 %v4617, %v4615
        %v4818 = vpack.c.b16 %v4620, %v4618
        %v4819 = vpack.c.b16 %v4621, %v4619
        %v4820 = vpack.c.b16 %v4624, %v4622
        %v4821 = vpack.c.b16 %v4625, %v4623
        %v4822 = vpack.c.b16 %v4628, %v4626
        %v4823 = vpack.c.b16 %v4629, %v4627
        %v4824 = vpack.c.b16 %v4632, %v4630
        %v4825 = vpack.c.b16 %v4633, %v4631
        %v4826 = vpack.c.b16 %v4636, %v4634
        %v4827 = vpack.c.b16 %v4637, %v4635
        %v4828 = vpack.c.b16 %v4640, %v4638
        %v4829 = vpack.c.b16 %v4641, %v4639
        %v4830 = vpack.c.b16 %v4644, %v4642
        %v4831 = vpack.c.b16 %v4645, %v4643
        %v4832 = vpack.c.b16 %v4648, %v4646
        %v4833 = vpack.c.b16 %v4649, %v4647
        %v4834 = vpack.c.b16 %v4652, %v4650
        %v4835 = vpack.c.b16 %v4653, %v4651
        %v4836 = vpack.c.b16 %v4656, %v4654
        %v4837 = vpack.c.b16 %v4657, %v4655
        %v4838 = vpack.c.b16 %v4660, %v4658
        %v4839 = vpack.c.b16 %v4661, %v4659
        %v4840 = vpack.c.b16 %v4664, %v4662
        %v4841 = vpack.c.b16 %v4665, %v4663
        %v4842 = vpack.c.b16 %v4668, %v4666
        %v4843 = vpack.c.b16 %v4669, %v4667
        %v4844 = vpack.c.b16 %v4672, %v4670
        %v4845 = vpack.c.b16 %v4673, %v4671
        %v4846 = vpack.c.b16 %v4676, %v4674
        %v4847 = vpack.c.b16 %v4677, %v4675
        %v4848 = vpack.c.b16 %v4680, %v4678
        %v4849 = vpack.c.b16 %v4681, %v4679
        %v4850 = vpack.c.b16 %v4684, %v4682
        %v4851 = vpack.c.b16 %v4685, %v4683
        %v4852 = vpack.c.b16 %v4688, %v4686
        %v4853 = vpack.c.b16 %v4689, %v4687
        %v4854 = vpack.c.b16 %v4692, %v4690
        %v4855 = vpack.c.b16 %v4693, %v4691
        %v4856 = vpack.c.b16 %v4696, %v4694
        %v4857 = vpack.c.b16 %v4697, %v4695
        %v4858 = vpack.c.b16 %v4700, %v4698
        %v4859 = vpack.c.b16 %v4701, %v4699
        %v4860 = vpack.c.b16 %v4704, %v4702
        %v4861 = vpack.c.b16 %v4705, %v4703
        %v4862 = vpack.c.b16 %v4708, %v4706
        %v4863 = vpack.c.b16 %v4709, %v4707
        %v4864 = vpack.c.b16 %v4712, %v4710
        %v4865 = vpack.c.b16 %v4713, %v4711
        %v4866 = vpack.c.b16 %v4716, %v4714
        %v4867 = vpack.c.b16 %v4717, %v4715
        %v4868 = vpack.c.b16 %v4720, %v4718
        %v4869 = vpack.c.b16 %v4721, %v4719
        %v4870 = vpack.c.b16 %v4724, %v4722
        %v4871 = vpack.c.b16 %v4725, %v4723
        %v4872 = vpack.c.b16 %v4728, %v4726
        %v4873 = vpack.c.b16 %v4729, %v4727
        %v4874 = vpack.c.b16 %v4732, %v4730
        %v4875 = vpack.c.b16 %v4733, %v4731
        %v4876 = vpack.c.b16 %v4736, %v4734
        %v4877 = vpack.c.b16 %v4737, %v4735
        %v4878 = vpack.c.b16 %v4740, %v4738
        %v4879 = vpack.c.b16 %v4741, %v4739
        %v4880 = vpack.c.b16 %v4744, %v4742
        %v4881 = vpack.c.b16 %v4745, %v4743
        %v4882 = vpack.c.b16 %v4748, %v4746
        %v4883 = vpack.c.b16 %v4749, %v4747
        %v4884 = vpack.c.b16 %v4752, %v4750
        %v4885 = vpack.c.b16 %v4753, %v4751
        %v4886 = vpack.c.b16 %v4756, %v4754
        %v4887 = vpack.c.b16 %v4757, %v4755
        %v4888 = vpack.c.b16 %v4760, %v4758
        %v4889 = vpack.c.b16 %v4761, %v4759
        %5018 = vmatpush.bf16.msra.mxu0 %v4776
        %5019 = vmatpush.bf16.msra.mxu0 %v4774
        %5020 = vmatpush.bf16.msra.mxu0 %v4772
        %5021 = vmatpush.bf16.msra.mxu0 %v4770
        %5022 = vmatpush.bf16.msra.mxu0 %v4768
        %5023 = vmatpush.bf16.msra.mxu0 %v4766
        %5024 = vmatpush.bf16.msra.mxu0 %v4764
        %5025 = vmatpush.bf16.msra.mxu0 %v4762
        %5026 = vmatmul.bf16.gmra.mxu0 %v4228
        %v5027 = vpop.f32.mrf.mxu0
        %v5028 = vadd.f32 %v4374, %v5027
        %v5029 = vpop.f32.mrf.mxu0
        %v5030 = vadd.f32 %v4374, %v5029
        %5031 = vmatmul.bf16.gmra.mxu0 %v4236
        %v5032 = vpop.f32.mrf.mxu0
        %v5033 = vadd.f32 %v4374, %v5032
        %v5034 = vpop.f32.mrf.mxu0
        %5035 = vdwg.mxu0
        %5036 = vmatpush.bf16.msra.mxu0 %v4792
        %5037 = vmatpush.bf16.msra.mxu0 %v4790
        %5038 = vmatpush.bf16.msra.mxu0 %v4788
        %5039 = vmatpush.bf16.msra.mxu0 %v4786
        %5040 = vmatpush.bf16.msra.mxu0 %v4784
        %5041 = vmatpush.bf16.msra.mxu0 %v4782
        %5042 = vmatpush.bf16.msra.mxu0 %v4780
        %5043 = vmatpush.bf16.msra.mxu0 %v4778
        %5044 = vmatmul.bf16.gmra.mxu0 %v4229
        %v5045 = vpop.f32.mrf.mxu0
        %v5046 = vadd.f32 %v5028, %v5045
        %v5047 = vpop.f32.mrf.mxu0
        %v5048 = vadd.f32 %v5030, %v5047
        %5049 = vmatmul.bf16.gmra.mxu0 %v4237
        %v5050 = vpop.f32.mrf.mxu0
        %v5051 = vadd.f32 %v5033, %v5050
        %v5052 = vpop.f32.mrf.mxu0
        %5053 = vdwg.mxu0
        %5054 = vmatpush.bf16.msra.mxu0 %v4808
        %5055 = vmatpush.bf16.msra.mxu0 %v4806
        %5056 = vmatpush.bf16.msra.mxu0 %v4804
        %5057 = vmatpush.bf16.msra.mxu0 %v4802
        %5058 = vmatpush.bf16.msra.mxu0 %v4800
        %5059 = vmatpush.bf16.msra.mxu0 %v4798
        %5060 = vmatpush.bf16.msra.mxu0 %v4796
        %5061 = vmatpush.bf16.msra.mxu0 %v4794
        %5062 = vmatmul.bf16.gmra.mxu0 %v4230
        %v5063 = vpop.f32.mrf.mxu0
        %v5064 = vadd.f32 %v5046, %v5063
        %v5065 = vpop.f32.mrf.mxu0
        %v5066 = vadd.f32 %v5048, %v5065
        %5067 = vmatmul.bf16.gmra.mxu0 %v4238
        %v5068 = vpop.f32.mrf.mxu0
        %v5069 = vadd.f32 %v5051, %v5068
        %v5070 = vpop.f32.mrf.mxu0
        %5071 = vdwg.mxu0
        %5072 = vmatpush.bf16.msra.mxu0 %v4824
        %5073 = vmatpush.bf16.msra.mxu0 %v4822
        %5074 = vmatpush.bf16.msra.mxu0 %v4820
        %5075 = vmatpush.bf16.msra.mxu0 %v4818
        %5076 = vmatpush.bf16.msra.mxu0 %v4816
        %5077 = vmatpush.bf16.msra.mxu0 %v4814
        %5078 = vmatpush.bf16.msra.mxu0 %v4812
        %5079 = vmatpush.bf16.msra.mxu0 %v4810
        %5080 = vmatmul.bf16.gmra.mxu0 %v4231
        %v5081 = vpop.f32.mrf.mxu0
        %v5082 = vadd.f32 %v5064, %v5081
        %v5083 = vpop.f32.mrf.mxu0
        %v5084 = vadd.f32 %v5066, %v5083
        %5085 = vmatmul.bf16.gmra.mxu0 %v4239
        %v5086 = vpop.f32.mrf.mxu0
        %v5087 = vadd.f32 %v5069, %v5086
        %v5088 = vpop.f32.mrf.mxu0
        %5089 = vdwg.mxu0
        %5090 = vmatpush.bf16.msra.mxu0 %v4840
        %5091 = vmatpush.bf16.msra.mxu0 %v4838
        %5092 = vmatpush.bf16.msra.mxu0 %v4836
        %5093 = vmatpush.bf16.msra.mxu0 %v4834
        %5094 = vmatpush.bf16.msra.mxu0 %v4832
        %5095 = vmatpush.bf16.msra.mxu0 %v4830
        %5096 = vmatpush.bf16.msra.mxu0 %v4828
        %5097 = vmatpush.bf16.msra.mxu0 %v4826
        %5098 = vmatmul.bf16.gmra.mxu0 %v4232
        %v5099 = vpop.f32.mrf.mxu0
        %v5100 = vadd.f32 %v5082, %v5099
        %v5101 = vpop.f32.mrf.mxu0
        %v5102 = vadd.f32 %v5084, %v5101
        %5103 = vmatmul.bf16.gmra.mxu0 %v4240
        %v5104 = vpop.f32.mrf.mxu0
        %v5105 = vadd.f32 %v5087, %v5104
        %v5106 = vpop.f32.mrf.mxu0
        %5107 = vdwg.mxu0
        %5108 = vmatpush.bf16.msra.mxu0 %v4856
        %5109 = vmatpush.bf16.msra.mxu0 %v4854
        %5110 = vmatpush.bf16.msra.mxu0 %v4852
        %5111 = vmatpush.bf16.msra.mxu0 %v4850
        %5112 = vmatpush.bf16.msra.mxu0 %v4848
        %5113 = vmatpush.bf16.msra.mxu0 %v4846
        %5114 = vmatpush.bf16.msra.mxu0 %v4844
        %5115 = vmatpush.bf16.msra.mxu0 %v4842
        %5116 = vmatmul.bf16.gmra.mxu0 %v4233
        %v5117 = vpop.f32.mrf.mxu0
        %v5118 = vadd.f32 %v5100, %v5117
        %v5119 = vpop.f32.mrf.mxu0
        %v5120 = vadd.f32 %v5102, %v5119
        %5121 = vmatmul.bf16.gmra.mxu0 %v4241
        %v5122 = vpop.f32.mrf.mxu0
        %v5123 = vadd.f32 %v5105, %v5122
        %v5124 = vpop.f32.mrf.mxu0
        %5125 = vdwg.mxu0
        %5126 = vmatpush.bf16.msra.mxu0 %v4872
        %5127 = vmatpush.bf16.msra.mxu0 %v4870
        %5128 = vmatpush.bf16.msra.mxu0 %v4868
        %5129 = vmatpush.bf16.msra.mxu0 %v4866
        %5130 = vmatpush.bf16.msra.mxu0 %v4864
        %5131 = vmatpush.bf16.msra.mxu0 %v4862
        %5132 = vmatpush.bf16.msra.mxu0 %v4860
        %5133 = vmatpush.bf16.msra.mxu0 %v4858
        %5134 = vmatmul.bf16.gmra.mxu0 %v4234
        %v5135 = vpop.f32.mrf.mxu0
        %v5136 = vadd.f32 %v5118, %v5135
        %v5137 = vpop.f32.mrf.mxu0
        %v5138 = vadd.f32 %v5120, %v5137
        %5139 = vmatmul.bf16.gmra.mxu0 %v4242
        %v5140 = vpop.f32.mrf.mxu0
        %v5141 = vadd.f32 %v5123, %v5140
        %v5142 = vpop.f32.mrf.mxu0
        %5143 = vdwg.mxu0
        %5144 = vmatpush.bf16.msra.mxu0 %v4888
        %5145 = vmatpush.bf16.msra.mxu0 %v4886
        %5146 = vmatpush.bf16.msra.mxu0 %v4884
        %5147 = vmatpush.bf16.msra.mxu0 %v4882
        %5148 = vmatpush.bf16.msra.mxu0 %v4880
        %5149 = vmatpush.bf16.msra.mxu0 %v4878
        %5150 = vmatpush.bf16.msra.mxu0 %v4876
        %5151 = vmatpush.bf16.msra.mxu0 %v4874
        %5152 = vmatmul.bf16.gmra.mxu0 %v4235
        %v5153 = vpop.f32.mrf.mxu0
        %v5154 = vadd.f32 %v5136, %v5153
        %v5155 = vpop.f32.mrf.mxu0
        %v5156 = vadd.f32 %v5138, %v5155
        %5157 = vmatmul.bf16.gmra.mxu0 %v4243
        %v5158 = vpop.f32.mrf.mxu0
        %v5159 = vadd.f32 %v5141, %v5158
        %v5160 = vpop.f32.mrf.mxu0
        %5161 = vdwg.mxu0
        %5162 = vmatpush.bf16.msra.mxu0 %v4777
        %5163 = vmatpush.bf16.msra.mxu0 %v4775
        %5164 = vmatpush.bf16.msra.mxu0 %v4773
        %5165 = vmatpush.bf16.msra.mxu0 %v4771
        %5166 = vmatpush.bf16.msra.mxu0 %v4769
        %5167 = vmatpush.bf16.msra.mxu0 %v4767
        %5168 = vmatpush.bf16.msra.mxu0 %v4765
        %5169 = vmatpush.bf16.msra.mxu0 %v4763
        %5170 = vmatmul.bf16.gmra.mxu0 %v4228
        %v5171 = vpop.f32.mrf.mxu0
        %v5172 = vadd.f32 %v4375, %v5171
        %v5173 = vpop.f32.mrf.mxu0
        %v5174 = vadd.f32 %v4375, %v5173
        %5175 = vmatmul.bf16.gmra.mxu0 %v4236
        %v5176 = vpop.f32.mrf.mxu0
        %v5177 = vadd.f32 %v4375, %v5176
        %v5178 = vpop.f32.mrf.mxu0
        %5179 = vdwg.mxu0
        %5180 = vmatpush.bf16.msra.mxu0 %v4793
        %5181 = vmatpush.bf16.msra.mxu0 %v4791
        %5182 = vmatpush.bf16.msra.mxu0 %v4789
        %5183 = vmatpush.bf16.msra.mxu0 %v4787
        %5184 = vmatpush.bf16.msra.mxu0 %v4785
        %5185 = vmatpush.bf16.msra.mxu0 %v4783
        %5186 = vmatpush.bf16.msra.mxu0 %v4781
        %5187 = vmatpush.bf16.msra.mxu0 %v4779
        %5188 = vmatmul.bf16.gmra.mxu0 %v4229
        %v5189 = vpop.f32.mrf.mxu0
        %v5190 = vadd.f32 %v5172, %v5189
        %v5191 = vpop.f32.mrf.mxu0
        %v5192 = vadd.f32 %v5174, %v5191
        %5193 = vmatmul.bf16.gmra.mxu0 %v4237
        %v5194 = vpop.f32.mrf.mxu0
        %v5195 = vadd.f32 %v5177, %v5194
        %v5196 = vpop.f32.mrf.mxu0
        %5197 = vdwg.mxu0
        %5198 = vmatpush.bf16.msra.mxu0 %v4809
        %5199 = vmatpush.bf16.msra.mxu0 %v4807
        %5200 = vmatpush.bf16.msra.mxu0 %v4805
        %5201 = vmatpush.bf16.msra.mxu0 %v4803
        %5202 = vmatpush.bf16.msra.mxu0 %v4801
        %5203 = vmatpush.bf16.msra.mxu0 %v4799
        %5204 = vmatpush.bf16.msra.mxu0 %v4797
        %5205 = vmatpush.bf16.msra.mxu0 %v4795
        %5206 = vmatmul.bf16.gmra.mxu0 %v4230
        %v5207 = vpop.f32.mrf.mxu0
        %v5208 = vadd.f32 %v5190, %v5207
        %v5209 = vpop.f32.mrf.mxu0
        %v5210 = vadd.f32 %v5192, %v5209
        %5211 = vmatmul.bf16.gmra.mxu0 %v4238
        %v5212 = vpop.f32.mrf.mxu0
        %v5213 = vadd.f32 %v5195, %v5212
        %v5214 = vpop.f32.mrf.mxu0
        %5215 = vdwg.mxu0
        %5216 = vmatpush.bf16.msra.mxu0 %v4825
        %5217 = vmatpush.bf16.msra.mxu0 %v4823
        %5218 = vmatpush.bf16.msra.mxu0 %v4821
        %5219 = vmatpush.bf16.msra.mxu0 %v4819
        %5220 = vmatpush.bf16.msra.mxu0 %v4817
        %5221 = vmatpush.bf16.msra.mxu0 %v4815
        %5222 = vmatpush.bf16.msra.mxu0 %v4813
        %5223 = vmatpush.bf16.msra.mxu0 %v4811
        %5224 = vmatmul.bf16.gmra.mxu0 %v4231
        %v5225 = vpop.f32.mrf.mxu0
        %v5226 = vadd.f32 %v5208, %v5225
        %v5227 = vpop.f32.mrf.mxu0
        %v5228 = vadd.f32 %v5210, %v5227
        %5229 = vmatmul.bf16.gmra.mxu0 %v4239
        %v5230 = vpop.f32.mrf.mxu0
        %v5231 = vadd.f32 %v5213, %v5230
        %v5232 = vpop.f32.mrf.mxu0
        %5233 = vdwg.mxu0
        %5234 = vmatpush.bf16.msra.mxu0 %v4841
        %5235 = vmatpush.bf16.msra.mxu0 %v4839
        %5236 = vmatpush.bf16.msra.mxu0 %v4837
        %5237 = vmatpush.bf16.msra.mxu0 %v4835
        %5238 = vmatpush.bf16.msra.mxu0 %v4833
        %5239 = vmatpush.bf16.msra.mxu0 %v4831
        %5240 = vmatpush.bf16.msra.mxu0 %v4829
        %5241 = vmatpush.bf16.msra.mxu0 %v4827
        %5242 = vmatmul.bf16.gmra.mxu0 %v4232
        %v5243 = vpop.f32.mrf.mxu0
        %v5244 = vadd.f32 %v5226, %v5243
        %v5245 = vpop.f32.mrf.mxu0
        %v5246 = vadd.f32 %v5228, %v5245
        %5247 = vmatmul.bf16.gmra.mxu0 %v4240
        %v5248 = vpop.f32.mrf.mxu0
        %v5249 = vadd.f32 %v5231, %v5248
        %v5250 = vpop.f32.mrf.mxu0
        %5251 = vdwg.mxu0
        %5252 = vmatpush.bf16.msra.mxu0 %v4857
        %5253 = vmatpush.bf16.msra.mxu0 %v4855
        %5254 = vmatpush.bf16.msra.mxu0 %v4853
        %5255 = vmatpush.bf16.msra.mxu0 %v4851
        %5256 = vmatpush.bf16.msra.mxu0 %v4849
        %5257 = vmatpush.bf16.msra.mxu0 %v4847
        %5258 = vmatpush.bf16.msra.mxu0 %v4845
        %5259 = vmatpush.bf16.msra.mxu0 %v4843
        %5260 = vmatmul.bf16.gmra.mxu0 %v4233
        %v5261 = vpop.f32.mrf.mxu0
        %v5262 = vadd.f32 %v5244, %v5261
        %v5263 = vpop.f32.mrf.mxu0
        %v5264 = vadd.f32 %v5246, %v5263
        %5265 = vmatmul.bf16.gmra.mxu0 %v4241
        %v5266 = vpop.f32.mrf.mxu0
        %v5267 = vadd.f32 %v5249, %v5266
        %v5268 = vpop.f32.mrf.mxu0
        %5269 = vdwg.mxu0
        %5270 = vmatpush.bf16.msra.mxu0 %v4873
        %5271 = vmatpush.bf16.msra.mxu0 %v4871
        %5272 = vmatpush.bf16.msra.mxu0 %v4869
        %5273 = vmatpush.bf16.msra.mxu0 %v4867
        %5274 = vmatpush.bf16.msra.mxu0 %v4865
        %5275 = vmatpush.bf16.msra.mxu0 %v4863
        %5276 = vmatpush.bf16.msra.mxu0 %v4861
        %5277 = vmatpush.bf16.msra.mxu0 %v4859
        %5278 = vmatmul.bf16.gmra.mxu0 %v4234
        %v5279 = vpop.f32.mrf.mxu0
        %v5280 = vadd.f32 %v5262, %v5279
        %v5281 = vpop.f32.mrf.mxu0
        %v5282 = vadd.f32 %v5264, %v5281
        %5283 = vmatmul.bf16.gmra.mxu0 %v4242
        %v5284 = vpop.f32.mrf.mxu0
        %v5285 = vadd.f32 %v5267, %v5284
        %v5286 = vpop.f32.mrf.mxu0
        %5287 = vdwg.mxu0
        %5288 = vmatpush.bf16.msra.mxu0 %v4889
        %5289 = vmatpush.bf16.msra.mxu0 %v4887
        %5290 = vmatpush.bf16.msra.mxu0 %v4885
        %5291 = vmatpush.bf16.msra.mxu0 %v4883
        %5292 = vmatpush.bf16.msra.mxu0 %v4881
        %5293 = vmatpush.bf16.msra.mxu0 %v4879
        %5294 = vmatpush.bf16.msra.mxu0 %v4877
        %5295 = vmatpush.bf16.msra.mxu0 %v4875
        %5296 = vmatmul.bf16.gmra.mxu0 %v4235
        %v5297 = vpop.f32.mrf.mxu0
        %v5298 = vadd.f32 %v5280, %v5297
        %v5299 = vpop.f32.mrf.mxu0
        %v5300 = vadd.f32 %v5282, %v5299
        %5301 = vmatmul.bf16.gmra.mxu0 %v4243
        %v5302 = vpop.f32.mrf.mxu0
        %v5303 = vadd.f32 %v5285, %v5302
        %v5304 = vpop.f32.mrf.mxu0
        %5305 = vdwg.mxu0
        %v5306 = vadd.f32 %v3120, %v5154
        %v5307 = vadd.f32 %v3121, %v5298
        %v5308 = vadd.f32 %v3122, %v5156
        %v5309 = vadd.f32 %v3123, %v5300
        %v5310 = vadd.f32 %v3124, %v5159
        %v5311 = vadd.f32 %v3125, %v5303
        %5312 = vst [vmem:[#allocation2] sm:$0xff] %v5306
        %5313 = vst [vmem:[#allocation2 + $0x8] sm:$0xff] %v5307
        %5314 = vst [vmem:[#allocation2 + $0x10] sm:$0xff] %v5308
        %5315 = vst [vmem:[#allocation2 + $0x18] sm:$0xff] %v5309
        %5316 = vst [vmem:[#allocation2 + $0x20] sm:$0x3] %v5310
        %5317 = vst [vmem:[#allocation2 + $0x28] sm:$0x3] %v5311
        %5318 = vst [vmem:[%s13] sm:$0xff] %v5306
        %5319 = vst [vmem:[%s13 + $0x8] sm:$0xff] %v5307
        %5320 = vst [vmem:[%s13 + $0x10] sm:$0xff] %v5308
        %5321 = vst [vmem:[%s13 + $0x18] sm:$0xff] %v5309
        %5322 = vst [vmem:[%s13 + $0x20] sm:$0x3] %v5310
        %5323 = vst [vmem:[%s13 + $0x28] sm:$0x3] %v5311
        // Predicated region
        $region121: #{forward_pallas.2} parent=71 // pred_check
          %p5324 = pneg %p364
        $region122: #{forward_pallas.2} parent=71 // pred_check_branch
          %5326 = sbr.rel (%p5324) target = $region124
        $region123: #{forward_pallas.2} parent=71 // pred_region
          _
        $region124: #{forward_pallas.2} parent=71 // pred_fallthru
          _
        // Predicated region
        $region125: #{forward_pallas.2} parent=71 // pred_check
          %p5327 = pneg %p364
        $region126: #{forward_pallas.2} parent=71 // pred_check_branch
          %5329 = sbr.rel (%p5327) target = $region128
        $region127: #{forward_pallas.2} parent=71 // pred_region
          _
        $region128: #{forward_pallas.2} parent=71 // pred_fallthru
          _
      $region72: #{forward_pallas.2} parent=5 // pred_fallthru
        _
      %p5330 = scmp.le.s32.totalorder 2, %s33
      // Predicated region
      $region129: #{forward_pallas.2} parent=5 // pred_check
        %p5331 = pneg %p5330
      $region130: #{forward_pallas.2} parent=5 // pred_check_branch
        %5333 = sbr.rel (%p5331) target = $region132
      $region131: #{forward_pallas.2} parent=5 // pred_region
        %s5334 = ssub.s32 %s33, 2
      $region132: #{forward_pallas.2} parent=5 // pred_fallthru
        _
    $region6: #{forward_pallas.2} parent=1 // loop_footer
      %s37 = sadd.s32 1, %s33
    $region7: #{forward_pallas.2} parent=1 // loop_footer_branch
      %32 = sbr.rel target = $region3
    $region8: #{forward_pallas.2} parent=1 // loop_exit
      _
    %5335 = vsyncpa [#allocation4], 1
    %s5336 = scalar_lea.sflag [#allocation4], 1
    %5337 = vsyncpa %s5336, 1
    %5338 = vsyncpa [#allocation6], 1
    %5339 = vsyncpa [#allocation9], 1
    %s5340 = scalar_lea.sflag [#allocation9], 1
    %5341 = vsyncpa %s5340, 1
    %5342 = vsyncpa [#allocation12], 1
    %s5343 = scalar_lea.sflag [#allocation12], 1
    %5344 = vsyncpa %s5343, 1
    %5345 = vsyncpa [#allocation15], 1
    %s5346 = scalar_lea.sflag [#allocation15], 1
    %5347 = vsyncpa %s5346, 1
    %5348 = vsyncpa [#allocation18], 1
    %s5349 = scalar_lea.sflag [#allocation18], 1
    %5350 = vsyncpa %s5349, 1

// kernel: forward_pallas.3
$region0: #{forward_pallas.3}
  #allocation0 [shape = 'u32[]', space=smem, size = 0x4, offset = 0x4, fixed_abs, tag = 'smem constant byte address 0x4 - core index']
  #allocation1 [shape = 'u32[72,128]{1,0:T(1,128)}', space=vmem, size = 0x9000, scoped, tag = 'internal scratch']
  %s0 = inlined_call_operand.vmem [shape: f32[18,256], index: 0, kind: input, shape index: {}]
  %s1 = inlined_call_operand.vmem [shape: f32[2,18], index: 1, kind: input, shape index: {}]
  %s2 = inlined_call_operand.hbm [shape: bf16[256,768], index: 2, kind: input, shape index: {}]
  %s3 = inlined_call_operand.hbm [shape: f32[1,768], index: 3, kind: input, shape index: {}]
  %s4 = inlined_call_operand.hbm [shape: bf16[256,256], index: 4, kind: input, shape index: {}]
  %s5 = inlined_call_operand.hbm [shape: f32[1,256], index: 5, kind: input, shape index: {}]
  %s6 = inlined_call_operand.hbm [shape: bf16[256,1024], index: 6, kind: input, shape index: {}]
  %s7 = inlined_call_operand.hbm [shape: f32[1,1024], index: 7, kind: input, shape index: {}]
  %s8 = inlined_call_operand.hbm [shape: bf16[1024,256], index: 8, kind: input, shape index: {}]
  %s9 = inlined_call_operand.hbm [shape: f32[1,256], index: 9, kind: input, shape index: {}]
  %s10 = inlined_call_operand.vmem [shape: bf16[256,288], index: 10, kind: input, shape index: {}]
  %s11 = inlined_call_operand.hbm [shape: f32[1,288], index: 11, kind: input, shape index: {}]
  %s12 = inlined_call_operand.hbm [shape: f32[2,288], index: 12, kind: output, shape index: {}]
  %s13 = sld [smem:[#allocation0]]
  $region94: #{forward_pallas.3} parent=0
    _
  %s15 = ssub.s32 1, %s13
  %s16 = scalar_select 0, %s15, %s13
  $region1: #{forward_pallas.3} parent=0
    #allocation2 [shape = 'u8[393216]{0}', space=vmem, size = 0x60000, scoped, tag = 'input window, operand 2, single buffered']
    #allocation3 [shape = 's32[1]{0}', space=sflag, size = 0x4, scoped, tag = 'scoped memory for forward_pallas.3']
    #allocation4 [shape = 's32[1]{0}', space=sflag, size = 0x4, scoped, tag = 'scoped memory for forward_pallas.3']
    #allocation5 [shape = 'u8[3072]{0}', space=vmem, size = 0xc00, scoped, tag = 'input window, operand 3, single buffered']
    #allocation6 [shape = 's32[1]{0}', space=sflag, size = 0x4, scoped, tag = 'scoped memory for forward_pallas.3']
    #allocation7 [shape = 'u8[131072]{0}', space=vmem, size = 0x20000, scoped, tag = 'input window, operand 4, single buffered']
    #allocation8 [shape = 'u8[1024]{0}', space=vmem, size = 0x400, scoped, tag = 'input window, operand 5, single buffered']
    #allocation9 [shape = 's32[1]{0}', space=sflag, size = 0x4, scoped, tag = 'scoped memory for forward_pallas.3']
    #allocation10 [shape = 'u8[524288]{0}', space=vmem, size = 0x80000, scoped, tag = 'input window, operand 6, single buffered']
    #allocation11 [shape = 'u8[4096]{0}', space=vmem, size = 0x1000, scoped, tag = 'input window, operand 7, single buffered']
    #allocation12 [shape = 's32[1]{0}', space=sflag, size = 0x4, scoped, tag = 'scoped memory for forward_pallas.3']
    #allocation13 [shape = 'u8[524288]{0}', space=vmem, size = 0x80000, scoped, tag = 'input window, operand 8, single buffered']
    #allocation14 [shape = 'u8[1024]{0}', space=vmem, size = 0x400, scoped, tag = 'input window, operand 9, single buffered']
    #allocation15 [shape = 's32[1]{0}', space=sflag, size = 0x4, scoped, tag = 'scoped memory for forward_pallas.3']
    #allocation16 [shape = 'u8[1536]{0}', space=vmem, size = 0x800, scoped, tag = 'input window, operand 11, single buffered']
    #allocation17 [shape = 'u8[3072]{0}', space=vmem, size = 0xc00, scoped, tag = 'output window, operand 0, single buffered']
    %17 = vsyncpa [#allocation3], 0
    %18 = vsyncpa [#allocation6], 0
    %19 = vsyncpa [#allocation9], 0
    %20 = vsyncpa [#allocation12], 0
    %21 = vsyncpa [#allocation15], 0
    %22 = vsyncpa [#allocation4], 0
    // Predicated region
    $region2: #{forward_pallas.3} parent=1 // pred_check
      _
    $region3: #{forward_pallas.3} parent=1 // pred_check_branch
      %24 = sbr.rel (0) target = $region5
    $region4: #{forward_pallas.3} parent=1 // pred_region
      _
    $region5: #{forward_pallas.3} parent=1 // pred_fallthru
      _
    // Predicated region
    $region6: #{forward_pallas.3} parent=1 // pred_check
      _
    $region7: #{forward_pallas.3} parent=1 // pred_check_branch
      %26 = sbr.rel (0) target = $region9
    $region8: #{forward_pallas.3} parent=1 // pred_region
      _
    $region9: #{forward_pallas.3} parent=1 // pred_fallthru
      _
    // Predicated region
    $region10: #{forward_pallas.3} parent=1 // pred_check
      _
    $region11: #{forward_pallas.3} parent=1 // pred_check_branch
      %28 = sbr.rel (0) target = $region13
    $region12: #{forward_pallas.3} parent=1 // pred_region
      %30 = vsyncadd [#allocation3], 0
      %s31 = sshll.u32 %s2, 4
      %s32 = int_to_ptr.hbm [resolvable:$true] %s31
      %s33 = sshll.u32 [#allocation2], 4
      %s34 = int_to_ptr.vmem [resolvable:$true] %s33
      %39 = dma.hbm_to_vmem [thread:$0]  %s32, 12288, %s34, [#allocation3], 384, 384, 24
    $region13: #{forward_pallas.3} parent=1 // pred_fallthru
      _
    // Predicated region
    $region14: #{forward_pallas.3} parent=1 // pred_check
      _
    $region15: #{forward_pallas.3} parent=1 // pred_check_branch
      %41 = sbr.rel (0) target = $region17
    $region16: #{forward_pallas.3} parent=1 // pred_region
      %43 = vsyncadd [#allocation6], 0
      %s45 = sshll.u32 %s3, 4
      %s46 = int_to_ptr.hbm [resolvable:$true] %s45
      %s47 = sshll.u32 [#allocation5], 4
      %s48 = int_to_ptr.vmem [resolvable:$true] %s47
      %50 = dma.hbm_to_vmem [thread:$0]  %s46, 96, %s48, [#allocation6]
    $region17: #{forward_pallas.3} parent=1 // pred_fallthru
      _
    // Predicated region
    $region18: #{forward_pallas.3} parent=1 // pred_check
      _
    $region19: #{forward_pallas.3} parent=1 // pred_check_branch
      %52 = sbr.rel (0) target = $region21
    $region20: #{forward_pallas.3} parent=1 // pred_region
      %54 = vsyncadd [#allocation6], 0
      %s55 = sshll.u32 %s4, 4
      %s56 = int_to_ptr.hbm [resolvable:$true] %s55
      %s57 = sshll.u32 [#allocation7], 4
      %s58 = int_to_ptr.vmem [resolvable:$true] %s57
      %63 = dma.hbm_to_vmem [thread:$0]  %s56, 4096, %s58, [#allocation6], 128, 128, 8
    $region21: #{forward_pallas.3} parent=1 // pred_fallthru
      _
    // Predicated region
    $region22: #{forward_pallas.3} parent=1 // pred_check
      _
    $region23: #{forward_pallas.3} parent=1 // pred_check_branch
      %65 = sbr.rel (0) target = $region25
    $region24: #{forward_pallas.3} parent=1 // pred_region
      %67 = vsyncadd [#allocation9], 0
      %s69 = sshll.u32 %s5, 4
      %s70 = int_to_ptr.hbm [resolvable:$true] %s69
      %s71 = sshll.u32 [#allocation8], 4
      %s72 = int_to_ptr.vmem [resolvable:$true] %s71
      %74 = dma.hbm_to_vmem [thread:$0]  %s70, 32, %s72, [#allocation9]
    $region25: #{forward_pallas.3} parent=1 // pred_fallthru
      _
    // Predicated region
    $region26: #{forward_pallas.3} parent=1 // pred_check
      _
    $region27: #{forward_pallas.3} parent=1 // pred_check_branch
      %76 = sbr.rel (0) target = $region29
    $region28: #{forward_pallas.3} parent=1 // pred_region
      %78 = vsyncadd [#allocation9], 0
      %s79 = sshll.u32 %s6, 4
      %s80 = int_to_ptr.hbm [resolvable:$true] %s79
      %s81 = sshll.u32 [#allocation10], 4
      %s82 = int_to_ptr.vmem [resolvable:$true] %s81
      %87 = dma.hbm_to_vmem [thread:$0]  %s80, 16384, %s82, [#allocation9], 512, 512, 32
    $region29: #{forward_pallas.3} parent=1 // pred_fallthru
      _
    // Predicated region
    $region30: #{forward_pallas.3} parent=1 // pred_check
      _
    $region31: #{forward_pallas.3} parent=1 // pred_check_branch
      %89 = sbr.rel (0) target = $region33
    $region32: #{forward_pallas.3} parent=1 // pred_region
      %91 = vsyncadd [#allocation12], 0
      %s93 = sshll.u32 %s7, 4
      %s94 = int_to_ptr.hbm [resolvable:$true] %s93
      %s95 = sshll.u32 [#allocation11], 4
      %s96 = int_to_ptr.vmem [resolvable:$true] %s95
      %98 = dma.hbm_to_vmem [thread:$0]  %s94, 128, %s96, [#allocation12]
    $region33: #{forward_pallas.3} parent=1 // pred_fallthru
      _
    // Predicated region
    $region34: #{forward_pallas.3} parent=1 // pred_check
      _
    $region35: #{forward_pallas.3} parent=1 // pred_check_branch
      %100 = sbr.rel (0) target = $region37
    $region36: #{forward_pallas.3} parent=1 // pred_region
      %102 = vsyncadd [#allocation12], 0
      %s103 = sshll.u32 %s8, 4
      %s104 = int_to_ptr.hbm [resolvable:$true] %s103
      %s105 = sshll.u32 [#allocation13], 4
      %s106 = int_to_ptr.vmem [resolvable:$true] %s105
      %111 = dma.hbm_to_vmem [thread:$0]  %s104, 16384, %s106, [#allocation12], 128, 128, 8
    $region37: #{forward_pallas.3} parent=1 // pred_fallthru
      _
    // Predicated region
    $region38: #{forward_pallas.3} parent=1 // pred_check
      _
    $region39: #{forward_pallas.3} parent=1 // pred_check_branch
      %113 = sbr.rel (0) target = $region41
    $region40: #{forward_pallas.3} parent=1 // pred_region
      %115 = vsyncadd [#allocation15], 0
      %s117 = sshll.u32 %s9, 4
      %s118 = int_to_ptr.hbm [resolvable:$true] %s117
      %s119 = sshll.u32 [#allocation14], 4
      %s120 = int_to_ptr.vmem [resolvable:$true] %s119
      %122 = dma.hbm_to_vmem [thread:$0]  %s118, 32, %s120, [#allocation15]
    $region41: #{forward_pallas.3} parent=1 // pred_fallthru
      _
    // Predicated region
    $region42: #{forward_pallas.3} parent=1 // pred_check
      _
    $region43: #{forward_pallas.3} parent=1 // pred_check_branch
      %124 = sbr.rel (0) target = $region45
    $region44: #{forward_pallas.3} parent=1 // pred_region
      _
    $region45: #{forward_pallas.3} parent=1 // pred_fallthru
      _
    // Predicated region
    $region46: #{forward_pallas.3} parent=1 // pred_check
      _
    $region47: #{forward_pallas.3} parent=1 // pred_check_branch
      %126 = sbr.rel (0) target = $region49
    $region48: #{forward_pallas.3} parent=1 // pred_region
      %128 = vsyncadd [#allocation15], 0
      %s130 = sshll.u32 %s11, 4
      %s131 = int_to_ptr.hbm [resolvable:$true] %s130
      %s132 = sshll.u32 [#allocation16], 4
      %s133 = int_to_ptr.vmem [resolvable:$true] %s132
      %135 = dma.hbm_to_vmem [thread:$0]  %s131, 48, %s133, [#allocation15]
    $region49: #{forward_pallas.3} parent=1 // pred_fallthru
      _
    // Predicated region
    $region50: #{forward_pallas.3} parent=1 // pred_check
      _
    $region51: #{forward_pallas.3} parent=1 // pred_check_branch
      %137 = sbr.rel (0) target = $region53
    $region52: #{forward_pallas.3} parent=1 // pred_region
      %139 = dma.done [#allocation3], 12288
    $region53: #{forward_pallas.3} parent=1 // pred_fallthru
      _
    // Predicated region
    $region54: #{forward_pallas.3} parent=1 // pred_check
      _
    $region55: #{forward_pallas.3} parent=1 // pred_check_branch
      %141 = sbr.rel (0) target = $region57
    $region56: #{forward_pallas.3} parent=1 // pred_region
      %143 = dma.done [#allocation6], 96
    $region57: #{forward_pallas.3} parent=1 // pred_fallthru
      _
    // Predicated region
    $region58: #{forward_pallas.3} parent=1 // pred_check
      _
    $region59: #{forward_pallas.3} parent=1 // pred_check_branch
      %145 = sbr.rel (0) target = $region61
    $region60: #{forward_pallas.3} parent=1 // pred_region
      %147 = dma.done [#allocation6], 4096
    $region61: #{forward_pallas.3} parent=1 // pred_fallthru
      _
    // Predicated region
    $region62: #{forward_pallas.3} parent=1 // pred_check
      _
    $region63: #{forward_pallas.3} parent=1 // pred_check_branch
      %149 = sbr.rel (0) target = $region65
    $region64: #{forward_pallas.3} parent=1 // pred_region
      %151 = dma.done [#allocation9], 32
    $region65: #{forward_pallas.3} parent=1 // pred_fallthru
      _
    // Predicated region
    $region66: #{forward_pallas.3} parent=1 // pred_check
      _
    $region67: #{forward_pallas.3} parent=1 // pred_check_branch
      %153 = sbr.rel (0) target = $region69
    $region68: #{forward_pallas.3} parent=1 // pred_region
      %155 = dma.done [#allocation9], 16384
    $region69: #{forward_pallas.3} parent=1 // pred_fallthru
      _
    // Predicated region
    $region70: #{forward_pallas.3} parent=1 // pred_check
      _
    $region71: #{forward_pallas.3} parent=1 // pred_check_branch
      %157 = sbr.rel (0) target = $region73
    $region72: #{forward_pallas.3} parent=1 // pred_region
      %159 = dma.done [#allocation12], 128
    $region73: #{forward_pallas.3} parent=1 // pred_fallthru
      _
    // Predicated region
    $region74: #{forward_pallas.3} parent=1 // pred_check
      _
    $region75: #{forward_pallas.3} parent=1 // pred_check_branch
      %161 = sbr.rel (0) target = $region77
    $region76: #{forward_pallas.3} parent=1 // pred_region
      %163 = dma.done [#allocation12], 16384
    $region77: #{forward_pallas.3} parent=1 // pred_fallthru
      _
    // Predicated region
    $region78: #{forward_pallas.3} parent=1 // pred_check
      _
    $region79: #{forward_pallas.3} parent=1 // pred_check_branch
      %165 = sbr.rel (0) target = $region81
    $region80: #{forward_pallas.3} parent=1 // pred_region
      %167 = dma.done [#allocation15], 32
    $region81: #{forward_pallas.3} parent=1 // pred_fallthru
      _
    // Predicated region
    $region82: #{forward_pallas.3} parent=1 // pred_check
      _
    $region83: #{forward_pallas.3} parent=1 // pred_check_branch
      %169 = sbr.rel (0) target = $region85
    $region84: #{forward_pallas.3} parent=1 // pred_region
      %171 = dma.done [#allocation15], 48
    $region85: #{forward_pallas.3} parent=1 // pred_fallthru
      _
    %v173 = vld [vmem:[%s0] sm:$0xff]
    %v174 = vld [vmem:[%s0 + $0x8] sm:$0xff]
    %v175 = vld [vmem:[%s0 + $0x10] sm:$0xff]
    %v176 = vld [vmem:[%s0 + $0x18] sm:$0xff]
    %v177 = vld [vmem:[%s0 + $0x20] sm:$0x3]
    %v178 = vld [vmem:[%s0 + $0x28] sm:$0x3]
    %v179 = vpack.c.bf16 %v175, %v173
    %v180 = vpack.c.bf16 %v176, %v174
    %v181 = vpack.c.bf16 %v177, %v177
    %v182 = vpack.c.bf16 %v178, %v178
    %v183 = vld [vmem:[#allocation2] sm:$0xff]
    %v184 = vld [vmem:[#allocation2 + $0x8] sm:$0xff]
    %v185 = vld [vmem:[#allocation2 + $0x10] sm:$0xff]
    %v186 = vld [vmem:[#allocation2 + $0x18] sm:$0xff]
    %v187 = vld [vmem:[#allocation2 + $0x20] sm:$0xff]
    %v188 = vld [vmem:[#allocation2 + $0x28] sm:$0xff]
    %v189 = vld [vmem:[#allocation2 + $0x30] sm:$0xff]
    %v190 = vld [vmem:[#allocation2 + $0x38] sm:$0xff]
    %v191 = vld [vmem:[#allocation2 + $0x40] sm:$0xff]
    %v192 = vld [vmem:[#allocation2 + $0x48] sm:$0xff]
    %v193 = vld [vmem:[#allocation2 + $0x50] sm:$0xff]
    %v194 = vld [vmem:[#allocation2 + $0x58] sm:$0xff]
    %v195 = vld [vmem:[#allocation2 + $0x60] sm:$0xff]
    %v196 = vld [vmem:[#allocation2 + $0x68] sm:$0xff]
    %v197 = vld [vmem:[#allocation2 + $0x70] sm:$0xff]
    %v198 = vld [vmem:[#allocation2 + $0x78] sm:$0xff]
    %v199 = vld [vmem:[#allocation2 + $0x80] sm:$0xff]
    %v200 = vld [vmem:[#allocation2 + $0x88] sm:$0xff]
    %v201 = vld [vmem:[#allocation2 + $0x90] sm:$0xff]
    %v202 = vld [vmem:[#allocation2 + $0x98] sm:$0xff]
    %v203 = vld [vmem:[#allocation2 + $0xa0] sm:$0xff]
    %v204 = vld [vmem:[#allocation2 + $0xa8] sm:$0xff]
    %v205 = vld [vmem:[#allocation2 + $0xb0] sm:$0xff]
    %v206 = vld [vmem:[#allocation2 + $0xb8] sm:$0xff]
    %v207 = vld [vmem:[#allocation2 + $0xc0] sm:$0xff]
    %v208 = vld [vmem:[#allocation2 + $0xc8] sm:$0xff]
    %v209 = vld [vmem:[#allocation2 + $0xd0] sm:$0xff]
    %v210 = vld [vmem:[#allocation2 + $0xd8] sm:$0xff]
    %v211 = vld [vmem:[#allocation2 + $0xe0] sm:$0xff]
    %v212 = vld [vmem:[#allocation2 + $0xe8] sm:$0xff]
    %v213 = vld [vmem:[#allocation2 + $0xf0] sm:$0xff]
    %v214 = vld [vmem:[#allocation2 + $0xf8] sm:$0xff]
    %v215 = vld [vmem:[#allocation2 + $0x100] sm:$0xff]
    %v216 = vld [vmem:[#allocation2 + $0x108] sm:$0xff]
    %v217 = vld [vmem:[#allocation2 + $0x110] sm:$0xff]
    %v218 = vld [vmem:[#allocation2 + $0x118] sm:$0xff]
    %v219 = vld [vmem:[#allocation2 + $0x120] sm:$0xff]
    %v220 = vld [vmem:[#allocation2 + $0x128] sm:$0xff]
    %v221 = vld [vmem:[#allocation2 + $0x130] sm:$0xff]
    %v222 = vld [vmem:[#allocation2 + $0x138] sm:$0xff]
    %v223 = vld [vmem:[#allocation2 + $0x140] sm:$0xff]
    %v224 = vld [vmem:[#allocation2 + $0x148] sm:$0xff]
    %v225 = vld [vmem:[#allocation2 + $0x150] sm:$0xff]
    %v226 = vld [vmem:[#allocation2 + $0x158] sm:$0xff]
    %v227 = vld [vmem:[#allocation2 + $0x160] sm:$0xff]
    %v228 = vld [vmem:[#allocation2 + $0x168] sm:$0xff]
    %v229 = vld [vmem:[#allocation2 + $0x170] sm:$0xff]
    %v230 = vld [vmem:[#allocation2 + $0x178] sm:$0xff]
    %v231 = vld [vmem:[#allocation2 + $0x180] sm:$0xff]
    %v232 = vld [vmem:[#allocation2 + $0x188] sm:$0xff]
    %v233 = vld [vmem:[#allocation2 + $0x190] sm:$0xff]
    %v234 = vld [vmem:[#allocation2 + $0x198] sm:$0xff]
    %v235 = vld [vmem:[#allocation2 + $0x1a0] sm:$0xff]
    %v236 = vld [vmem:[#allocation2 + $0x1a8] sm:$0xff]
    %v237 = vld [vmem:[#allocation2 + $0x1b0] sm:$0xff]
    %v238 = vld [vmem:[#allocation2 + $0x1b8] sm:$0xff]
    %v239 = vld [vmem:[#allocation2 + $0x1c0] sm:$0xff]
    %v240 = vld [vmem:[#allocation2 + $0x1c8] sm:$0xff]
    %v241 = vld [vmem:[#allocation2 + $0x1d0] sm:$0xff]
    %v242 = vld [vmem:[#allocation2 + $0x1d8] sm:$0xff]
    %v243 = vld [vmem:[#allocation2 + $0x1e0] sm:$0xff]
    %v244 = vld [vmem:[#allocation2 + $0x1e8] sm:$0xff]
    %v245 = vld [vmem:[#allocation2 + $0x1f0] sm:$0xff]
    %v246 = vld [vmem:[#allocation2 + $0x1f8] sm:$0xff]
    %v247 = vld [vmem:[#allocation2 + $0x200] sm:$0xff]
    %v248 = vld [vmem:[#allocation2 + $0x208] sm:$0xff]
    %v249 = vld [vmem:[#allocation2 + $0x210] sm:$0xff]
    %v250 = vld [vmem:[#allocation2 + $0x218] sm:$0xff]
    %v251 = vld [vmem:[#allocation2 + $0x220] sm:$0xff]
    %v252 = vld [vmem:[#allocation2 + $0x228] sm:$0xff]
    %v253 = vld [vmem:[#allocation2 + $0x230] sm:$0xff]
    %v254 = vld [vmem:[#allocation2 + $0x238] sm:$0xff]
    %v255 = vld [vmem:[#allocation2 + $0x240] sm:$0xff]
    %v256 = vld [vmem:[#allocation2 + $0x248] sm:$0xff]
    %v257 = vld [vmem:[#allocation2 + $0x250] sm:$0xff]
    %v258 = vld [vmem:[#allocation2 + $0x258] sm:$0xff]
    %v259 = vld [vmem:[#allocation2 + $0x260] sm:$0xff]
    %v260 = vld [vmem:[#allocation2 + $0x268] sm:$0xff]
    %v261 = vld [vmem:[#allocation2 + $0x270] sm:$0xff]
    %v262 = vld [vmem:[#allocation2 + $0x278] sm:$0xff]
    %v263 = vld [vmem:[#allocation2 + $0x280] sm:$0xff]
    %v264 = vld [vmem:[#allocation2 + $0x288] sm:$0xff]
    %v265 = vld [vmem:[#allocation2 + $0x290] sm:$0xff]
    %v266 = vld [vmem:[#allocation2 + $0x298] sm:$0xff]
    %v267 = vld [vmem:[#allocation2 + $0x2a0] sm:$0xff]
    %v268 = vld [vmem:[#allocation2 + $0x2a8] sm:$0xff]
    %v269 = vld [vmem:[#allocation2 + $0x2b0] sm:$0xff]
    %v270 = vld [vmem:[#allocation2 + $0x2b8] sm:$0xff]
    %v271 = vld [vmem:[#allocation2 + $0x2c0] sm:$0xff]
    %v272 = vld [vmem:[#allocation2 + $0x2c8] sm:$0xff]
    %v273 = vld [vmem:[#allocation2 + $0x2d0] sm:$0xff]
    %v274 = vld [vmem:[#allocation2 + $0x2d8] sm:$0xff]
    %v275 = vld [vmem:[#allocation2 + $0x2e0] sm:$0xff]
    %v276 = vld [vmem:[#allocation2 + $0x2e8] sm:$0xff]
    %v277 = vld [vmem:[#allocation2 + $0x2f0] sm:$0xff]
    %v278 = vld [vmem:[#allocation2 + $0x2f8] sm:$0xff]
    %v279 = vld [vmem:[#allocation5] sm:$0x3f]
    %v281 = vperm.slane %v279, 0
    %v282 = vperm.slane %v279, 1
    %v283 = vperm.slane %v279, 2
    %v284 = vperm.slane %v279, 3
    %v285 = vperm.slane %v279, 4
    %v286 = vperm.slane %v279, 5
    %v389 = vunpack.c.l.b16 %v183
    %v390 = vunpack.c.h.b16 %v183
    %v391 = vunpack.c.l.b16 %v184
    %v392 = vunpack.c.h.b16 %v184
    %v393 = vunpack.c.l.b16 %v185
    %v394 = vunpack.c.h.b16 %v185
    %v395 = vunpack.c.l.b16 %v186
    %v396 = vunpack.c.h.b16 %v186
    %v397 = vunpack.c.l.b16 %v187
    %v398 = vunpack.c.h.b16 %v187
    %v399 = vunpack.c.l.b16 %v188
    %v400 = vunpack.c.h.b16 %v188
    %v401 = vunpack.c.l.b16 %v189
    %v402 = vunpack.c.h.b16 %v189
    %v403 = vunpack.c.l.b16 %v190
    %v404 = vunpack.c.h.b16 %v190
    %v405 = vunpack.c.l.b16 %v191
    %v406 = vunpack.c.h.b16 %v191
    %v407 = vunpack.c.l.b16 %v192
    %v408 = vunpack.c.h.b16 %v192
    %v409 = vunpack.c.l.b16 %v193
    %v410 = vunpack.c.h.b16 %v193
    %v411 = vunpack.c.l.b16 %v194
    %v412 = vunpack.c.h.b16 %v194
    %v413 = vunpack.c.l.b16 %v195
    %v414 = vunpack.c.h.b16 %v195
    %v415 = vunpack.c.l.b16 %v196
    %v416 = vunpack.c.h.b16 %v196
    %v417 = vunpack.c.l.b16 %v197
    %v418 = vunpack.c.h.b16 %v197
    %v419 = vunpack.c.l.b16 %v198
    %v420 = vunpack.c.h.b16 %v198
    %v421 = vunpack.c.l.b16 %v199
    %v422 = vunpack.c.h.b16 %v199
    %v423 = vunpack.c.l.b16 %v200
    %v424 = vunpack.c.h.b16 %v200
    %v425 = vunpack.c.l.b16 %v201
    %v426 = vunpack.c.h.b16 %v201
    %v427 = vunpack.c.l.b16 %v202
    %v428 = vunpack.c.h.b16 %v202
    %v429 = vunpack.c.l.b16 %v203
    %v430 = vunpack.c.h.b16 %v203
    %v431 = vunpack.c.l.b16 %v204
    %v432 = vunpack.c.h.b16 %v204
    %v433 = vunpack.c.l.b16 %v205
    %v434 = vunpack.c.h.b16 %v205
    %v435 = vunpack.c.l.b16 %v206
    %v436 = vunpack.c.h.b16 %v206
    %v437 = vunpack.c.l.b16 %v207
    %v438 = vunpack.c.h.b16 %v207
    %v439 = vunpack.c.l.b16 %v208
    %v440 = vunpack.c.h.b16 %v208
    %v441 = vunpack.c.l.b16 %v209
    %v442 = vunpack.c.h.b16 %v209
    %v443 = vunpack.c.l.b16 %v210
    %v444 = vunpack.c.h.b16 %v210
    %v445 = vunpack.c.l.b16 %v211
    %v446 = vunpack.c.h.b16 %v211
    %v447 = vunpack.c.l.b16 %v212
    %v448 = vunpack.c.h.b16 %v212
    %v449 = vunpack.c.l.b16 %v213
    %v450 = vunpack.c.h.b16 %v213
    %v451 = vunpack.c.l.b16 %v214
    %v452 = vunpack.c.h.b16 %v214
    %v453 = vunpack.c.l.b16 %v215
    %v454 = vunpack.c.h.b16 %v215
    %v455 = vunpack.c.l.b16 %v216
    %v456 = vunpack.c.h.b16 %v216
    %v457 = vunpack.c.l.b16 %v217
    %v458 = vunpack.c.h.b16 %v217
    %v459 = vunpack.c.l.b16 %v218
    %v460 = vunpack.c.h.b16 %v218
    %v461 = vunpack.c.l.b16 %v219
    %v462 = vunpack.c.h.b16 %v219
    %v463 = vunpack.c.l.b16 %v220
    %v464 = vunpack.c.h.b16 %v220
    %v465 = vunpack.c.l.b16 %v221
    %v466 = vunpack.c.h.b16 %v221
    %v467 = vunpack.c.l.b16 %v222
    %v468 = vunpack.c.h.b16 %v222
    %v469 = vunpack.c.l.b16 %v223
    %v470 = vunpack.c.h.b16 %v223
    %v471 = vunpack.c.l.b16 %v224
    %v472 = vunpack.c.h.b16 %v224
    %v473 = vunpack.c.l.b16 %v225
    %v474 = vunpack.c.h.b16 %v225
    %v475 = vunpack.c.l.b16 %v226
    %v476 = vunpack.c.h.b16 %v226
    %v477 = vunpack.c.l.b16 %v227
    %v478 = vunpack.c.h.b16 %v227
    %v479 = vunpack.c.l.b16 %v228
    %v480 = vunpack.c.h.b16 %v228
    %v481 = vunpack.c.l.b16 %v229
    %v482 = vunpack.c.h.b16 %v229
    %v483 = vunpack.c.l.b16 %v230
    %v484 = vunpack.c.h.b16 %v230
    %v485 = vunpack.c.l.b16 %v231
    %v486 = vunpack.c.h.b16 %v231
    %v487 = vunpack.c.l.b16 %v232
    %v488 = vunpack.c.h.b16 %v232
    %v489 = vunpack.c.l.b16 %v233
    %v490 = vunpack.c.h.b16 %v233
    %v491 = vunpack.c.l.b16 %v234
    %v492 = vunpack.c.h.b16 %v234
    %v493 = vunpack.c.l.b16 %v235
    %v494 = vunpack.c.h.b16 %v235
    %v495 = vunpack.c.l.b16 %v236
    %v496 = vunpack.c.h.b16 %v236
    %v497 = vunpack.c.l.b16 %v237
    %v498 = vunpack.c.h.b16 %v237
    %v499 = vunpack.c.l.b16 %v238
    %v500 = vunpack.c.h.b16 %v238
    %v501 = vunpack.c.l.b16 %v239
    %v502 = vunpack.c.h.b16 %v239
    %v503 = vunpack.c.l.b16 %v240
    %v504 = vunpack.c.h.b16 %v240
    %v505 = vunpack.c.l.b16 %v241
    %v506 = vunpack.c.h.b16 %v241
    %v507 = vunpack.c.l.b16 %v242
    %v508 = vunpack.c.h.b16 %v242
    %v509 = vunpack.c.l.b16 %v243
    %v510 = vunpack.c.h.b16 %v243
    %v511 = vunpack.c.l.b16 %v244
    %v512 = vunpack.c.h.b16 %v244
    %v513 = vunpack.c.l.b16 %v245
    %v514 = vunpack.c.h.b16 %v245
    %v515 = vunpack.c.l.b16 %v246
    %v516 = vunpack.c.h.b16 %v246
    %v517 = vunpack.c.l.b16 %v247
    %v518 = vunpack.c.h.b16 %v247
    %v519 = vunpack.c.l.b16 %v248
    %v520 = vunpack.c.h.b16 %v248
    %v521 = vunpack.c.l.b16 %v249
    %v522 = vunpack.c.h.b16 %v249
    %v523 = vunpack.c.l.b16 %v250
    %v524 = vunpack.c.h.b16 %v250
    %v525 = vunpack.c.l.b16 %v251
    %v526 = vunpack.c.h.b16 %v251
    %v527 = vunpack.c.l.b16 %v252
    %v528 = vunpack.c.h.b16 %v252
    %v529 = vunpack.c.l.b16 %v253
    %v530 = vunpack.c.h.b16 %v253
    %v531 = vunpack.c.l.b16 %v254
    %v532 = vunpack.c.h.b16 %v254
    %v533 = vunpack.c.l.b16 %v255
    %v534 = vunpack.c.h.b16 %v255
    %v535 = vunpack.c.l.b16 %v256
    %v536 = vunpack.c.h.b16 %v256
    %v537 = vunpack.c.l.b16 %v257
    %v538 = vunpack.c.h.b16 %v257
    %v539 = vunpack.c.l.b16 %v258
    %v540 = vunpack.c.h.b16 %v258
    %v541 = vunpack.c.l.b16 %v259
    %v542 = vunpack.c.h.b16 %v259
    %v543 = vunpack.c.l.b16 %v260
    %v544 = vunpack.c.h.b16 %v260
    %v545 = vunpack.c.l.b16 %v261
    %v546 = vunpack.c.h.b16 %v261
    %v547 = vunpack.c.l.b16 %v262
    %v548 = vunpack.c.h.b16 %v262
    %v549 = vunpack.c.l.b16 %v263
    %v550 = vunpack.c.h.b16 %v263
    %v551 = vunpack.c.l.b16 %v264
    %v552 = vunpack.c.h.b16 %v264
    %v553 = vunpack.c.l.b16 %v265
    %v554 = vunpack.c.h.b16 %v265
    %v555 = vunpack.c.l.b16 %v266
    %v556 = vunpack.c.h.b16 %v266
    %v557 = vunpack.c.l.b16 %v267
    %v558 = vunpack.c.h.b16 %v267
    %v559 = vunpack.c.l.b16 %v268
    %v560 = vunpack.c.h.b16 %v268
    %v561 = vunpack.c.l.b16 %v269
    %v562 = vunpack.c.h.b16 %v269
    %v563 = vunpack.c.l.b16 %v270
    %v564 = vunpack.c.h.b16 %v270
    %v565 = vunpack.c.l.b16 %v271
    %v566 = vunpack.c.h.b16 %v271
    %v567 = vunpack.c.l.b16 %v272
    %v568 = vunpack.c.h.b16 %v272
    %v569 = vunpack.c.l.b16 %v273
    %v570 = vunpack.c.h.b16 %v273
    %v571 = vunpack.c.l.b16 %v274
    %v572 = vunpack.c.h.b16 %v274
    %v573 = vunpack.c.l.b16 %v275
    %v574 = vunpack.c.h.b16 %v275
    %v575 = vunpack.c.l.b16 %v276
    %v576 = vunpack.c.h.b16 %v276
    %v577 = vunpack.c.l.b16 %v277
    %v578 = vunpack.c.h.b16 %v277
    %v579 = vunpack.c.l.b16 %v278
    %v580 = vunpack.c.h.b16 %v278
    %v581 = vpack.c.b16 %v395, %v389
    %v582 = vpack.c.b16 %v396, %v390
    %v583 = vpack.c.b16 %v397, %v391
    %v584 = vpack.c.b16 %v398, %v392
    %v585 = vpack.c.b16 %v399, %v393
    %v586 = vpack.c.b16 %v400, %v394
    %v587 = vpack.c.b16 %v407, %v401
    %v588 = vpack.c.b16 %v408, %v402
    %v589 = vpack.c.b16 %v409, %v403
    %v590 = vpack.c.b16 %v410, %v404
    %v591 = vpack.c.b16 %v411, %v405
    %v592 = vpack.c.b16 %v412, %v406
    %v593 = vpack.c.b16 %v419, %v413
    %v594 = vpack.c.b16 %v420, %v414
    %v595 = vpack.c.b16 %v421, %v415
    %v596 = vpack.c.b16 %v422, %v416
    %v597 = vpack.c.b16 %v423, %v417
    %v598 = vpack.c.b16 %v424, %v418
    %v599 = vpack.c.b16 %v431, %v425
    %v600 = vpack.c.b16 %v432, %v426
    %v601 = vpack.c.b16 %v433, %v427
    %v602 = vpack.c.b16 %v434, %v428
    %v603 = vpack.c.b16 %v435, %v429
    %v604 = vpack.c.b16 %v436, %v430
    %v605 = vpack.c.b16 %v443, %v437
    %v606 = vpack.c.b16 %v444, %v438
    %v607 = vpack.c.b16 %v445, %v439
    %v608 = vpack.c.b16 %v446, %v440
    %v609 = vpack.c.b16 %v447, %v441
    %v610 = vpack.c.b16 %v448, %v442
    %v611 = vpack.c.b16 %v455, %v449
    %v612 = vpack.c.b16 %v456, %v450
    %v613 = vpack.c.b16 %v457, %v451
    %v614 = vpack.c.b16 %v458, %v452
    %v615 = vpack.c.b16 %v459, %v453
    %v616 = vpack.c.b16 %v460, %v454
    %v617 = vpack.c.b16 %v467, %v461
    %v618 = vpack.c.b16 %v468, %v462
    %v619 = vpack.c.b16 %v469, %v463
    %v620 = vpack.c.b16 %v470, %v464
    %v621 = vpack.c.b16 %v471, %v465
    %v622 = vpack.c.b16 %v472, %v466
    %v623 = vpack.c.b16 %v479, %v473
    %v624 = vpack.c.b16 %v480, %v474
    %v625 = vpack.c.b16 %v481, %v475
    %v626 = vpack.c.b16 %v482, %v476
    %v627 = vpack.c.b16 %v483, %v477
    %v628 = vpack.c.b16 %v484, %v478
    %v629 = vpack.c.b16 %v491, %v485
    %v630 = vpack.c.b16 %v492, %v486
    %v631 = vpack.c.b16 %v493, %v487
    %v632 = vpack.c.b16 %v494, %v488
    %v633 = vpack.c.b16 %v495, %v489
    %v634 = vpack.c.b16 %v496, %v490
    %v635 = vpack.c.b16 %v503, %v497
    %v636 = vpack.c.b16 %v504, %v498
    %v637 = vpack.c.b16 %v505, %v499
    %v638 = vpack.c.b16 %v506, %v500
    %v639 = vpack.c.b16 %v507, %v501
    %v640 = vpack.c.b16 %v508, %v502
    %v641 = vpack.c.b16 %v515, %v509
    %v642 = vpack.c.b16 %v516, %v510
    %v643 = vpack.c.b16 %v517, %v511
    %v644 = vpack.c.b16 %v518, %v512
    %v645 = vpack.c.b16 %v519, %v513
    %v646 = vpack.c.b16 %v520, %v514
    %v647 = vpack.c.b16 %v527, %v521
    %v648 = vpack.c.b16 %v528, %v522
    %v649 = vpack.c.b16 %v529, %v523
    %v650 = vpack.c.b16 %v530, %v524
    %v651 = vpack.c.b16 %v531, %v525
    %v652 = vpack.c.b16 %v532, %v526
    %v653 = vpack.c.b16 %v539, %v533
    %v654 = vpack.c.b16 %v540, %v534
    %v655 = vpack.c.b16 %v541, %v535
    %v656 = vpack.c.b16 %v542, %v536
    %v657 = vpack.c.b16 %v543, %v537
    %v658 = vpack.c.b16 %v544, %v538
    %v659 = vpack.c.b16 %v551, %v545
    %v660 = vpack.c.b16 %v552, %v546
    %v661 = vpack.c.b16 %v553, %v547
    %v662 = vpack.c.b16 %v554, %v548
    %v663 = vpack.c.b16 %v555, %v549
    %v664 = vpack.c.b16 %v556, %v550
    %v665 = vpack.c.b16 %v563, %v557
    %v666 = vpack.c.b16 %v564, %v558
    %v667 = vpack.c.b16 %v565, %v559
    %v668 = vpack.c.b16 %v566, %v560
    %v669 = vpack.c.b16 %v567, %v561
    %v670 = vpack.c.b16 %v568, %v562
    %v671 = vpack.c.b16 %v575, %v569
    %v672 = vpack.c.b16 %v576, %v570
    %v673 = vpack.c.b16 %v577, %v571
    %v674 = vpack.c.b16 %v578, %v572
    %v675 = vpack.c.b16 %v579, %v573
    %v676 = vpack.c.b16 %v580, %v574
    %773 = vmatpush.bf16.msra.mxu0 %v623
    %774 = vmatpush.bf16.msra.mxu0 %v617
    %775 = vmatpush.bf16.msra.mxu0 %v611
    %776 = vmatpush.bf16.msra.mxu0 %v605
    %777 = vmatpush.bf16.msra.mxu0 %v599
    %778 = vmatpush.bf16.msra.mxu0 %v593
    %779 = vmatpush.bf16.msra.mxu0 %v587
    %780 = vmatpush.bf16.msra.mxu0 %v581
    %781 = vmatmul.bf16.gmra.mxu0 %v179
    %v782 = vpop.f32.mrf.mxu0
    %v783 = vadd.f32 %v281, %v782
    %v784 = vpop.f32.mrf.mxu0
    %v785 = vadd.f32 %v281, %v784
    %786 = vmatmul.bf16.gmra.mxu0 %v181
    %v787 = vpop.f32.mrf.mxu0
    %v788 = vpop.f32.mrf.mxu0
    %789 = vdwg.mxu0
    %790 = vmatpush.bf16.msra.mxu0 %v671
    %791 = vmatpush.bf16.msra.mxu0 %v665
    %792 = vmatpush.bf16.msra.mxu0 %v659
    %793 = vmatpush.bf16.msra.mxu0 %v653
    %794 = vmatpush.bf16.msra.mxu0 %v647
    %795 = vmatpush.bf16.msra.mxu0 %v641
    %796 = vmatpush.bf16.msra.mxu0 %v635
    %797 = vmatpush.bf16.msra.mxu0 %v629
    %798 = vmatmul.bf16.gmra.mxu0 %v180
    %v799 = vpop.f32.mrf.mxu0
    %v800 = vadd.f32 %v783, %v799
    %v801 = vpop.f32.mrf.mxu0
    %v802 = vadd.f32 %v785, %v801
    %803 = vmatmul.bf16.gmra.mxu0 %v182
    %v804 = vpop.f32.mrf.mxu0
    %v805 = vpop.f32.mrf.mxu0
    %806 = vdwg.mxu0
    %807 = vmatpush.bf16.msra.mxu0 %v624
    %808 = vmatpush.bf16.msra.mxu0 %v618
    %809 = vmatpush.bf16.msra.mxu0 %v612
    %810 = vmatpush.bf16.msra.mxu0 %v606
    %811 = vmatpush.bf16.msra.mxu0 %v600
    %812 = vmatpush.bf16.msra.mxu0 %v594
    %813 = vmatpush.bf16.msra.mxu0 %v588
    %814 = vmatpush.bf16.msra.mxu0 %v582
    %815 = vmatmul.bf16.gmra.mxu0 %v179
    %v816 = vpop.f32.mrf.mxu0
    %v817 = vadd.f32 %v282, %v816
    %v818 = vpop.f32.mrf.mxu0
    %v819 = vadd.f32 %v282, %v818
    %820 = vmatmul.bf16.gmra.mxu0 %v181
    %v821 = vpop.f32.mrf.mxu0
    %v822 = vpop.f32.mrf.mxu0
    %823 = vdwg.mxu0
    %824 = vmatpush.bf16.msra.mxu0 %v672
    %825 = vmatpush.bf16.msra.mxu0 %v666
    %826 = vmatpush.bf16.msra.mxu0 %v660
    %827 = vmatpush.bf16.msra.mxu0 %v654
    %828 = vmatpush.bf16.msra.mxu0 %v648
    %829 = vmatpush.bf16.msra.mxu0 %v642
    %830 = vmatpush.bf16.msra.mxu0 %v636
    %831 = vmatpush.bf16.msra.mxu0 %v630
    %832 = vmatmul.bf16.gmra.mxu0 %v180
    %v833 = vpop.f32.mrf.mxu0
    %v834 = vadd.f32 %v817, %v833
    %v835 = vpop.f32.mrf.mxu0
    %v836 = vadd.f32 %v819, %v835
    %837 = vmatmul.bf16.gmra.mxu0 %v182
    %v838 = vpop.f32.mrf.mxu0
    %v839 = vpop.f32.mrf.mxu0
    %840 = vdwg.mxu0
    %841 = vmatpush.bf16.msra.mxu0 %v625
    %842 = vmatpush.bf16.msra.mxu0 %v619
    %843 = vmatpush.bf16.msra.mxu0 %v613
    %844 = vmatpush.bf16.msra.mxu0 %v607
    %845 = vmatpush.bf16.msra.mxu0 %v601
    %846 = vmatpush.bf16.msra.mxu0 %v595
    %847 = vmatpush.bf16.msra.mxu0 %v589
    %848 = vmatpush.bf16.msra.mxu0 %v583
    %849 = vmatmul.bf16.gmra.mxu0 %v179
    %v850 = vpop.f32.mrf.mxu0
    %v851 = vadd.f32 %v283, %v850
    %v852 = vpop.f32.mrf.mxu0
    %v853 = vadd.f32 %v283, %v852
    %854 = vmatmul.bf16.gmra.mxu0 %v181
    %v855 = vpop.f32.mrf.mxu0
    %v856 = vadd.f32 %v283, %v855
    %v857 = vpop.f32.mrf.mxu0
    %858 = vdwg.mxu0
    %859 = vmatpush.bf16.msra.mxu0 %v673
    %860 = vmatpush.bf16.msra.mxu0 %v667
    %861 = vmatpush.bf16.msra.mxu0 %v661
    %862 = vmatpush.bf16.msra.mxu0 %v655
    %863 = vmatpush.bf16.msra.mxu0 %v649
    %864 = vmatpush.bf16.msra.mxu0 %v643
    %865 = vmatpush.bf16.msra.mxu0 %v637
    %866 = vmatpush.bf16.msra.mxu0 %v631
    %867 = vmatmul.bf16.gmra.mxu0 %v180
    %v868 = vpop.f32.mrf.mxu0
    %v869 = vadd.f32 %v851, %v868
    %v870 = vpop.f32.mrf.mxu0
    %v871 = vadd.f32 %v853, %v870
    %872 = vmatmul.bf16.gmra.mxu0 %v182
    %v873 = vpop.f32.mrf.mxu0
    %v874 = vadd.f32 %v856, %v873
    %v875 = vpop.f32.mrf.mxu0
    %876 = vdwg.mxu0
    %877 = vmatpush.bf16.msra.mxu0 %v626
    %878 = vmatpush.bf16.msra.mxu0 %v620
    %879 = vmatpush.bf16.msra.mxu0 %v614
    %880 = vmatpush.bf16.msra.mxu0 %v608
    %881 = vmatpush.bf16.msra.mxu0 %v602
    %882 = vmatpush.bf16.msra.mxu0 %v596
    %883 = vmatpush.bf16.msra.mxu0 %v590
    %884 = vmatpush.bf16.msra.mxu0 %v584
    %885 = vmatmul.bf16.gmra.mxu0 %v179
    %v886 = vpop.f32.mrf.mxu0
    %v887 = vadd.f32 %v284, %v886
    %v888 = vpop.f32.mrf.mxu0
    %v889 = vadd.f32 %v284, %v888
    %890 = vmatmul.bf16.gmra.mxu0 %v181
    %v891 = vpop.f32.mrf.mxu0
    %v892 = vadd.f32 %v284, %v891
    %v893 = vpop.f32.mrf.mxu0
    %894 = vdwg.mxu0
    %895 = vmatpush.bf16.msra.mxu0 %v674
    %896 = vmatpush.bf16.msra.mxu0 %v668
    %897 = vmatpush.bf16.msra.mxu0 %v662
    %898 = vmatpush.bf16.msra.mxu0 %v656
    %899 = vmatpush.bf16.msra.mxu0 %v650
    %900 = vmatpush.bf16.msra.mxu0 %v644
    %901 = vmatpush.bf16.msra.mxu0 %v638
    %902 = vmatpush.bf16.msra.mxu0 %v632
    %903 = vmatmul.bf16.gmra.mxu0 %v180
    %v904 = vpop.f32.mrf.mxu0
    %v905 = vadd.f32 %v887, %v904
    %v906 = vpop.f32.mrf.mxu0
    %v907 = vadd.f32 %v889, %v906
    %908 = vmatmul.bf16.gmra.mxu0 %v182
    %v909 = vpop.f32.mrf.mxu0
    %v910 = vadd.f32 %v892, %v909
    %v911 = vpop.f32.mrf.mxu0
    %912 = vdwg.mxu0
    %913 = vmatpush.bf16.msra.mxu0 %v627
    %914 = vmatpush.bf16.msra.mxu0 %v621
    %915 = vmatpush.bf16.msra.mxu0 %v615
    %916 = vmatpush.bf16.msra.mxu0 %v609
    %917 = vmatpush.bf16.msra.mxu0 %v603
    %918 = vmatpush.bf16.msra.mxu0 %v597
    %919 = vmatpush.bf16.msra.mxu0 %v591
    %920 = vmatpush.bf16.msra.mxu0 %v585
    %921 = vmatmul.bf16.gmra.mxu0 %v179
    %v922 = vpop.f32.mrf.mxu0
    %v923 = vadd.f32 %v285, %v922
    %v924 = vpop.f32.mrf.mxu0
    %v925 = vadd.f32 %v285, %v924
    %926 = vmatmul.bf16.gmra.mxu0 %v181
    %v927 = vpop.f32.mrf.mxu0
    %v928 = vadd.f32 %v285, %v927
    %v929 = vpop.f32.mrf.mxu0
    %930 = vdwg.mxu0
    %931 = vmatpush.bf16.msra.mxu0 %v675
    %932 = vmatpush.bf16.msra.mxu0 %v669
    %933 = vmatpush.bf16.msra.mxu0 %v663
    %934 = vmatpush.bf16.msra.mxu0 %v657
    %935 = vmatpush.bf16.msra.mxu0 %v651
    %936 = vmatpush.bf16.msra.mxu0 %v645
    %937 = vmatpush.bf16.msra.mxu0 %v639
    %938 = vmatpush.bf16.msra.mxu0 %v633
    %939 = vmatmul.bf16.gmra.mxu0 %v180
    %v940 = vpop.f32.mrf.mxu0
    %v941 = vadd.f32 %v923, %v940
    %v942 = vpop.f32.mrf.mxu0
    %v943 = vadd.f32 %v925, %v942
    %944 = vmatmul.bf16.gmra.mxu0 %v182
    %v945 = vpop.f32.mrf.mxu0
    %v946 = vadd.f32 %v928, %v945
    %v947 = vpop.f32.mrf.mxu0
    %948 = vdwg.mxu0
    %949 = vmatpush.bf16.msra.mxu0 %v628
    %950 = vmatpush.bf16.msra.mxu0 %v622
    %951 = vmatpush.bf16.msra.mxu0 %v616
    %952 = vmatpush.bf16.msra.mxu0 %v610
    %953 = vmatpush.bf16.msra.mxu0 %v604
    %954 = vmatpush.bf16.msra.mxu0 %v598
    %955 = vmatpush.bf16.msra.mxu0 %v592
    %956 = vmatpush.bf16.msra.mxu0 %v586
    %957 = vmatmul.bf16.gmra.mxu0 %v179
    %v958 = vpop.f32.mrf.mxu0
    %v959 = vadd.f32 %v286, %v958
    %v960 = vpop.f32.mrf.mxu0
    %v961 = vadd.f32 %v286, %v960
    %962 = vmatmul.bf16.gmra.mxu0 %v181
    %v963 = vpop.f32.mrf.mxu0
    %v964 = vadd.f32 %v286, %v963
    %v965 = vpop.f32.mrf.mxu0
    %966 = vdwg.mxu0
    %967 = vmatpush.bf16.msra.mxu0 %v676
    %968 = vmatpush.bf16.msra.mxu0 %v670
    %969 = vmatpush.bf16.msra.mxu0 %v664
    %970 = vmatpush.bf16.msra.mxu0 %v658
    %971 = vmatpush.bf16.msra.mxu0 %v652
    %972 = vmatpush.bf16.msra.mxu0 %v646
    %973 = vmatpush.bf16.msra.mxu0 %v640
    %974 = vmatpush.bf16.msra.mxu0 %v634
    %975 = vmatmul.bf16.gmra.mxu0 %v180
    %v976 = vpop.f32.mrf.mxu0
    %v977 = vadd.f32 %v959, %v976
    %v978 = vpop.f32.mrf.mxu0
    %v979 = vadd.f32 %v961, %v978
    %980 = vmatmul.bf16.gmra.mxu0 %v182
    %v981 = vpop.f32.mrf.mxu0
    %v982 = vadd.f32 %v964, %v981
    %v983 = vpop.f32.mrf.mxu0
    %984 = vdwg.mxu0
    %vm985 = vcmask 1040384
    %v986 = vsel %vm985, %v800, %v802
    %v987 = vsel %vm985, %v834, %v836
    %v988 = vld [vmem:[%s1] sm:$0x3]
    %v989 = vpack.c.bf16 %v986, %v986
    %v990 = vpack.c.bf16 %v871, %v869
    %v991 = vpack.c.bf16 %v874, %v874
    %v992 = vpack.c.bf16 %v943, %v941
    %v993 = vpack.c.bf16 %v946, %v946
    %vm994 = vcmask 261120
    %v996 = vsel %vm994, %v989, 0
    %v999 = vsel %vm994, %v990, 0
    %v1002 = vsel %vm994, %v991, 0
    %1004 = vmatpush.bf16.xpose.msra.mxu0 0
    %1005 = vmatpush.bf16.xpose.msra.mxu0 0
    %1006 = vmatpush.bf16.xpose.msra.mxu0 0
    %1007 = vmatpush.bf16.xpose.msra.mxu0 0
    %1008 = vmatpush.bf16.xpose.msra.mxu0 0
    %1009 = vmatpush.bf16.xpose.msra.mxu0 0
    %1010 = vmatpush.bf16.xpose.msra.mxu0 %v1002
    %1011 = vmatpush.bf16.xpose.msra.mxu0 %v999
    %1012 = vmatmul.bf16.gmra.mxu0 %v996
    %v1013 = vpop.f32.mrf.mxu0
    %v1014 = vadd.f32 0.0, %v1013
    %v1015 = vpop.f32.mrf.mxu0
    %1016 = vdwg.mxu0
    %v1017 = vmul.f32 %v1014, 0.17677669
    %v1018 = vadd.f32 %v1017, %v988
    %vm1019 = vcmask 140288
    %v1020 = vsel %vm1019, %v1018, -inf
    %1021 = vmax.xlane.f32.xlu0 %v1020
    %v1022 = vpop.xlane.xlu0 %1021
    %v1023 = vsub.f32 %v1018, %v1022
    %v1024 = vmul.f32 %v1023, 1.442695
    %v1025 = vpow.pop %v1024
    %v1026 = vsel %vm1019, %v1025, 0.0
    %1027 = vadd.xlane.f32.xlu0 %v1026
    %v1028 = vpop.xlane.xlu0 %1027
    %v1029 = vrcp.pop %v1028
    %v1030 = vmul.f32 %v1025, %v1029
    %v1031 = vpack.c.bf16 %v1030, %v1030
    %vm1032 = vcmask 146432
    %v1034 = vsel %vm1032, %v1031, 0
    %v1037 = vsel %vm985, %v993, 0
    %1039 = vmatpush.bf16.msra.mxu0 0
    %1040 = vmatpush.bf16.msra.mxu0 0
    %1041 = vmatpush.bf16.msra.mxu0 0
    %1042 = vmatpush.bf16.msra.mxu0 0
    %1043 = vmatpush.bf16.msra.mxu0 0
    %1044 = vmatpush.bf16.msra.mxu0 0
    %1045 = vmatpush.bf16.msra.mxu0 %v1037
    %1046 = vmatpush.bf16.msra.mxu0 %v992
    %1047 = vmatmul.bf16.gmra.mxu0 %v1034
    %v1048 = vpop.f32.mrf.mxu0
    %v1049 = vadd.f32 0.0, %v1048
    %v1050 = vpop.f32.mrf.mxu0
    %1051 = vdwg.mxu0
    %1053 = vrot.lane.b32.xlu0 %v989, 96
    %v1054 = vpop.permute.xlu0 %1053
    %1057 = vrot.lane.b32.xlu0 %v990, 96
    %v1058 = vpop.permute.xlu0 %1057
    %1059 = vrot.lane.b32.xlu0 %v991, 96
    %v1060 = vpop.permute.xlu0 %1059
    %v1062 = vsel %vm994, %v1054, 0
    %v1065 = vsel %vm994, %v1058, 0
    %v1068 = vsel %vm994, %v1060, 0
    %1070 = vmatpush.bf16.xpose.msra.mxu0 0
    %1071 = vmatpush.bf16.xpose.msra.mxu0 0
    %1072 = vmatpush.bf16.xpose.msra.mxu0 0
    %1073 = vmatpush.bf16.xpose.msra.mxu0 0
    %1074 = vmatpush.bf16.xpose.msra.mxu0 0
    %1075 = vmatpush.bf16.xpose.msra.mxu0 0
    %1076 = vmatpush.bf16.xpose.msra.mxu0 %v1068
    %1077 = vmatpush.bf16.xpose.msra.mxu0 %v1065
    %1078 = vmatmul.bf16.gmra.mxu0 %v1062
    %v1079 = vpop.f32.mrf.mxu0
    %v1080 = vadd.f32 0.0, %v1079
    %v1081 = vpop.f32.mrf.mxu0
    %1082 = vdwg.mxu0
    %v1083 = vmul.f32 %v1080, 0.17677669
    %v1084 = vadd.f32 %v1083, %v988
    %v1085 = vsel %vm1019, %v1084, -inf
    %1086 = vmax.xlane.f32.xlu0 %v1085
    %v1087 = vpop.xlane.xlu0 %1086
    %v1088 = vsub.f32 %v1084, %v1087
    %v1089 = vmul.f32 %v1088, 1.442695
    %v1090 = vpow.pop %v1089
    %v1091 = vsel %vm1019, %v1090, 0.0
    %1092 = vadd.xlane.f32.xlu0 %v1091
    %v1093 = vpop.xlane.xlu0 %1092
    %v1094 = vrcp.pop %v1093
    %v1095 = vmul.f32 %v1090, %v1094
    %v1096 = vpack.c.bf16 %v1095, %v1095
    %1099 = vrot.lane.b32.xlu0 %v992, 96
    %v1100 = vpop.permute.xlu0 %1099
    %1101 = vrot.lane.b32.xlu0 %v993, 96
    %v1102 = vpop.permute.xlu0 %1101
    %v1105 = vsel %vm1032, %v1096, 0
    %v1108 = vsel %vm985, %v1102, 0
    %1110 = vmatpush.bf16.msra.mxu0 0
    %1111 = vmatpush.bf16.msra.mxu0 0
    %1112 = vmatpush.bf16.msra.mxu0 0
    %1113 = vmatpush.bf16.msra.mxu0 0
    %1114 = vmatpush.bf16.msra.mxu0 0
    %1115 = vmatpush.bf16.msra.mxu0 0
    %1116 = vmatpush.bf16.msra.mxu0 %v1108
    %1117 = vmatpush.bf16.msra.mxu0 %v1100
    %1118 = vmatmul.bf16.gmra.mxu0 %v1105
    %v1119 = vpop.f32.mrf.mxu0
    %v1120 = vadd.f32 0.0, %v1119
    %v1121 = vpop.f32.mrf.mxu0
    %1122 = vdwg.mxu0
    %1123 = vrot.lane.b32.xlu0 %v989, 64
    %v1124 = vpop.permute.xlu0 %1123
    %1125 = vrot.lane.b32.xlu0 %v990, 64
    %v1126 = vpop.permute.xlu0 %1125
    %1127 = vrot.lane.b32.xlu0 %v991, 64
    %v1128 = vpop.permute.xlu0 %1127
    %v1130 = vsel %vm994, %v1124, 0
    %v1133 = vsel %vm994, %v1126, 0
    %v1136 = vsel %vm994, %v1128, 0
    %1138 = vmatpush.bf16.xpose.msra.mxu0 0
    %1139 = vmatpush.bf16.xpose.msra.mxu0 0
    %1140 = vmatpush.bf16.xpose.msra.mxu0 0
    %1141 = vmatpush.bf16.xpose.msra.mxu0 0
    %1142 = vmatpush.bf16.xpose.msra.mxu0 0
    %1143 = vmatpush.bf16.xpose.msra.mxu0 0
    %1144 = vmatpush.bf16.xpose.msra.mxu0 %v1136
    %1145 = vmatpush.bf16.xpose.msra.mxu0 %v1133
    %1146 = vmatmul.bf16.gmra.mxu0 %v1130
    %v1147 = vpop.f32.mrf.mxu0
    %v1148 = vadd.f32 0.0, %v1147
    %v1149 = vpop.f32.mrf.mxu0
    %1150 = vdwg.mxu0
    %v1151 = vmul.f32 %v1148, 0.17677669
    %v1152 = vadd.f32 %v1151, %v988
    %v1153 = vsel %vm1019, %v1152, -inf
    %1154 = vmax.xlane.f32.xlu0 %v1153
    %v1155 = vpop.xlane.xlu0 %1154
    %v1156 = vsub.f32 %v1152, %v1155
    %v1157 = vmul.f32 %v1156, 1.442695
    %v1158 = vpow.pop %v1157
    %v1159 = vsel %vm1019, %v1158, 0.0
    %1160 = vadd.xlane.f32.xlu0 %v1159
    %v1161 = vpop.xlane.xlu0 %1160
    %v1162 = vrcp.pop %v1161
    %v1163 = vmul.f32 %v1158, %v1162
    %v1164 = vpack.c.bf16 %v1163, %v1163
    %1165 = vrot.lane.b32.xlu0 %v992, 64
    %v1166 = vpop.permute.xlu0 %1165
    %1167 = vrot.lane.b32.xlu0 %v993, 64
    %v1168 = vpop.permute.xlu0 %1167
    %v1171 = vsel %vm1032, %v1164, 0
    %v1174 = vsel %vm985, %v1168, 0
    %1176 = vmatpush.bf16.msra.mxu0 0
    %1177 = vmatpush.bf16.msra.mxu0 0
    %1178 = vmatpush.bf16.msra.mxu0 0
    %1179 = vmatpush.bf16.msra.mxu0 0
    %1180 = vmatpush.bf16.msra.mxu0 0
    %1181 = vmatpush.bf16.msra.mxu0 0
    %1182 = vmatpush.bf16.msra.mxu0 %v1174
    %1183 = vmatpush.bf16.msra.mxu0 %v1166
    %1184 = vmatmul.bf16.gmra.mxu0 %v1171
    %v1185 = vpop.f32.mrf.mxu0
    %v1186 = vadd.f32 0.0, %v1185
    %v1187 = vpop.f32.mrf.mxu0
    %1188 = vdwg.mxu0
    %1189 = vrot.lane.b32.xlu0 %v989, 32
    %v1190 = vpop.permute.xlu0 %1189
    %1191 = vrot.lane.b32.xlu0 %v990, 32
    %v1192 = vpop.permute.xlu0 %1191
    %1193 = vrot.lane.b32.xlu0 %v991, 32
    %v1194 = vpop.permute.xlu0 %1193
    %v1196 = vsel %vm994, %v1190, 0
    %v1199 = vsel %vm994, %v1192, 0
    %v1202 = vsel %vm994, %v1194, 0
    %1204 = vmatpush.bf16.xpose.msra.mxu0 0
    %1205 = vmatpush.bf16.xpose.msra.mxu0 0
    %1206 = vmatpush.bf16.xpose.msra.mxu0 0
    %1207 = vmatpush.bf16.xpose.msra.mxu0 0
    %1208 = vmatpush.bf16.xpose.msra.mxu0 0
    %1209 = vmatpush.bf16.xpose.msra.mxu0 0
    %1210 = vmatpush.bf16.xpose.msra.mxu0 %v1202
    %1211 = vmatpush.bf16.xpose.msra.mxu0 %v1199
    %1212 = vmatmul.bf16.gmra.mxu0 %v1196
    %v1213 = vpop.f32.mrf.mxu0
    %v1214 = vadd.f32 0.0, %v1213
    %v1215 = vpop.f32.mrf.mxu0
    %1216 = vdwg.mxu0
    %v1217 = vmul.f32 %v1214, 0.17677669
    %v1218 = vadd.f32 %v1217, %v988
    %v1219 = vsel %vm1019, %v1218, -inf
    %1220 = vmax.xlane.f32.xlu0 %v1219
    %v1221 = vpop.xlane.xlu0 %1220
    %v1222 = vsub.f32 %v1218, %v1221
    %v1223 = vmul.f32 %v1222, 1.442695
    %v1224 = vpow.pop %v1223
    %v1225 = vsel %vm1019, %v1224, 0.0
    %1226 = vadd.xlane.f32.xlu0 %v1225
    %v1227 = vpop.xlane.xlu0 %1226
    %v1228 = vrcp.pop %v1227
    %v1229 = vmul.f32 %v1224, %v1228
    %v1230 = vpack.c.bf16 %v1229, %v1229
    %1231 = vrot.lane.b32.xlu0 %v992, 32
    %v1232 = vpop.permute.xlu0 %1231
    %1233 = vrot.lane.b32.xlu0 %v993, 32
    %v1234 = vpop.permute.xlu0 %1233
    %v1237 = vsel %vm1032, %v1230, 0
    %v1240 = vsel %vm985, %v1234, 0
    %1242 = vmatpush.bf16.msra.mxu0 0
    %1243 = vmatpush.bf16.msra.mxu0 0
    %1244 = vmatpush.bf16.msra.mxu0 0
    %1245 = vmatpush.bf16.msra.mxu0 0
    %1246 = vmatpush.bf16.msra.mxu0 0
    %1247 = vmatpush.bf16.msra.mxu0 0
    %1248 = vmatpush.bf16.msra.mxu0 %v1240
    %1249 = vmatpush.bf16.msra.mxu0 %v1232
    %1250 = vmatmul.bf16.gmra.mxu0 %v1237
    %v1251 = vpop.f32.mrf.mxu0
    %v1252 = vadd.f32 0.0, %v1251
    %v1253 = vpop.f32.mrf.mxu0
    %1254 = vdwg.mxu0
    %v1255 = vpack.c.bf16 %v987, %v987
    %v1256 = vpack.c.bf16 %v907, %v905
    %v1257 = vpack.c.bf16 %v910, %v910
    %v1258 = vpack.c.bf16 %v979, %v977
    %v1259 = vpack.c.bf16 %v982, %v982
    %v1261 = vsel %vm994, %v1255, 0
    %v1264 = vsel %vm994, %v1256, 0
    %v1267 = vsel %vm994, %v1257, 0
    %1269 = vmatpush.bf16.xpose.msra.mxu0 0
    %1270 = vmatpush.bf16.xpose.msra.mxu0 0
    %1271 = vmatpush.bf16.xpose.msra.mxu0 0
    %1272 = vmatpush.bf16.xpose.msra.mxu0 0
    %1273 = vmatpush.bf16.xpose.msra.mxu0 0
    %1274 = vmatpush.bf16.xpose.msra.mxu0 0
    %1275 = vmatpush.bf16.xpose.msra.mxu0 %v1267
    %1276 = vmatpush.bf16.xpose.msra.mxu0 %v1264
    %1277 = vmatmul.bf16.gmra.mxu0 %v1261
    %v1278 = vpop.f32.mrf.mxu0
    %v1279 = vadd.f32 0.0, %v1278
    %v1280 = vpop.f32.mrf.mxu0
    %1281 = vdwg.mxu0
    %v1282 = vmul.f32 %v1279, 0.17677669
    %v1283 = vadd.f32 %v1282, %v988
    %v1284 = vsel %vm1019, %v1283, -inf
    %1285 = vmax.xlane.f32.xlu0 %v1284
    %v1286 = vpop.xlane.xlu0 %1285
    %v1287 = vsub.f32 %v1283, %v1286
    %v1288 = vmul.f32 %v1287, 1.442695
    %v1289 = vpow.pop %v1288
    %v1290 = vsel %vm1019, %v1289, 0.0
    %1291 = vadd.xlane.f32.xlu0 %v1290
    %v1292 = vpop.xlane.xlu0 %1291
    %v1293 = vrcp.pop %v1292
    %v1294 = vmul.f32 %v1289, %v1293
    %v1295 = vpack.c.bf16 %v1294, %v1294
    %v1297 = vsel %vm1032, %v1295, 0
    %v1300 = vsel %vm985, %v1259, 0
    %1302 = vmatpush.bf16.msra.mxu0 0
    %1303 = vmatpush.bf16.msra.mxu0 0
    %1304 = vmatpush.bf16.msra.mxu0 0
    %1305 = vmatpush.bf16.msra.mxu0 0
    %1306 = vmatpush.bf16.msra.mxu0 0
    %1307 = vmatpush.bf16.msra.mxu0 0
    %1308 = vmatpush.bf16.msra.mxu0 %v1300
    %1309 = vmatpush.bf16.msra.mxu0 %v1258
    %1310 = vmatmul.bf16.gmra.mxu0 %v1297
    %v1311 = vpop.f32.mrf.mxu0
    %v1312 = vadd.f32 0.0, %v1311
    %v1313 = vpop.f32.mrf.mxu0
    %1314 = vdwg.mxu0
    %1316 = vrot.lane.b32.xlu0 %v1255, 96
    %v1317 = vpop.permute.xlu0 %1316
    %1320 = vrot.lane.b32.xlu0 %v1256, 96
    %v1321 = vpop.permute.xlu0 %1320
    %1322 = vrot.lane.b32.xlu0 %v1257, 96
    %v1323 = vpop.permute.xlu0 %1322
    %v1325 = vsel %vm994, %v1317, 0
    %v1328 = vsel %vm994, %v1321, 0
    %v1331 = vsel %vm994, %v1323, 0
    %1333 = vmatpush.bf16.xpose.msra.mxu0 0
    %1334 = vmatpush.bf16.xpose.msra.mxu0 0
    %1335 = vmatpush.bf16.xpose.msra.mxu0 0
    %1336 = vmatpush.bf16.xpose.msra.mxu0 0
    %1337 = vmatpush.bf16.xpose.msra.mxu0 0
    %1338 = vmatpush.bf16.xpose.msra.mxu0 0
    %1339 = vmatpush.bf16.xpose.msra.mxu0 %v1331
    %1340 = vmatpush.bf16.xpose.msra.mxu0 %v1328
    %1341 = vmatmul.bf16.gmra.mxu0 %v1325
    %v1342 = vpop.f32.mrf.mxu0
    %v1343 = vadd.f32 0.0, %v1342
    %v1344 = vpop.f32.mrf.mxu0
    %1345 = vdwg.mxu0
    %v1346 = vmul.f32 %v1343, 0.17677669
    %v1347 = vadd.f32 %v1346, %v988
    %v1348 = vsel %vm1019, %v1347, -inf
    %1349 = vmax.xlane.f32.xlu0 %v1348
    %v1350 = vpop.xlane.xlu0 %1349
    %v1351 = vsub.f32 %v1347, %v1350
    %v1352 = vmul.f32 %v1351, 1.442695
    %v1353 = vpow.pop %v1352
    %v1354 = vsel %vm1019, %v1353, 0.0
    %1355 = vadd.xlane.f32.xlu0 %v1354
    %v1356 = vpop.xlane.xlu0 %1355
    %v1357 = vrcp.pop %v1356
    %v1358 = vmul.f32 %v1353, %v1357
    %v1359 = vpack.c.bf16 %v1358, %v1358
    %1362 = vrot.lane.b32.xlu0 %v1258, 96
    %v1363 = vpop.permute.xlu0 %1362
    %1364 = vrot.lane.b32.xlu0 %v1259, 96
    %v1365 = vpop.permute.xlu0 %1364
    %v1368 = vsel %vm1032, %v1359, 0
    %v1371 = vsel %vm985, %v1365, 0
    %1373 = vmatpush.bf16.msra.mxu0 0
    %1374 = vmatpush.bf16.msra.mxu0 0
    %1375 = vmatpush.bf16.msra.mxu0 0
    %1376 = vmatpush.bf16.msra.mxu0 0
    %1377 = vmatpush.bf16.msra.mxu0 0
    %1378 = vmatpush.bf16.msra.mxu0 0
    %1379 = vmatpush.bf16.msra.mxu0 %v1371
    %1380 = vmatpush.bf16.msra.mxu0 %v1363
    %1381 = vmatmul.bf16.gmra.mxu0 %v1368
    %v1382 = vpop.f32.mrf.mxu0
    %v1383 = vadd.f32 0.0, %v1382
    %v1384 = vpop.f32.mrf.mxu0
    %1385 = vdwg.mxu0
    %1386 = vrot.lane.b32.xlu0 %v1255, 64
    %v1387 = vpop.permute.xlu0 %1386
    %1388 = vrot.lane.b32.xlu0 %v1256, 64
    %v1389 = vpop.permute.xlu0 %1388
    %1390 = vrot.lane.b32.xlu0 %v1257, 64
    %v1391 = vpop.permute.xlu0 %1390
    %v1393 = vsel %vm994, %v1387, 0
    %v1396 = vsel %vm994, %v1389, 0
    %v1399 = vsel %vm994, %v1391, 0
    %1401 = vmatpush.bf16.xpose.msra.mxu0 0
    %1402 = vmatpush.bf16.xpose.msra.mxu0 0
    %1403 = vmatpush.bf16.xpose.msra.mxu0 0
    %1404 = vmatpush.bf16.xpose.msra.mxu0 0
    %1405 = vmatpush.bf16.xpose.msra.mxu0 0
    %1406 = vmatpush.bf16.xpose.msra.mxu0 0
    %1407 = vmatpush.bf16.xpose.msra.mxu0 %v1399
    %1408 = vmatpush.bf16.xpose.msra.mxu0 %v1396
    %1409 = vmatmul.bf16.gmra.mxu0 %v1393
    %v1410 = vpop.f32.mrf.mxu0
    %v1411 = vadd.f32 0.0, %v1410
    %v1412 = vpop.f32.mrf.mxu0
    %1413 = vdwg.mxu0
    %v1414 = vmul.f32 %v1411, 0.17677669
    %v1415 = vadd.f32 %v1414, %v988
    %v1416 = vsel %vm1019, %v1415, -inf
    %1417 = vmax.xlane.f32.xlu0 %v1416
    %v1418 = vpop.xlane.xlu0 %1417
    %v1419 = vsub.f32 %v1415, %v1418
    %v1420 = vmul.f32 %v1419, 1.442695
    %v1421 = vpow.pop %v1420
    %v1422 = vsel %vm1019, %v1421, 0.0
    %1423 = vadd.xlane.f32.xlu0 %v1422
    %v1424 = vpop.xlane.xlu0 %1423
    %v1425 = vrcp.pop %v1424
    %v1426 = vmul.f32 %v1421, %v1425
    %v1427 = vpack.c.bf16 %v1426, %v1426
    %1428 = vrot.lane.b32.xlu0 %v1258, 64
    %v1429 = vpop.permute.xlu0 %1428
    %1430 = vrot.lane.b32.xlu0 %v1259, 64
    %v1431 = vpop.permute.xlu0 %1430
    %v1434 = vsel %vm1032, %v1427, 0
    %v1437 = vsel %vm985, %v1431, 0
    %1439 = vmatpush.bf16.msra.mxu0 0
    %1440 = vmatpush.bf16.msra.mxu0 0
    %1441 = vmatpush.bf16.msra.mxu0 0
    %1442 = vmatpush.bf16.msra.mxu0 0
    %1443 = vmatpush.bf16.msra.mxu0 0
    %1444 = vmatpush.bf16.msra.mxu0 0
    %1445 = vmatpush.bf16.msra.mxu0 %v1437
    %1446 = vmatpush.bf16.msra.mxu0 %v1429
    %1447 = vmatmul.bf16.gmra.mxu0 %v1434
    %v1448 = vpop.f32.mrf.mxu0
    %v1449 = vadd.f32 0.0, %v1448
    %v1450 = vpop.f32.mrf.mxu0
    %1451 = vdwg.mxu0
    %1452 = vrot.lane.b32.xlu0 %v1255, 32
    %v1453 = vpop.permute.xlu0 %1452
    %1454 = vrot.lane.b32.xlu0 %v1256, 32
    %v1455 = vpop.permute.xlu0 %1454
    %1456 = vrot.lane.b32.xlu0 %v1257, 32
    %v1457 = vpop.permute.xlu0 %1456
    %v1459 = vsel %vm994, %v1453, 0
    %v1462 = vsel %vm994, %v1455, 0
    %v1465 = vsel %vm994, %v1457, 0
    %1467 = vmatpush.bf16.xpose.msra.mxu0 0
    %1468 = vmatpush.bf16.xpose.msra.mxu0 0
    %1469 = vmatpush.bf16.xpose.msra.mxu0 0
    %1470 = vmatpush.bf16.xpose.msra.mxu0 0
    %1471 = vmatpush.bf16.xpose.msra.mxu0 0
    %1472 = vmatpush.bf16.xpose.msra.mxu0 0
    %1473 = vmatpush.bf16.xpose.msra.mxu0 %v1465
    %1474 = vmatpush.bf16.xpose.msra.mxu0 %v1462
    %1475 = vmatmul.bf16.gmra.mxu0 %v1459
    %v1476 = vpop.f32.mrf.mxu0
    %v1477 = vadd.f32 0.0, %v1476
    %v1478 = vpop.f32.mrf.mxu0
    %1479 = vdwg.mxu0
    %v1480 = vmul.f32 %v1477, 0.17677669
    %v1481 = vadd.f32 %v1480, %v988
    %v1482 = vsel %vm1019, %v1481, -inf
    %1483 = vmax.xlane.f32.xlu0 %v1482
    %v1484 = vpop.xlane.xlu0 %1483
    %v1485 = vsub.f32 %v1481, %v1484
    %v1486 = vmul.f32 %v1485, 1.442695
    %v1487 = vpow.pop %v1486
    %v1488 = vsel %vm1019, %v1487, 0.0
    %1489 = vadd.xlane.f32.xlu0 %v1488
    %v1490 = vpop.xlane.xlu0 %1489
    %v1491 = vrcp.pop %v1490
    %v1492 = vmul.f32 %v1487, %v1491
    %v1493 = vpack.c.bf16 %v1492, %v1492
    %1494 = vrot.lane.b32.xlu0 %v1258, 32
    %v1495 = vpop.permute.xlu0 %1494
    %1496 = vrot.lane.b32.xlu0 %v1259, 32
    %v1497 = vpop.permute.xlu0 %1496
    %v1500 = vsel %vm1032, %v1493, 0
    %v1503 = vsel %vm985, %v1497, 0
    %1505 = vmatpush.bf16.msra.mxu0 0
    %1506 = vmatpush.bf16.msra.mxu0 0
    %1507 = vmatpush.bf16.msra.mxu0 0
    %1508 = vmatpush.bf16.msra.mxu0 0
    %1509 = vmatpush.bf16.msra.mxu0 0
    %1510 = vmatpush.bf16.msra.mxu0 0
    %1511 = vmatpush.bf16.msra.mxu0 %v1503
    %1512 = vmatpush.bf16.msra.mxu0 %v1495
    %1513 = vmatmul.bf16.gmra.mxu0 %v1500
    %v1514 = vpop.f32.mrf.mxu0
    %v1515 = vadd.f32 0.0, %v1514
    %v1516 = vpop.f32.mrf.mxu0
    %1517 = vdwg.mxu0
    %1519 = vrot.lane.b32.xlu0 %v1120, 32
    %v1520 = vpop.permute.xlu0 %1519
    %1523 = vrot.lane.b32.xlu0 %v1186, 64
    %v1524 = vpop.permute.xlu0 %1523
    %1527 = vrot.lane.b32.xlu0 %v1252, 96
    %v1528 = vpop.permute.xlu0 %1527
    %1531 = vrot.lane.b32.xlu0 %v1383, 32
    %v1532 = vpop.permute.xlu0 %1531
    %1535 = vrot.lane.b32.xlu0 %v1449, 64
    %v1536 = vpop.permute.xlu0 %1535
    %1539 = vrot.lane.b32.xlu0 %v1515, 96
    %v1540 = vpop.permute.xlu0 %1539
    %v1542 = vsel %vm994, %v1049, %v1520
    %vm1543 = vcmask 523264
    %v1544 = vsel %vm1543, %v1542, %v1524
    %vm1545 = vcmask 785408
    %v1546 = vsel %vm1545, %v1544, %v1528
    %v1547 = vsel %vm994, %v1312, %v1532
    %v1548 = vsel %vm1543, %v1547, %v1536
    %v1549 = vsel %vm1545, %v1548, %v1540
    %v1550 = vpack.c.bf16 %v1546, %v1546
    %v1551 = vpack.c.bf16 %v1549, %v1549
    %v1552 = vld [vmem:[#allocation7] sm:$0xff]
    %v1553 = vld [vmem:[#allocation7 + $0x8] sm:$0xff]
    %v1554 = vld [vmem:[#allocation7 + $0x10] sm:$0xff]
    %v1555 = vld [vmem:[#allocation7 + $0x18] sm:$0xff]
    %v1556 = vld [vmem:[#allocation7 + $0x20] sm:$0xff]
    %v1557 = vld [vmem:[#allocation7 + $0x28] sm:$0xff]
    %v1558 = vld [vmem:[#allocation7 + $0x30] sm:$0xff]
    %v1559 = vld [vmem:[#allocation7 + $0x38] sm:$0xff]
    %v1560 = vld [vmem:[#allocation7 + $0x40] sm:$0xff]
    %v1561 = vld [vmem:[#allocation7 + $0x48] sm:$0xff]
    %v1562 = vld [vmem:[#allocation7 + $0x50] sm:$0xff]
    %v1563 = vld [vmem:[#allocation7 + $0x58] sm:$0xff]
    %v1564 = vld [vmem:[#allocation7 + $0x60] sm:$0xff]
    %v1565 = vld [vmem:[#allocation7 + $0x68] sm:$0xff]
    %v1566 = vld [vmem:[#allocation7 + $0x70] sm:$0xff]
    %v1567 = vld [vmem:[#allocation7 + $0x78] sm:$0xff]
    %v1568 = vld [vmem:[#allocation7 + $0x80] sm:$0xff]
    %v1569 = vld [vmem:[#allocation7 + $0x88] sm:$0xff]
    %v1570 = vld [vmem:[#allocation7 + $0x90] sm:$0xff]
    %v1571 = vld [vmem:[#allocation7 + $0x98] sm:$0xff]
    %v1572 = vld [vmem:[#allocation7 + $0xa0] sm:$0xff]
    %v1573 = vld [vmem:[#allocation7 + $0xa8] sm:$0xff]
    %v1574 = vld [vmem:[#allocation7 + $0xb0] sm:$0xff]
    %v1575 = vld [vmem:[#allocation7 + $0xb8] sm:$0xff]
    %v1576 = vld [vmem:[#allocation7 + $0xc0] sm:$0xff]
    %v1577 = vld [vmem:[#allocation7 + $0xc8] sm:$0xff]
    %v1578 = vld [vmem:[#allocation7 + $0xd0] sm:$0xff]
    %v1579 = vld [vmem:[#allocation7 + $0xd8] sm:$0xff]
    %v1580 = vld [vmem:[#allocation7 + $0xe0] sm:$0xff]
    %v1581 = vld [vmem:[#allocation7 + $0xe8] sm:$0xff]
    %v1582 = vld [vmem:[#allocation7 + $0xf0] sm:$0xff]
    %v1583 = vld [vmem:[#allocation7 + $0xf8] sm:$0xff]
    %v1584 = vld [vmem:[#allocation8] sm:$0x3]
    %v1586 = vperm.slane %v1584, 0
    %v1587 = vperm.slane %v1584, 1
    %v1622 = vunpack.c.l.b16 %v1552
    %v1623 = vunpack.c.h.b16 %v1552
    %v1624 = vunpack.c.l.b16 %v1553
    %v1625 = vunpack.c.h.b16 %v1553
    %v1626 = vunpack.c.l.b16 %v1554
    %v1627 = vunpack.c.h.b16 %v1554
    %v1628 = vunpack.c.l.b16 %v1555
    %v1629 = vunpack.c.h.b16 %v1555
    %v1630 = vunpack.c.l.b16 %v1556
    %v1631 = vunpack.c.h.b16 %v1556
    %v1632 = vunpack.c.l.b16 %v1557
    %v1633 = vunpack.c.h.b16 %v1557
    %v1634 = vunpack.c.l.b16 %v1558
    %v1635 = vunpack.c.h.b16 %v1558
    %v1636 = vunpack.c.l.b16 %v1559
    %v1637 = vunpack.c.h.b16 %v1559
    %v1638 = vunpack.c.l.b16 %v1560
    %v1639 = vunpack.c.h.b16 %v1560
    %v1640 = vunpack.c.l.b16 %v1561
    %v1641 = vunpack.c.h.b16 %v1561
    %v1642 = vunpack.c.l.b16 %v1562
    %v1643 = vunpack.c.h.b16 %v1562
    %v1644 = vunpack.c.l.b16 %v1563
    %v1645 = vunpack.c.h.b16 %v1563
    %v1646 = vunpack.c.l.b16 %v1564
    %v1647 = vunpack.c.h.b16 %v1564
    %v1648 = vunpack.c.l.b16 %v1565
    %v1649 = vunpack.c.h.b16 %v1565
    %v1650 = vunpack.c.l.b16 %v1566
    %v1651 = vunpack.c.h.b16 %v1566
    %v1652 = vunpack.c.l.b16 %v1567
    %v1653 = vunpack.c.h.b16 %v1567
    %v1654 = vunpack.c.l.b16 %v1568
    %v1655 = vunpack.c.h.b16 %v1568
    %v1656 = vunpack.c.l.b16 %v1569
    %v1657 = vunpack.c.h.b16 %v1569
    %v1658 = vunpack.c.l.b16 %v1570
    %v1659 = vunpack.c.h.b16 %v1570
    %v1660 = vunpack.c.l.b16 %v1571
    %v1661 = vunpack.c.h.b16 %v1571
    %v1662 = vunpack.c.l.b16 %v1572
    %v1663 = vunpack.c.h.b16 %v1572
    %v1664 = vunpack.c.l.b16 %v1573
    %v1665 = vunpack.c.h.b16 %v1573
    %v1666 = vunpack.c.l.b16 %v1574
    %v1667 = vunpack.c.h.b16 %v1574
    %v1668 = vunpack.c.l.b16 %v1575
    %v1669 = vunpack.c.h.b16 %v1575
    %v1670 = vunpack.c.l.b16 %v1576
    %v1671 = vunpack.c.h.b16 %v1576
    %v1672 = vunpack.c.l.b16 %v1577
    %v1673 = vunpack.c.h.b16 %v1577
    %v1674 = vunpack.c.l.b16 %v1578
    %v1675 = vunpack.c.h.b16 %v1578
    %v1676 = vunpack.c.l.b16 %v1579
    %v1677 = vunpack.c.h.b16 %v1579
    %v1678 = vunpack.c.l.b16 %v1580
    %v1679 = vunpack.c.h.b16 %v1580
    %v1680 = vunpack.c.l.b16 %v1581
    %v1681 = vunpack.c.h.b16 %v1581
    %v1682 = vunpack.c.l.b16 %v1582
    %v1683 = vunpack.c.h.b16 %v1582
    %v1684 = vunpack.c.l.b16 %v1583
    %v1685 = vunpack.c.h.b16 %v1583
    %v1686 = vpack.c.b16 %v1624, %v1622
    %v1687 = vpack.c.b16 %v1625, %v1623
    %v1688 = vpack.c.b16 %v1628, %v1626
    %v1689 = vpack.c.b16 %v1629, %v1627
    %v1690 = vpack.c.b16 %v1632, %v1630
    %v1691 = vpack.c.b16 %v1633, %v1631
    %v1692 = vpack.c.b16 %v1636, %v1634
    %v1693 = vpack.c.b16 %v1637, %v1635
    %v1694 = vpack.c.b16 %v1640, %v1638
    %v1695 = vpack.c.b16 %v1641, %v1639
    %v1696 = vpack.c.b16 %v1644, %v1642
    %v1697 = vpack.c.b16 %v1645, %v1643
    %v1698 = vpack.c.b16 %v1648, %v1646
    %v1699 = vpack.c.b16 %v1649, %v1647
    %v1700 = vpack.c.b16 %v1652, %v1650
    %v1701 = vpack.c.b16 %v1653, %v1651
    %v1702 = vpack.c.b16 %v1656, %v1654
    %v1703 = vpack.c.b16 %v1657, %v1655
    %v1704 = vpack.c.b16 %v1660, %v1658
    %v1705 = vpack.c.b16 %v1661, %v1659
    %v1706 = vpack.c.b16 %v1664, %v1662
    %v1707 = vpack.c.b16 %v1665, %v1663
    %v1708 = vpack.c.b16 %v1668, %v1666
    %v1709 = vpack.c.b16 %v1669, %v1667
    %v1710 = vpack.c.b16 %v1672, %v1670
    %v1711 = vpack.c.b16 %v1673, %v1671
    %v1712 = vpack.c.b16 %v1676, %v1674
    %v1713 = vpack.c.b16 %v1677, %v1675
    %v1714 = vpack.c.b16 %v1680, %v1678
    %v1715 = vpack.c.b16 %v1681, %v1679
    %v1716 = vpack.c.b16 %v1684, %v1682
    %v1717 = vpack.c.b16 %v1685, %v1683
    %1750 = vmatpush.bf16.msra.mxu0 %v1700
    %1751 = vmatpush.bf16.msra.mxu0 %v1698
    %1752 = vmatpush.bf16.msra.mxu0 %v1696
    %1753 = vmatpush.bf16.msra.mxu0 %v1694
    %1754 = vmatpush.bf16.msra.mxu0 %v1692
    %1755 = vmatpush.bf16.msra.mxu0 %v1690
    %1756 = vmatpush.bf16.msra.mxu0 %v1688
    %1757 = vmatpush.bf16.msra.mxu0 %v1686
    %1758 = vmatmul.bf16.gmra.mxu0 %v1550
    %v1759 = vpop.f32.mrf.mxu0
    %v1760 = vadd.f32 %v1586, %v1759
    %v1761 = vpop.f32.mrf.mxu0
    %1762 = vdwg.mxu0
    %1763 = vmatpush.bf16.msra.mxu0 %v1716
    %1764 = vmatpush.bf16.msra.mxu0 %v1714
    %1765 = vmatpush.bf16.msra.mxu0 %v1712
    %1766 = vmatpush.bf16.msra.mxu0 %v1710
    %1767 = vmatpush.bf16.msra.mxu0 %v1708
    %1768 = vmatpush.bf16.msra.mxu0 %v1706
    %1769 = vmatpush.bf16.msra.mxu0 %v1704
    %1770 = vmatpush.bf16.msra.mxu0 %v1702
    %1771 = vmatmul.bf16.gmra.mxu0 %v1551
    %v1772 = vpop.f32.mrf.mxu0
    %v1773 = vadd.f32 %v1760, %v1772
    %v1774 = vpop.f32.mrf.mxu0
    %1775 = vdwg.mxu0
    %1776 = vmatpush.bf16.msra.mxu0 %v1701
    %1777 = vmatpush.bf16.msra.mxu0 %v1699
    %1778 = vmatpush.bf16.msra.mxu0 %v1697
    %1779 = vmatpush.bf16.msra.mxu0 %v1695
    %1780 = vmatpush.bf16.msra.mxu0 %v1693
    %1781 = vmatpush.bf16.msra.mxu0 %v1691
    %1782 = vmatpush.bf16.msra.mxu0 %v1689
    %1783 = vmatpush.bf16.msra.mxu0 %v1687
    %1784 = vmatmul.bf16.gmra.mxu0 %v1550
    %v1785 = vpop.f32.mrf.mxu0
    %v1786 = vadd.f32 %v1587, %v1785
    %v1787 = vpop.f32.mrf.mxu0
    %1788 = vdwg.mxu0
    %1789 = vmatpush.bf16.msra.mxu0 %v1717
    %1790 = vmatpush.bf16.msra.mxu0 %v1715
    %1791 = vmatpush.bf16.msra.mxu0 %v1713
    %1792 = vmatpush.bf16.msra.mxu0 %v1711
    %1793 = vmatpush.bf16.msra.mxu0 %v1709
    %1794 = vmatpush.bf16.msra.mxu0 %v1707
    %1795 = vmatpush.bf16.msra.mxu0 %v1705
    %1796 = vmatpush.bf16.msra.mxu0 %v1703
    %1797 = vmatmul.bf16.gmra.mxu0 %v1551
    %v1798 = vpop.f32.mrf.mxu0
    %v1799 = vadd.f32 %v1786, %v1798
    %v1800 = vpop.f32.mrf.mxu0
    %1801 = vdwg.mxu0
    %v1802 = vpack.c.bf16 %v1773, %v1773
    %v1803 = vpack.c.bf16 %v1799, %v1799
    %v1804 = vld [vmem:[#allocation10] sm:$0xff]
    %v1805 = vld [vmem:[#allocation10 + $0x8] sm:$0xff]
    %v1806 = vld [vmem:[#allocation10 + $0x10] sm:$0xff]
    %v1807 = vld [vmem:[#allocation10 + $0x18] sm:$0xff]
    %v1808 = vld [vmem:[#allocation10 + $0x20] sm:$0xff]
    %v1809 = vld [vmem:[#allocation10 + $0x28] sm:$0xff]
    %v1810 = vld [vmem:[#allocation10 + $0x30] sm:$0xff]
    %v1811 = vld [vmem:[#allocation10 + $0x38] sm:$0xff]
    %v1812 = vld [vmem:[#allocation10 + $0x40] sm:$0xff]
    %v1813 = vld [vmem:[#allocation10 + $0x48] sm:$0xff]
    %v1814 = vld [vmem:[#allocation10 + $0x50] sm:$0xff]
    %v1815 = vld [vmem:[#allocation10 + $0x58] sm:$0xff]
    %v1816 = vld [vmem:[#allocation10 + $0x60] sm:$0xff]
    %v1817 = vld [vmem:[#allocation10 + $0x68] sm:$0xff]
    %v1818 = vld [vmem:[#allocation10 + $0x70] sm:$0xff]
    %v1819 = vld [vmem:[#allocation10 + $0x78] sm:$0xff]
    %v1820 = vld [vmem:[#allocation10 + $0x80] sm:$0xff]
    %v1821 = vld [vmem:[#allocation10 + $0x88] sm:$0xff]
    %v1822 = vld [vmem:[#allocation10 + $0x90] sm:$0xff]
    %v1823 = vld [vmem:[#allocation10 + $0x98] sm:$0xff]
    %v1824 = vld [vmem:[#allocation10 + $0xa0] sm:$0xff]
    %v1825 = vld [vmem:[#allocation10 + $0xa8] sm:$0xff]
    %v1826 = vld [vmem:[#allocation10 + $0xb0] sm:$0xff]
    %v1827 = vld [vmem:[#allocation10 + $0xb8] sm:$0xff]
    %v1828 = vld [vmem:[#allocation10 + $0xc0] sm:$0xff]
    %v1829 = vld [vmem:[#allocation10 + $0xc8] sm:$0xff]
    %v1830 = vld [vmem:[#allocation10 + $0xd0] sm:$0xff]
    %v1831 = vld [vmem:[#allocation10 + $0xd8] sm:$0xff]
    %v1832 = vld [vmem:[#allocation10 + $0xe0] sm:$0xff]
    %v1833 = vld [vmem:[#allocation10 + $0xe8] sm:$0xff]
    %v1834 = vld [vmem:[#allocation10 + $0xf0] sm:$0xff]
    %v1835 = vld [vmem:[#allocation10 + $0xf8] sm:$0xff]
    %v1836 = vld [vmem:[#allocation10 + $0x100] sm:$0xff]
    %v1837 = vld [vmem:[#allocation10 + $0x108] sm:$0xff]
    %v1838 = vld [vmem:[#allocation10 + $0x110] sm:$0xff]
    %v1839 = vld [vmem:[#allocation10 + $0x118] sm:$0xff]
    %v1840 = vld [vmem:[#allocation10 + $0x120] sm:$0xff]
    %v1841 = vld [vmem:[#allocation10 + $0x128] sm:$0xff]
    %v1842 = vld [vmem:[#allocation10 + $0x130] sm:$0xff]
    %v1843 = vld [vmem:[#allocation10 + $0x138] sm:$0xff]
    %v1844 = vld [vmem:[#allocation10 + $0x140] sm:$0xff]
    %v1845 = vld [vmem:[#allocation10 + $0x148] sm:$0xff]
    %v1846 = vld [vmem:[#allocation10 + $0x150] sm:$0xff]
    %v1847 = vld [vmem:[#allocation10 + $0x158] sm:$0xff]
    %v1848 = vld [vmem:[#allocation10 + $0x160] sm:$0xff]
    %v1849 = vld [vmem:[#allocation10 + $0x168] sm:$0xff]
    %v1850 = vld [vmem:[#allocation10 + $0x170] sm:$0xff]
    %v1851 = vld [vmem:[#allocation10 + $0x178] sm:$0xff]
    %v1852 = vld [vmem:[#allocation10 + $0x180] sm:$0xff]
    %v1853 = vld [vmem:[#allocation10 + $0x188] sm:$0xff]
    %v1854 = vld [vmem:[#allocation10 + $0x190] sm:$0xff]
    %v1855 = vld [vmem:[#allocation10 + $0x198] sm:$0xff]
    %v1856 = vld [vmem:[#allocation10 + $0x1a0] sm:$0xff]
    %v1857 = vld [vmem:[#allocation10 + $0x1a8] sm:$0xff]
    %v1858 = vld [vmem:[#allocation10 + $0x1b0] sm:$0xff]
    %v1859 = vld [vmem:[#allocation10 + $0x1b8] sm:$0xff]
    %v1860 = vld [vmem:[#allocation10 + $0x1c0] sm:$0xff]
    %v1861 = vld [vmem:[#allocation10 + $0x1c8] sm:$0xff]
    %v1862 = vld [vmem:[#allocation10 + $0x1d0] sm:$0xff]
    %v1863 = vld [vmem:[#allocation10 + $0x1d8] sm:$0xff]
    %v1864 = vld [vmem:[#allocation10 + $0x1e0] sm:$0xff]
    %v1865 = vld [vmem:[#allocation10 + $0x1e8] sm:$0xff]
    %v1866 = vld [vmem:[#allocation10 + $0x1f0] sm:$0xff]
    %v1867 = vld [vmem:[#allocation10 + $0x1f8] sm:$0xff]
    %v1868 = vld [vmem:[#allocation10 + $0x200] sm:$0xff]
    %v1869 = vld [vmem:[#allocation10 + $0x208] sm:$0xff]
    %v1870 = vld [vmem:[#allocation10 + $0x210] sm:$0xff]
    %v1871 = vld [vmem:[#allocation10 + $0x218] sm:$0xff]
    %v1872 = vld [vmem:[#allocation10 + $0x220] sm:$0xff]
    %v1873 = vld [vmem:[#allocation10 + $0x228] sm:$0xff]
    %v1874 = vld [vmem:[#allocation10 + $0x230] sm:$0xff]
    %v1875 = vld [vmem:[#allocation10 + $0x238] sm:$0xff]
    %v1876 = vld [vmem:[#allocation10 + $0x240] sm:$0xff]
    %v1877 = vld [vmem:[#allocation10 + $0x248] sm:$0xff]
    %v1878 = vld [vmem:[#allocation10 + $0x250] sm:$0xff]
    %v1879 = vld [vmem:[#allocation10 + $0x258] sm:$0xff]
    %v1880 = vld [vmem:[#allocation10 + $0x260] sm:$0xff]
    %v1881 = vld [vmem:[#allocation10 + $0x268] sm:$0xff]
    %v1882 = vld [vmem:[#allocation10 + $0x270] sm:$0xff]
    %v1883 = vld [vmem:[#allocation10 + $0x278] sm:$0xff]
    %v1884 = vld [vmem:[#allocation10 + $0x280] sm:$0xff]
    %v1885 = vld [vmem:[#allocation10 + $0x288] sm:$0xff]
    %v1886 = vld [vmem:[#allocation10 + $0x290] sm:$0xff]
    %v1887 = vld [vmem:[#allocation10 + $0x298] sm:$0xff]
    %v1888 = vld [vmem:[#allocation10 + $0x2a0] sm:$0xff]
    %v1889 = vld [vmem:[#allocation10 + $0x2a8] sm:$0xff]
    %v1890 = vld [vmem:[#allocation10 + $0x2b0] sm:$0xff]
    %v1891 = vld [vmem:[#allocation10 + $0x2b8] sm:$0xff]
    %v1892 = vld [vmem:[#allocation10 + $0x2c0] sm:$0xff]
    %v1893 = vld [vmem:[#allocation10 + $0x2c8] sm:$0xff]
    %v1894 = vld [vmem:[#allocation10 + $0x2d0] sm:$0xff]
    %v1895 = vld [vmem:[#allocation10 + $0x2d8] sm:$0xff]
    %v1896 = vld [vmem:[#allocation10 + $0x2e0] sm:$0xff]
    %v1897 = vld [vmem:[#allocation10 + $0x2e8] sm:$0xff]
    %v1898 = vld [vmem:[#allocation10 + $0x2f0] sm:$0xff]
    %v1899 = vld [vmem:[#allocation10 + $0x2f8] sm:$0xff]
    %v1900 = vld [vmem:[#allocation10 + $0x300] sm:$0xff]
    %v1901 = vld [vmem:[#allocation10 + $0x308] sm:$0xff]
    %v1902 = vld [vmem:[#allocation10 + $0x310] sm:$0xff]
    %v1903 = vld [vmem:[#allocation10 + $0x318] sm:$0xff]
    %v1904 = vld [vmem:[#allocation10 + $0x320] sm:$0xff]
    %v1905 = vld [vmem:[#allocation10 + $0x328] sm:$0xff]
    %v1906 = vld [vmem:[#allocation10 + $0x330] sm:$0xff]
    %v1907 = vld [vmem:[#allocation10 + $0x338] sm:$0xff]
    %v1908 = vld [vmem:[#allocation10 + $0x340] sm:$0xff]
    %v1909 = vld [vmem:[#allocation10 + $0x348] sm:$0xff]
    %v1910 = vld [vmem:[#allocation10 + $0x350] sm:$0xff]
    %v1911 = vld [vmem:[#allocation10 + $0x358] sm:$0xff]
    %v1912 = vld [vmem:[#allocation10 + $0x360] sm:$0xff]
    %v1913 = vld [vmem:[#allocation10 + $0x368] sm:$0xff]
    %v1914 = vld [vmem:[#allocation10 + $0x370] sm:$0xff]
    %v1915 = vld [vmem:[#allocation10 + $0x378] sm:$0xff]
    %v1916 = vld [vmem:[#allocation10 + $0x380] sm:$0xff]
    %v1917 = vld [vmem:[#allocation10 + $0x388] sm:$0xff]
    %v1918 = vld [vmem:[#allocation10 + $0x390] sm:$0xff]
    %v1919 = vld [vmem:[#allocation10 + $0x398] sm:$0xff]
    %v1920 = vld [vmem:[#allocation10 + $0x3a0] sm:$0xff]
    %v1921 = vld [vmem:[#allocation10 + $0x3a8] sm:$0xff]
    %v1922 = vld [vmem:[#allocation10 + $0x3b0] sm:$0xff]
    %v1923 = vld [vmem:[#allocation10 + $0x3b8] sm:$0xff]
    %v1924 = vld [vmem:[#allocation10 + $0x3c0] sm:$0xff]
    %v1925 = vld [vmem:[#allocation10 + $0x3c8] sm:$0xff]
    %v1926 = vld [vmem:[#allocation10 + $0x3d0] sm:$0xff]
    %v1927 = vld [vmem:[#allocation10 + $0x3d8] sm:$0xff]
    %v1928 = vld [vmem:[#allocation10 + $0x3e0] sm:$0xff]
    %v1929 = vld [vmem:[#allocation10 + $0x3e8] sm:$0xff]
    %v1930 = vld [vmem:[#allocation10 + $0x3f0] sm:$0xff]
    %v1931 = vld [vmem:[#allocation10 + $0x3f8] sm:$0xff]
    %v1932 = vld [vmem:[#allocation11] sm:$0xff]
    %v1934 = vperm.slane %v1932, 0
    %v1935 = vperm.slane %v1932, 1
    %v1936 = vperm.slane %v1932, 2
    %v1937 = vperm.slane %v1932, 3
    %v1938 = vperm.slane %v1932, 4
    %v1939 = vperm.slane %v1932, 5
    %v1940 = vperm.slane %v1932, 6
    %v1941 = vperm.slane %v1932, 7
    %v2078 = vunpack.c.l.b16 %v1804
    %v2079 = vunpack.c.h.b16 %v1804
    %v2080 = vunpack.c.l.b16 %v1805
    %v2081 = vunpack.c.h.b16 %v1805
    %v2082 = vunpack.c.l.b16 %v1806
    %v2083 = vunpack.c.h.b16 %v1806
    %v2084 = vunpack.c.l.b16 %v1807
    %v2085 = vunpack.c.h.b16 %v1807
    %v2086 = vunpack.c.l.b16 %v1808
    %v2087 = vunpack.c.h.b16 %v1808
    %v2088 = vunpack.c.l.b16 %v1809
    %v2089 = vunpack.c.h.b16 %v1809
    %v2090 = vunpack.c.l.b16 %v1810
    %v2091 = vunpack.c.h.b16 %v1810
    %v2092 = vunpack.c.l.b16 %v1811
    %v2093 = vunpack.c.h.b16 %v1811
    %v2094 = vunpack.c.l.b16 %v1812
    %v2095 = vunpack.c.h.b16 %v1812
    %v2096 = vunpack.c.l.b16 %v1813
    %v2097 = vunpack.c.h.b16 %v1813
    %v2098 = vunpack.c.l.b16 %v1814
    %v2099 = vunpack.c.h.b16 %v1814
    %v2100 = vunpack.c.l.b16 %v1815
    %v2101 = vunpack.c.h.b16 %v1815
    %v2102 = vunpack.c.l.b16 %v1816
    %v2103 = vunpack.c.h.b16 %v1816
    %v2104 = vunpack.c.l.b16 %v1817
    %v2105 = vunpack.c.h.b16 %v1817
    %v2106 = vunpack.c.l.b16 %v1818
    %v2107 = vunpack.c.h.b16 %v1818
    %v2108 = vunpack.c.l.b16 %v1819
    %v2109 = vunpack.c.h.b16 %v1819
    %v2110 = vunpack.c.l.b16 %v1820
    %v2111 = vunpack.c.h.b16 %v1820
    %v2112 = vunpack.c.l.b16 %v1821
    %v2113 = vunpack.c.h.b16 %v1821
    %v2114 = vunpack.c.l.b16 %v1822
    %v2115 = vunpack.c.h.b16 %v1822
    %v2116 = vunpack.c.l.b16 %v1823
    %v2117 = vunpack.c.h.b16 %v1823
    %v2118 = vunpack.c.l.b16 %v1824
    %v2119 = vunpack.c.h.b16 %v1824
    %v2120 = vunpack.c.l.b16 %v1825
    %v2121 = vunpack.c.h.b16 %v1825
    %v2122 = vunpack.c.l.b16 %v1826
    %v2123 = vunpack.c.h.b16 %v1826
    %v2124 = vunpack.c.l.b16 %v1827
    %v2125 = vunpack.c.h.b16 %v1827
    %v2126 = vunpack.c.l.b16 %v1828
    %v2127 = vunpack.c.h.b16 %v1828
    %v2128 = vunpack.c.l.b16 %v1829
    %v2129 = vunpack.c.h.b16 %v1829
    %v2130 = vunpack.c.l.b16 %v1830
    %v2131 = vunpack.c.h.b16 %v1830
    %v2132 = vunpack.c.l.b16 %v1831
    %v2133 = vunpack.c.h.b16 %v1831
    %v2134 = vunpack.c.l.b16 %v1832
    %v2135 = vunpack.c.h.b16 %v1832
    %v2136 = vunpack.c.l.b16 %v1833
    %v2137 = vunpack.c.h.b16 %v1833
    %v2138 = vunpack.c.l.b16 %v1834
    %v2139 = vunpack.c.h.b16 %v1834
    %v2140 = vunpack.c.l.b16 %v1835
    %v2141 = vunpack.c.h.b16 %v1835
    %v2142 = vunpack.c.l.b16 %v1836
    %v2143 = vunpack.c.h.b16 %v1836
    %v2144 = vunpack.c.l.b16 %v1837
    %v2145 = vunpack.c.h.b16 %v1837
    %v2146 = vunpack.c.l.b16 %v1838
    %v2147 = vunpack.c.h.b16 %v1838
    %v2148 = vunpack.c.l.b16 %v1839
    %v2149 = vunpack.c.h.b16 %v1839
    %v2150 = vunpack.c.l.b16 %v1840
    %v2151 = vunpack.c.h.b16 %v1840
    %v2152 = vunpack.c.l.b16 %v1841
    %v2153 = vunpack.c.h.b16 %v1841
    %v2154 = vunpack.c.l.b16 %v1842
    %v2155 = vunpack.c.h.b16 %v1842
    %v2156 = vunpack.c.l.b16 %v1843
    %v2157 = vunpack.c.h.b16 %v1843
    %v2158 = vunpack.c.l.b16 %v1844
    %v2159 = vunpack.c.h.b16 %v1844
    %v2160 = vunpack.c.l.b16 %v1845
    %v2161 = vunpack.c.h.b16 %v1845
    %v2162 = vunpack.c.l.b16 %v1846
    %v2163 = vunpack.c.h.b16 %v1846
    %v2164 = vunpack.c.l.b16 %v1847
    %v2165 = vunpack.c.h.b16 %v1847
    %v2166 = vunpack.c.l.b16 %v1848
    %v2167 = vunpack.c.h.b16 %v1848
    %v2168 = vunpack.c.l.b16 %v1849
    %v2169 = vunpack.c.h.b16 %v1849
    %v2170 = vunpack.c.l.b16 %v1850
    %v2171 = vunpack.c.h.b16 %v1850
    %v2172 = vunpack.c.l.b16 %v1851
    %v2173 = vunpack.c.h.b16 %v1851
    %v2174 = vunpack.c.l.b16 %v1852
    %v2175 = vunpack.c.h.b16 %v1852
    %v2176 = vunpack.c.l.b16 %v1853
    %v2177 = vunpack.c.h.b16 %v1853
    %v2178 = vunpack.c.l.b16 %v1854
    %v2179 = vunpack.c.h.b16 %v1854
    %v2180 = vunpack.c.l.b16 %v1855
    %v2181 = vunpack.c.h.b16 %v1855
    %v2182 = vunpack.c.l.b16 %v1856
    %v2183 = vunpack.c.h.b16 %v1856
    %v2184 = vunpack.c.l.b16 %v1857
    %v2185 = vunpack.c.h.b16 %v1857
    %v2186 = vunpack.c.l.b16 %v1858
    %v2187 = vunpack.c.h.b16 %v1858
    %v2188 = vunpack.c.l.b16 %v1859
    %v2189 = vunpack.c.h.b16 %v1859
    %v2190 = vunpack.c.l.b16 %v1860
    %v2191 = vunpack.c.h.b16 %v1860
    %v2192 = vunpack.c.l.b16 %v1861
    %v2193 = vunpack.c.h.b16 %v1861
    %v2194 = vunpack.c.l.b16 %v1862
    %v2195 = vunpack.c.h.b16 %v1862
    %v2196 = vunpack.c.l.b16 %v1863
    %v2197 = vunpack.c.h.b16 %v1863
    %v2198 = vunpack.c.l.b16 %v1864
    %v2199 = vunpack.c.h.b16 %v1864
    %v2200 = vunpack.c.l.b16 %v1865
    %v2201 = vunpack.c.h.b16 %v1865
    %v2202 = vunpack.c.l.b16 %v1866
    %v2203 = vunpack.c.h.b16 %v1866
    %v2204 = vunpack.c.l.b16 %v1867
    %v2205 = vunpack.c.h.b16 %v1867
    %v2206 = vunpack.c.l.b16 %v1868
    %v2207 = vunpack.c.h.b16 %v1868
    %v2208 = vunpack.c.l.b16 %v1869
    %v2209 = vunpack.c.h.b16 %v1869
    %v2210 = vunpack.c.l.b16 %v1870
    %v2211 = vunpack.c.h.b16 %v1870
    %v2212 = vunpack.c.l.b16 %v1871
    %v2213 = vunpack.c.h.b16 %v1871
    %v2214 = vunpack.c.l.b16 %v1872
    %v2215 = vunpack.c.h.b16 %v1872
    %v2216 = vunpack.c.l.b16 %v1873
    %v2217 = vunpack.c.h.b16 %v1873
    %v2218 = vunpack.c.l.b16 %v1874
    %v2219 = vunpack.c.h.b16 %v1874
    %v2220 = vunpack.c.l.b16 %v1875
    %v2221 = vunpack.c.h.b16 %v1875
    %v2222 = vunpack.c.l.b16 %v1876
    %v2223 = vunpack.c.h.b16 %v1876
    %v2224 = vunpack.c.l.b16 %v1877
    %v2225 = vunpack.c.h.b16 %v1877
    %v2226 = vunpack.c.l.b16 %v1878
    %v2227 = vunpack.c.h.b16 %v1878
    %v2228 = vunpack.c.l.b16 %v1879
    %v2229 = vunpack.c.h.b16 %v1879
    %v2230 = vunpack.c.l.b16 %v1880
    %v2231 = vunpack.c.h.b16 %v1880
    %v2232 = vunpack.c.l.b16 %v1881
    %v2233 = vunpack.c.h.b16 %v1881
    %v2234 = vunpack.c.l.b16 %v1882
    %v2235 = vunpack.c.h.b16 %v1882
    %v2236 = vunpack.c.l.b16 %v1883
    %v2237 = vunpack.c.h.b16 %v1883
    %v2238 = vunpack.c.l.b16 %v1884
    %v2239 = vunpack.c.h.b16 %v1884
    %v2240 = vunpack.c.l.b16 %v1885
    %v2241 = vunpack.c.h.b16 %v1885
    %v2242 = vunpack.c.l.b16 %v1886
    %v2243 = vunpack.c.h.b16 %v1886
    %v2244 = vunpack.c.l.b16 %v1887
    %v2245 = vunpack.c.h.b16 %v1887
    %v2246 = vunpack.c.l.b16 %v1888
    %v2247 = vunpack.c.h.b16 %v1888
    %v2248 = vunpack.c.l.b16 %v1889
    %v2249 = vunpack.c.h.b16 %v1889
    %v2250 = vunpack.c.l.b16 %v1890
    %v2251 = vunpack.c.h.b16 %v1890
    %v2252 = vunpack.c.l.b16 %v1891
    %v2253 = vunpack.c.h.b16 %v1891
    %v2254 = vunpack.c.l.b16 %v1892
    %v2255 = vunpack.c.h.b16 %v1892
    %v2256 = vunpack.c.l.b16 %v1893
    %v2257 = vunpack.c.h.b16 %v1893
    %v2258 = vunpack.c.l.b16 %v1894
    %v2259 = vunpack.c.h.b16 %v1894
    %v2260 = vunpack.c.l.b16 %v1895
    %v2261 = vunpack.c.h.b16 %v1895
    %v2262 = vunpack.c.l.b16 %v1896
    %v2263 = vunpack.c.h.b16 %v1896
    %v2264 = vunpack.c.l.b16 %v1897
    %v2265 = vunpack.c.h.b16 %v1897
    %v2266 = vunpack.c.l.b16 %v1898
    %v2267 = vunpack.c.h.b16 %v1898
    %v2268 = vunpack.c.l.b16 %v1899
    %v2269 = vunpack.c.h.b16 %v1899
    %v2270 = vunpack.c.l.b16 %v1900
    %v2271 = vunpack.c.h.b16 %v1900
    %v2272 = vunpack.c.l.b16 %v1901
    %v2273 = vunpack.c.h.b16 %v1901
    %v2274 = vunpack.c.l.b16 %v1902
    %v2275 = vunpack.c.h.b16 %v1902
    %v2276 = vunpack.c.l.b16 %v1903
    %v2277 = vunpack.c.h.b16 %v1903
    %v2278 = vunpack.c.l.b16 %v1904
    %v2279 = vunpack.c.h.b16 %v1904
    %v2280 = vunpack.c.l.b16 %v1905
    %v2281 = vunpack.c.h.b16 %v1905
    %v2282 = vunpack.c.l.b16 %v1906
    %v2283 = vunpack.c.h.b16 %v1906
    %v2284 = vunpack.c.l.b16 %v1907
    %v2285 = vunpack.c.h.b16 %v1907
    %v2286 = vunpack.c.l.b16 %v1908
    %v2287 = vunpack.c.h.b16 %v1908
    %v2288 = vunpack.c.l.b16 %v1909
    %v2289 = vunpack.c.h.b16 %v1909
    %v2290 = vunpack.c.l.b16 %v1910
    %v2291 = vunpack.c.h.b16 %v1910
    %v2292 = vunpack.c.l.b16 %v1911
    %v2293 = vunpack.c.h.b16 %v1911
    %v2294 = vunpack.c.l.b16 %v1912
    %v2295 = vunpack.c.h.b16 %v1912
    %v2296 = vunpack.c.l.b16 %v1913
    %v2297 = vunpack.c.h.b16 %v1913
    %v2298 = vunpack.c.l.b16 %v1914
    %v2299 = vunpack.c.h.b16 %v1914
    %v2300 = vunpack.c.l.b16 %v1915
    %v2301 = vunpack.c.h.b16 %v1915
    %v2302 = vunpack.c.l.b16 %v1916
    %v2303 = vunpack.c.h.b16 %v1916
    %v2304 = vunpack.c.l.b16 %v1917
    %v2305 = vunpack.c.h.b16 %v1917
    %v2306 = vunpack.c.l.b16 %v1918
    %v2307 = vunpack.c.h.b16 %v1918
    %v2308 = vunpack.c.l.b16 %v1919
    %v2309 = vunpack.c.h.b16 %v1919
    %v2310 = vunpack.c.l.b16 %v1920
    %v2311 = vunpack.c.h.b16 %v1920
    %v2312 = vunpack.c.l.b16 %v1921
    %v2313 = vunpack.c.h.b16 %v1921
    %v2314 = vunpack.c.l.b16 %v1922
    %v2315 = vunpack.c.h.b16 %v1922
    %v2316 = vunpack.c.l.b16 %v1923
    %v2317 = vunpack.c.h.b16 %v1923
    %v2318 = vunpack.c.l.b16 %v1924
    %v2319 = vunpack.c.h.b16 %v1924
    %v2320 = vunpack.c.l.b16 %v1925
    %v2321 = vunpack.c.h.b16 %v1925
    %v2322 = vunpack.c.l.b16 %v1926
    %v2323 = vunpack.c.h.b16 %v1926
    %v2324 = vunpack.c.l.b16 %v1927
    %v2325 = vunpack.c.h.b16 %v1927
    %v2326 = vunpack.c.l.b16 %v1928
    %v2327 = vunpack.c.h.b16 %v1928
    %v2328 = vunpack.c.l.b16 %v1929
    %v2329 = vunpack.c.h.b16 %v1929
    %v2330 = vunpack.c.l.b16 %v1930
    %v2331 = vunpack.c.h.b16 %v1930
    %v2332 = vunpack.c.l.b16 %v1931
    %v2333 = vunpack.c.h.b16 %v1931
    %v2334 = vpack.c.b16 %v2086, %v2078
    %v2335 = vpack.c.b16 %v2087, %v2079
    %v2336 = vpack.c.b16 %v2088, %v2080
    %v2337 = vpack.c.b16 %v2089, %v2081
    %v2338 = vpack.c.b16 %v2090, %v2082
    %v2339 = vpack.c.b16 %v2091, %v2083
    %v2340 = vpack.c.b16 %v2092, %v2084
    %v2341 = vpack.c.b16 %v2093, %v2085
    %v2342 = vpack.c.b16 %v2102, %v2094
    %v2343 = vpack.c.b16 %v2103, %v2095
    %v2344 = vpack.c.b16 %v2104, %v2096
    %v2345 = vpack.c.b16 %v2105, %v2097
    %v2346 = vpack.c.b16 %v2106, %v2098
    %v2347 = vpack.c.b16 %v2107, %v2099
    %v2348 = vpack.c.b16 %v2108, %v2100
    %v2349 = vpack.c.b16 %v2109, %v2101
    %v2350 = vpack.c.b16 %v2118, %v2110
    %v2351 = vpack.c.b16 %v2119, %v2111
    %v2352 = vpack.c.b16 %v2120, %v2112
    %v2353 = vpack.c.b16 %v2121, %v2113
    %v2354 = vpack.c.b16 %v2122, %v2114
    %v2355 = vpack.c.b16 %v2123, %v2115
    %v2356 = vpack.c.b16 %v2124, %v2116
    %v2357 = vpack.c.b16 %v2125, %v2117
    %v2358 = vpack.c.b16 %v2134, %v2126
    %v2359 = vpack.c.b16 %v2135, %v2127
    %v2360 = vpack.c.b16 %v2136, %v2128
    %v2361 = vpack.c.b16 %v2137, %v2129
    %v2362 = vpack.c.b16 %v2138, %v2130
    %v2363 = vpack.c.b16 %v2139, %v2131
    %v2364 = vpack.c.b16 %v2140, %v2132
    %v2365 = vpack.c.b16 %v2141, %v2133
    %v2366 = vpack.c.b16 %v2150, %v2142
    %v2367 = vpack.c.b16 %v2151, %v2143
    %v2368 = vpack.c.b16 %v2152, %v2144
    %v2369 = vpack.c.b16 %v2153, %v2145
    %v2370 = vpack.c.b16 %v2154, %v2146
    %v2371 = vpack.c.b16 %v2155, %v2147
    %v2372 = vpack.c.b16 %v2156, %v2148
    %v2373 = vpack.c.b16 %v2157, %v2149
    %v2374 = vpack.c.b16 %v2166, %v2158
    %v2375 = vpack.c.b16 %v2167, %v2159
    %v2376 = vpack.c.b16 %v2168, %v2160
    %v2377 = vpack.c.b16 %v2169, %v2161
    %v2378 = vpack.c.b16 %v2170, %v2162
    %v2379 = vpack.c.b16 %v2171, %v2163
    %v2380 = vpack.c.b16 %v2172, %v2164
    %v2381 = vpack.c.b16 %v2173, %v2165
    %v2382 = vpack.c.b16 %v2182, %v2174
    %v2383 = vpack.c.b16 %v2183, %v2175
    %v2384 = vpack.c.b16 %v2184, %v2176
    %v2385 = vpack.c.b16 %v2185, %v2177
    %v2386 = vpack.c.b16 %v2186, %v2178
    %v2387 = vpack.c.b16 %v2187, %v2179
    %v2388 = vpack.c.b16 %v2188, %v2180
    %v2389 = vpack.c.b16 %v2189, %v2181
    %v2390 = vpack.c.b16 %v2198, %v2190
    %v2391 = vpack.c.b16 %v2199, %v2191
    %v2392 = vpack.c.b16 %v2200, %v2192
    %v2393 = vpack.c.b16 %v2201, %v2193
    %v2394 = vpack.c.b16 %v2202, %v2194
    %v2395 = vpack.c.b16 %v2203, %v2195
    %v2396 = vpack.c.b16 %v2204, %v2196
    %v2397 = vpack.c.b16 %v2205, %v2197
    %v2398 = vpack.c.b16 %v2214, %v2206
    %v2399 = vpack.c.b16 %v2215, %v2207
    %v2400 = vpack.c.b16 %v2216, %v2208
    %v2401 = vpack.c.b16 %v2217, %v2209
    %v2402 = vpack.c.b16 %v2218, %v2210
    %v2403 = vpack.c.b16 %v2219, %v2211
    %v2404 = vpack.c.b16 %v2220, %v2212
    %v2405 = vpack.c.b16 %v2221, %v2213
    %v2406 = vpack.c.b16 %v2230, %v2222
    %v2407 = vpack.c.b16 %v2231, %v2223
    %v2408 = vpack.c.b16 %v2232, %v2224
    %v2409 = vpack.c.b16 %v2233, %v2225
    %v2410 = vpack.c.b16 %v2234, %v2226
    %v2411 = vpack.c.b16 %v2235, %v2227
    %v2412 = vpack.c.b16 %v2236, %v2228
    %v2413 = vpack.c.b16 %v2237, %v2229
    %v2414 = vpack.c.b16 %v2246, %v2238
    %v2415 = vpack.c.b16 %v2247, %v2239
    %v2416 = vpack.c.b16 %v2248, %v2240
    %v2417 = vpack.c.b16 %v2249, %v2241
    %v2418 = vpack.c.b16 %v2250, %v2242
    %v2419 = vpack.c.b16 %v2251, %v2243
    %v2420 = vpack.c.b16 %v2252, %v2244
    %v2421 = vpack.c.b16 %v2253, %v2245
    %v2422 = vpack.c.b16 %v2262, %v2254
    %v2423 = vpack.c.b16 %v2263, %v2255
    %v2424 = vpack.c.b16 %v2264, %v2256
    %v2425 = vpack.c.b16 %v2265, %v2257
    %v2426 = vpack.c.b16 %v2266, %v2258
    %v2427 = vpack.c.b16 %v2267, %v2259
    %v2428 = vpack.c.b16 %v2268, %v2260
    %v2429 = vpack.c.b16 %v2269, %v2261
    %v2430 = vpack.c.b16 %v2278, %v2270
    %v2431 = vpack.c.b16 %v2279, %v2271
    %v2432 = vpack.c.b16 %v2280, %v2272
    %v2433 = vpack.c.b16 %v2281, %v2273
    %v2434 = vpack.c.b16 %v2282, %v2274
    %v2435 = vpack.c.b16 %v2283, %v2275
    %v2436 = vpack.c.b16 %v2284, %v2276
    %v2437 = vpack.c.b16 %v2285, %v2277
    %v2438 = vpack.c.b16 %v2294, %v2286
    %v2439 = vpack.c.b16 %v2295, %v2287
    %v2440 = vpack.c.b16 %v2296, %v2288
    %v2441 = vpack.c.b16 %v2297, %v2289
    %v2442 = vpack.c.b16 %v2298, %v2290
    %v2443 = vpack.c.b16 %v2299, %v2291
    %v2444 = vpack.c.b16 %v2300, %v2292
    %v2445 = vpack.c.b16 %v2301, %v2293
    %v2446 = vpack.c.b16 %v2310, %v2302
    %v2447 = vpack.c.b16 %v2311, %v2303
    %v2448 = vpack.c.b16 %v2312, %v2304
    %v2449 = vpack.c.b16 %v2313, %v2305
    %v2450 = vpack.c.b16 %v2314, %v2306
    %v2451 = vpack.c.b16 %v2315, %v2307
    %v2452 = vpack.c.b16 %v2316, %v2308
    %v2453 = vpack.c.b16 %v2317, %v2309
    %v2454 = vpack.c.b16 %v2326, %v2318
    %v2455 = vpack.c.b16 %v2327, %v2319
    %v2456 = vpack.c.b16 %v2328, %v2320
    %v2457 = vpack.c.b16 %v2329, %v2321
    %v2458 = vpack.c.b16 %v2330, %v2322
    %v2459 = vpack.c.b16 %v2331, %v2323
    %v2460 = vpack.c.b16 %v2332, %v2324
    %v2461 = vpack.c.b16 %v2333, %v2325
    %2590 = vmatpush.bf16.msra.mxu0 %v2390
    %2591 = vmatpush.bf16.msra.mxu0 %v2382
    %2592 = vmatpush.bf16.msra.mxu0 %v2374
    %2593 = vmatpush.bf16.msra.mxu0 %v2366
    %2594 = vmatpush.bf16.msra.mxu0 %v2358
    %2595 = vmatpush.bf16.msra.mxu0 %v2350
    %2596 = vmatpush.bf16.msra.mxu0 %v2342
    %2597 = vmatpush.bf16.msra.mxu0 %v2334
    %2598 = vmatmul.bf16.gmra.mxu0 %v1802
    %v2599 = vpop.f32.mrf.mxu0
    %v2600 = vadd.f32 %v1934, %v2599
    %v2601 = vpop.f32.mrf.mxu0
    %2602 = vdwg.mxu0
    %2603 = vmatpush.bf16.msra.mxu0 %v2454
    %2604 = vmatpush.bf16.msra.mxu0 %v2446
    %2605 = vmatpush.bf16.msra.mxu0 %v2438
    %2606 = vmatpush.bf16.msra.mxu0 %v2430
    %2607 = vmatpush.bf16.msra.mxu0 %v2422
    %2608 = vmatpush.bf16.msra.mxu0 %v2414
    %2609 = vmatpush.bf16.msra.mxu0 %v2406
    %2610 = vmatpush.bf16.msra.mxu0 %v2398
    %2611 = vmatmul.bf16.gmra.mxu0 %v1803
    %v2612 = vpop.f32.mrf.mxu0
    %v2613 = vadd.f32 %v2600, %v2612
    %v2614 = vpop.f32.mrf.mxu0
    %2615 = vdwg.mxu0
    %2616 = vmatpush.bf16.msra.mxu0 %v2391
    %2617 = vmatpush.bf16.msra.mxu0 %v2383
    %2618 = vmatpush.bf16.msra.mxu0 %v2375
    %2619 = vmatpush.bf16.msra.mxu0 %v2367
    %2620 = vmatpush.bf16.msra.mxu0 %v2359
    %2621 = vmatpush.bf16.msra.mxu0 %v2351
    %2622 = vmatpush.bf16.msra.mxu0 %v2343
    %2623 = vmatpush.bf16.msra.mxu0 %v2335
    %2624 = vmatmul.bf16.gmra.mxu0 %v1802
    %v2625 = vpop.f32.mrf.mxu0
    %v2626 = vadd.f32 %v1935, %v2625
    %v2627 = vpop.f32.mrf.mxu0
    %2628 = vdwg.mxu0
    %2629 = vmatpush.bf16.msra.mxu0 %v2455
    %2630 = vmatpush.bf16.msra.mxu0 %v2447
    %2631 = vmatpush.bf16.msra.mxu0 %v2439
    %2632 = vmatpush.bf16.msra.mxu0 %v2431
    %2633 = vmatpush.bf16.msra.mxu0 %v2423
    %2634 = vmatpush.bf16.msra.mxu0 %v2415
    %2635 = vmatpush.bf16.msra.mxu0 %v2407
    %2636 = vmatpush.bf16.msra.mxu0 %v2399
    %2637 = vmatmul.bf16.gmra.mxu0 %v1803
    %v2638 = vpop.f32.mrf.mxu0
    %v2639 = vadd.f32 %v2626, %v2638
    %v2640 = vpop.f32.mrf.mxu0
    %2641 = vdwg.mxu0
    %2642 = vmatpush.bf16.msra.mxu0 %v2392
    %2643 = vmatpush.bf16.msra.mxu0 %v2384
    %2644 = vmatpush.bf16.msra.mxu0 %v2376
    %2645 = vmatpush.bf16.msra.mxu0 %v2368
    %2646 = vmatpush.bf16.msra.mxu0 %v2360
    %2647 = vmatpush.bf16.msra.mxu0 %v2352
    %2648 = vmatpush.bf16.msra.mxu0 %v2344
    %2649 = vmatpush.bf16.msra.mxu0 %v2336
    %2650 = vmatmul.bf16.gmra.mxu0 %v1802
    %v2651 = vpop.f32.mrf.mxu0
    %v2652 = vadd.f32 %v1936, %v2651
    %v2653 = vpop.f32.mrf.mxu0
    %2654 = vdwg.mxu0
    %2655 = vmatpush.bf16.msra.mxu0 %v2456
    %2656 = vmatpush.bf16.msra.mxu0 %v2448
    %2657 = vmatpush.bf16.msra.mxu0 %v2440
    %2658 = vmatpush.bf16.msra.mxu0 %v2432
    %2659 = vmatpush.bf16.msra.mxu0 %v2424
    %2660 = vmatpush.bf16.msra.mxu0 %v2416
    %2661 = vmatpush.bf16.msra.mxu0 %v2408
    %2662 = vmatpush.bf16.msra.mxu0 %v2400
    %2663 = vmatmul.bf16.gmra.mxu0 %v1803
    %v2664 = vpop.f32.mrf.mxu0
    %v2665 = vadd.f32 %v2652, %v2664
    %v2666 = vpop.f32.mrf.mxu0
    %2667 = vdwg.mxu0
    %2668 = vmatpush.bf16.msra.mxu0 %v2393
    %2669 = vmatpush.bf16.msra.mxu0 %v2385
    %2670 = vmatpush.bf16.msra.mxu0 %v2377
    %2671 = vmatpush.bf16.msra.mxu0 %v2369
    %2672 = vmatpush.bf16.msra.mxu0 %v2361
    %2673 = vmatpush.bf16.msra.mxu0 %v2353
    %2674 = vmatpush.bf16.msra.mxu0 %v2345
    %2675 = vmatpush.bf16.msra.mxu0 %v2337
    %2676 = vmatmul.bf16.gmra.mxu0 %v1802
    %v2677 = vpop.f32.mrf.mxu0
    %v2678 = vadd.f32 %v1937, %v2677
    %v2679 = vpop.f32.mrf.mxu0
    %2680 = vdwg.mxu0
    %2681 = vmatpush.bf16.msra.mxu0 %v2457
    %2682 = vmatpush.bf16.msra.mxu0 %v2449
    %2683 = vmatpush.bf16.msra.mxu0 %v2441
    %2684 = vmatpush.bf16.msra.mxu0 %v2433
    %2685 = vmatpush.bf16.msra.mxu0 %v2425
    %2686 = vmatpush.bf16.msra.mxu0 %v2417
    %2687 = vmatpush.bf16.msra.mxu0 %v2409
    %2688 = vmatpush.bf16.msra.mxu0 %v2401
    %2689 = vmatmul.bf16.gmra.mxu0 %v1803
    %v2690 = vpop.f32.mrf.mxu0
    %v2691 = vadd.f32 %v2678, %v2690
    %v2692 = vpop.f32.mrf.mxu0
    %2693 = vdwg.mxu0
    %2694 = vmatpush.bf16.msra.mxu0 %v2394
    %2695 = vmatpush.bf16.msra.mxu0 %v2386
    %2696 = vmatpush.bf16.msra.mxu0 %v2378
    %2697 = vmatpush.bf16.msra.mxu0 %v2370
    %2698 = vmatpush.bf16.msra.mxu0 %v2362
    %2699 = vmatpush.bf16.msra.mxu0 %v2354
    %2700 = vmatpush.bf16.msra.mxu0 %v2346
    %2701 = vmatpush.bf16.msra.mxu0 %v2338
    %2702 = vmatmul.bf16.gmra.mxu0 %v1802
    %v2703 = vpop.f32.mrf.mxu0
    %v2704 = vadd.f32 %v1938, %v2703
    %v2705 = vpop.f32.mrf.mxu0
    %2706 = vdwg.mxu0
    %2707 = vmatpush.bf16.msra.mxu0 %v2458
    %2708 = vmatpush.bf16.msra.mxu0 %v2450
    %2709 = vmatpush.bf16.msra.mxu0 %v2442
    %2710 = vmatpush.bf16.msra.mxu0 %v2434
    %2711 = vmatpush.bf16.msra.mxu0 %v2426
    %2712 = vmatpush.bf16.msra.mxu0 %v2418
    %2713 = vmatpush.bf16.msra.mxu0 %v2410
    %2714 = vmatpush.bf16.msra.mxu0 %v2402
    %2715 = vmatmul.bf16.gmra.mxu0 %v1803
    %v2716 = vpop.f32.mrf.mxu0
    %v2717 = vadd.f32 %v2704, %v2716
    %v2718 = vpop.f32.mrf.mxu0
    %2719 = vdwg.mxu0
    %2720 = vmatpush.bf16.msra.mxu0 %v2395
    %2721 = vmatpush.bf16.msra.mxu0 %v2387
    %2722 = vmatpush.bf16.msra.mxu0 %v2379
    %2723 = vmatpush.bf16.msra.mxu0 %v2371
    %2724 = vmatpush.bf16.msra.mxu0 %v2363
    %2725 = vmatpush.bf16.msra.mxu0 %v2355
    %2726 = vmatpush.bf16.msra.mxu0 %v2347
    %2727 = vmatpush.bf16.msra.mxu0 %v2339
    %2728 = vmatmul.bf16.gmra.mxu0 %v1802
    %v2729 = vpop.f32.mrf.mxu0
    %v2730 = vadd.f32 %v1939, %v2729
    %v2731 = vpop.f32.mrf.mxu0
    %2732 = vdwg.mxu0
    %2733 = vmatpush.bf16.msra.mxu0 %v2459
    %2734 = vmatpush.bf16.msra.mxu0 %v2451
    %2735 = vmatpush.bf16.msra.mxu0 %v2443
    %2736 = vmatpush.bf16.msra.mxu0 %v2435
    %2737 = vmatpush.bf16.msra.mxu0 %v2427
    %2738 = vmatpush.bf16.msra.mxu0 %v2419
    %2739 = vmatpush.bf16.msra.mxu0 %v2411
    %2740 = vmatpush.bf16.msra.mxu0 %v2403
    %2741 = vmatmul.bf16.gmra.mxu0 %v1803
    %v2742 = vpop.f32.mrf.mxu0
    %v2743 = vadd.f32 %v2730, %v2742
    %v2744 = vpop.f32.mrf.mxu0
    %2745 = vdwg.mxu0
    %2746 = vmatpush.bf16.msra.mxu0 %v2396
    %2747 = vmatpush.bf16.msra.mxu0 %v2388
    %2748 = vmatpush.bf16.msra.mxu0 %v2380
    %2749 = vmatpush.bf16.msra.mxu0 %v2372
    %2750 = vmatpush.bf16.msra.mxu0 %v2364
    %2751 = vmatpush.bf16.msra.mxu0 %v2356
    %2752 = vmatpush.bf16.msra.mxu0 %v2348
    %2753 = vmatpush.bf16.msra.mxu0 %v2340
    %2754 = vmatmul.bf16.gmra.mxu0 %v1802
    %v2755 = vpop.f32.mrf.mxu0
    %v2756 = vadd.f32 %v1940, %v2755
    %v2757 = vpop.f32.mrf.mxu0
    %2758 = vdwg.mxu0
    %2759 = vmatpush.bf16.msra.mxu0 %v2460
    %2760 = vmatpush.bf16.msra.mxu0 %v2452
    %2761 = vmatpush.bf16.msra.mxu0 %v2444
    %2762 = vmatpush.bf16.msra.mxu0 %v2436
    %2763 = vmatpush.bf16.msra.mxu0 %v2428
    %2764 = vmatpush.bf16.msra.mxu0 %v2420
    %2765 = vmatpush.bf16.msra.mxu0 %v2412
    %2766 = vmatpush.bf16.msra.mxu0 %v2404
    %2767 = vmatmul.bf16.gmra.mxu0 %v1803
    %v2768 = vpop.f32.mrf.mxu0
    %v2769 = vadd.f32 %v2756, %v2768
    %v2770 = vpop.f32.mrf.mxu0
    %2771 = vdwg.mxu0
    %2772 = vmatpush.bf16.msra.mxu0 %v2397
    %2773 = vmatpush.bf16.msra.mxu0 %v2389
    %2774 = vmatpush.bf16.msra.mxu0 %v2381
    %2775 = vmatpush.bf16.msra.mxu0 %v2373
    %2776 = vmatpush.bf16.msra.mxu0 %v2365
    %2777 = vmatpush.bf16.msra.mxu0 %v2357
    %2778 = vmatpush.bf16.msra.mxu0 %v2349
    %2779 = vmatpush.bf16.msra.mxu0 %v2341
    %2780 = vmatmul.bf16.gmra.mxu0 %v1802
    %v2781 = vpop.f32.mrf.mxu0
    %v2782 = vadd.f32 %v1941, %v2781
    %v2783 = vpop.f32.mrf.mxu0
    %2784 = vdwg.mxu0
    %2785 = vmatpush.bf16.msra.mxu0 %v2461
    %2786 = vmatpush.bf16.msra.mxu0 %v2453
    %2787 = vmatpush.bf16.msra.mxu0 %v2445
    %2788 = vmatpush.bf16.msra.mxu0 %v2437
    %2789 = vmatpush.bf16.msra.mxu0 %v2429
    %2790 = vmatpush.bf16.msra.mxu0 %v2421
    %2791 = vmatpush.bf16.msra.mxu0 %v2413
    %2792 = vmatpush.bf16.msra.mxu0 %v2405
    %2793 = vmatmul.bf16.gmra.mxu0 %v1803
    %v2794 = vpop.f32.mrf.mxu0
    %v2795 = vadd.f32 %v2782, %v2794
    %v2796 = vpop.f32.mrf.mxu0
    %2797 = vdwg.mxu0
    %v2798 = vmax.f32 %v2613, 0.0
    %v2799 = vmax.f32 %v2639, 0.0
    %v2800 = vmax.f32 %v2665, 0.0
    %v2801 = vmax.f32 %v2691, 0.0
    %v2802 = vmax.f32 %v2717, 0.0
    %v2803 = vmax.f32 %v2743, 0.0
    %v2804 = vmax.f32 %v2769, 0.0
    %v2805 = vmax.f32 %v2795, 0.0
    %v2806 = vpack.c.bf16 %v2798, %v2798
    %v2807 = vpack.c.bf16 %v2799, %v2799
    %v2808 = vpack.c.bf16 %v2800, %v2800
    %v2809 = vpack.c.bf16 %v2801, %v2801
    %v2810 = vpack.c.bf16 %v2802, %v2802
    %v2811 = vpack.c.bf16 %v2803, %v2803
    %v2812 = vpack.c.bf16 %v2804, %v2804
    %v2813 = vpack.c.bf16 %v2805, %v2805
    %v2814 = vld [vmem:[#allocation13] sm:$0xff]
    %v2815 = vld [vmem:[#allocation13 + $0x8] sm:$0xff]
    %v2816 = vld [vmem:[#allocation13 + $0x10] sm:$0xff]
    %v2817 = vld [vmem:[#allocation13 + $0x18] sm:$0xff]
    %v2818 = vld [vmem:[#allocation13 + $0x20] sm:$0xff]
    %v2819 = vld [vmem:[#allocation13 + $0x28] sm:$0xff]
    %v2820 = vld [vmem:[#allocation13 + $0x30] sm:$0xff]
    %v2821 = vld [vmem:[#allocation13 + $0x38] sm:$0xff]
    %v2822 = vld [vmem:[#allocation13 + $0x40] sm:$0xff]
    %v2823 = vld [vmem:[#allocation13 + $0x48] sm:$0xff]
    %v2824 = vld [vmem:[#allocation13 + $0x50] sm:$0xff]
    %v2825 = vld [vmem:[#allocation13 + $0x58] sm:$0xff]
    %v2826 = vld [vmem:[#allocation13 + $0x60] sm:$0xff]
    %v2827 = vld [vmem:[#allocation13 + $0x68] sm:$0xff]
    %v2828 = vld [vmem:[#allocation13 + $0x70] sm:$0xff]
    %v2829 = vld [vmem:[#allocation13 + $0x78] sm:$0xff]
    %v2830 = vld [vmem:[#allocation13 + $0x80] sm:$0xff]
    %v2831 = vld [vmem:[#allocation13 + $0x88] sm:$0xff]
    %v2832 = vld [vmem:[#allocation13 + $0x90] sm:$0xff]
    %v2833 = vld [vmem:[#allocation13 + $0x98] sm:$0xff]
    %v2834 = vld [vmem:[#allocation13 + $0xa0] sm:$0xff]
    %v2835 = vld [vmem:[#allocation13 + $0xa8] sm:$0xff]
    %v2836 = vld [vmem:[#allocation13 + $0xb0] sm:$0xff]
    %v2837 = vld [vmem:[#allocation13 + $0xb8] sm:$0xff]
    %v2838 = vld [vmem:[#allocation13 + $0xc0] sm:$0xff]
    %v2839 = vld [vmem:[#allocation13 + $0xc8] sm:$0xff]
    %v2840 = vld [vmem:[#allocation13 + $0xd0] sm:$0xff]
    %v2841 = vld [vmem:[#allocation13 + $0xd8] sm:$0xff]
    %v2842 = vld [vmem:[#allocation13 + $0xe0] sm:$0xff]
    %v2843 = vld [vmem:[#allocation13 + $0xe8] sm:$0xff]
    %v2844 = vld [vmem:[#allocation13 + $0xf0] sm:$0xff]
    %v2845 = vld [vmem:[#allocation13 + $0xf8] sm:$0xff]
    %v2846 = vld [vmem:[#allocation13 + $0x100] sm:$0xff]
    %v2847 = vld [vmem:[#allocation13 + $0x108] sm:$0xff]
    %v2848 = vld [vmem:[#allocation13 + $0x110] sm:$0xff]
    %v2849 = vld [vmem:[#allocation13 + $0x118] sm:$0xff]
    %v2850 = vld [vmem:[#allocation13 + $0x120] sm:$0xff]
    %v2851 = vld [vmem:[#allocation13 + $0x128] sm:$0xff]
    %v2852 = vld [vmem:[#allocation13 + $0x130] sm:$0xff]
    %v2853 = vld [vmem:[#allocation13 + $0x138] sm:$0xff]
    %v2854 = vld [vmem:[#allocation13 + $0x140] sm:$0xff]
    %v2855 = vld [vmem:[#allocation13 + $0x148] sm:$0xff]
    %v2856 = vld [vmem:[#allocation13 + $0x150] sm:$0xff]
    %v2857 = vld [vmem:[#allocation13 + $0x158] sm:$0xff]
    %v2858 = vld [vmem:[#allocation13 + $0x160] sm:$0xff]
    %v2859 = vld [vmem:[#allocation13 + $0x168] sm:$0xff]
    %v2860 = vld [vmem:[#allocation13 + $0x170] sm:$0xff]
    %v2861 = vld [vmem:[#allocation13 + $0x178] sm:$0xff]
    %v2862 = vld [vmem:[#allocation13 + $0x180] sm:$0xff]
    %v2863 = vld [vmem:[#allocation13 + $0x188] sm:$0xff]
    %v2864 = vld [vmem:[#allocation13 + $0x190] sm:$0xff]
    %v2865 = vld [vmem:[#allocation13 + $0x198] sm:$0xff]
    %v2866 = vld [vmem:[#allocation13 + $0x1a0] sm:$0xff]
    %v2867 = vld [vmem:[#allocation13 + $0x1a8] sm:$0xff]
    %v2868 = vld [vmem:[#allocation13 + $0x1b0] sm:$0xff]
    %v2869 = vld [vmem:[#allocation13 + $0x1b8] sm:$0xff]
    %v2870 = vld [vmem:[#allocation13 + $0x1c0] sm:$0xff]
    %v2871 = vld [vmem:[#allocation13 + $0x1c8] sm:$0xff]
    %v2872 = vld [vmem:[#allocation13 + $0x1d0] sm:$0xff]
    %v2873 = vld [vmem:[#allocation13 + $0x1d8] sm:$0xff]
    %v2874 = vld [vmem:[#allocation13 + $0x1e0] sm:$0xff]
    %v2875 = vld [vmem:[#allocation13 + $0x1e8] sm:$0xff]
    %v2876 = vld [vmem:[#allocation13 + $0x1f0] sm:$0xff]
    %v2877 = vld [vmem:[#allocation13 + $0x1f8] sm:$0xff]
    %v2878 = vld [vmem:[#allocation13 + $0x200] sm:$0xff]
    %v2879 = vld [vmem:[#allocation13 + $0x208] sm:$0xff]
    %v2880 = vld [vmem:[#allocation13 + $0x210] sm:$0xff]
    %v2881 = vld [vmem:[#allocation13 + $0x218] sm:$0xff]
    %v2882 = vld [vmem:[#allocation13 + $0x220] sm:$0xff]
    %v2883 = vld [vmem:[#allocation13 + $0x228] sm:$0xff]
    %v2884 = vld [vmem:[#allocation13 + $0x230] sm:$0xff]
    %v2885 = vld [vmem:[#allocation13 + $0x238] sm:$0xff]
    %v2886 = vld [vmem:[#allocation13 + $0x240] sm:$0xff]
    %v2887 = vld [vmem:[#allocation13 + $0x248] sm:$0xff]
    %v2888 = vld [vmem:[#allocation13 + $0x250] sm:$0xff]
    %v2889 = vld [vmem:[#allocation13 + $0x258] sm:$0xff]
    %v2890 = vld [vmem:[#allocation13 + $0x260] sm:$0xff]
    %v2891 = vld [vmem:[#allocation13 + $0x268] sm:$0xff]
    %v2892 = vld [vmem:[#allocation13 + $0x270] sm:$0xff]
    %v2893 = vld [vmem:[#allocation13 + $0x278] sm:$0xff]
    %v2894 = vld [vmem:[#allocation13 + $0x280] sm:$0xff]
    %v2895 = vld [vmem:[#allocation13 + $0x288] sm:$0xff]
    %v2896 = vld [vmem:[#allocation13 + $0x290] sm:$0xff]
    %v2897 = vld [vmem:[#allocation13 + $0x298] sm:$0xff]
    %v2898 = vld [vmem:[#allocation13 + $0x2a0] sm:$0xff]
    %v2899 = vld [vmem:[#allocation13 + $0x2a8] sm:$0xff]
    %v2900 = vld [vmem:[#allocation13 + $0x2b0] sm:$0xff]
    %v2901 = vld [vmem:[#allocation13 + $0x2b8] sm:$0xff]
    %v2902 = vld [vmem:[#allocation13 + $0x2c0] sm:$0xff]
    %v2903 = vld [vmem:[#allocation13 + $0x2c8] sm:$0xff]
    %v2904 = vld [vmem:[#allocation13 + $0x2d0] sm:$0xff]
    %v2905 = vld [vmem:[#allocation13 + $0x2d8] sm:$0xff]
    %v2906 = vld [vmem:[#allocation13 + $0x2e0] sm:$0xff]
    %v2907 = vld [vmem:[#allocation13 + $0x2e8] sm:$0xff]
    %v2908 = vld [vmem:[#allocation13 + $0x2f0] sm:$0xff]
    %v2909 = vld [vmem:[#allocation13 + $0x2f8] sm:$0xff]
    %v2910 = vld [vmem:[#allocation13 + $0x300] sm:$0xff]
    %v2911 = vld [vmem:[#allocation13 + $0x308] sm:$0xff]
    %v2912 = vld [vmem:[#allocation13 + $0x310] sm:$0xff]
    %v2913 = vld [vmem:[#allocation13 + $0x318] sm:$0xff]
    %v2914 = vld [vmem:[#allocation13 + $0x320] sm:$0xff]
    %v2915 = vld [vmem:[#allocation13 + $0x328] sm:$0xff]
    %v2916 = vld [vmem:[#allocation13 + $0x330] sm:$0xff]
    %v2917 = vld [vmem:[#allocation13 + $0x338] sm:$0xff]
    %v2918 = vld [vmem:[#allocation13 + $0x340] sm:$0xff]
    %v2919 = vld [vmem:[#allocation13 + $0x348] sm:$0xff]
    %v2920 = vld [vmem:[#allocation13 + $0x350] sm:$0xff]
    %v2921 = vld [vmem:[#allocation13 + $0x358] sm:$0xff]
    %v2922 = vld [vmem:[#allocation13 + $0x360] sm:$0xff]
    %v2923 = vld [vmem:[#allocation13 + $0x368] sm:$0xff]
    %v2924 = vld [vmem:[#allocation13 + $0x370] sm:$0xff]
    %v2925 = vld [vmem:[#allocation13 + $0x378] sm:$0xff]
    %v2926 = vld [vmem:[#allocation13 + $0x380] sm:$0xff]
    %v2927 = vld [vmem:[#allocation13 + $0x388] sm:$0xff]
    %v2928 = vld [vmem:[#allocation13 + $0x390] sm:$0xff]
    %v2929 = vld [vmem:[#allocation13 + $0x398] sm:$0xff]
    %v2930 = vld [vmem:[#allocation13 + $0x3a0] sm:$0xff]
    %v2931 = vld [vmem:[#allocation13 + $0x3a8] sm:$0xff]
    %v2932 = vld [vmem:[#allocation13 + $0x3b0] sm:$0xff]
    %v2933 = vld [vmem:[#allocation13 + $0x3b8] sm:$0xff]
    %v2934 = vld [vmem:[#allocation13 + $0x3c0] sm:$0xff]
    %v2935 = vld [vmem:[#allocation13 + $0x3c8] sm:$0xff]
    %v2936 = vld [vmem:[#allocation13 + $0x3d0] sm:$0xff]
    %v2937 = vld [vmem:[#allocation13 + $0x3d8] sm:$0xff]
    %v2938 = vld [vmem:[#allocation13 + $0x3e0] sm:$0xff]
    %v2939 = vld [vmem:[#allocation13 + $0x3e8] sm:$0xff]
    %v2940 = vld [vmem:[#allocation13 + $0x3f0] sm:$0xff]
    %v2941 = vld [vmem:[#allocation13 + $0x3f8] sm:$0xff]
    %v2942 = vld [vmem:[#allocation14] sm:$0x3]
    %v2944 = vperm.slane %v2942, 0
    %v2945 = vperm.slane %v2942, 1
    %v3076 = vunpack.c.l.b16 %v2814
    %v3077 = vunpack.c.h.b16 %v2814
    %v3078 = vunpack.c.l.b16 %v2815
    %v3079 = vunpack.c.h.b16 %v2815
    %v3080 = vunpack.c.l.b16 %v2816
    %v3081 = vunpack.c.h.b16 %v2816
    %v3082 = vunpack.c.l.b16 %v2817
    %v3083 = vunpack.c.h.b16 %v2817
    %v3084 = vunpack.c.l.b16 %v2818
    %v3085 = vunpack.c.h.b16 %v2818
    %v3086 = vunpack.c.l.b16 %v2819
    %v3087 = vunpack.c.h.b16 %v2819
    %v3088 = vunpack.c.l.b16 %v2820
    %v3089 = vunpack.c.h.b16 %v2820
    %v3090 = vunpack.c.l.b16 %v2821
    %v3091 = vunpack.c.h.b16 %v2821
    %v3092 = vunpack.c.l.b16 %v2822
    %v3093 = vunpack.c.h.b16 %v2822
    %v3094 = vunpack.c.l.b16 %v2823
    %v3095 = vunpack.c.h.b16 %v2823
    %v3096 = vunpack.c.l.b16 %v2824
    %v3097 = vunpack.c.h.b16 %v2824
    %v3098 = vunpack.c.l.b16 %v2825
    %v3099 = vunpack.c.h.b16 %v2825
    %v3100 = vunpack.c.l.b16 %v2826
    %v3101 = vunpack.c.h.b16 %v2826
    %v3102 = vunpack.c.l.b16 %v2827
    %v3103 = vunpack.c.h.b16 %v2827
    %v3104 = vunpack.c.l.b16 %v2828
    %v3105 = vunpack.c.h.b16 %v2828
    %v3106 = vunpack.c.l.b16 %v2829
    %v3107 = vunpack.c.h.b16 %v2829
    %v3108 = vunpack.c.l.b16 %v2830
    %v3109 = vunpack.c.h.b16 %v2830
    %v3110 = vunpack.c.l.b16 %v2831
    %v3111 = vunpack.c.h.b16 %v2831
    %v3112 = vunpack.c.l.b16 %v2832
    %v3113 = vunpack.c.h.b16 %v2832
    %v3114 = vunpack.c.l.b16 %v2833
    %v3115 = vunpack.c.h.b16 %v2833
    %v3116 = vunpack.c.l.b16 %v2834
    %v3117 = vunpack.c.h.b16 %v2834
    %v3118 = vunpack.c.l.b16 %v2835
    %v3119 = vunpack.c.h.b16 %v2835
    %v3120 = vunpack.c.l.b16 %v2836
    %v3121 = vunpack.c.h.b16 %v2836
    %v3122 = vunpack.c.l.b16 %v2837
    %v3123 = vunpack.c.h.b16 %v2837
    %v3124 = vunpack.c.l.b16 %v2838
    %v3125 = vunpack.c.h.b16 %v2838
    %v3126 = vunpack.c.l.b16 %v2839
    %v3127 = vunpack.c.h.b16 %v2839
    %v3128 = vunpack.c.l.b16 %v2840
    %v3129 = vunpack.c.h.b16 %v2840
    %v3130 = vunpack.c.l.b16 %v2841
    %v3131 = vunpack.c.h.b16 %v2841
    %v3132 = vunpack.c.l.b16 %v2842
    %v3133 = vunpack.c.h.b16 %v2842
    %v3134 = vunpack.c.l.b16 %v2843
    %v3135 = vunpack.c.h.b16 %v2843
    %v3136 = vunpack.c.l.b16 %v2844
    %v3137 = vunpack.c.h.b16 %v2844
    %v3138 = vunpack.c.l.b16 %v2845
    %v3139 = vunpack.c.h.b16 %v2845
    %v3140 = vunpack.c.l.b16 %v2846
    %v3141 = vunpack.c.h.b16 %v2846
    %v3142 = vunpack.c.l.b16 %v2847
    %v3143 = vunpack.c.h.b16 %v2847
    %v3144 = vunpack.c.l.b16 %v2848
    %v3145 = vunpack.c.h.b16 %v2848
    %v3146 = vunpack.c.l.b16 %v2849
    %v3147 = vunpack.c.h.b16 %v2849
    %v3148 = vunpack.c.l.b16 %v2850
    %v3149 = vunpack.c.h.b16 %v2850
    %v3150 = vunpack.c.l.b16 %v2851
    %v3151 = vunpack.c.h.b16 %v2851
    %v3152 = vunpack.c.l.b16 %v2852
    %v3153 = vunpack.c.h.b16 %v2852
    %v3154 = vunpack.c.l.b16 %v2853
    %v3155 = vunpack.c.h.b16 %v2853
    %v3156 = vunpack.c.l.b16 %v2854
    %v3157 = vunpack.c.h.b16 %v2854
    %v3158 = vunpack.c.l.b16 %v2855
    %v3159 = vunpack.c.h.b16 %v2855
    %v3160 = vunpack.c.l.b16 %v2856
    %v3161 = vunpack.c.h.b16 %v2856
    %v3162 = vunpack.c.l.b16 %v2857
    %v3163 = vunpack.c.h.b16 %v2857
    %v3164 = vunpack.c.l.b16 %v2858
    %v3165 = vunpack.c.h.b16 %v2858
    %v3166 = vunpack.c.l.b16 %v2859
    %v3167 = vunpack.c.h.b16 %v2859
    %v3168 = vunpack.c.l.b16 %v2860
    %v3169 = vunpack.c.h.b16 %v2860
    %v3170 = vunpack.c.l.b16 %v2861
    %v3171 = vunpack.c.h.b16 %v2861
    %v3172 = vunpack.c.l.b16 %v2862
    %v3173 = vunpack.c.h.b16 %v2862
    %v3174 = vunpack.c.l.b16 %v2863
    %v3175 = vunpack.c.h.b16 %v2863
    %v3176 = vunpack.c.l.b16 %v2864
    %v3177 = vunpack.c.h.b16 %v2864
    %v3178 = vunpack.c.l.b16 %v2865
    %v3179 = vunpack.c.h.b16 %v2865
    %v3180 = vunpack.c.l.b16 %v2866
    %v3181 = vunpack.c.h.b16 %v2866
    %v3182 = vunpack.c.l.b16 %v2867
    %v3183 = vunpack.c.h.b16 %v2867
    %v3184 = vunpack.c.l.b16 %v2868
    %v3185 = vunpack.c.h.b16 %v2868
    %v3186 = vunpack.c.l.b16 %v2869
    %v3187 = vunpack.c.h.b16 %v2869
    %v3188 = vunpack.c.l.b16 %v2870
    %v3189 = vunpack.c.h.b16 %v2870
    %v3190 = vunpack.c.l.b16 %v2871
    %v3191 = vunpack.c.h.b16 %v2871
    %v3192 = vunpack.c.l.b16 %v2872
    %v3193 = vunpack.c.h.b16 %v2872
    %v3194 = vunpack.c.l.b16 %v2873
    %v3195 = vunpack.c.h.b16 %v2873
    %v3196 = vunpack.c.l.b16 %v2874
    %v3197 = vunpack.c.h.b16 %v2874
    %v3198 = vunpack.c.l.b16 %v2875
    %v3199 = vunpack.c.h.b16 %v2875
    %v3200 = vunpack.c.l.b16 %v2876
    %v3201 = vunpack.c.h.b16 %v2876
    %v3202 = vunpack.c.l.b16 %v2877
    %v3203 = vunpack.c.h.b16 %v2877
    %v3204 = vunpack.c.l.b16 %v2878
    %v3205 = vunpack.c.h.b16 %v2878
    %v3206 = vunpack.c.l.b16 %v2879
    %v3207 = vunpack.c.h.b16 %v2879
    %v3208 = vunpack.c.l.b16 %v2880
    %v3209 = vunpack.c.h.b16 %v2880
    %v3210 = vunpack.c.l.b16 %v2881
    %v3211 = vunpack.c.h.b16 %v2881
    %v3212 = vunpack.c.l.b16 %v2882
    %v3213 = vunpack.c.h.b16 %v2882
    %v3214 = vunpack.c.l.b16 %v2883
    %v3215 = vunpack.c.h.b16 %v2883
    %v3216 = vunpack.c.l.b16 %v2884
    %v3217 = vunpack.c.h.b16 %v2884
    %v3218 = vunpack.c.l.b16 %v2885
    %v3219 = vunpack.c.h.b16 %v2885
    %v3220 = vunpack.c.l.b16 %v2886
    %v3221 = vunpack.c.h.b16 %v2886
    %v3222 = vunpack.c.l.b16 %v2887
    %v3223 = vunpack.c.h.b16 %v2887
    %v3224 = vunpack.c.l.b16 %v2888
    %v3225 = vunpack.c.h.b16 %v2888
    %v3226 = vunpack.c.l.b16 %v2889
    %v3227 = vunpack.c.h.b16 %v2889
    %v3228 = vunpack.c.l.b16 %v2890
    %v3229 = vunpack.c.h.b16 %v2890
    %v3230 = vunpack.c.l.b16 %v2891
    %v3231 = vunpack.c.h.b16 %v2891
    %v3232 = vunpack.c.l.b16 %v2892
    %v3233 = vunpack.c.h.b16 %v2892
    %v3234 = vunpack.c.l.b16 %v2893
    %v3235 = vunpack.c.h.b16 %v2893
    %v3236 = vunpack.c.l.b16 %v2894
    %v3237 = vunpack.c.h.b16 %v2894
    %v3238 = vunpack.c.l.b16 %v2895
    %v3239 = vunpack.c.h.b16 %v2895
    %v3240 = vunpack.c.l.b16 %v2896
    %v3241 = vunpack.c.h.b16 %v2896
    %v3242 = vunpack.c.l.b16 %v2897
    %v3243 = vunpack.c.h.b16 %v2897
    %v3244 = vunpack.c.l.b16 %v2898
    %v3245 = vunpack.c.h.b16 %v2898
    %v3246 = vunpack.c.l.b16 %v2899
    %v3247 = vunpack.c.h.b16 %v2899
    %v3248 = vunpack.c.l.b16 %v2900
    %v3249 = vunpack.c.h.b16 %v2900
    %v3250 = vunpack.c.l.b16 %v2901
    %v3251 = vunpack.c.h.b16 %v2901
    %v3252 = vunpack.c.l.b16 %v2902
    %v3253 = vunpack.c.h.b16 %v2902
    %v3254 = vunpack.c.l.b16 %v2903
    %v3255 = vunpack.c.h.b16 %v2903
    %v3256 = vunpack.c.l.b16 %v2904
    %v3257 = vunpack.c.h.b16 %v2904
    %v3258 = vunpack.c.l.b16 %v2905
    %v3259 = vunpack.c.h.b16 %v2905
    %v3260 = vunpack.c.l.b16 %v2906
    %v3261 = vunpack.c.h.b16 %v2906
    %v3262 = vunpack.c.l.b16 %v2907
    %v3263 = vunpack.c.h.b16 %v2907
    %v3264 = vunpack.c.l.b16 %v2908
    %v3265 = vunpack.c.h.b16 %v2908
    %v3266 = vunpack.c.l.b16 %v2909
    %v3267 = vunpack.c.h.b16 %v2909
    %v3268 = vunpack.c.l.b16 %v2910
    %v3269 = vunpack.c.h.b16 %v2910
    %v3270 = vunpack.c.l.b16 %v2911
    %v3271 = vunpack.c.h.b16 %v2911
    %v3272 = vunpack.c.l.b16 %v2912
    %v3273 = vunpack.c.h.b16 %v2912
    %v3274 = vunpack.c.l.b16 %v2913
    %v3275 = vunpack.c.h.b16 %v2913
    %v3276 = vunpack.c.l.b16 %v2914
    %v3277 = vunpack.c.h.b16 %v2914
    %v3278 = vunpack.c.l.b16 %v2915
    %v3279 = vunpack.c.h.b16 %v2915
    %v3280 = vunpack.c.l.b16 %v2916
    %v3281 = vunpack.c.h.b16 %v2916
    %v3282 = vunpack.c.l.b16 %v2917
    %v3283 = vunpack.c.h.b16 %v2917
    %v3284 = vunpack.c.l.b16 %v2918
    %v3285 = vunpack.c.h.b16 %v2918
    %v3286 = vunpack.c.l.b16 %v2919
    %v3287 = vunpack.c.h.b16 %v2919
    %v3288 = vunpack.c.l.b16 %v2920
    %v3289 = vunpack.c.h.b16 %v2920
    %v3290 = vunpack.c.l.b16 %v2921
    %v3291 = vunpack.c.h.b16 %v2921
    %v3292 = vunpack.c.l.b16 %v2922
    %v3293 = vunpack.c.h.b16 %v2922
    %v3294 = vunpack.c.l.b16 %v2923
    %v3295 = vunpack.c.h.b16 %v2923
    %v3296 = vunpack.c.l.b16 %v2924
    %v3297 = vunpack.c.h.b16 %v2924
    %v3298 = vunpack.c.l.b16 %v2925
    %v3299 = vunpack.c.h.b16 %v2925
    %v3300 = vunpack.c.l.b16 %v2926
    %v3301 = vunpack.c.h.b16 %v2926
    %v3302 = vunpack.c.l.b16 %v2927
    %v3303 = vunpack.c.h.b16 %v2927
    %v3304 = vunpack.c.l.b16 %v2928
    %v3305 = vunpack.c.h.b16 %v2928
    %v3306 = vunpack.c.l.b16 %v2929
    %v3307 = vunpack.c.h.b16 %v2929
    %v3308 = vunpack.c.l.b16 %v2930
    %v3309 = vunpack.c.h.b16 %v2930
    %v3310 = vunpack.c.l.b16 %v2931
    %v3311 = vunpack.c.h.b16 %v2931
    %v3312 = vunpack.c.l.b16 %v2932
    %v3313 = vunpack.c.h.b16 %v2932
    %v3314 = vunpack.c.l.b16 %v2933
    %v3315 = vunpack.c.h.b16 %v2933
    %v3316 = vunpack.c.l.b16 %v2934
    %v3317 = vunpack.c.h.b16 %v2934
    %v3318 = vunpack.c.l.b16 %v2935
    %v3319 = vunpack.c.h.b16 %v2935
    %v3320 = vunpack.c.l.b16 %v2936
    %v3321 = vunpack.c.h.b16 %v2936
    %v3322 = vunpack.c.l.b16 %v2937
    %v3323 = vunpack.c.h.b16 %v2937
    %v3324 = vunpack.c.l.b16 %v2938
    %v3325 = vunpack.c.h.b16 %v2938
    %v3326 = vunpack.c.l.b16 %v2939
    %v3327 = vunpack.c.h.b16 %v2939
    %v3328 = vunpack.c.l.b16 %v2940
    %v3329 = vunpack.c.h.b16 %v2940
    %v3330 = vunpack.c.l.b16 %v2941
    %v3331 = vunpack.c.h.b16 %v2941
    %v3332 = vpack.c.b16 %v3078, %v3076
    %v3333 = vpack.c.b16 %v3079, %v3077
    %v3334 = vpack.c.b16 %v3082, %v3080
    %v3335 = vpack.c.b16 %v3083, %v3081
    %v3336 = vpack.c.b16 %v3086, %v3084
    %v3337 = vpack.c.b16 %v3087, %v3085
    %v3338 = vpack.c.b16 %v3090, %v3088
    %v3339 = vpack.c.b16 %v3091, %v3089
    %v3340 = vpack.c.b16 %v3094, %v3092
    %v3341 = vpack.c.b16 %v3095, %v3093
    %v3342 = vpack.c.b16 %v3098, %v3096
    %v3343 = vpack.c.b16 %v3099, %v3097
    %v3344 = vpack.c.b16 %v3102, %v3100
    %v3345 = vpack.c.b16 %v3103, %v3101
    %v3346 = vpack.c.b16 %v3106, %v3104
    %v3347 = vpack.c.b16 %v3107, %v3105
    %v3348 = vpack.c.b16 %v3110, %v3108
    %v3349 = vpack.c.b16 %v3111, %v3109
    %v3350 = vpack.c.b16 %v3114, %v3112
    %v3351 = vpack.c.b16 %v3115, %v3113
    %v3352 = vpack.c.b16 %v3118, %v3116
    %v3353 = vpack.c.b16 %v3119, %v3117
    %v3354 = vpack.c.b16 %v3122, %v3120
    %v3355 = vpack.c.b16 %v3123, %v3121
    %v3356 = vpack.c.b16 %v3126, %v3124
    %v3357 = vpack.c.b16 %v3127, %v3125
    %v3358 = vpack.c.b16 %v3130, %v3128
    %v3359 = vpack.c.b16 %v3131, %v3129
    %v3360 = vpack.c.b16 %v3134, %v3132
    %v3361 = vpack.c.b16 %v3135, %v3133
    %v3362 = vpack.c.b16 %v3138, %v3136
    %v3363 = vpack.c.b16 %v3139, %v3137
    %v3364 = vpack.c.b16 %v3142, %v3140
    %v3365 = vpack.c.b16 %v3143, %v3141
    %v3366 = vpack.c.b16 %v3146, %v3144
    %v3367 = vpack.c.b16 %v3147, %v3145
    %v3368 = vpack.c.b16 %v3150, %v3148
    %v3369 = vpack.c.b16 %v3151, %v3149
    %v3370 = vpack.c.b16 %v3154, %v3152
    %v3371 = vpack.c.b16 %v3155, %v3153
    %v3372 = vpack.c.b16 %v3158, %v3156
    %v3373 = vpack.c.b16 %v3159, %v3157
    %v3374 = vpack.c.b16 %v3162, %v3160
    %v3375 = vpack.c.b16 %v3163, %v3161
    %v3376 = vpack.c.b16 %v3166, %v3164
    %v3377 = vpack.c.b16 %v3167, %v3165
    %v3378 = vpack.c.b16 %v3170, %v3168
    %v3379 = vpack.c.b16 %v3171, %v3169
    %v3380 = vpack.c.b16 %v3174, %v3172
    %v3381 = vpack.c.b16 %v3175, %v3173
    %v3382 = vpack.c.b16 %v3178, %v3176
    %v3383 = vpack.c.b16 %v3179, %v3177
    %v3384 = vpack.c.b16 %v3182, %v3180
    %v3385 = vpack.c.b16 %v3183, %v3181
    %v3386 = vpack.c.b16 %v3186, %v3184
    %v3387 = vpack.c.b16 %v3187, %v3185
    %v3388 = vpack.c.b16 %v3190, %v3188
    %v3389 = vpack.c.b16 %v3191, %v3189
    %v3390 = vpack.c.b16 %v3194, %v3192
    %v3391 = vpack.c.b16 %v3195, %v3193
    %v3392 = vpack.c.b16 %v3198, %v3196
    %v3393 = vpack.c.b16 %v3199, %v3197
    %v3394 = vpack.c.b16 %v3202, %v3200
    %v3395 = vpack.c.b16 %v3203, %v3201
    %v3396 = vpack.c.b16 %v3206, %v3204
    %v3397 = vpack.c.b16 %v3207, %v3205
    %v3398 = vpack.c.b16 %v3210, %v3208
    %v3399 = vpack.c.b16 %v3211, %v3209
    %v3400 = vpack.c.b16 %v3214, %v3212
    %v3401 = vpack.c.b16 %v3215, %v3213
    %v3402 = vpack.c.b16 %v3218, %v3216
    %v3403 = vpack.c.b16 %v3219, %v3217
    %v3404 = vpack.c.b16 %v3222, %v3220
    %v3405 = vpack.c.b16 %v3223, %v3221
    %v3406 = vpack.c.b16 %v3226, %v3224
    %v3407 = vpack.c.b16 %v3227, %v3225
    %v3408 = vpack.c.b16 %v3230, %v3228
    %v3409 = vpack.c.b16 %v3231, %v3229
    %v3410 = vpack.c.b16 %v3234, %v3232
    %v3411 = vpack.c.b16 %v3235, %v3233
    %v3412 = vpack.c.b16 %v3238, %v3236
    %v3413 = vpack.c.b16 %v3239, %v3237
    %v3414 = vpack.c.b16 %v3242, %v3240
    %v3415 = vpack.c.b16 %v3243, %v3241
    %v3416 = vpack.c.b16 %v3246, %v3244
    %v3417 = vpack.c.b16 %v3247, %v3245
    %v3418 = vpack.c.b16 %v3250, %v3248
    %v3419 = vpack.c.b16 %v3251, %v3249
    %v3420 = vpack.c.b16 %v3254, %v3252
    %v3421 = vpack.c.b16 %v3255, %v3253
    %v3422 = vpack.c.b16 %v3258, %v3256
    %v3423 = vpack.c.b16 %v3259, %v3257
    %v3424 = vpack.c.b16 %v3262, %v3260
    %v3425 = vpack.c.b16 %v3263, %v3261
    %v3426 = vpack.c.b16 %v3266, %v3264
    %v3427 = vpack.c.b16 %v3267, %v3265
    %v3428 = vpack.c.b16 %v3270, %v3268
    %v3429 = vpack.c.b16 %v3271, %v3269
    %v3430 = vpack.c.b16 %v3274, %v3272
    %v3431 = vpack.c.b16 %v3275, %v3273
    %v3432 = vpack.c.b16 %v3278, %v3276
    %v3433 = vpack.c.b16 %v3279, %v3277
    %v3434 = vpack.c.b16 %v3282, %v3280
    %v3435 = vpack.c.b16 %v3283, %v3281
    %v3436 = vpack.c.b16 %v3286, %v3284
    %v3437 = vpack.c.b16 %v3287, %v3285
    %v3438 = vpack.c.b16 %v3290, %v3288
    %v3439 = vpack.c.b16 %v3291, %v3289
    %v3440 = vpack.c.b16 %v3294, %v3292
    %v3441 = vpack.c.b16 %v3295, %v3293
    %v3442 = vpack.c.b16 %v3298, %v3296
    %v3443 = vpack.c.b16 %v3299, %v3297
    %v3444 = vpack.c.b16 %v3302, %v3300
    %v3445 = vpack.c.b16 %v3303, %v3301
    %v3446 = vpack.c.b16 %v3306, %v3304
    %v3447 = vpack.c.b16 %v3307, %v3305
    %v3448 = vpack.c.b16 %v3310, %v3308
    %v3449 = vpack.c.b16 %v3311, %v3309
    %v3450 = vpack.c.b16 %v3314, %v3312
    %v3451 = vpack.c.b16 %v3315, %v3313
    %v3452 = vpack.c.b16 %v3318, %v3316
    %v3453 = vpack.c.b16 %v3319, %v3317
    %v3454 = vpack.c.b16 %v3322, %v3320
    %v3455 = vpack.c.b16 %v3323, %v3321
    %v3456 = vpack.c.b16 %v3326, %v3324
    %v3457 = vpack.c.b16 %v3327, %v3325
    %v3458 = vpack.c.b16 %v3330, %v3328
    %v3459 = vpack.c.b16 %v3331, %v3329
    %3588 = vmatpush.bf16.msra.mxu0 %v3346
    %3589 = vmatpush.bf16.msra.mxu0 %v3344
    %3590 = vmatpush.bf16.msra.mxu0 %v3342
    %3591 = vmatpush.bf16.msra.mxu0 %v3340
    %3592 = vmatpush.bf16.msra.mxu0 %v3338
    %3593 = vmatpush.bf16.msra.mxu0 %v3336
    %3594 = vmatpush.bf16.msra.mxu0 %v3334
    %3595 = vmatpush.bf16.msra.mxu0 %v3332
    %3596 = vmatmul.bf16.gmra.mxu0 %v2806
    %v3597 = vpop.f32.mrf.mxu0
    %v3598 = vadd.f32 %v2944, %v3597
    %v3599 = vpop.f32.mrf.mxu0
    %3600 = vdwg.mxu0
    %3601 = vmatpush.bf16.msra.mxu0 %v3362
    %3602 = vmatpush.bf16.msra.mxu0 %v3360
    %3603 = vmatpush.bf16.msra.mxu0 %v3358
    %3604 = vmatpush.bf16.msra.mxu0 %v3356
    %3605 = vmatpush.bf16.msra.mxu0 %v3354
    %3606 = vmatpush.bf16.msra.mxu0 %v3352
    %3607 = vmatpush.bf16.msra.mxu0 %v3350
    %3608 = vmatpush.bf16.msra.mxu0 %v3348
    %3609 = vmatmul.bf16.gmra.mxu0 %v2807
    %v3610 = vpop.f32.mrf.mxu0
    %v3611 = vadd.f32 %v3598, %v3610
    %v3612 = vpop.f32.mrf.mxu0
    %3613 = vdwg.mxu0
    %3614 = vmatpush.bf16.msra.mxu0 %v3378
    %3615 = vmatpush.bf16.msra.mxu0 %v3376
    %3616 = vmatpush.bf16.msra.mxu0 %v3374
    %3617 = vmatpush.bf16.msra.mxu0 %v3372
    %3618 = vmatpush.bf16.msra.mxu0 %v3370
    %3619 = vmatpush.bf16.msra.mxu0 %v3368
    %3620 = vmatpush.bf16.msra.mxu0 %v3366
    %3621 = vmatpush.bf16.msra.mxu0 %v3364
    %3622 = vmatmul.bf16.gmra.mxu0 %v2808
    %v3623 = vpop.f32.mrf.mxu0
    %v3624 = vadd.f32 %v3611, %v3623
    %v3625 = vpop.f32.mrf.mxu0
    %3626 = vdwg.mxu0
    %3627 = vmatpush.bf16.msra.mxu0 %v3394
    %3628 = vmatpush.bf16.msra.mxu0 %v3392
    %3629 = vmatpush.bf16.msra.mxu0 %v3390
    %3630 = vmatpush.bf16.msra.mxu0 %v3388
    %3631 = vmatpush.bf16.msra.mxu0 %v3386
    %3632 = vmatpush.bf16.msra.mxu0 %v3384
    %3633 = vmatpush.bf16.msra.mxu0 %v3382
    %3634 = vmatpush.bf16.msra.mxu0 %v3380
    %3635 = vmatmul.bf16.gmra.mxu0 %v2809
    %v3636 = vpop.f32.mrf.mxu0
    %v3637 = vadd.f32 %v3624, %v3636
    %v3638 = vpop.f32.mrf.mxu0
    %3639 = vdwg.mxu0
    %3640 = vmatpush.bf16.msra.mxu0 %v3410
    %3641 = vmatpush.bf16.msra.mxu0 %v3408
    %3642 = vmatpush.bf16.msra.mxu0 %v3406
    %3643 = vmatpush.bf16.msra.mxu0 %v3404
    %3644 = vmatpush.bf16.msra.mxu0 %v3402
    %3645 = vmatpush.bf16.msra.mxu0 %v3400
    %3646 = vmatpush.bf16.msra.mxu0 %v3398
    %3647 = vmatpush.bf16.msra.mxu0 %v3396
    %3648 = vmatmul.bf16.gmra.mxu0 %v2810
    %v3649 = vpop.f32.mrf.mxu0
    %v3650 = vadd.f32 %v3637, %v3649
    %v3651 = vpop.f32.mrf.mxu0
    %3652 = vdwg.mxu0
    %3653 = vmatpush.bf16.msra.mxu0 %v3426
    %3654 = vmatpush.bf16.msra.mxu0 %v3424
    %3655 = vmatpush.bf16.msra.mxu0 %v3422
    %3656 = vmatpush.bf16.msra.mxu0 %v3420
    %3657 = vmatpush.bf16.msra.mxu0 %v3418
    %3658 = vmatpush.bf16.msra.mxu0 %v3416
    %3659 = vmatpush.bf16.msra.mxu0 %v3414
    %3660 = vmatpush.bf16.msra.mxu0 %v3412
    %3661 = vmatmul.bf16.gmra.mxu0 %v2811
    %v3662 = vpop.f32.mrf.mxu0
    %v3663 = vadd.f32 %v3650, %v3662
    %v3664 = vpop.f32.mrf.mxu0
    %3665 = vdwg.mxu0
    %3666 = vmatpush.bf16.msra.mxu0 %v3442
    %3667 = vmatpush.bf16.msra.mxu0 %v3440
    %3668 = vmatpush.bf16.msra.mxu0 %v3438
    %3669 = vmatpush.bf16.msra.mxu0 %v3436
    %3670 = vmatpush.bf16.msra.mxu0 %v3434
    %3671 = vmatpush.bf16.msra.mxu0 %v3432
    %3672 = vmatpush.bf16.msra.mxu0 %v3430
    %3673 = vmatpush.bf16.msra.mxu0 %v3428
    %3674 = vmatmul.bf16.gmra.mxu0 %v2812
    %v3675 = vpop.f32.mrf.mxu0
    %v3676 = vadd.f32 %v3663, %v3675
    %v3677 = vpop.f32.mrf.mxu0
    %3678 = vdwg.mxu0
    %3679 = vmatpush.bf16.msra.mxu0 %v3458
    %3680 = vmatpush.bf16.msra.mxu0 %v3456
    %3681 = vmatpush.bf16.msra.mxu0 %v3454
    %3682 = vmatpush.bf16.msra.mxu0 %v3452
    %3683 = vmatpush.bf16.msra.mxu0 %v3450
    %3684 = vmatpush.bf16.msra.mxu0 %v3448
    %3685 = vmatpush.bf16.msra.mxu0 %v3446
    %3686 = vmatpush.bf16.msra.mxu0 %v3444
    %3687 = vmatmul.bf16.gmra.mxu0 %v2813
    %v3688 = vpop.f32.mrf.mxu0
    %v3689 = vadd.f32 %v3676, %v3688
    %v3690 = vpop.f32.mrf.mxu0
    %3691 = vdwg.mxu0
    %3692 = vmatpush.bf16.msra.mxu0 %v3347
    %3693 = vmatpush.bf16.msra.mxu0 %v3345
    %3694 = vmatpush.bf16.msra.mxu0 %v3343
    %3695 = vmatpush.bf16.msra.mxu0 %v3341
    %3696 = vmatpush.bf16.msra.mxu0 %v3339
    %3697 = vmatpush.bf16.msra.mxu0 %v3337
    %3698 = vmatpush.bf16.msra.mxu0 %v3335
    %3699 = vmatpush.bf16.msra.mxu0 %v3333
    %3700 = vmatmul.bf16.gmra.mxu0 %v2806
    %v3701 = vpop.f32.mrf.mxu0
    %v3702 = vadd.f32 %v2945, %v3701
    %v3703 = vpop.f32.mrf.mxu0
    %3704 = vdwg.mxu0
    %3705 = vmatpush.bf16.msra.mxu0 %v3363
    %3706 = vmatpush.bf16.msra.mxu0 %v3361
    %3707 = vmatpush.bf16.msra.mxu0 %v3359
    %3708 = vmatpush.bf16.msra.mxu0 %v3357
    %3709 = vmatpush.bf16.msra.mxu0 %v3355
    %3710 = vmatpush.bf16.msra.mxu0 %v3353
    %3711 = vmatpush.bf16.msra.mxu0 %v3351
    %3712 = vmatpush.bf16.msra.mxu0 %v3349
    %3713 = vmatmul.bf16.gmra.mxu0 %v2807
    %v3714 = vpop.f32.mrf.mxu0
    %v3715 = vadd.f32 %v3702, %v3714
    %v3716 = vpop.f32.mrf.mxu0
    %3717 = vdwg.mxu0
    %3718 = vmatpush.bf16.msra.mxu0 %v3379
    %3719 = vmatpush.bf16.msra.mxu0 %v3377
    %3720 = vmatpush.bf16.msra.mxu0 %v3375
    %3721 = vmatpush.bf16.msra.mxu0 %v3373
    %3722 = vmatpush.bf16.msra.mxu0 %v3371
    %3723 = vmatpush.bf16.msra.mxu0 %v3369
    %3724 = vmatpush.bf16.msra.mxu0 %v3367
    %3725 = vmatpush.bf16.msra.mxu0 %v3365
    %3726 = vmatmul.bf16.gmra.mxu0 %v2808
    %v3727 = vpop.f32.mrf.mxu0
    %v3728 = vadd.f32 %v3715, %v3727
    %v3729 = vpop.f32.mrf.mxu0
    %3730 = vdwg.mxu0
    %3731 = vmatpush.bf16.msra.mxu0 %v3395
    %3732 = vmatpush.bf16.msra.mxu0 %v3393
    %3733 = vmatpush.bf16.msra.mxu0 %v3391
    %3734 = vmatpush.bf16.msra.mxu0 %v3389
    %3735 = vmatpush.bf16.msra.mxu0 %v3387
    %3736 = vmatpush.bf16.msra.mxu0 %v3385
    %3737 = vmatpush.bf16.msra.mxu0 %v3383
    %3738 = vmatpush.bf16.msra.mxu0 %v3381
    %3739 = vmatmul.bf16.gmra.mxu0 %v2809
    %v3740 = vpop.f32.mrf.mxu0
    %v3741 = vadd.f32 %v3728, %v3740
    %v3742 = vpop.f32.mrf.mxu0
    %3743 = vdwg.mxu0
    %3744 = vmatpush.bf16.msra.mxu0 %v3411
    %3745 = vmatpush.bf16.msra.mxu0 %v3409
    %3746 = vmatpush.bf16.msra.mxu0 %v3407
    %3747 = vmatpush.bf16.msra.mxu0 %v3405
    %3748 = vmatpush.bf16.msra.mxu0 %v3403
    %3749 = vmatpush.bf16.msra.mxu0 %v3401
    %3750 = vmatpush.bf16.msra.mxu0 %v3399
    %3751 = vmatpush.bf16.msra.mxu0 %v3397
    %3752 = vmatmul.bf16.gmra.mxu0 %v2810
    %v3753 = vpop.f32.mrf.mxu0
    %v3754 = vadd.f32 %v3741, %v3753
    %v3755 = vpop.f32.mrf.mxu0
    %3756 = vdwg.mxu0
    %3757 = vmatpush.bf16.msra.mxu0 %v3427
    %3758 = vmatpush.bf16.msra.mxu0 %v3425
    %3759 = vmatpush.bf16.msra.mxu0 %v3423
    %3760 = vmatpush.bf16.msra.mxu0 %v3421
    %3761 = vmatpush.bf16.msra.mxu0 %v3419
    %3762 = vmatpush.bf16.msra.mxu0 %v3417
    %3763 = vmatpush.bf16.msra.mxu0 %v3415
    %3764 = vmatpush.bf16.msra.mxu0 %v3413
    %3765 = vmatmul.bf16.gmra.mxu0 %v2811
    %v3766 = vpop.f32.mrf.mxu0
    %v3767 = vadd.f32 %v3754, %v3766
    %v3768 = vpop.f32.mrf.mxu0
    %3769 = vdwg.mxu0
    %3770 = vmatpush.bf16.msra.mxu0 %v3443
    %3771 = vmatpush.bf16.msra.mxu0 %v3441
    %3772 = vmatpush.bf16.msra.mxu0 %v3439
    %3773 = vmatpush.bf16.msra.mxu0 %v3437
    %3774 = vmatpush.bf16.msra.mxu0 %v3435
    %3775 = vmatpush.bf16.msra.mxu0 %v3433
    %3776 = vmatpush.bf16.msra.mxu0 %v3431
    %3777 = vmatpush.bf16.msra.mxu0 %v3429
    %3778 = vmatmul.bf16.gmra.mxu0 %v2812
    %v3779 = vpop.f32.mrf.mxu0
    %v3780 = vadd.f32 %v3767, %v3779
    %v3781 = vpop.f32.mrf.mxu0
    %3782 = vdwg.mxu0
    %3783 = vmatpush.bf16.msra.mxu0 %v3459
    %3784 = vmatpush.bf16.msra.mxu0 %v3457
    %3785 = vmatpush.bf16.msra.mxu0 %v3455
    %3786 = vmatpush.bf16.msra.mxu0 %v3453
    %3787 = vmatpush.bf16.msra.mxu0 %v3451
    %3788 = vmatpush.bf16.msra.mxu0 %v3449
    %3789 = vmatpush.bf16.msra.mxu0 %v3447
    %3790 = vmatpush.bf16.msra.mxu0 %v3445
    %3791 = vmatmul.bf16.gmra.mxu0 %v2813
    %v3792 = vpop.f32.mrf.mxu0
    %v3793 = vadd.f32 %v3780, %v3792
    %v3794 = vpop.f32.mrf.mxu0
    %3795 = vdwg.mxu0
    %v3796 = vpack.c.bf16 %v3689, %v3689
    %v3797 = vpack.c.bf16 %v3793, %v3793
    %v3798 = vld [vmem:[%s10] sm:$0xff]
    %v3799 = vld [vmem:[%s10 + $0x8] sm:$0xf]
    %v3800 = vld [vmem:[%s10 + $0xc] sm:$0xff]
    %v3801 = vld [vmem:[%s10 + $0x14] sm:$0xf]
    %v3802 = vld [vmem:[%s10 + $0x18] sm:$0xff]
    %v3803 = vld [vmem:[%s10 + $0x20] sm:$0xf]
    %v3804 = vld [vmem:[%s10 + $0x24] sm:$0xff]
    %v3805 = vld [vmem:[%s10 + $0x2c] sm:$0xf]
    %v3806 = vld [vmem:[%s10 + $0x30] sm:$0xff]
    %v3807 = vld [vmem:[%s10 + $0x38] sm:$0xf]
    %v3808 = vld [vmem:[%s10 + $0x3c] sm:$0xff]
    %v3809 = vld [vmem:[%s10 + $0x44] sm:$0xf]
    %v3810 = vld [vmem:[%s10 + $0x48] sm:$0xff]
    %v3811 = vld [vmem:[%s10 + $0x50] sm:$0xf]
    %v3812 = vld [vmem:[%s10 + $0x54] sm:$0xff]
    %v3813 = vld [vmem:[%s10 + $0x5c] sm:$0xf]
    %v3814 = vld [vmem:[%s10 + $0x60] sm:$0xff]
    %v3815 = vld [vmem:[%s10 + $0x68] sm:$0xf]
    %v3816 = vld [vmem:[%s10 + $0x6c] sm:$0xff]
    %v3817 = vld [vmem:[%s10 + $0x74] sm:$0xf]
    %v3818 = vld [vmem:[%s10 + $0x78] sm:$0xff]
    %v3819 = vld [vmem:[%s10 + $0x80] sm:$0xf]
    %v3820 = vld [vmem:[%s10 + $0x84] sm:$0xff]
    %v3821 = vld [vmem:[%s10 + $0x8c] sm:$0xf]
    %v3822 = vld [vmem:[%s10 + $0x90] sm:$0xff]
    %v3823 = vld [vmem:[%s10 + $0x98] sm:$0xf]
    %v3824 = vld [vmem:[%s10 + $0x9c] sm:$0xff]
    %v3825 = vld [vmem:[%s10 + $0xa4] sm:$0xf]
    %v3826 = vld [vmem:[%s10 + $0xa8] sm:$0xff]
    %v3827 = vld [vmem:[%s10 + $0xb0] sm:$0xf]
    %v3828 = vld [vmem:[%s10 + $0xb4] sm:$0xff]
    %v3829 = vld [vmem:[%s10 + $0xbc] sm:$0xf]
    %v3830 = vld [vmem:[%s10 + $0xc0] sm:$0xff]
    %v3831 = vld [vmem:[%s10 + $0xc8] sm:$0xf]
    %v3832 = vld [vmem:[%s10 + $0xcc] sm:$0xff]
    %v3833 = vld [vmem:[%s10 + $0xd4] sm:$0xf]
    %v3834 = vld [vmem:[%s10 + $0xd8] sm:$0xff]
    %v3835 = vld [vmem:[%s10 + $0xe0] sm:$0xf]
    %v3836 = vld [vmem:[%s10 + $0xe4] sm:$0xff]
    %v3837 = vld [vmem:[%s10 + $0xec] sm:$0xf]
    %v3838 = vld [vmem:[%s10 + $0xf0] sm:$0xff]
    %v3839 = vld [vmem:[%s10 + $0xf8] sm:$0xf]
    %v3840 = vld [vmem:[%s10 + $0xfc] sm:$0xff]
    %v3841 = vld [vmem:[%s10 + $0x104] sm:$0xf]
    %v3842 = vld [vmem:[%s10 + $0x108] sm:$0xff]
    %v3843 = vld [vmem:[%s10 + $0x110] sm:$0xf]
    %v3844 = vld [vmem:[%s10 + $0x114] sm:$0xff]
    %v3845 = vld [vmem:[%s10 + $0x11c] sm:$0xf]
    %v3846 = vld [vmem:[%s10 + $0x120] sm:$0xff]
    %v3847 = vld [vmem:[%s10 + $0x128] sm:$0xf]
    %v3848 = vld [vmem:[%s10 + $0x12c] sm:$0xff]
    %v3849 = vld [vmem:[%s10 + $0x134] sm:$0xf]
    %v3850 = vld [vmem:[%s10 + $0x138] sm:$0xff]
    %v3851 = vld [vmem:[%s10 + $0x140] sm:$0xf]
    %v3852 = vld [vmem:[%s10 + $0x144] sm:$0xff]
    %v3853 = vld [vmem:[%s10 + $0x14c] sm:$0xf]
    %v3854 = vld [vmem:[%s10 + $0x150] sm:$0xff]
    %v3855 = vld [vmem:[%s10 + $0x158] sm:$0xf]
    %v3856 = vld [vmem:[%s10 + $0x15c] sm:$0xff]
    %v3857 = vld [vmem:[%s10 + $0x164] sm:$0xf]
    %v3858 = vld [vmem:[%s10 + $0x168] sm:$0xff]
    %v3859 = vld [vmem:[%s10 + $0x170] sm:$0xf]
    %v3860 = vld [vmem:[%s10 + $0x174] sm:$0xff]
    %v3861 = vld [vmem:[%s10 + $0x17c] sm:$0xf]
    %v3862 = vld [vmem:[#allocation16] sm:$0x7]
    %v3864 = vperm.slane %v3862, 0
    %v3865 = vperm.slane %v3862, 1
    %v3866 = vperm.slane %v3862, 2
    %v3934 = vunpack.c.l.b16 %v3798
    %v3935 = vunpack.c.h.b16 %v3798
    %v3936 = vunpack.c.l.b16 %v3799
    %v3937 = vunpack.c.l.b16 %v3800
    %v3938 = vunpack.c.h.b16 %v3800
    %v3939 = vunpack.c.l.b16 %v3801
    %v3940 = vunpack.c.l.b16 %v3802
    %v3941 = vunpack.c.h.b16 %v3802
    %v3942 = vunpack.c.l.b16 %v3803
    %v3943 = vunpack.c.l.b16 %v3804
    %v3944 = vunpack.c.h.b16 %v3804
    %v3945 = vunpack.c.l.b16 %v3805
    %v3946 = vunpack.c.l.b16 %v3806
    %v3947 = vunpack.c.h.b16 %v3806
    %v3948 = vunpack.c.l.b16 %v3807
    %v3949 = vunpack.c.l.b16 %v3808
    %v3950 = vunpack.c.h.b16 %v3808
    %v3951 = vunpack.c.l.b16 %v3809
    %v3952 = vunpack.c.l.b16 %v3810
    %v3953 = vunpack.c.h.b16 %v3810
    %v3954 = vunpack.c.l.b16 %v3811
    %v3955 = vunpack.c.l.b16 %v3812
    %v3956 = vunpack.c.h.b16 %v3812
    %v3957 = vunpack.c.l.b16 %v3813
    %v3958 = vunpack.c.l.b16 %v3814
    %v3959 = vunpack.c.h.b16 %v3814
    %v3960 = vunpack.c.l.b16 %v3815
    %v3961 = vunpack.c.l.b16 %v3816
    %v3962 = vunpack.c.h.b16 %v3816
    %v3963 = vunpack.c.l.b16 %v3817
    %v3964 = vunpack.c.l.b16 %v3818
    %v3965 = vunpack.c.h.b16 %v3818
    %v3966 = vunpack.c.l.b16 %v3819
    %v3967 = vunpack.c.l.b16 %v3820
    %v3968 = vunpack.c.h.b16 %v3820
    %v3969 = vunpack.c.l.b16 %v3821
    %v3970 = vunpack.c.l.b16 %v3822
    %v3971 = vunpack.c.h.b16 %v3822
    %v3972 = vunpack.c.l.b16 %v3823
    %v3973 = vunpack.c.l.b16 %v3824
    %v3974 = vunpack.c.h.b16 %v3824
    %v3975 = vunpack.c.l.b16 %v3825
    %v3976 = vunpack.c.l.b16 %v3826
    %v3977 = vunpack.c.h.b16 %v3826
    %v3978 = vunpack.c.l.b16 %v3827
    %v3979 = vunpack.c.l.b16 %v3828
    %v3980 = vunpack.c.h.b16 %v3828
    %v3981 = vunpack.c.l.b16 %v3829
    %v3982 = vunpack.c.l.b16 %v3830
    %v3983 = vunpack.c.h.b16 %v3830
    %v3984 = vunpack.c.l.b16 %v3831
    %v3985 = vunpack.c.l.b16 %v3832
    %v3986 = vunpack.c.h.b16 %v3832
    %v3987 = vunpack.c.l.b16 %v3833
    %v3988 = vunpack.c.l.b16 %v3834
    %v3989 = vunpack.c.h.b16 %v3834
    %v3990 = vunpack.c.l.b16 %v3835
    %v3991 = vunpack.c.l.b16 %v3836
    %v3992 = vunpack.c.h.b16 %v3836
    %v3993 = vunpack.c.l.b16 %v3837
    %v3994 = vunpack.c.l.b16 %v3838
    %v3995 = vunpack.c.h.b16 %v3838
    %v3996 = vunpack.c.l.b16 %v3839
    %v3997 = vunpack.c.l.b16 %v3840
    %v3998 = vunpack.c.h.b16 %v3840
    %v3999 = vunpack.c.l.b16 %v3841
    %v4000 = vunpack.c.l.b16 %v3842
    %v4001 = vunpack.c.h.b16 %v3842
    %v4002 = vunpack.c.l.b16 %v3843
    %v4003 = vunpack.c.l.b16 %v3844
    %v4004 = vunpack.c.h.b16 %v3844
    %v4005 = vunpack.c.l.b16 %v3845
    %v4006 = vunpack.c.l.b16 %v3846
    %v4007 = vunpack.c.h.b16 %v3846
    %v4008 = vunpack.c.l.b16 %v3847
    %v4009 = vunpack.c.l.b16 %v3848
    %v4010 = vunpack.c.h.b16 %v3848
    %v4011 = vunpack.c.l.b16 %v3849
    %v4012 = vunpack.c.l.b16 %v3850
    %v4013 = vunpack.c.h.b16 %v3850
    %v4014 = vunpack.c.l.b16 %v3851
    %v4015 = vunpack.c.l.b16 %v3852
    %v4016 = vunpack.c.h.b16 %v3852
    %v4017 = vunpack.c.l.b16 %v3853
    %v4018 = vunpack.c.l.b16 %v3854
    %v4019 = vunpack.c.h.b16 %v3854
    %v4020 = vunpack.c.l.b16 %v3855
    %v4021 = vunpack.c.l.b16 %v3856
    %v4022 = vunpack.c.h.b16 %v3856
    %v4023 = vunpack.c.l.b16 %v3857
    %v4024 = vunpack.c.l.b16 %v3858
    %v4025 = vunpack.c.h.b16 %v3858
    %v4026 = vunpack.c.l.b16 %v3859
    %v4027 = vunpack.c.l.b16 %v3860
    %v4028 = vunpack.c.h.b16 %v3860
    %v4029 = vunpack.c.l.b16 %v3861
    %v4030 = vpack.c.b16 %v3937, %v3934
    %v4031 = vpack.c.b16 %v3938, %v3935
    %v4032 = vpack.c.b16 %v3939, %v3936
    %v4033 = vpack.c.b16 %v3943, %v3940
    %v4034 = vpack.c.b16 %v3944, %v3941
    %v4035 = vpack.c.b16 %v3945, %v3942
    %v4036 = vpack.c.b16 %v3949, %v3946
    %v4037 = vpack.c.b16 %v3950, %v3947
    %v4038 = vpack.c.b16 %v3951, %v3948
    %v4039 = vpack.c.b16 %v3955, %v3952
    %v4040 = vpack.c.b16 %v3956, %v3953
    %v4041 = vpack.c.b16 %v3957, %v3954
    %v4042 = vpack.c.b16 %v3961, %v3958
    %v4043 = vpack.c.b16 %v3962, %v3959
    %v4044 = vpack.c.b16 %v3963, %v3960
    %v4045 = vpack.c.b16 %v3967, %v3964
    %v4046 = vpack.c.b16 %v3968, %v3965
    %v4047 = vpack.c.b16 %v3969, %v3966
    %v4048 = vpack.c.b16 %v3973, %v3970
    %v4049 = vpack.c.b16 %v3974, %v3971
    %v4050 = vpack.c.b16 %v3975, %v3972
    %v4051 = vpack.c.b16 %v3979, %v3976
    %v4052 = vpack.c.b16 %v3980, %v3977
    %v4053 = vpack.c.b16 %v3981, %v3978
    %v4054 = vpack.c.b16 %v3985, %v3982
    %v4055 = vpack.c.b16 %v3986, %v3983
    %v4056 = vpack.c.b16 %v3987, %v3984
    %v4057 = vpack.c.b16 %v3991, %v3988
    %v4058 = vpack.c.b16 %v3992, %v3989
    %v4059 = vpack.c.b16 %v3993, %v3990
    %v4060 = vpack.c.b16 %v3997, %v3994
    %v4061 = vpack.c.b16 %v3998, %v3995
    %v4062 = vpack.c.b16 %v3999, %v3996
    %v4063 = vpack.c.b16 %v4003, %v4000
    %v4064 = vpack.c.b16 %v4004, %v4001
    %v4065 = vpack.c.b16 %v4005, %v4002
    %v4066 = vpack.c.b16 %v4009, %v4006
    %v4067 = vpack.c.b16 %v4010, %v4007
    %v4068 = vpack.c.b16 %v4011, %v4008
    %v4069 = vpack.c.b16 %v4015, %v4012
    %v4070 = vpack.c.b16 %v4016, %v4013
    %v4071 = vpack.c.b16 %v4017, %v4014
    %v4072 = vpack.c.b16 %v4021, %v4018
    %v4073 = vpack.c.b16 %v4022, %v4019
    %v4074 = vpack.c.b16 %v4023, %v4020
    %v4075 = vpack.c.b16 %v4027, %v4024
    %v4076 = vpack.c.b16 %v4028, %v4025
    %v4077 = vpack.c.b16 %v4029, %v4026
    %4126 = vmatpush.bf16.msra.mxu0 %v4051
    %4127 = vmatpush.bf16.msra.mxu0 %v4048
    %4128 = vmatpush.bf16.msra.mxu0 %v4045
    %4129 = vmatpush.bf16.msra.mxu0 %v4042
    %4130 = vmatpush.bf16.msra.mxu0 %v4039
    %4131 = vmatpush.bf16.msra.mxu0 %v4036
    %4132 = vmatpush.bf16.msra.mxu0 %v4033
    %4133 = vmatpush.bf16.msra.mxu0 %v4030
    %4134 = vmatmul.bf16.gmra.mxu0 %v3796
    %v4135 = vpop.f32.mrf.mxu0
    %v4136 = vadd.f32 %v3864, %v4135
    %v4137 = vpop.f32.mrf.mxu0
    %4138 = vdwg.mxu0
    %4139 = vmatpush.bf16.msra.mxu0 %v4075
    %4140 = vmatpush.bf16.msra.mxu0 %v4072
    %4141 = vmatpush.bf16.msra.mxu0 %v4069
    %4142 = vmatpush.bf16.msra.mxu0 %v4066
    %4143 = vmatpush.bf16.msra.mxu0 %v4063
    %4144 = vmatpush.bf16.msra.mxu0 %v4060
    %4145 = vmatpush.bf16.msra.mxu0 %v4057
    %4146 = vmatpush.bf16.msra.mxu0 %v4054
    %4147 = vmatmul.bf16.gmra.mxu0 %v3797
    %v4148 = vpop.f32.mrf.mxu0
    %v4149 = vadd.f32 %v4136, %v4148
    %v4150 = vpop.f32.mrf.mxu0
    %4151 = vdwg.mxu0
    %4152 = vmatpush.bf16.msra.mxu0 %v4052
    %4153 = vmatpush.bf16.msra.mxu0 %v4049
    %4154 = vmatpush.bf16.msra.mxu0 %v4046
    %4155 = vmatpush.bf16.msra.mxu0 %v4043
    %4156 = vmatpush.bf16.msra.mxu0 %v4040
    %4157 = vmatpush.bf16.msra.mxu0 %v4037
    %4158 = vmatpush.bf16.msra.mxu0 %v4034
    %4159 = vmatpush.bf16.msra.mxu0 %v4031
    %4160 = vmatmul.bf16.gmra.mxu0 %v3796
    %v4161 = vpop.f32.mrf.mxu0
    %v4162 = vadd.f32 %v3865, %v4161
    %v4163 = vpop.f32.mrf.mxu0
    %4164 = vdwg.mxu0
    %4165 = vmatpush.bf16.msra.mxu0 %v4076
    %4166 = vmatpush.bf16.msra.mxu0 %v4073
    %4167 = vmatpush.bf16.msra.mxu0 %v4070
    %4168 = vmatpush.bf16.msra.mxu0 %v4067
    %4169 = vmatpush.bf16.msra.mxu0 %v4064
    %4170 = vmatpush.bf16.msra.mxu0 %v4061
    %4171 = vmatpush.bf16.msra.mxu0 %v4058
    %4172 = vmatpush.bf16.msra.mxu0 %v4055
    %4173 = vmatmul.bf16.gmra.mxu0 %v3797
    %v4174 = vpop.f32.mrf.mxu0
    %v4175 = vadd.f32 %v4162, %v4174
    %v4176 = vpop.f32.mrf.mxu0
    %4177 = vdwg.mxu0
    %4178 = vmatpush.bf16.msra.mxu0 %v4053
    %4179 = vmatpush.bf16.msra.mxu0 %v4050
    %4180 = vmatpush.bf16.msra.mxu0 %v4047
    %4181 = vmatpush.bf16.msra.mxu0 %v4044
    %4182 = vmatpush.bf16.msra.mxu0 %v4041
    %4183 = vmatpush.bf16.msra.mxu0 %v4038
    %4184 = vmatpush.bf16.msra.mxu0 %v4035
    %4185 = vmatpush.bf16.msra.mxu0 %v4032
    %4186 = vmatmul.bf16.gmra.mxu0 %v3796
    %v4187 = vpop.f32.mrf.mxu0
    %v4188 = vadd.f32 %v3866, %v4187
    %v4189 = vpop.f32.mrf.mxu0
    %4190 = vdwg.mxu0
    %4191 = vmatpush.bf16.msra.mxu0 %v4077
    %4192 = vmatpush.bf16.msra.mxu0 %v4074
    %4193 = vmatpush.bf16.msra.mxu0 %v4071
    %4194 = vmatpush.bf16.msra.mxu0 %v4068
    %4195 = vmatpush.bf16.msra.mxu0 %v4065
    %4196 = vmatpush.bf16.msra.mxu0 %v4062
    %4197 = vmatpush.bf16.msra.mxu0 %v4059
    %4198 = vmatpush.bf16.msra.mxu0 %v4056
    %4199 = vmatmul.bf16.gmra.mxu0 %v3797
    %v4200 = vpop.f32.mrf.mxu0
    %v4201 = vadd.f32 %v4188, %v4200
    %v4202 = vpop.f32.mrf.mxu0
    %4203 = vdwg.mxu0
    %v4207 = vrot.slane %v4175, 6
    %v4208 = vrot.slane %v4201, 4
    %vm4209 = vcmask 1041408
    %v4210 = vsel %vm4209, %v4149, %v4207
    %vm4211 = vcmask 1043456
    %v4212 = vsel %vm4211, %v4210, %v4208
    %vm4214 = vcmask 1043458
    %vm4215 = vmor %vm4214, %vm4209
    %vm4216 = vcmask 259076
    %vm4217 = vmor %vm4216, %vm4215
    %4218 = vst.msk [vmem:[#allocation17] sm:$0x3f] %vm4217, %v4212
    // Predicated region
    $region86: #{forward_pallas.3} parent=1 // pred_check
      _
    $region87: #{forward_pallas.3} parent=1 // pred_check_branch
      %4220 = sbr.rel (0) target = $region89
    $region88: #{forward_pallas.3} parent=1 // pred_region
      %4222 = vsyncadd [#allocation4], 0
      %s4224 = sshll.u32 [#allocation17], 4
      %s4225 = int_to_ptr.vmem [resolvable:$true] %s4224
      %s4226 = sshll.u32 %s12, 4
      %s4227 = int_to_ptr.hbm [resolvable:$true] %s4226
      %4229 = dma.vmem_to_hbm [thread:$0]  %s4225, 96, %s4227, [#allocation4]
    $region89: #{forward_pallas.3} parent=1 // pred_fallthru
      _
    // Predicated region
    $region90: #{forward_pallas.3} parent=1 // pred_check
      _
    $region91: #{forward_pallas.3} parent=1 // pred_check_branch
      %4231 = sbr.rel (0) target = $region93
    $region92: #{forward_pallas.3} parent=1 // pred_region
      %4233 = dma.done [#allocation4], 96
    $region93: #{forward_pallas.3} parent=1 // pred_fallthru
      _
    %4234 = vsyncpa [#allocation3], 1
    %4235 = vsyncpa [#allocation6], 1
    %4236 = vsyncpa [#allocation9], 1
    %4237 = vsyncpa [#allocation12], 1
    %4238 = vsyncpa [#allocation15], 1
    %4239 = vsyncpa [#allocation4], 1

</llo_original>
